<compile_context>
chip_gen: v5e
topology: v5e:2x2
jax: 0.10.0
libtpu: 0.0.40
codegen_flags: <defaults>
</compile_context>

<pallas_src>
import jax
import jax.numpy as jnp
from jax.experimental import pallas as pl
from jax.experimental.pallas import tpu as pltpu

# ---- module hyper-parameters (from clip_cvae.py) ----
CLIP_EMBED_DIM = 512
N_HID = 800
N_IN = 28 * 28          # 784
Z_DIM = 40

# ---- lane-padded (multiple-of-128) dims used inside the kernel ----
N_IN_P = 896            # 784 -> 896
N_HID_P = 896           # 800 -> 896
Z_DIM_P = 128           # 40  -> 128


def _round_up(n, m):
    return ((n + m - 1) // m) * m


def _pad2(a, shape):
    """Zero-pad a 2-D array up to `shape`."""
    return jnp.pad(a, [(0, s - d) for d, s in zip(a.shape, shape)])


def _cvae_kernel(x_ref, c_ref, eps_ref,
                 w1x_ref, w1c_ref, b1_ref,
                 w2_ref, b2_ref,
                 w3z_ref, w3c_ref, b3_ref,
                 w4_ref, b4_ref,
                 recon_ref, mu_ref, logvar_ref):
    f32 = jnp.float32
    bf16 = jnp.bfloat16

    x = x_ref[...]            # (TB, N_IN_P)  bf16
    c = c_ref[...]            # (TB, CLIP)    bf16

    # ---- encode: h1 = relu([x, c] @ W1 + b1) ----
    h1 = (jnp.dot(x, w1x_ref[...], preferred_element_type=f32)
          + jnp.dot(c, w1c_ref[...], preferred_element_type=f32)
          + b1_ref[...])
    h1 = jnp.maximum(h1, 0.0).astype(bf16)

    # ---- fused fc21/fc22: one (N_HID_P, 2*Z_DIM_P) matmul, lane-aligned split
    h2 = jnp.dot(h1, w2_ref[...], preferred_element_type=f32) + b2_ref[...]
    mu = h2[:, :Z_DIM_P]
    logvar = h2[:, Z_DIM_P:]

    # ---- reparameterize: z = mu + eps * exp(0.5 * logvar) ----
    std = jnp.exp(0.5 * logvar)
    z = mu + eps_ref[...] * std

    # ---- decode: recon = sigmoid(relu([z, c] @ W3 + b3) @ W4 + b4) ----
    h3 = (jnp.dot(z.astype(bf16), w3z_ref[...], preferred_element_type=f32)
          + jnp.dot(c, w3c_ref[...], preferred_element_type=f32)
          + b3_ref[...])
    h3 = jnp.maximum(h3, 0.0).astype(bf16)

    logits = jnp.dot(h3, w4_ref[...], preferred_element_type=f32) + b4_ref[...]

    recon_ref[...] = jax.nn.sigmoid(logits)
    mu_ref[...] = mu
    logvar_ref[...] = logvar


def _pack_params(p):
    """Pad params to lane-aligned shapes, cast weights to bf16, fuse fc21/fc22."""
    f32, bf16 = jnp.float32, jnp.bfloat16
    w1x = _pad2(p["w1x"], (N_IN_P, N_HID_P)).astype(bf16)
    w1c = _pad2(p["w1c"], (CLIP_EMBED_DIM, N_HID_P)).astype(bf16)
    b1 = _pad2(p["b1"], (1, N_HID_P)).astype(f32)

    # fused fc21/fc22: columns [0, Z_DIM) -> mu, [Z_DIM_P, Z_DIM_P+Z_DIM) -> logvar
    w2 = jnp.zeros((N_HID_P, 2 * Z_DIM_P), f32)
    w2 = w2.at[:N_HID, :Z_DIM].set(p["w21"])
    w2 = w2.at[:N_HID, Z_DIM_P:Z_DIM_P + Z_DIM].set(p["w22"])
    b2 = jnp.zeros((1, 2 * Z_DIM_P), f32)
    b2 = b2.at[:, :Z_DIM].set(p["b21"])
    b2 = b2.at[:, Z_DIM_P:Z_DIM_P + Z_DIM].set(p["b22"])

    w3z = _pad2(p["w3z"], (Z_DIM_P, N_HID_P)).astype(bf16)
    w3c = _pad2(p["w3c"], (CLIP_EMBED_DIM, N_HID_P)).astype(bf16)
    b3 = _pad2(p["b3"], (1, N_HID_P)).astype(f32)
    w4 = _pad2(p["w4"], (N_HID_P, N_IN_P)).astype(bf16)
    b4 = _pad2(p["b4"], (1, N_IN_P)).astype(f32)

    return {"w1x": w1x, "w1c": w1c, "b1": b1,
            "w2": w2.astype(bf16), "b2": b2,
            "w3z": w3z, "w3c": w3c, "b3": b3,
            "w4": w4, "b4": b4}


def cvae_forward(x, c, eps, params):
    """Full CVAE forward in one batch-gridded Pallas kernel."""
    B = x.shape[0]
    # batch tile: multiple of 16 (bf16 sublane pack), capped at 128
    TB = _round_up(B, 16) if B <= 128 else 128
    B_pad = _round_up(B, TB)
    grid = (pl.cdiv(B_pad, TB),)

    # pad + cast per-batch inputs
    xp = _pad2(x, (B_pad, N_IN_P)).astype(jnp.bfloat16)
    cp = _pad2(c, (B_pad, CLIP_EMBED_DIM)).astype(jnp.bfloat16)
    ep = _pad2(eps, (B_pad, Z_DIM_P)).astype(jnp.float32)

    pk = _pack_params(params)

    def batch_spec(cols):
        return pl.BlockSpec((TB, cols), lambda i: (i, 0))

    def const_spec(arr):
        # constant block index -> DMA'd once, resident in VMEM across grid steps
        return pl.BlockSpec(arr.shape, lambda i: (0, 0))

    inputs = (
        xp, cp, ep,
        pk["w1x"], pk["w1c"], pk["b1"],
        pk["w2"], pk["b2"],
        pk["w3z"], pk["w3c"], pk["b3"],
        pk["w4"], pk["b4"],
    )
    in_specs = [
        batch_spec(N_IN_P), batch_spec(CLIP_EMBED_DIM), batch_spec(Z_DIM_P),
        const_spec(pk["w1x"]), const_spec(pk["w1c"]), const_spec(pk["b1"]),
        const_spec(pk["w2"]), const_spec(pk["b2"]),
        const_spec(pk["w3z"]), const_spec(pk["w3c"]), const_spec(pk["b3"]),
        const_spec(pk["w4"]), const_spec(pk["b4"]),
    ]
    out_specs = (batch_spec(N_IN_P), batch_spec(Z_DIM_P), batch_spec(Z_DIM_P))
    out_shapes = (
        jax.ShapeDtypeStruct((B_pad, N_IN_P), jnp.float32),   # recon (padded)
        jax.ShapeDtypeStruct((B_pad, Z_DIM_P), jnp.float32),  # mu    (padded)
        jax.ShapeDtypeStruct((B_pad, Z_DIM_P), jnp.float32),  # logvar(padded)
    )

    # advisory cost estimate for XLA scheduling
    flops = 2 * B_pad * (N_IN_P * N_HID_P + CLIP_EMBED_DIM * N_HID_P
                         + N_HID_P * 2 * Z_DIM_P + Z_DIM_P * N_HID_P
                         + CLIP_EMBED_DIM * N_HID_P + N_HID_P * N_IN_P)
    weight_bytes = sum(int(v.size) * v.dtype.itemsize for v in pk.values())
    act_bytes = sum(int(a.size) * a.dtype.itemsize for a in (xp, cp, ep))
    out_bytes = sum(int(s.size) * 4 for s in out_shapes)
    cost = pl.CostEstimate(
        flops=int(flops),
        transcendentals=int(B_pad * (2 * Z_DIM_P + N_IN_P)),
        bytes_accessed=int(weight_bytes + act_bytes + out_bytes),
    )

    recon_p, mu_p, logvar_p = pl.pallas_call(
        _cvae_kernel,
        grid=grid,
        in_specs=in_specs,
        out_specs=out_specs,
        out_shape=out_shapes,
        compiler_params=pltpu.CompilerParams(
            dimension_semantics=("parallel",),
            vmem_limit_bytes=32 << 20,
        ),
        cost_estimate=cost,
    )(*inputs)

    # slice away the batch/lane padding (padded recon region is sigmoid(0)=0.5,
    # padded mu/logvar regions are 0 — all discarded here)
    return (recon_p[:B, :N_IN], mu_p[:B, :Z_DIM], logvar_p[:B, :Z_DIM])


def init_params(key):
    """Deterministic synthetic parameters with the nn.Linear shapes,
    pre-transposed to (in, out) and with the concat dims pre-split."""
    ks = jax.random.split(key, 10)

    def lin(k, fan_in, fan_out):
        return jax.random.normal(k, (fan_in, fan_out), jnp.float32) * (1.0 / jnp.sqrt(fan_in))

    w1 = lin(ks[0], N_IN + CLIP_EMBED_DIM, N_HID)
    b1 = jax.random.normal(ks[1], (1, N_HID), jnp.float32) * 0.01
    w21 = lin(ks[2], N_HID, Z_DIM)
    b21 = jax.random.normal(ks[3], (1, Z_DIM), jnp.float32) * 0.01
    w22 = lin(ks[4], N_HID, Z_DIM)
    b22 = jax.random.normal(ks[5], (1, Z_DIM), jnp.float32) * 0.01
    w3 = lin(ks[6], Z_DIM + CLIP_EMBED_DIM, N_HID)
    b3 = jax.random.normal(ks[7], (1, N_HID), jnp.float32) * 0.01
    w4 = lin(ks[8], N_HID, N_IN)
    b4 = jax.random.normal(ks[9], (1, N_IN), jnp.float32) * 0.01

    return {
        "w1x": w1[:N_IN], "w1c": w1[N_IN:], "b1": b1,
        "w21": w21, "b21": b21,
        "w22": w22, "b22": b22,
        "w3z": w3[:Z_DIM], "w3c": w3[Z_DIM:], "b3": b3,
        "w4": w4, "b4": b4,
    }


def cvae_forward_ref(x, c, eps, p):
    """Pure-JAX reference reproducing the PyTorch forward semantics, with the
    same bf16 weight/activation quantization the kernel uses (f32 accumulate)."""
    bf = lambda a: a.astype(jnp.bfloat16).astype(jnp.float32)
    h1 = jax.nn.relu(bf(x) @ bf(p["w1x"]) + bf(c) @ bf(p["w1c"]) + p["b1"])
    h1 = bf(h1)
    mu = h1 @ bf(p["w21"]) + p["b21"]
    logvar = h1 @ bf(p["w22"]) + p["b22"]
    z = mu + eps * jnp.exp(0.5 * logvar)
    h3 = jax.nn.relu(bf(z) @ bf(p["w3z"]) + bf(c) @ bf(p["w3c"]) + p["b3"])
    h3 = bf(h3)
    recon = jax.nn.sigmoid(h3 @ bf(p["w4"]) + p["b4"])
    return recon, mu, logvar


if __name__ == "__main__":
    key = jax.random.PRNGKey(0)
    k_param, k_x, k_c, k_eps = jax.random.split(key, 4)

    B = 2
    params = init_params(k_param)
    x = jax.random.uniform(k_x, (B, N_IN), jnp.float32)              # flattened 28x28 image
    c = jax.random.normal(k_c, (B, CLIP_EMBED_DIM), jnp.float32)     # CLIP conditioning
    eps = jax.random.normal(k_eps, (B, Z_DIM), jnp.float32)          # reparameterization noise

    recon, mu, logvar = jax.block_until_ready(cvae_forward(x, c, eps, params))

    # sanity check against a pure-JAX reference (same bf16 quantization)
    recon_r, mu_r, logvar_r = cvae_forward_ref(x, c, eps, params)
    assert recon.shape == (B, N_IN) and mu.shape == (B, Z_DIM) and logvar.shape == (B, Z_DIM)
    assert jnp.allclose(recon, recon_r, atol=2e-3, rtol=2e-3)
    assert jnp.allclose(mu, mu_r, atol=2e-3, rtol=2e-3)
    assert jnp.allclose(logvar, logvar_r, atol=2e-3, rtol=2e-3)

    print("KERNEL_OK")
</pallas_src>

<mosaic_0001>
module attributes {stable_mosaic.version = 11 : i64} {
  func.func @_cvae_kernel(%arg0: i32, %arg1: memref<16x896xbf16, #tpu.memory_space<vmem>>, %arg2: memref<16x512xbf16, #tpu.memory_space<vmem>>, %arg3: memref<16x128xf32, #tpu.memory_space<vmem>>, %arg4: memref<896x896xbf16, #tpu.memory_space<vmem>>, %arg5: memref<512x896xbf16, #tpu.memory_space<vmem>>, %arg6: memref<1x896xf32, #tpu.memory_space<vmem>>, %arg7: memref<896x256xbf16, #tpu.memory_space<vmem>>, %arg8: memref<1x256xf32, #tpu.memory_space<vmem>>, %arg9: memref<128x896xbf16, #tpu.memory_space<vmem>>, %arg10: memref<512x896xbf16, #tpu.memory_space<vmem>>, %arg11: memref<1x896xf32, #tpu.memory_space<vmem>>, %arg12: memref<896x896xbf16, #tpu.memory_space<vmem>>, %arg13: memref<1x896xf32, #tpu.memory_space<vmem>>, %arg14: memref<16x896xf32, #tpu.memory_space<vmem>>, %arg15: memref<16x128xf32, #tpu.memory_space<vmem>>, %arg16: memref<16x128xf32, #tpu.memory_space<vmem>>) attributes {dimension_semantics = [#tpu.dimension_semantics<parallel>], iteration_bounds = array<i64: 1>, scalar_prefetch = 0 : i64, scratch_operands = 0 : i64, tpu.core_type = #tpu.core_type<tc>, window_params = [{transform_indices = @transform_0, window_bounds = array<i64: 16, 896>}, {transform_indices = @transform_1, window_bounds = array<i64: 16, 512>}, {transform_indices = @transform_2, window_bounds = array<i64: 16, 128>}, {pipeline_mode = #tpu.pipeline_mode<synchronous>, transform_indices = @transform_3, window_bounds = array<i64: 896, 896>}, {pipeline_mode = #tpu.pipeline_mode<synchronous>, transform_indices = @transform_4, window_bounds = array<i64: 512, 896>}, {pipeline_mode = #tpu.pipeline_mode<synchronous>, transform_indices = @transform_5, window_bounds = array<i64: 1, 896>}, {pipeline_mode = #tpu.pipeline_mode<synchronous>, transform_indices = @transform_6, window_bounds = array<i64: 896, 256>}, {pipeline_mode = #tpu.pipeline_mode<synchronous>, transform_indices = @transform_7, window_bounds = array<i64: 1, 256>}, {pipeline_mode = #tpu.pipeline_mode<synchronous>, transform_indices = @transform_8, window_bounds = array<i64: 128, 896>}, {pipeline_mode = #tpu.pipeline_mode<synchronous>, transform_indices = @transform_9, window_bounds = array<i64: 512, 896>}, {pipeline_mode = #tpu.pipeline_mode<synchronous>, transform_indices = @transform_10, window_bounds = array<i64: 1, 896>}, {pipeline_mode = #tpu.pipeline_mode<synchronous>, transform_indices = @transform_11, window_bounds = array<i64: 896, 896>}, {pipeline_mode = #tpu.pipeline_mode<synchronous>, transform_indices = @transform_12, window_bounds = array<i64: 1, 896>}, {transform_indices = @transform_13, window_bounds = array<i64: 16, 896>}, {transform_indices = @transform_14, window_bounds = array<i64: 16, 128>}, {transform_indices = @transform_15, window_bounds = array<i64: 16, 128>}]} {
    %c0 = arith.constant 0 : index
    %c0_0 = arith.constant 0 : index
    %0 = vector.load %arg1[%c0, %c0_0] : memref<16x896xbf16, #tpu.memory_space<vmem>>, vector<16x896xbf16>
    %c0_1 = arith.constant 0 : index
    %c0_2 = arith.constant 0 : index
    %1 = vector.load %arg2[%c0_1, %c0_2] : memref<16x512xbf16, #tpu.memory_space<vmem>>, vector<16x512xbf16>
    %c0_3 = arith.constant 0 : index
    %c0_4 = arith.constant 0 : index
    %2 = vector.load %arg4[%c0_3, %c0_4] : memref<896x896xbf16, #tpu.memory_space<vmem>>, vector<896x896xbf16>
    %cst = arith.constant dense<0.000000e+00> : vector<16x896xf32>
    %3 = tpu.matmul %0, %2, %cst {dimension_numbers = #tpu.dot_dimension_numbers<[1], [0], [0], [1], [0, 0, 1, 1], [], []>} : vector<16x896xbf16>, vector<896x896xbf16>, vector<16x896xf32> -> vector<16x896xf32>
    %c0_5 = arith.constant 0 : index
    %c0_6 = arith.constant 0 : index
    %4 = vector.load %arg5[%c0_5, %c0_6] : memref<512x896xbf16, #tpu.memory_space<vmem>>, vector<512x896xbf16>
    %cst_7 = arith.constant dense<0.000000e+00> : vector<16x896xf32>
    %5 = tpu.matmul %1, %4, %cst_7 {dimension_numbers = #tpu.dot_dimension_numbers<[1], [0], [0], [1], [0, 0, 1, 1], [], []>} : vector<16x512xbf16>, vector<512x896xbf16>, vector<16x896xf32> -> vector<16x896xf32>
    %6 = arith.addf %3, %5 : vector<16x896xf32>
    %c0_8 = arith.constant 0 : index
    %c0_9 = arith.constant 0 : index
    %7 = vector.load %arg6[%c0_8, %c0_9] : memref<1x896xf32, #tpu.memory_space<vmem>>, vector<1x896xf32>
    %8 = vector.broadcast %7 : vector<1x896xf32> to vector<16x896xf32>
    %9 = arith.addf %6, %8 : vector<16x896xf32>
    %cst_10 = arith.constant 0.000000e+00 : f32
    %10 = vector.broadcast %cst_10 : f32 to vector<16x896xf32>
    %11 = arith.maximumf %9, %10 : vector<16x896xf32>
    %12 = arith.truncf %11 : vector<16x896xf32> to vector<16x896xbf16>
    %c0_11 = arith.constant 0 : index
    %c0_12 = arith.constant 0 : index
    %13 = vector.load %arg7[%c0_11, %c0_12] : memref<896x256xbf16, #tpu.memory_space<vmem>>, vector<896x256xbf16>
    %cst_13 = arith.constant dense<0.000000e+00> : vector<16x256xf32>
    %14 = tpu.matmul %12, %13, %cst_13 {dimension_numbers = #tpu.dot_dimension_numbers<[1], [0], [0], [1], [0, 0, 1, 1], [], []>} : vector<16x896xbf16>, vector<896x256xbf16>, vector<16x256xf32> -> vector<16x256xf32>
    %c0_14 = arith.constant 0 : index
    %c0_15 = arith.constant 0 : index
    %15 = vector.load %arg8[%c0_14, %c0_15] : memref<1x256xf32, #tpu.memory_space<vmem>>, vector<1x256xf32>
    %16 = vector.broadcast %15 : vector<1x256xf32> to vector<16x256xf32>
    %17 = arith.addf %14, %16 : vector<16x256xf32>
    %18 = vector.extract_strided_slice %17 {offsets = [0, 0], sizes = [16, 128], strides = [1, 1]} : vector<16x256xf32> to vector<16x128xf32>
    %19 = vector.extract_strided_slice %17 {offsets = [0, 128], sizes = [16, 128], strides = [1, 1]} : vector<16x256xf32> to vector<16x128xf32>
    %cst_16 = arith.constant 5.000000e-01 : f32
    %20 = vector.broadcast %cst_16 : f32 to vector<16x128xf32>
    %21 = arith.mulf %20, %19 : vector<16x128xf32>
    %22 = math.exp %21 : vector<16x128xf32>
    %c0_17 = arith.constant 0 : index
    %c0_18 = arith.constant 0 : index
    %23 = vector.load %arg3[%c0_17, %c0_18] : memref<16x128xf32, #tpu.memory_space<vmem>>, vector<16x128xf32>
    %24 = arith.mulf %23, %22 : vector<16x128xf32>
    %25 = arith.addf %18, %24 : vector<16x128xf32>
    %26 = arith.truncf %25 : vector<16x128xf32> to vector<16x128xbf16>
    %c0_19 = arith.constant 0 : index
    %c0_20 = arith.constant 0 : index
    %27 = vector.load %arg9[%c0_19, %c0_20] : memref<128x896xbf16, #tpu.memory_space<vmem>>, vector<128x896xbf16>
    %cst_21 = arith.constant dense<0.000000e+00> : vector<16x896xf32>
    %28 = tpu.matmul %26, %27, %cst_21 {dimension_numbers = #tpu.dot_dimension_numbers<[1], [0], [0], [1], [0, 0, 1, 1], [], []>} : vector<16x128xbf16>, vector<128x896xbf16>, vector<16x896xf32> -> vector<16x896xf32>
    %c0_22 = arith.constant 0 : index
    %c0_23 = arith.constant 0 : index
    %29 = vector.load %arg10[%c0_22, %c0_23] : memref<512x896xbf16, #tpu.memory_space<vmem>>, vector<512x896xbf16>
    %cst_24 = arith.constant dense<0.000000e+00> : vector<16x896xf32>
    %30 = tpu.matmul %1, %29, %cst_24 {dimension_numbers = #tpu.dot_dimension_numbers<[1], [0], [0], [1], [0, 0, 1, 1], [], []>} : vector<16x512xbf16>, vector<512x896xbf16>, vector<16x896xf32> -> vector<16x896xf32>
    %31 = arith.addf %28, %30 : vector<16x896xf32>
    %c0_25 = arith.constant 0 : index
    %c0_26 = arith.constant 0 : index
    %32 = vector.load %arg11[%c0_25, %c0_26] : memref<1x896xf32, #tpu.memory_space<vmem>>, vector<1x896xf32>
    %33 = vector.broadcast %32 : vector<1x896xf32> to vector<16x896xf32>
    %34 = arith.addf %31, %33 : vector<16x896xf32>
    %cst_27 = arith.constant 0.000000e+00 : f32
    %35 = vector.broadcast %cst_27 : f32 to vector<16x896xf32>
    %36 = arith.maximumf %34, %35 : vector<16x896xf32>
    %37 = arith.truncf %36 : vector<16x896xf32> to vector<16x896xbf16>
    %c0_28 = arith.constant 0 : index
    %c0_29 = arith.constant 0 : index
    %38 = vector.load %arg12[%c0_28, %c0_29] : memref<896x896xbf16, #tpu.memory_space<vmem>>, vector<896x896xbf16>
    %cst_30 = arith.constant dense<0.000000e+00> : vector<16x896xf32>
    %39 = tpu.matmul %37, %38, %cst_30 {dimension_numbers = #tpu.dot_dimension_numbers<[1], [0], [0], [1], [0, 0, 1, 1], [], []>} : vector<16x896xbf16>, vector<896x896xbf16>, vector<16x896xf32> -> vector<16x896xf32>
    %c0_31 = arith.constant 0 : index
    %c0_32 = arith.constant 0 : index
    %40 = vector.load %arg13[%c0_31, %c0_32] : memref<1x896xf32, #tpu.memory_space<vmem>>, vector<1x896xf32>
    %41 = vector.broadcast %40 : vector<1x896xf32> to vector<16x896xf32>
    %42 = arith.addf %39, %41 : vector<16x896xf32>
    %43 = arith.negf %42 : vector<16x896xf32>
    %44 = math.exp %43 : vector<16x896xf32>
    %cst_33 = arith.constant 1.000000e+00 : f32
    %45 = vector.broadcast %cst_33 : f32 to vector<16x896xf32>
    %46 = arith.addf %45, %44 : vector<16x896xf32>
    %47 = arith.divf %45, %46 : vector<16x896xf32>
    %c0_34 = arith.constant 0 : index
    %c0_35 = arith.constant 0 : index
    %48 = vector.load %arg14[%c0_34, %c0_35] : memref<16x896xf32, #tpu.memory_space<vmem>>, vector<16x896xf32>
    tpu.vector_store %arg14[%c0_34, %c0_35], %47 {strides = array<i32>} : memref<16x896xf32, #tpu.memory_space<vmem>>, vector<16x896xf32>,
    %c0_36 = arith.constant 0 : index
    %c0_37 = arith.constant 0 : index
    %49 = vector.load %arg15[%c0_36, %c0_37] : memref<16x128xf32, #tpu.memory_space<vmem>>, vector<16x128xf32>
    tpu.vector_store %arg15[%c0_36, %c0_37], %18 {strides = array<i32>} : memref<16x128xf32, #tpu.memory_space<vmem>>, vector<16x128xf32>,
    %c0_38 = arith.constant 0 : index
    %c0_39 = arith.constant 0 : index
    %50 = vector.load %arg16[%c0_38, %c0_39] : memref<16x128xf32, #tpu.memory_space<vmem>>, vector<16x128xf32>
    tpu.vector_store %arg16[%c0_38, %c0_39], %19 {strides = array<i32>} : memref<16x128xf32, #tpu.memory_space<vmem>>, vector<16x128xf32>,
    return
  }
  func.func @transform_0(%arg0: i32) -> (i32, i32) {
    %c0_i32 = arith.constant 0 : i32
    %c0_i32_0 = arith.constant 0 : i32
    return %arg0, %c0_i32 : i32, i32
  }
  func.func @transform_1(%arg0: i32) -> (i32, i32) {
    %c0_i32 = arith.constant 0 : i32
    %c0_i32_0 = arith.constant 0 : i32
    return %arg0, %c0_i32 : i32, i32
  }
  func.func @transform_2(%arg0: i32) -> (i32, i32) {
    %c0_i32 = arith.constant 0 : i32
    %c0_i32_0 = arith.constant 0 : i32
    return %arg0, %c0_i32 : i32, i32
  }
  func.func @transform_3(%arg0: i32) -> (i32, i32) {
    %c0_i32 = arith.constant 0 : i32
    %c0_i32_0 = arith.constant 0 : i32
    %c0_i32_1 = arith.constant 0 : i32
    return %c0_i32, %c0_i32_0 : i32, i32
  }
  func.func @transform_4(%arg0: i32) -> (i32, i32) {
    %c0_i32 = arith.constant 0 : i32
    %c0_i32_0 = arith.constant 0 : i32
    %c0_i32_1 = arith.constant 0 : i32
    return %c0_i32, %c0_i32_0 : i32, i32
  }
  func.func @transform_5(%arg0: i32) -> (i32, i32) {
    %c0_i32 = arith.constant 0 : i32
    %c0_i32_0 = arith.constant 0 : i32
    %c0_i32_1 = arith.constant 0 : i32
    return %c0_i32, %c0_i32_0 : i32, i32
  }
  func.func @transform_6(%arg0: i32) -> (i32, i32) {
    %c0_i32 = arith.constant 0 : i32
    %c0_i32_0 = arith.constant 0 : i32
    %c0_i32_1 = arith.constant 0 : i32
    return %c0_i32, %c0_i32_0 : i32, i32
  }
  func.func @transform_7(%arg0: i32) -> (i32, i32) {
    %c0_i32 = arith.constant 0 : i32
    %c0_i32_0 = arith.constant 0 : i32
    %c0_i32_1 = arith.constant 0 : i32
    return %c0_i32, %c0_i32_0 : i32, i32
  }
  func.func @transform_8(%arg0: i32) -> (i32, i32) {
    %c0_i32 = arith.constant 0 : i32
    %c0_i32_0 = arith.constant 0 : i32
    %c0_i32_1 = arith.constant 0 : i32
    return %c0_i32, %c0_i32_0 : i32, i32
  }
  func.func @transform_9(%arg0: i32) -> (i32, i32) {
    %c0_i32 = arith.constant 0 : i32
    %c0_i32_0 = arith.constant 0 : i32
    %c0_i32_1 = arith.constant 0 : i32
    return %c0_i32, %c0_i32_0 : i32, i32
  }
  func.func @transform_10(%arg0: i32) -> (i32, i32) {
    %c0_i32 = arith.constant 0 : i32
    %c0_i32_0 = arith.constant 0 : i32
    %c0_i32_1 = arith.constant 0 : i32
    return %c0_i32, %c0_i32_0 : i32, i32
  }
  func.func @transform_11(%arg0: i32) -> (i32, i32) {
    %c0_i32 = arith.constant 0 : i32
    %c0_i32_0 = arith.constant 0 : i32
    %c0_i32_1 = arith.constant 0 : i32
    return %c0_i32, %c0_i32_0 : i32, i32
  }
  func.func @transform_12(%arg0: i32) -> (i32, i32) {
    %c0_i32 = arith.constant 0 : i32
    %c0_i32_0 = arith.constant 0 : i32
    %c0_i32_1 = arith.constant 0 : i32
    return %c0_i32, %c0_i32_0 : i32, i32
  }
  func.func @transform_13(%arg0: i32) -> (i32, i32) {
    %c0_i32 = arith.constant 0 : i32
    %c0_i32_0 = arith.constant 0 : i32
    return %arg0, %c0_i32 : i32, i32
  }
  func.func @transform_14(%arg0: i32) -> (i32, i32) {
    %c0_i32 = arith.constant 0 : i32
    %c0_i32_0 = arith.constant 0 : i32
    return %arg0, %c0_i32 : i32, i32
  }
  func.func @transform_15(%arg0: i32) -> (i32, i32) {
    %c0_i32 = arith.constant 0 : i32
    %c0_i32_0 = arith.constant 0 : i32
    return %arg0, %c0_i32 : i32, i32
  }
}

</mosaic_0001>

<llo_original>
// kernel: tpu_custom_call.1
$region0: #{tpu_custom_call.1}
  #allocation0 [shape = 'u32[]', space=smem, size = 0x4, offset = 0x4, fixed_abs, tag = 'smem constant byte address 0x4 - core index']
  #allocation1 [shape = 'u32[72,128]{1,0:T(1,128)}', space=vmem, size = 0x9000, scoped, tag = 'internal scratch']
  %s0 = inlined_call_operand.hbm [shape: bf16[16,896], index: 0, kind: input, shape index: {}]
  %s1 = inlined_call_operand.hbm [shape: bf16[16,512], index: 1, kind: input, shape index: {}]
  %s2 = inlined_call_operand.hbm [shape: f32[16,128], index: 2, kind: input, shape index: {}]
  %s3 = inlined_call_operand.hbm [shape: bf16[896,896], index: 3, kind: input, shape index: {}]
  %s4 = inlined_call_operand.hbm [shape: bf16[512,896], index: 4, kind: input, shape index: {}]
  %s5 = inlined_call_operand.hbm [shape: f32[1,896], index: 5, kind: input, shape index: {}]
  %s6 = inlined_call_operand.hbm [shape: bf16[896,256], index: 6, kind: input, shape index: {}]
  %s7 = inlined_call_operand.hbm [shape: f32[1,256], index: 7, kind: input, shape index: {}]
  %s8 = inlined_call_operand.hbm [shape: bf16[128,896], index: 8, kind: input, shape index: {}]
  %s9 = inlined_call_operand.hbm [shape: bf16[512,896], index: 9, kind: input, shape index: {}]
  %s10 = inlined_call_operand.hbm [shape: f32[1,896], index: 10, kind: input, shape index: {}]
  %s11 = inlined_call_operand.hbm [shape: bf16[896,896], index: 11, kind: input, shape index: {}]
  %s12 = inlined_call_operand.hbm [shape: f32[1,896], index: 12, kind: input, shape index: {}]
  %s13 = inlined_call_operand.hbm [shape: f32[16,896], index: 13, kind: output, shape index: {0}]
  %s14 = inlined_call_operand.hbm [shape: f32[16,128], index: 14, kind: output, shape index: {1}]
  %s15 = inlined_call_operand.hbm [shape: f32[16,128], index: 15, kind: output, shape index: {2}]
  %16 = xla_tuple %s13, %s14, %s15
  %s17 = sld [smem:[#allocation0]]
  $region130: #{tpu_custom_call.1} parent=0
    _
  %s19 = ssub.s32 1, %s17
  %s20 = scalar_select 0, %s19, %s17
  $region1: #{tpu_custom_call.1} parent=0
    #allocation2 [shape = 'u8[28672]{0}', space=vmem, size = 0x7000, scoped, tag = 'input window, operand 0, single buffered']
    #allocation3 [shape = 's32[1]{0}', space=sflag, size = 0x4, scoped, tag = 'scoped memory for tpu_custom_call.1']
    #allocation4 [shape = 's32[1]{0}', space=sflag, size = 0x4, scoped, tag = 'scoped memory for tpu_custom_call.1']
    #allocation5 [shape = 'u8[16384]{0}', space=vmem, size = 0x4000, scoped, tag = 'input window, operand 1, single buffered']
    #allocation6 [shape = 's32[1]{0}', space=sflag, size = 0x4, scoped, tag = 'scoped memory for tpu_custom_call.1']
    #allocation7 [shape = 'u8[8192]{0}', space=vmem, size = 0x2000, scoped, tag = 'input window, operand 2, single buffered']
    #allocation8 [shape = 'u8[1605632]{0}', space=vmem, size = 0x188000, scoped, tag = 'input window, operand 3, single buffered']
    #allocation9 [shape = 's32[1]{0}', space=sflag, size = 0x4, scoped, tag = 'scoped memory for tpu_custom_call.1']
    #allocation10 [shape = 'u8[917504]{0}', space=vmem, size = 0xe0000, scoped, tag = 'input window, operand 4, single buffered']
    #allocation11 [shape = 'u8[3584]{0}', space=vmem, size = 0x1000, scoped, tag = 'input window, operand 5, single buffered']
    #allocation12 [shape = 's32[1]{0}', space=sflag, size = 0x4, scoped, tag = 'scoped memory for tpu_custom_call.1']
    #allocation13 [shape = 'u8[458752]{0}', space=vmem, size = 0x70000, scoped, tag = 'input window, operand 6, single buffered']
    #allocation14 [shape = 'u8[1024]{0}', space=vmem, size = 0x400, scoped, tag = 'input window, operand 7, single buffered']
    #allocation15 [shape = 's32[1]{0}', space=sflag, size = 0x4, scoped, tag = 'scoped memory for tpu_custom_call.1']
    #allocation16 [shape = 'u8[229376]{0}', space=vmem, size = 0x38000, scoped, tag = 'input window, operand 8, single buffered']
    #allocation17 [shape = 'u8[917504]{0}', space=vmem, size = 0xe0000, scoped, tag = 'input window, operand 9, single buffered']
    #allocation18 [shape = 's32[1]{0}', space=sflag, size = 0x4, scoped, tag = 'scoped memory for tpu_custom_call.1']
    #allocation19 [shape = 'u8[3584]{0}', space=vmem, size = 0x1000, scoped, tag = 'input window, operand 10, single buffered']
    #allocation20 [shape = 'u8[1605632]{0}', space=vmem, size = 0x188000, scoped, tag = 'input window, operand 11, single buffered']
    #allocation21 [shape = 's32[1]{0}', space=sflag, size = 0x4, scoped, tag = 'scoped memory for tpu_custom_call.1']
    #allocation22 [shape = 'u8[3584]{0}', space=vmem, size = 0x1000, scoped, tag = 'input window, operand 12, single buffered']
    #allocation23 [shape = 'u8[57344]{0}', space=vmem, size = 0xe000, scoped, tag = 'output window, operand 0, single buffered']
    #allocation24 [shape = 'u8[8192]{0}', space=vmem, size = 0x2000, scoped, tag = 'output window, operand 1, single buffered']
    #allocation25 [shape = 's32[1]{0}', space=sflag, size = 0x4, scoped, tag = 'scoped memory for tpu_custom_call.1']
    #allocation26 [shape = 'u8[8192]{0}', space=vmem, size = 0x2000, scoped, tag = 'output window, operand 2, single buffered']
    %21 = vsyncpa [#allocation3], 0
    %22 = vsyncpa [#allocation6], 0
    %23 = vsyncpa [#allocation9], 0
    %24 = vsyncpa [#allocation12], 0
    %25 = vsyncpa [#allocation15], 0
    %26 = vsyncpa [#allocation18], 0
    %27 = vsyncpa [#allocation21], 0
    %28 = vsyncpa [#allocation4], 0
    %29 = vsyncpa [#allocation25], 0
    // Predicated region
    $region2: #{tpu_custom_call.1} parent=1 // pred_check
      _
    $region3: #{tpu_custom_call.1} parent=1 // pred_check_branch
      %31 = sbr.rel (0) target = $region5
    $region4: #{tpu_custom_call.1} parent=1 // pred_region
      %33 = vsyncadd [#allocation3], 0
      %s34 = sshll.u32 %s0, 4
      %s35 = int_to_ptr.hbm [resolvable:$true] %s34
      %s36 = sshll.u32 [#allocation2], 4
      %s37 = int_to_ptr.vmem [resolvable:$true] %s36
      %42 = dma.hbm_to_vmem [thread:$0]  %s35, 896, %s37, [#allocation3], 448, 448, 28
    $region5: #{tpu_custom_call.1} parent=1 // pred_fallthru
      _
    // Predicated region
    $region6: #{tpu_custom_call.1} parent=1 // pred_check
      _
    $region7: #{tpu_custom_call.1} parent=1 // pred_check_branch
      %44 = sbr.rel (0) target = $region9
    $region8: #{tpu_custom_call.1} parent=1 // pred_region
      %46 = vsyncadd [#allocation6], 0
      %s47 = sshll.u32 %s1, 4
      %s48 = int_to_ptr.hbm [resolvable:$true] %s47
      %s49 = sshll.u32 [#allocation5], 4
      %s50 = int_to_ptr.vmem [resolvable:$true] %s49
      %55 = dma.hbm_to_vmem [thread:$0]  %s48, 512, %s50, [#allocation6], 256, 256, 16
    $region9: #{tpu_custom_call.1} parent=1 // pred_fallthru
      _
    // Predicated region
    $region10: #{tpu_custom_call.1} parent=1 // pred_check
      _
    $region11: #{tpu_custom_call.1} parent=1 // pred_check_branch
      %57 = sbr.rel (0) target = $region13
    $region12: #{tpu_custom_call.1} parent=1 // pred_region
      %59 = vsyncadd [#allocation6], 0
      %s60 = sshll.u32 %s2, 4
      %s61 = int_to_ptr.hbm [resolvable:$true] %s60
      %s62 = sshll.u32 [#allocation7], 4
      %s63 = int_to_ptr.vmem [resolvable:$true] %s62
      %68 = dma.hbm_to_vmem [thread:$0]  %s61, 256, %s63, [#allocation6], 128, 128, 8
    $region13: #{tpu_custom_call.1} parent=1 // pred_fallthru
      _
    // Predicated region
    $region14: #{tpu_custom_call.1} parent=1 // pred_check
      _
    $region15: #{tpu_custom_call.1} parent=1 // pred_check_branch
      %70 = sbr.rel (0) target = $region17
    $region16: #{tpu_custom_call.1} parent=1 // pred_region
      %72 = vsyncadd [#allocation9], 0
      %s73 = sshll.u32 %s3, 4
      %s74 = int_to_ptr.hbm [resolvable:$true] %s73
      %s75 = sshll.u32 [#allocation8], 4
      %s76 = int_to_ptr.vmem [resolvable:$true] %s75
      %81 = dma.hbm_to_vmem [thread:$0]  %s74, 50176, %s76, [#allocation9], 448, 448, 28
    $region17: #{tpu_custom_call.1} parent=1 // pred_fallthru
      _
    // Predicated region
    $region18: #{tpu_custom_call.1} parent=1 // pred_check
      _
    $region19: #{tpu_custom_call.1} parent=1 // pred_check_branch
      %83 = sbr.rel (0) target = $region21
    $region20: #{tpu_custom_call.1} parent=1 // pred_region
      %85 = vsyncadd [#allocation9], 0
      %s86 = sshll.u32 %s4, 4
      %s87 = int_to_ptr.hbm [resolvable:$true] %s86
      %s88 = sshll.u32 [#allocation10], 4
      %s89 = int_to_ptr.vmem [resolvable:$true] %s88
      %94 = dma.hbm_to_vmem [thread:$0]  %s87, 28672, %s89, [#allocation9], 448, 448, 28
    $region21: #{tpu_custom_call.1} parent=1 // pred_fallthru
      _
    // Predicated region
    $region22: #{tpu_custom_call.1} parent=1 // pred_check
      _
    $region23: #{tpu_custom_call.1} parent=1 // pred_check_branch
      %96 = sbr.rel (0) target = $region25
    $region24: #{tpu_custom_call.1} parent=1 // pred_region
      %98 = vsyncadd [#allocation12], 0
      %s100 = sshll.u32 %s5, 4
      %s101 = int_to_ptr.hbm [resolvable:$true] %s100
      %s102 = sshll.u32 [#allocation11], 4
      %s103 = int_to_ptr.vmem [resolvable:$true] %s102
      %105 = dma.hbm_to_vmem [thread:$0]  %s101, 112, %s103, [#allocation12]
    $region25: #{tpu_custom_call.1} parent=1 // pred_fallthru
      _
    // Predicated region
    $region26: #{tpu_custom_call.1} parent=1 // pred_check
      _
    $region27: #{tpu_custom_call.1} parent=1 // pred_check_branch
      %107 = sbr.rel (0) target = $region29
    $region28: #{tpu_custom_call.1} parent=1 // pred_region
      %109 = vsyncadd [#allocation12], 0
      %s110 = sshll.u32 %s6, 4
      %s111 = int_to_ptr.hbm [resolvable:$true] %s110
      %s112 = sshll.u32 [#allocation13], 4
      %s113 = int_to_ptr.vmem [resolvable:$true] %s112
      %118 = dma.hbm_to_vmem [thread:$0]  %s111, 14336, %s113, [#allocation12], 128, 128, 8
    $region29: #{tpu_custom_call.1} parent=1 // pred_fallthru
      _
    // Predicated region
    $region30: #{tpu_custom_call.1} parent=1 // pred_check
      _
    $region31: #{tpu_custom_call.1} parent=1 // pred_check_branch
      %120 = sbr.rel (0) target = $region33
    $region32: #{tpu_custom_call.1} parent=1 // pred_region
      %122 = vsyncadd [#allocation15], 0
      %s124 = sshll.u32 %s7, 4
      %s125 = int_to_ptr.hbm [resolvable:$true] %s124
      %s126 = sshll.u32 [#allocation14], 4
      %s127 = int_to_ptr.vmem [resolvable:$true] %s126
      %129 = dma.hbm_to_vmem [thread:$0]  %s125, 32, %s127, [#allocation15]
    $region33: #{tpu_custom_call.1} parent=1 // pred_fallthru
      _
    // Predicated region
    $region34: #{tpu_custom_call.1} parent=1 // pred_check
      _
    $region35: #{tpu_custom_call.1} parent=1 // pred_check_branch
      %131 = sbr.rel (0) target = $region37
    $region36: #{tpu_custom_call.1} parent=1 // pred_region
      %133 = vsyncadd [#allocation15], 0
      %s134 = sshll.u32 %s8, 4
      %s135 = int_to_ptr.hbm [resolvable:$true] %s134
      %s136 = sshll.u32 [#allocation16], 4
      %s137 = int_to_ptr.vmem [resolvable:$true] %s136
      %142 = dma.hbm_to_vmem [thread:$0]  %s135, 7168, %s137, [#allocation15], 448, 448, 28
    $region37: #{tpu_custom_call.1} parent=1 // pred_fallthru
      _
    // Predicated region
    $region38: #{tpu_custom_call.1} parent=1 // pred_check
      _
    $region39: #{tpu_custom_call.1} parent=1 // pred_check_branch
      %144 = sbr.rel (0) target = $region41
    $region40: #{tpu_custom_call.1} parent=1 // pred_region
      %146 = vsyncadd [#allocation18], 0
      %s147 = sshll.u32 %s9, 4
      %s148 = int_to_ptr.hbm [resolvable:$true] %s147
      %s149 = sshll.u32 [#allocation17], 4
      %s150 = int_to_ptr.vmem [resolvable:$true] %s149
      %155 = dma.hbm_to_vmem [thread:$0]  %s148, 28672, %s150, [#allocation18], 448, 448, 28
    $region41: #{tpu_custom_call.1} parent=1 // pred_fallthru
      _
    // Predicated region
    $region42: #{tpu_custom_call.1} parent=1 // pred_check
      _
    $region43: #{tpu_custom_call.1} parent=1 // pred_check_branch
      %157 = sbr.rel (0) target = $region45
    $region44: #{tpu_custom_call.1} parent=1 // pred_region
      %159 = vsyncadd [#allocation18], 0
      %s161 = sshll.u32 %s10, 4
      %s162 = int_to_ptr.hbm [resolvable:$true] %s161
      %s163 = sshll.u32 [#allocation19], 4
      %s164 = int_to_ptr.vmem [resolvable:$true] %s163
      %166 = dma.hbm_to_vmem [thread:$0]  %s162, 112, %s164, [#allocation18]
    $region45: #{tpu_custom_call.1} parent=1 // pred_fallthru
      _
    // Predicated region
    $region46: #{tpu_custom_call.1} parent=1 // pred_check
      _
    $region47: #{tpu_custom_call.1} parent=1 // pred_check_branch
      %168 = sbr.rel (0) target = $region49
    $region48: #{tpu_custom_call.1} parent=1 // pred_region
      %170 = vsyncadd [#allocation21], 0
      %s171 = sshll.u32 %s11, 4
      %s172 = int_to_ptr.hbm [resolvable:$true] %s171
      %s173 = sshll.u32 [#allocation20], 4
      %s174 = int_to_ptr.vmem [resolvable:$true] %s173
      %179 = dma.hbm_to_vmem [thread:$0]  %s172, 50176, %s174, [#allocation21], 448, 448, 28
    $region49: #{tpu_custom_call.1} parent=1 // pred_fallthru
      _
    // Predicated region
    $region50: #{tpu_custom_call.1} parent=1 // pred_check
      _
    $region51: #{tpu_custom_call.1} parent=1 // pred_check_branch
      %181 = sbr.rel (0) target = $region53
    $region52: #{tpu_custom_call.1} parent=1 // pred_region
      %183 = vsyncadd [#allocation21], 0
      %s185 = sshll.u32 %s12, 4
      %s186 = int_to_ptr.hbm [resolvable:$true] %s185
      %s187 = sshll.u32 [#allocation22], 4
      %s188 = int_to_ptr.vmem [resolvable:$true] %s187
      %190 = dma.hbm_to_vmem [thread:$0]  %s186, 112, %s188, [#allocation21]
    $region53: #{tpu_custom_call.1} parent=1 // pred_fallthru
      _
    // Predicated region
    $region54: #{tpu_custom_call.1} parent=1 // pred_check
      _
    $region55: #{tpu_custom_call.1} parent=1 // pred_check_branch
      %192 = sbr.rel (0) target = $region57
    $region56: #{tpu_custom_call.1} parent=1 // pred_region
      %194 = dma.done [#allocation3], 896
    $region57: #{tpu_custom_call.1} parent=1 // pred_fallthru
      _
    // Predicated region
    $region58: #{tpu_custom_call.1} parent=1 // pred_check
      _
    $region59: #{tpu_custom_call.1} parent=1 // pred_check_branch
      %196 = sbr.rel (0) target = $region61
    $region60: #{tpu_custom_call.1} parent=1 // pred_region
      %198 = dma.done [#allocation6], 512
    $region61: #{tpu_custom_call.1} parent=1 // pred_fallthru
      _
    // Predicated region
    $region62: #{tpu_custom_call.1} parent=1 // pred_check
      _
    $region63: #{tpu_custom_call.1} parent=1 // pred_check_branch
      %200 = sbr.rel (0) target = $region65
    $region64: #{tpu_custom_call.1} parent=1 // pred_region
      %202 = dma.done [#allocation6], 256
    $region65: #{tpu_custom_call.1} parent=1 // pred_fallthru
      _
    // Predicated region
    $region66: #{tpu_custom_call.1} parent=1 // pred_check
      _
    $region67: #{tpu_custom_call.1} parent=1 // pred_check_branch
      %204 = sbr.rel (0) target = $region69
    $region68: #{tpu_custom_call.1} parent=1 // pred_region
      %206 = dma.done [#allocation9], 50176
    $region69: #{tpu_custom_call.1} parent=1 // pred_fallthru
      _
    // Predicated region
    $region70: #{tpu_custom_call.1} parent=1 // pred_check
      _
    $region71: #{tpu_custom_call.1} parent=1 // pred_check_branch
      %208 = sbr.rel (0) target = $region73
    $region72: #{tpu_custom_call.1} parent=1 // pred_region
      %210 = dma.done [#allocation9], 28672
    $region73: #{tpu_custom_call.1} parent=1 // pred_fallthru
      _
    // Predicated region
    $region74: #{tpu_custom_call.1} parent=1 // pred_check
      _
    $region75: #{tpu_custom_call.1} parent=1 // pred_check_branch
      %212 = sbr.rel (0) target = $region77
    $region76: #{tpu_custom_call.1} parent=1 // pred_region
      %214 = dma.done [#allocation12], 112
    $region77: #{tpu_custom_call.1} parent=1 // pred_fallthru
      _
    // Predicated region
    $region78: #{tpu_custom_call.1} parent=1 // pred_check
      _
    $region79: #{tpu_custom_call.1} parent=1 // pred_check_branch
      %216 = sbr.rel (0) target = $region81
    $region80: #{tpu_custom_call.1} parent=1 // pred_region
      %218 = dma.done [#allocation12], 14336
    $region81: #{tpu_custom_call.1} parent=1 // pred_fallthru
      _
    // Predicated region
    $region82: #{tpu_custom_call.1} parent=1 // pred_check
      _
    $region83: #{tpu_custom_call.1} parent=1 // pred_check_branch
      %220 = sbr.rel (0) target = $region85
    $region84: #{tpu_custom_call.1} parent=1 // pred_region
      %222 = dma.done [#allocation15], 32
    $region85: #{tpu_custom_call.1} parent=1 // pred_fallthru
      _
    // Predicated region
    $region86: #{tpu_custom_call.1} parent=1 // pred_check
      _
    $region87: #{tpu_custom_call.1} parent=1 // pred_check_branch
      %224 = sbr.rel (0) target = $region89
    $region88: #{tpu_custom_call.1} parent=1 // pred_region
      %226 = dma.done [#allocation15], 7168
    $region89: #{tpu_custom_call.1} parent=1 // pred_fallthru
      _
    // Predicated region
    $region90: #{tpu_custom_call.1} parent=1 // pred_check
      _
    $region91: #{tpu_custom_call.1} parent=1 // pred_check_branch
      %228 = sbr.rel (0) target = $region93
    $region92: #{tpu_custom_call.1} parent=1 // pred_region
      %230 = dma.done [#allocation18], 28672
    $region93: #{tpu_custom_call.1} parent=1 // pred_fallthru
      _
    // Predicated region
    $region94: #{tpu_custom_call.1} parent=1 // pred_check
      _
    $region95: #{tpu_custom_call.1} parent=1 // pred_check_branch
      %232 = sbr.rel (0) target = $region97
    $region96: #{tpu_custom_call.1} parent=1 // pred_region
      %234 = dma.done [#allocation18], 112
    $region97: #{tpu_custom_call.1} parent=1 // pred_fallthru
      _
    // Predicated region
    $region98: #{tpu_custom_call.1} parent=1 // pred_check
      _
    $region99: #{tpu_custom_call.1} parent=1 // pred_check_branch
      %236 = sbr.rel (0) target = $region101
    $region100: #{tpu_custom_call.1} parent=1 // pred_region
      %238 = dma.done [#allocation21], 50176
    $region101: #{tpu_custom_call.1} parent=1 // pred_fallthru
      _
    // Predicated region
    $region102: #{tpu_custom_call.1} parent=1 // pred_check
      _
    $region103: #{tpu_custom_call.1} parent=1 // pred_check_branch
      %240 = sbr.rel (0) target = $region105
    $region104: #{tpu_custom_call.1} parent=1 // pred_region
      %242 = dma.done [#allocation21], 112
    $region105: #{tpu_custom_call.1} parent=1 // pred_fallthru
      _
    %v243 = vld [vmem:[#allocation2] sm:$0xff]
    %v244 = vld [vmem:[#allocation2 + $0x8] sm:$0xff]
    %v245 = vld [vmem:[#allocation2 + $0x10] sm:$0xff]
    %v246 = vld [vmem:[#allocation2 + $0x18] sm:$0xf]
    %v247 = vld [vmem:[#allocation2 + $0x1c] sm:$0xff]
    %v248 = vld [vmem:[#allocation2 + $0x24] sm:$0xff]
    %v249 = vld [vmem:[#allocation2 + $0x2c] sm:$0xff]
    %v250 = vld [vmem:[#allocation2 + $0x34] sm:$0xf]
    %v251 = vld [vmem:[#allocation5] sm:$0xff]
    %v252 = vld [vmem:[#allocation5 + $0x8] sm:$0xff]
    %v253 = vld [vmem:[#allocation5 + $0x10] sm:$0xff]
    %v254 = vld [vmem:[#allocation5 + $0x18] sm:$0xff]
    %v255 = vld [vmem:[#allocation8] sm:$0xff]
    %v256 = vld [vmem:[#allocation8 + $0x8] sm:$0xff]
    %v257 = vld [vmem:[#allocation8 + $0x10] sm:$0xff]
    %v258 = vld [vmem:[#allocation8 + $0x18] sm:$0xf]
    %v259 = vld [vmem:[#allocation8 + $0x1c] sm:$0xff]
    %v260 = vld [vmem:[#allocation8 + $0x24] sm:$0xff]
    %v261 = vld [vmem:[#allocation8 + $0x2c] sm:$0xff]
    %v262 = vld [vmem:[#allocation8 + $0x34] sm:$0xf]
    %v263 = vld [vmem:[#allocation8 + $0x38] sm:$0xff]
    %v264 = vld [vmem:[#allocation8 + $0x40] sm:$0xff]
    %v265 = vld [vmem:[#allocation8 + $0x48] sm:$0xff]
    %v266 = vld [vmem:[#allocation8 + $0x50] sm:$0xf]
    %v267 = vld [vmem:[#allocation8 + $0x54] sm:$0xff]
    %v268 = vld [vmem:[#allocation8 + $0x5c] sm:$0xff]
    %v269 = vld [vmem:[#allocation8 + $0x64] sm:$0xff]
    %v270 = vld [vmem:[#allocation8 + $0x6c] sm:$0xf]
    %v271 = vld [vmem:[#allocation8 + $0x70] sm:$0xff]
    %v272 = vld [vmem:[#allocation8 + $0x78] sm:$0xff]
    %v273 = vld [vmem:[#allocation8 + $0x80] sm:$0xff]
    %v274 = vld [vmem:[#allocation8 + $0x88] sm:$0xf]
    %v275 = vld [vmem:[#allocation8 + $0x8c] sm:$0xff]
    %v276 = vld [vmem:[#allocation8 + $0x94] sm:$0xff]
    %v277 = vld [vmem:[#allocation8 + $0x9c] sm:$0xff]
    %v278 = vld [vmem:[#allocation8 + $0xa4] sm:$0xf]
    %v279 = vld [vmem:[#allocation8 + $0xa8] sm:$0xff]
    %v280 = vld [vmem:[#allocation8 + $0xb0] sm:$0xff]
    %v281 = vld [vmem:[#allocation8 + $0xb8] sm:$0xff]
    %v282 = vld [vmem:[#allocation8 + $0xc0] sm:$0xf]
    %v283 = vld [vmem:[#allocation8 + $0xc4] sm:$0xff]
    %v284 = vld [vmem:[#allocation8 + $0xcc] sm:$0xff]
    %v285 = vld [vmem:[#allocation8 + $0xd4] sm:$0xff]
    %v286 = vld [vmem:[#allocation8 + $0xdc] sm:$0xf]
    %v287 = vld [vmem:[#allocation8 + $0xe0] sm:$0xff]
    %v288 = vld [vmem:[#allocation8 + $0xe8] sm:$0xff]
    %v289 = vld [vmem:[#allocation8 + $0xf0] sm:$0xff]
    %v290 = vld [vmem:[#allocation8 + $0xf8] sm:$0xf]
    %v291 = vld [vmem:[#allocation8 + $0xfc] sm:$0xff]
    %v292 = vld [vmem:[#allocation8 + $0x104] sm:$0xff]
    %v293 = vld [vmem:[#allocation8 + $0x10c] sm:$0xff]
    %v294 = vld [vmem:[#allocation8 + $0x114] sm:$0xf]
    %v295 = vld [vmem:[#allocation8 + $0x118] sm:$0xff]
    %v296 = vld [vmem:[#allocation8 + $0x120] sm:$0xff]
    %v297 = vld [vmem:[#allocation8 + $0x128] sm:$0xff]
    %v298 = vld [vmem:[#allocation8 + $0x130] sm:$0xf]
    %v299 = vld [vmem:[#allocation8 + $0x134] sm:$0xff]
    %v300 = vld [vmem:[#allocation8 + $0x13c] sm:$0xff]
    %v301 = vld [vmem:[#allocation8 + $0x144] sm:$0xff]
    %v302 = vld [vmem:[#allocation8 + $0x14c] sm:$0xf]
    %v303 = vld [vmem:[#allocation8 + $0x150] sm:$0xff]
    %v304 = vld [vmem:[#allocation8 + $0x158] sm:$0xff]
    %v305 = vld [vmem:[#allocation8 + $0x160] sm:$0xff]
    %v306 = vld [vmem:[#allocation8 + $0x168] sm:$0xf]
    %v307 = vld [vmem:[#allocation8 + $0x16c] sm:$0xff]
    %v308 = vld [vmem:[#allocation8 + $0x174] sm:$0xff]
    %v309 = vld [vmem:[#allocation8 + $0x17c] sm:$0xff]
    %v310 = vld [vmem:[#allocation8 + $0x184] sm:$0xf]
    %v311 = vld [vmem:[#allocation8 + $0x188] sm:$0xff]
    %v312 = vld [vmem:[#allocation8 + $0x190] sm:$0xff]
    %v313 = vld [vmem:[#allocation8 + $0x198] sm:$0xff]
    %v314 = vld [vmem:[#allocation8 + $0x1a0] sm:$0xf]
    %v315 = vld [vmem:[#allocation8 + $0x1a4] sm:$0xff]
    %v316 = vld [vmem:[#allocation8 + $0x1ac] sm:$0xff]
    %v317 = vld [vmem:[#allocation8 + $0x1b4] sm:$0xff]
    %v318 = vld [vmem:[#allocation8 + $0x1bc] sm:$0xf]
    %v319 = vld [vmem:[#allocation8 + $0x1c0] sm:$0xff]
    %v320 = vld [vmem:[#allocation8 + $0x1c8] sm:$0xff]
    %v321 = vld [vmem:[#allocation8 + $0x1d0] sm:$0xff]
    %v322 = vld [vmem:[#allocation8 + $0x1d8] sm:$0xf]
    %v323 = vld [vmem:[#allocation8 + $0x1dc] sm:$0xff]
    %v324 = vld [vmem:[#allocation8 + $0x1e4] sm:$0xff]
    %v325 = vld [vmem:[#allocation8 + $0x1ec] sm:$0xff]
    %v326 = vld [vmem:[#allocation8 + $0x1f4] sm:$0xf]
    %v327 = vld [vmem:[#allocation8 + $0x1f8] sm:$0xff]
    %v328 = vld [vmem:[#allocation8 + $0x200] sm:$0xff]
    %v329 = vld [vmem:[#allocation8 + $0x208] sm:$0xff]
    %v330 = vld [vmem:[#allocation8 + $0x210] sm:$0xf]
    %v331 = vld [vmem:[#allocation8 + $0x214] sm:$0xff]
    %v332 = vld [vmem:[#allocation8 + $0x21c] sm:$0xff]
    %v333 = vld [vmem:[#allocation8 + $0x224] sm:$0xff]
    %v334 = vld [vmem:[#allocation8 + $0x22c] sm:$0xf]
    %v335 = vld [vmem:[#allocation8 + $0x230] sm:$0xff]
    %v336 = vld [vmem:[#allocation8 + $0x238] sm:$0xff]
    %v337 = vld [vmem:[#allocation8 + $0x240] sm:$0xff]
    %v338 = vld [vmem:[#allocation8 + $0x248] sm:$0xf]
    %v339 = vld [vmem:[#allocation8 + $0x24c] sm:$0xff]
    %v340 = vld [vmem:[#allocation8 + $0x254] sm:$0xff]
    %v341 = vld [vmem:[#allocation8 + $0x25c] sm:$0xff]
    %v342 = vld [vmem:[#allocation8 + $0x264] sm:$0xf]
    %v343 = vld [vmem:[#allocation8 + $0x268] sm:$0xff]
    %v344 = vld [vmem:[#allocation8 + $0x270] sm:$0xff]
    %v345 = vld [vmem:[#allocation8 + $0x278] sm:$0xff]
    %v346 = vld [vmem:[#allocation8 + $0x280] sm:$0xf]
    %v347 = vld [vmem:[#allocation8 + $0x284] sm:$0xff]
    %v348 = vld [vmem:[#allocation8 + $0x28c] sm:$0xff]
    %v349 = vld [vmem:[#allocation8 + $0x294] sm:$0xff]
    %v350 = vld [vmem:[#allocation8 + $0x29c] sm:$0xf]
    %v351 = vld [vmem:[#allocation8 + $0x2a0] sm:$0xff]
    %v352 = vld [vmem:[#allocation8 + $0x2a8] sm:$0xff]
    %v353 = vld [vmem:[#allocation8 + $0x2b0] sm:$0xff]
    %v354 = vld [vmem:[#allocation8 + $0x2b8] sm:$0xf]
    %v355 = vld [vmem:[#allocation8 + $0x2bc] sm:$0xff]
    %v356 = vld [vmem:[#allocation8 + $0x2c4] sm:$0xff]
    %v357 = vld [vmem:[#allocation8 + $0x2cc] sm:$0xff]
    %v358 = vld [vmem:[#allocation8 + $0x2d4] sm:$0xf]
    %v359 = vld [vmem:[#allocation8 + $0x2d8] sm:$0xff]
    %v360 = vld [vmem:[#allocation8 + $0x2e0] sm:$0xff]
    %v361 = vld [vmem:[#allocation8 + $0x2e8] sm:$0xff]
    %v362 = vld [vmem:[#allocation8 + $0x2f0] sm:$0xf]
    %v363 = vld [vmem:[#allocation8 + $0x2f4] sm:$0xff]
    %v364 = vld [vmem:[#allocation8 + $0x2fc] sm:$0xff]
    %v365 = vld [vmem:[#allocation8 + $0x304] sm:$0xff]
    %v366 = vld [vmem:[#allocation8 + $0x30c] sm:$0xf]
    %v367 = vld [vmem:[#allocation8 + $0x310] sm:$0xff]
    %v368 = vld [vmem:[#allocation8 + $0x318] sm:$0xff]
    %v369 = vld [vmem:[#allocation8 + $0x320] sm:$0xff]
    %v370 = vld [vmem:[#allocation8 + $0x328] sm:$0xf]
    %v371 = vld [vmem:[#allocation8 + $0x32c] sm:$0xff]
    %v372 = vld [vmem:[#allocation8 + $0x334] sm:$0xff]
    %v373 = vld [vmem:[#allocation8 + $0x33c] sm:$0xff]
    %v374 = vld [vmem:[#allocation8 + $0x344] sm:$0xf]
    %v375 = vld [vmem:[#allocation8 + $0x348] sm:$0xff]
    %v376 = vld [vmem:[#allocation8 + $0x350] sm:$0xff]
    %v377 = vld [vmem:[#allocation8 + $0x358] sm:$0xff]
    %v378 = vld [vmem:[#allocation8 + $0x360] sm:$0xf]
    %v379 = vld [vmem:[#allocation8 + $0x364] sm:$0xff]
    %v380 = vld [vmem:[#allocation8 + $0x36c] sm:$0xff]
    %v381 = vld [vmem:[#allocation8 + $0x374] sm:$0xff]
    %v382 = vld [vmem:[#allocation8 + $0x37c] sm:$0xf]
    %v383 = vld [vmem:[#allocation8 + $0x380] sm:$0xff]
    %v384 = vld [vmem:[#allocation8 + $0x388] sm:$0xff]
    %v385 = vld [vmem:[#allocation8 + $0x390] sm:$0xff]
    %v386 = vld [vmem:[#allocation8 + $0x398] sm:$0xf]
    %v387 = vld [vmem:[#allocation8 + $0x39c] sm:$0xff]
    %v388 = vld [vmem:[#allocation8 + $0x3a4] sm:$0xff]
    %v389 = vld [vmem:[#allocation8 + $0x3ac] sm:$0xff]
    %v390 = vld [vmem:[#allocation8 + $0x3b4] sm:$0xf]
    %v391 = vld [vmem:[#allocation8 + $0x3b8] sm:$0xff]
    %v392 = vld [vmem:[#allocation8 + $0x3c0] sm:$0xff]
    %v393 = vld [vmem:[#allocation8 + $0x3c8] sm:$0xff]
    %v394 = vld [vmem:[#allocation8 + $0x3d0] sm:$0xf]
    %v395 = vld [vmem:[#allocation8 + $0x3d4] sm:$0xff]
    %v396 = vld [vmem:[#allocation8 + $0x3dc] sm:$0xff]
    %v397 = vld [vmem:[#allocation8 + $0x3e4] sm:$0xff]
    %v398 = vld [vmem:[#allocation8 + $0x3ec] sm:$0xf]
    %v399 = vld [vmem:[#allocation8 + $0x3f0] sm:$0xff]
    %v400 = vld [vmem:[#allocation8 + $0x3f8] sm:$0xff]
    %v401 = vld [vmem:[#allocation8 + $0x400] sm:$0xff]
    %v402 = vld [vmem:[#allocation8 + $0x408] sm:$0xf]
    %v403 = vld [vmem:[#allocation8 + $0x40c] sm:$0xff]
    %v404 = vld [vmem:[#allocation8 + $0x414] sm:$0xff]
    %v405 = vld [vmem:[#allocation8 + $0x41c] sm:$0xff]
    %v406 = vld [vmem:[#allocation8 + $0x424] sm:$0xf]
    %v407 = vld [vmem:[#allocation8 + $0x428] sm:$0xff]
    %v408 = vld [vmem:[#allocation8 + $0x430] sm:$0xff]
    %v409 = vld [vmem:[#allocation8 + $0x438] sm:$0xff]
    %v410 = vld [vmem:[#allocation8 + $0x440] sm:$0xf]
    %v411 = vld [vmem:[#allocation8 + $0x444] sm:$0xff]
    %v412 = vld [vmem:[#allocation8 + $0x44c] sm:$0xff]
    %v413 = vld [vmem:[#allocation8 + $0x454] sm:$0xff]
    %v414 = vld [vmem:[#allocation8 + $0x45c] sm:$0xf]
    %v415 = vld [vmem:[#allocation8 + $0x460] sm:$0xff]
    %v416 = vld [vmem:[#allocation8 + $0x468] sm:$0xff]
    %v417 = vld [vmem:[#allocation8 + $0x470] sm:$0xff]
    %v418 = vld [vmem:[#allocation8 + $0x478] sm:$0xf]
    %v419 = vld [vmem:[#allocation8 + $0x47c] sm:$0xff]
    %v420 = vld [vmem:[#allocation8 + $0x484] sm:$0xff]
    %v421 = vld [vmem:[#allocation8 + $0x48c] sm:$0xff]
    %v422 = vld [vmem:[#allocation8 + $0x494] sm:$0xf]
    %v423 = vld [vmem:[#allocation8 + $0x498] sm:$0xff]
    %v424 = vld [vmem:[#allocation8 + $0x4a0] sm:$0xff]
    %v425 = vld [vmem:[#allocation8 + $0x4a8] sm:$0xff]
    %v426 = vld [vmem:[#allocation8 + $0x4b0] sm:$0xf]
    %v427 = vld [vmem:[#allocation8 + $0x4b4] sm:$0xff]
    %v428 = vld [vmem:[#allocation8 + $0x4bc] sm:$0xff]
    %v429 = vld [vmem:[#allocation8 + $0x4c4] sm:$0xff]
    %v430 = vld [vmem:[#allocation8 + $0x4cc] sm:$0xf]
    %v431 = vld [vmem:[#allocation8 + $0x4d0] sm:$0xff]
    %v432 = vld [vmem:[#allocation8 + $0x4d8] sm:$0xff]
    %v433 = vld [vmem:[#allocation8 + $0x4e0] sm:$0xff]
    %v434 = vld [vmem:[#allocation8 + $0x4e8] sm:$0xf]
    %v435 = vld [vmem:[#allocation8 + $0x4ec] sm:$0xff]
    %v436 = vld [vmem:[#allocation8 + $0x4f4] sm:$0xff]
    %v437 = vld [vmem:[#allocation8 + $0x4fc] sm:$0xff]
    %v438 = vld [vmem:[#allocation8 + $0x504] sm:$0xf]
    %v439 = vld [vmem:[#allocation8 + $0x508] sm:$0xff]
    %v440 = vld [vmem:[#allocation8 + $0x510] sm:$0xff]
    %v441 = vld [vmem:[#allocation8 + $0x518] sm:$0xff]
    %v442 = vld [vmem:[#allocation8 + $0x520] sm:$0xf]
    %v443 = vld [vmem:[#allocation8 + $0x524] sm:$0xff]
    %v444 = vld [vmem:[#allocation8 + $0x52c] sm:$0xff]
    %v445 = vld [vmem:[#allocation8 + $0x534] sm:$0xff]
    %v446 = vld [vmem:[#allocation8 + $0x53c] sm:$0xf]
    %v447 = vld [vmem:[#allocation8 + $0x540] sm:$0xff]
    %v448 = vld [vmem:[#allocation8 + $0x548] sm:$0xff]
    %v449 = vld [vmem:[#allocation8 + $0x550] sm:$0xff]
    %v450 = vld [vmem:[#allocation8 + $0x558] sm:$0xf]
    %v451 = vld [vmem:[#allocation8 + $0x55c] sm:$0xff]
    %v452 = vld [vmem:[#allocation8 + $0x564] sm:$0xff]
    %v453 = vld [vmem:[#allocation8 + $0x56c] sm:$0xff]
    %v454 = vld [vmem:[#allocation8 + $0x574] sm:$0xf]
    %v455 = vld [vmem:[#allocation8 + $0x578] sm:$0xff]
    %v456 = vld [vmem:[#allocation8 + $0x580] sm:$0xff]
    %v457 = vld [vmem:[#allocation8 + $0x588] sm:$0xff]
    %v458 = vld [vmem:[#allocation8 + $0x590] sm:$0xf]
    %v459 = vld [vmem:[#allocation8 + $0x594] sm:$0xff]
    %v460 = vld [vmem:[#allocation8 + $0x59c] sm:$0xff]
    %v461 = vld [vmem:[#allocation8 + $0x5a4] sm:$0xff]
    %v462 = vld [vmem:[#allocation8 + $0x5ac] sm:$0xf]
    %v463 = vld [vmem:[#allocation8 + $0x5b0] sm:$0xff]
    %v464 = vld [vmem:[#allocation8 + $0x5b8] sm:$0xff]
    %v465 = vld [vmem:[#allocation8 + $0x5c0] sm:$0xff]
    %v466 = vld [vmem:[#allocation8 + $0x5c8] sm:$0xf]
    %v467 = vld [vmem:[#allocation8 + $0x5cc] sm:$0xff]
    %v468 = vld [vmem:[#allocation8 + $0x5d4] sm:$0xff]
    %v469 = vld [vmem:[#allocation8 + $0x5dc] sm:$0xff]
    %v470 = vld [vmem:[#allocation8 + $0x5e4] sm:$0xf]
    %v471 = vld [vmem:[#allocation8 + $0x5e8] sm:$0xff]
    %v472 = vld [vmem:[#allocation8 + $0x5f0] sm:$0xff]
    %v473 = vld [vmem:[#allocation8 + $0x5f8] sm:$0xff]
    %v474 = vld [vmem:[#allocation8 + $0x600] sm:$0xf]
    %v475 = vld [vmem:[#allocation8 + $0x604] sm:$0xff]
    %v476 = vld [vmem:[#allocation8 + $0x60c] sm:$0xff]
    %v477 = vld [vmem:[#allocation8 + $0x614] sm:$0xff]
    %v478 = vld [vmem:[#allocation8 + $0x61c] sm:$0xf]
    %v479 = vld [vmem:[#allocation8 + $0x620] sm:$0xff]
    %v480 = vld [vmem:[#allocation8 + $0x628] sm:$0xff]
    %v481 = vld [vmem:[#allocation8 + $0x630] sm:$0xff]
    %v482 = vld [vmem:[#allocation8 + $0x638] sm:$0xf]
    %v483 = vld [vmem:[#allocation8 + $0x63c] sm:$0xff]
    %v484 = vld [vmem:[#allocation8 + $0x644] sm:$0xff]
    %v485 = vld [vmem:[#allocation8 + $0x64c] sm:$0xff]
    %v486 = vld [vmem:[#allocation8 + $0x654] sm:$0xf]
    %v487 = vld [vmem:[#allocation8 + $0x658] sm:$0xff]
    %v488 = vld [vmem:[#allocation8 + $0x660] sm:$0xff]
    %v489 = vld [vmem:[#allocation8 + $0x668] sm:$0xff]
    %v490 = vld [vmem:[#allocation8 + $0x670] sm:$0xf]
    %v491 = vld [vmem:[#allocation8 + $0x674] sm:$0xff]
    %v492 = vld [vmem:[#allocation8 + $0x67c] sm:$0xff]
    %v493 = vld [vmem:[#allocation8 + $0x684] sm:$0xff]
    %v494 = vld [vmem:[#allocation8 + $0x68c] sm:$0xf]
    %v495 = vld [vmem:[#allocation8 + $0x690] sm:$0xff]
    %v496 = vld [vmem:[#allocation8 + $0x698] sm:$0xff]
    %v497 = vld [vmem:[#allocation8 + $0x6a0] sm:$0xff]
    %v498 = vld [vmem:[#allocation8 + $0x6a8] sm:$0xf]
    %v499 = vld [vmem:[#allocation8 + $0x6ac] sm:$0xff]
    %v500 = vld [vmem:[#allocation8 + $0x6b4] sm:$0xff]
    %v501 = vld [vmem:[#allocation8 + $0x6bc] sm:$0xff]
    %v502 = vld [vmem:[#allocation8 + $0x6c4] sm:$0xf]
    %v503 = vld [vmem:[#allocation8 + $0x6c8] sm:$0xff]
    %v504 = vld [vmem:[#allocation8 + $0x6d0] sm:$0xff]
    %v505 = vld [vmem:[#allocation8 + $0x6d8] sm:$0xff]
    %v506 = vld [vmem:[#allocation8 + $0x6e0] sm:$0xf]
    %v507 = vld [vmem:[#allocation8 + $0x6e4] sm:$0xff]
    %v508 = vld [vmem:[#allocation8 + $0x6ec] sm:$0xff]
    %v509 = vld [vmem:[#allocation8 + $0x6f4] sm:$0xff]
    %v510 = vld [vmem:[#allocation8 + $0x6fc] sm:$0xf]
    %v511 = vld [vmem:[#allocation8 + $0x700] sm:$0xff]
    %v512 = vld [vmem:[#allocation8 + $0x708] sm:$0xff]
    %v513 = vld [vmem:[#allocation8 + $0x710] sm:$0xff]
    %v514 = vld [vmem:[#allocation8 + $0x718] sm:$0xf]
    %v515 = vld [vmem:[#allocation8 + $0x71c] sm:$0xff]
    %v516 = vld [vmem:[#allocation8 + $0x724] sm:$0xff]
    %v517 = vld [vmem:[#allocation8 + $0x72c] sm:$0xff]
    %v518 = vld [vmem:[#allocation8 + $0x734] sm:$0xf]
    %v519 = vld [vmem:[#allocation8 + $0x738] sm:$0xff]
    %v520 = vld [vmem:[#allocation8 + $0x740] sm:$0xff]
    %v521 = vld [vmem:[#allocation8 + $0x748] sm:$0xff]
    %v522 = vld [vmem:[#allocation8 + $0x750] sm:$0xf]
    %v523 = vld [vmem:[#allocation8 + $0x754] sm:$0xff]
    %v524 = vld [vmem:[#allocation8 + $0x75c] sm:$0xff]
    %v525 = vld [vmem:[#allocation8 + $0x764] sm:$0xff]
    %v526 = vld [vmem:[#allocation8 + $0x76c] sm:$0xf]
    %v527 = vld [vmem:[#allocation8 + $0x770] sm:$0xff]
    %v528 = vld [vmem:[#allocation8 + $0x778] sm:$0xff]
    %v529 = vld [vmem:[#allocation8 + $0x780] sm:$0xff]
    %v530 = vld [vmem:[#allocation8 + $0x788] sm:$0xf]
    %v531 = vld [vmem:[#allocation8 + $0x78c] sm:$0xff]
    %v532 = vld [vmem:[#allocation8 + $0x794] sm:$0xff]
    %v533 = vld [vmem:[#allocation8 + $0x79c] sm:$0xff]
    %v534 = vld [vmem:[#allocation8 + $0x7a4] sm:$0xf]
    %v535 = vld [vmem:[#allocation8 + $0x7a8] sm:$0xff]
    %v536 = vld [vmem:[#allocation8 + $0x7b0] sm:$0xff]
    %v537 = vld [vmem:[#allocation8 + $0x7b8] sm:$0xff]
    %v538 = vld [vmem:[#allocation8 + $0x7c0] sm:$0xf]
    %v539 = vld [vmem:[#allocation8 + $0x7c4] sm:$0xff]
    %v540 = vld [vmem:[#allocation8 + $0x7cc] sm:$0xff]
    %v541 = vld [vmem:[#allocation8 + $0x7d4] sm:$0xff]
    %v542 = vld [vmem:[#allocation8 + $0x7dc] sm:$0xf]
    %v543 = vld [vmem:[#allocation8 + $0x7e0] sm:$0xff]
    %v544 = vld [vmem:[#allocation8 + $0x7e8] sm:$0xff]
    %v545 = vld [vmem:[#allocation8 + $0x7f0] sm:$0xff]
    %v546 = vld [vmem:[#allocation8 + $0x7f8] sm:$0xf]
    %v547 = vld [vmem:[#allocation8 + $0x7fc] sm:$0xff]
    %v548 = vld [vmem:[#allocation8 + $0x804] sm:$0xff]
    %v549 = vld [vmem:[#allocation8 + $0x80c] sm:$0xff]
    %v550 = vld [vmem:[#allocation8 + $0x814] sm:$0xf]
    %v551 = vld [vmem:[#allocation8 + $0x818] sm:$0xff]
    %v552 = vld [vmem:[#allocation8 + $0x820] sm:$0xff]
    %v553 = vld [vmem:[#allocation8 + $0x828] sm:$0xff]
    %v554 = vld [vmem:[#allocation8 + $0x830] sm:$0xf]
    %v555 = vld [vmem:[#allocation8 + $0x834] sm:$0xff]
    %v556 = vld [vmem:[#allocation8 + $0x83c] sm:$0xff]
    %v557 = vld [vmem:[#allocation8 + $0x844] sm:$0xff]
    %v558 = vld [vmem:[#allocation8 + $0x84c] sm:$0xf]
    %v559 = vld [vmem:[#allocation8 + $0x850] sm:$0xff]
    %v560 = vld [vmem:[#allocation8 + $0x858] sm:$0xff]
    %v561 = vld [vmem:[#allocation8 + $0x860] sm:$0xff]
    %v562 = vld [vmem:[#allocation8 + $0x868] sm:$0xf]
    %v563 = vld [vmem:[#allocation8 + $0x86c] sm:$0xff]
    %v564 = vld [vmem:[#allocation8 + $0x874] sm:$0xff]
    %v565 = vld [vmem:[#allocation8 + $0x87c] sm:$0xff]
    %v566 = vld [vmem:[#allocation8 + $0x884] sm:$0xf]
    %v567 = vld [vmem:[#allocation8 + $0x888] sm:$0xff]
    %v568 = vld [vmem:[#allocation8 + $0x890] sm:$0xff]
    %v569 = vld [vmem:[#allocation8 + $0x898] sm:$0xff]
    %v570 = vld [vmem:[#allocation8 + $0x8a0] sm:$0xf]
    %v571 = vld [vmem:[#allocation8 + $0x8a4] sm:$0xff]
    %v572 = vld [vmem:[#allocation8 + $0x8ac] sm:$0xff]
    %v573 = vld [vmem:[#allocation8 + $0x8b4] sm:$0xff]
    %v574 = vld [vmem:[#allocation8 + $0x8bc] sm:$0xf]
    %v575 = vld [vmem:[#allocation8 + $0x8c0] sm:$0xff]
    %v576 = vld [vmem:[#allocation8 + $0x8c8] sm:$0xff]
    %v577 = vld [vmem:[#allocation8 + $0x8d0] sm:$0xff]
    %v578 = vld [vmem:[#allocation8 + $0x8d8] sm:$0xf]
    %v579 = vld [vmem:[#allocation8 + $0x8dc] sm:$0xff]
    %v580 = vld [vmem:[#allocation8 + $0x8e4] sm:$0xff]
    %v581 = vld [vmem:[#allocation8 + $0x8ec] sm:$0xff]
    %v582 = vld [vmem:[#allocation8 + $0x8f4] sm:$0xf]
    %v583 = vld [vmem:[#allocation8 + $0x8f8] sm:$0xff]
    %v584 = vld [vmem:[#allocation8 + $0x900] sm:$0xff]
    %v585 = vld [vmem:[#allocation8 + $0x908] sm:$0xff]
    %v586 = vld [vmem:[#allocation8 + $0x910] sm:$0xf]
    %v587 = vld [vmem:[#allocation8 + $0x914] sm:$0xff]
    %v588 = vld [vmem:[#allocation8 + $0x91c] sm:$0xff]
    %v589 = vld [vmem:[#allocation8 + $0x924] sm:$0xff]
    %v590 = vld [vmem:[#allocation8 + $0x92c] sm:$0xf]
    %v591 = vld [vmem:[#allocation8 + $0x930] sm:$0xff]
    %v592 = vld [vmem:[#allocation8 + $0x938] sm:$0xff]
    %v593 = vld [vmem:[#allocation8 + $0x940] sm:$0xff]
    %v594 = vld [vmem:[#allocation8 + $0x948] sm:$0xf]
    %v595 = vld [vmem:[#allocation8 + $0x94c] sm:$0xff]
    %v596 = vld [vmem:[#allocation8 + $0x954] sm:$0xff]
    %v597 = vld [vmem:[#allocation8 + $0x95c] sm:$0xff]
    %v598 = vld [vmem:[#allocation8 + $0x964] sm:$0xf]
    %v599 = vld [vmem:[#allocation8 + $0x968] sm:$0xff]
    %v600 = vld [vmem:[#allocation8 + $0x970] sm:$0xff]
    %v601 = vld [vmem:[#allocation8 + $0x978] sm:$0xff]
    %v602 = vld [vmem:[#allocation8 + $0x980] sm:$0xf]
    %v603 = vld [vmem:[#allocation8 + $0x984] sm:$0xff]
    %v604 = vld [vmem:[#allocation8 + $0x98c] sm:$0xff]
    %v605 = vld [vmem:[#allocation8 + $0x994] sm:$0xff]
    %v606 = vld [vmem:[#allocation8 + $0x99c] sm:$0xf]
    %v607 = vld [vmem:[#allocation8 + $0x9a0] sm:$0xff]
    %v608 = vld [vmem:[#allocation8 + $0x9a8] sm:$0xff]
    %v609 = vld [vmem:[#allocation8 + $0x9b0] sm:$0xff]
    %v610 = vld [vmem:[#allocation8 + $0x9b8] sm:$0xf]
    %v611 = vld [vmem:[#allocation8 + $0x9bc] sm:$0xff]
    %v612 = vld [vmem:[#allocation8 + $0x9c4] sm:$0xff]
    %v613 = vld [vmem:[#allocation8 + $0x9cc] sm:$0xff]
    %v614 = vld [vmem:[#allocation8 + $0x9d4] sm:$0xf]
    %v615 = vld [vmem:[#allocation8 + $0x9d8] sm:$0xff]
    %v616 = vld [vmem:[#allocation8 + $0x9e0] sm:$0xff]
    %v617 = vld [vmem:[#allocation8 + $0x9e8] sm:$0xff]
    %v618 = vld [vmem:[#allocation8 + $0x9f0] sm:$0xf]
    %v619 = vld [vmem:[#allocation8 + $0x9f4] sm:$0xff]
    %v620 = vld [vmem:[#allocation8 + $0x9fc] sm:$0xff]
    %v621 = vld [vmem:[#allocation8 + $0xa04] sm:$0xff]
    %v622 = vld [vmem:[#allocation8 + $0xa0c] sm:$0xf]
    %v623 = vld [vmem:[#allocation8 + $0xa10] sm:$0xff]
    %v624 = vld [vmem:[#allocation8 + $0xa18] sm:$0xff]
    %v625 = vld [vmem:[#allocation8 + $0xa20] sm:$0xff]
    %v626 = vld [vmem:[#allocation8 + $0xa28] sm:$0xf]
    %v627 = vld [vmem:[#allocation8 + $0xa2c] sm:$0xff]
    %v628 = vld [vmem:[#allocation8 + $0xa34] sm:$0xff]
    %v629 = vld [vmem:[#allocation8 + $0xa3c] sm:$0xff]
    %v630 = vld [vmem:[#allocation8 + $0xa44] sm:$0xf]
    %v631 = vld [vmem:[#allocation8 + $0xa48] sm:$0xff]
    %v632 = vld [vmem:[#allocation8 + $0xa50] sm:$0xff]
    %v633 = vld [vmem:[#allocation8 + $0xa58] sm:$0xff]
    %v634 = vld [vmem:[#allocation8 + $0xa60] sm:$0xf]
    %v635 = vld [vmem:[#allocation8 + $0xa64] sm:$0xff]
    %v636 = vld [vmem:[#allocation8 + $0xa6c] sm:$0xff]
    %v637 = vld [vmem:[#allocation8 + $0xa74] sm:$0xff]
    %v638 = vld [vmem:[#allocation8 + $0xa7c] sm:$0xf]
    %v639 = vld [vmem:[#allocation8 + $0xa80] sm:$0xff]
    %v640 = vld [vmem:[#allocation8 + $0xa88] sm:$0xff]
    %v641 = vld [vmem:[#allocation8 + $0xa90] sm:$0xff]
    %v642 = vld [vmem:[#allocation8 + $0xa98] sm:$0xf]
    %v643 = vld [vmem:[#allocation8 + $0xa9c] sm:$0xff]
    %v644 = vld [vmem:[#allocation8 + $0xaa4] sm:$0xff]
    %v645 = vld [vmem:[#allocation8 + $0xaac] sm:$0xff]
    %v646 = vld [vmem:[#allocation8 + $0xab4] sm:$0xf]
    %v647 = vld [vmem:[#allocation8 + $0xab8] sm:$0xff]
    %v648 = vld [vmem:[#allocation8 + $0xac0] sm:$0xff]
    %v649 = vld [vmem:[#allocation8 + $0xac8] sm:$0xff]
    %v650 = vld [vmem:[#allocation8 + $0xad0] sm:$0xf]
    %v651 = vld [vmem:[#allocation8 + $0xad4] sm:$0xff]
    %v652 = vld [vmem:[#allocation8 + $0xadc] sm:$0xff]
    %v653 = vld [vmem:[#allocation8 + $0xae4] sm:$0xff]
    %v654 = vld [vmem:[#allocation8 + $0xaec] sm:$0xf]
    %v655 = vld [vmem:[#allocation8 + $0xaf0] sm:$0xff]
    %v656 = vld [vmem:[#allocation8 + $0xaf8] sm:$0xff]
    %v657 = vld [vmem:[#allocation8 + $0xb00] sm:$0xff]
    %v658 = vld [vmem:[#allocation8 + $0xb08] sm:$0xf]
    %v659 = vld [vmem:[#allocation8 + $0xb0c] sm:$0xff]
    %v660 = vld [vmem:[#allocation8 + $0xb14] sm:$0xff]
    %v661 = vld [vmem:[#allocation8 + $0xb1c] sm:$0xff]
    %v662 = vld [vmem:[#allocation8 + $0xb24] sm:$0xf]
    %v663 = vld [vmem:[#allocation8 + $0xb28] sm:$0xff]
    %v664 = vld [vmem:[#allocation8 + $0xb30] sm:$0xff]
    %v665 = vld [vmem:[#allocation8 + $0xb38] sm:$0xff]
    %v666 = vld [vmem:[#allocation8 + $0xb40] sm:$0xf]
    %v667 = vld [vmem:[#allocation8 + $0xb44] sm:$0xff]
    %v668 = vld [vmem:[#allocation8 + $0xb4c] sm:$0xff]
    %v669 = vld [vmem:[#allocation8 + $0xb54] sm:$0xff]
    %v670 = vld [vmem:[#allocation8 + $0xb5c] sm:$0xf]
    %v671 = vld [vmem:[#allocation8 + $0xb60] sm:$0xff]
    %v672 = vld [vmem:[#allocation8 + $0xb68] sm:$0xff]
    %v673 = vld [vmem:[#allocation8 + $0xb70] sm:$0xff]
    %v674 = vld [vmem:[#allocation8 + $0xb78] sm:$0xf]
    %v675 = vld [vmem:[#allocation8 + $0xb7c] sm:$0xff]
    %v676 = vld [vmem:[#allocation8 + $0xb84] sm:$0xff]
    %v677 = vld [vmem:[#allocation8 + $0xb8c] sm:$0xff]
    %v678 = vld [vmem:[#allocation8 + $0xb94] sm:$0xf]
    %v679 = vld [vmem:[#allocation8 + $0xb98] sm:$0xff]
    %v680 = vld [vmem:[#allocation8 + $0xba0] sm:$0xff]
    %v681 = vld [vmem:[#allocation8 + $0xba8] sm:$0xff]
    %v682 = vld [vmem:[#allocation8 + $0xbb0] sm:$0xf]
    %v683 = vld [vmem:[#allocation8 + $0xbb4] sm:$0xff]
    %v684 = vld [vmem:[#allocation8 + $0xbbc] sm:$0xff]
    %v685 = vld [vmem:[#allocation8 + $0xbc4] sm:$0xff]
    %v686 = vld [vmem:[#allocation8 + $0xbcc] sm:$0xf]
    %v687 = vld [vmem:[#allocation8 + $0xbd0] sm:$0xff]
    %v688 = vld [vmem:[#allocation8 + $0xbd8] sm:$0xff]
    %v689 = vld [vmem:[#allocation8 + $0xbe0] sm:$0xff]
    %v690 = vld [vmem:[#allocation8 + $0xbe8] sm:$0xf]
    %v691 = vld [vmem:[#allocation8 + $0xbec] sm:$0xff]
    %v692 = vld [vmem:[#allocation8 + $0xbf4] sm:$0xff]
    %v693 = vld [vmem:[#allocation8 + $0xbfc] sm:$0xff]
    %v694 = vld [vmem:[#allocation8 + $0xc04] sm:$0xf]
    %v695 = vld [vmem:[#allocation8 + $0xc08] sm:$0xff]
    %v696 = vld [vmem:[#allocation8 + $0xc10] sm:$0xff]
    %v697 = vld [vmem:[#allocation8 + $0xc18] sm:$0xff]
    %v698 = vld [vmem:[#allocation8 + $0xc20] sm:$0xf]
    %v699 = vld [vmem:[#allocation8 + $0xc24] sm:$0xff]
    %v700 = vld [vmem:[#allocation8 + $0xc2c] sm:$0xff]
    %v701 = vld [vmem:[#allocation8 + $0xc34] sm:$0xff]
    %v702 = vld [vmem:[#allocation8 + $0xc3c] sm:$0xf]
    %v703 = vld [vmem:[#allocation10] sm:$0xff]
    %v704 = vld [vmem:[#allocation10 + $0x8] sm:$0xff]
    %v705 = vld [vmem:[#allocation10 + $0x10] sm:$0xff]
    %v706 = vld [vmem:[#allocation10 + $0x18] sm:$0xf]
    %v707 = vld [vmem:[#allocation10 + $0x1c] sm:$0xff]
    %v708 = vld [vmem:[#allocation10 + $0x24] sm:$0xff]
    %v709 = vld [vmem:[#allocation10 + $0x2c] sm:$0xff]
    %v710 = vld [vmem:[#allocation10 + $0x34] sm:$0xf]
    %v711 = vld [vmem:[#allocation10 + $0x38] sm:$0xff]
    %v712 = vld [vmem:[#allocation10 + $0x40] sm:$0xff]
    %v713 = vld [vmem:[#allocation10 + $0x48] sm:$0xff]
    %v714 = vld [vmem:[#allocation10 + $0x50] sm:$0xf]
    %v715 = vld [vmem:[#allocation10 + $0x54] sm:$0xff]
    %v716 = vld [vmem:[#allocation10 + $0x5c] sm:$0xff]
    %v717 = vld [vmem:[#allocation10 + $0x64] sm:$0xff]
    %v718 = vld [vmem:[#allocation10 + $0x6c] sm:$0xf]
    %v719 = vld [vmem:[#allocation10 + $0x70] sm:$0xff]
    %v720 = vld [vmem:[#allocation10 + $0x78] sm:$0xff]
    %v721 = vld [vmem:[#allocation10 + $0x80] sm:$0xff]
    %v722 = vld [vmem:[#allocation10 + $0x88] sm:$0xf]
    %v723 = vld [vmem:[#allocation10 + $0x8c] sm:$0xff]
    %v724 = vld [vmem:[#allocation10 + $0x94] sm:$0xff]
    %v725 = vld [vmem:[#allocation10 + $0x9c] sm:$0xff]
    %v726 = vld [vmem:[#allocation10 + $0xa4] sm:$0xf]
    %v727 = vld [vmem:[#allocation10 + $0xa8] sm:$0xff]
    %v728 = vld [vmem:[#allocation10 + $0xb0] sm:$0xff]
    %v729 = vld [vmem:[#allocation10 + $0xb8] sm:$0xff]
    %v730 = vld [vmem:[#allocation10 + $0xc0] sm:$0xf]
    %v731 = vld [vmem:[#allocation10 + $0xc4] sm:$0xff]
    %v732 = vld [vmem:[#allocation10 + $0xcc] sm:$0xff]
    %v733 = vld [vmem:[#allocation10 + $0xd4] sm:$0xff]
    %v734 = vld [vmem:[#allocation10 + $0xdc] sm:$0xf]
    %v735 = vld [vmem:[#allocation10 + $0xe0] sm:$0xff]
    %v736 = vld [vmem:[#allocation10 + $0xe8] sm:$0xff]
    %v737 = vld [vmem:[#allocation10 + $0xf0] sm:$0xff]
    %v738 = vld [vmem:[#allocation10 + $0xf8] sm:$0xf]
    %v739 = vld [vmem:[#allocation10 + $0xfc] sm:$0xff]
    %v740 = vld [vmem:[#allocation10 + $0x104] sm:$0xff]
    %v741 = vld [vmem:[#allocation10 + $0x10c] sm:$0xff]
    %v742 = vld [vmem:[#allocation10 + $0x114] sm:$0xf]
    %v743 = vld [vmem:[#allocation10 + $0x118] sm:$0xff]
    %v744 = vld [vmem:[#allocation10 + $0x120] sm:$0xff]
    %v745 = vld [vmem:[#allocation10 + $0x128] sm:$0xff]
    %v746 = vld [vmem:[#allocation10 + $0x130] sm:$0xf]
    %v747 = vld [vmem:[#allocation10 + $0x134] sm:$0xff]
    %v748 = vld [vmem:[#allocation10 + $0x13c] sm:$0xff]
    %v749 = vld [vmem:[#allocation10 + $0x144] sm:$0xff]
    %v750 = vld [vmem:[#allocation10 + $0x14c] sm:$0xf]
    %v751 = vld [vmem:[#allocation10 + $0x150] sm:$0xff]
    %v752 = vld [vmem:[#allocation10 + $0x158] sm:$0xff]
    %v753 = vld [vmem:[#allocation10 + $0x160] sm:$0xff]
    %v754 = vld [vmem:[#allocation10 + $0x168] sm:$0xf]
    %v755 = vld [vmem:[#allocation10 + $0x16c] sm:$0xff]
    %v756 = vld [vmem:[#allocation10 + $0x174] sm:$0xff]
    %v757 = vld [vmem:[#allocation10 + $0x17c] sm:$0xff]
    %v758 = vld [vmem:[#allocation10 + $0x184] sm:$0xf]
    %v759 = vld [vmem:[#allocation10 + $0x188] sm:$0xff]
    %v760 = vld [vmem:[#allocation10 + $0x190] sm:$0xff]
    %v761 = vld [vmem:[#allocation10 + $0x198] sm:$0xff]
    %v762 = vld [vmem:[#allocation10 + $0x1a0] sm:$0xf]
    %v763 = vld [vmem:[#allocation10 + $0x1a4] sm:$0xff]
    %v764 = vld [vmem:[#allocation10 + $0x1ac] sm:$0xff]
    %v765 = vld [vmem:[#allocation10 + $0x1b4] sm:$0xff]
    %v766 = vld [vmem:[#allocation10 + $0x1bc] sm:$0xf]
    %v767 = vld [vmem:[#allocation10 + $0x1c0] sm:$0xff]
    %v768 = vld [vmem:[#allocation10 + $0x1c8] sm:$0xff]
    %v769 = vld [vmem:[#allocation10 + $0x1d0] sm:$0xff]
    %v770 = vld [vmem:[#allocation10 + $0x1d8] sm:$0xf]
    %v771 = vld [vmem:[#allocation10 + $0x1dc] sm:$0xff]
    %v772 = vld [vmem:[#allocation10 + $0x1e4] sm:$0xff]
    %v773 = vld [vmem:[#allocation10 + $0x1ec] sm:$0xff]
    %v774 = vld [vmem:[#allocation10 + $0x1f4] sm:$0xf]
    %v775 = vld [vmem:[#allocation10 + $0x1f8] sm:$0xff]
    %v776 = vld [vmem:[#allocation10 + $0x200] sm:$0xff]
    %v777 = vld [vmem:[#allocation10 + $0x208] sm:$0xff]
    %v778 = vld [vmem:[#allocation10 + $0x210] sm:$0xf]
    %v779 = vld [vmem:[#allocation10 + $0x214] sm:$0xff]
    %v780 = vld [vmem:[#allocation10 + $0x21c] sm:$0xff]
    %v781 = vld [vmem:[#allocation10 + $0x224] sm:$0xff]
    %v782 = vld [vmem:[#allocation10 + $0x22c] sm:$0xf]
    %v783 = vld [vmem:[#allocation10 + $0x230] sm:$0xff]
    %v784 = vld [vmem:[#allocation10 + $0x238] sm:$0xff]
    %v785 = vld [vmem:[#allocation10 + $0x240] sm:$0xff]
    %v786 = vld [vmem:[#allocation10 + $0x248] sm:$0xf]
    %v787 = vld [vmem:[#allocation10 + $0x24c] sm:$0xff]
    %v788 = vld [vmem:[#allocation10 + $0x254] sm:$0xff]
    %v789 = vld [vmem:[#allocation10 + $0x25c] sm:$0xff]
    %v790 = vld [vmem:[#allocation10 + $0x264] sm:$0xf]
    %v791 = vld [vmem:[#allocation10 + $0x268] sm:$0xff]
    %v792 = vld [vmem:[#allocation10 + $0x270] sm:$0xff]
    %v793 = vld [vmem:[#allocation10 + $0x278] sm:$0xff]
    %v794 = vld [vmem:[#allocation10 + $0x280] sm:$0xf]
    %v795 = vld [vmem:[#allocation10 + $0x284] sm:$0xff]
    %v796 = vld [vmem:[#allocation10 + $0x28c] sm:$0xff]
    %v797 = vld [vmem:[#allocation10 + $0x294] sm:$0xff]
    %v798 = vld [vmem:[#allocation10 + $0x29c] sm:$0xf]
    %v799 = vld [vmem:[#allocation10 + $0x2a0] sm:$0xff]
    %v800 = vld [vmem:[#allocation10 + $0x2a8] sm:$0xff]
    %v801 = vld [vmem:[#allocation10 + $0x2b0] sm:$0xff]
    %v802 = vld [vmem:[#allocation10 + $0x2b8] sm:$0xf]
    %v803 = vld [vmem:[#allocation10 + $0x2bc] sm:$0xff]
    %v804 = vld [vmem:[#allocation10 + $0x2c4] sm:$0xff]
    %v805 = vld [vmem:[#allocation10 + $0x2cc] sm:$0xff]
    %v806 = vld [vmem:[#allocation10 + $0x2d4] sm:$0xf]
    %v807 = vld [vmem:[#allocation10 + $0x2d8] sm:$0xff]
    %v808 = vld [vmem:[#allocation10 + $0x2e0] sm:$0xff]
    %v809 = vld [vmem:[#allocation10 + $0x2e8] sm:$0xff]
    %v810 = vld [vmem:[#allocation10 + $0x2f0] sm:$0xf]
    %v811 = vld [vmem:[#allocation10 + $0x2f4] sm:$0xff]
    %v812 = vld [vmem:[#allocation10 + $0x2fc] sm:$0xff]
    %v813 = vld [vmem:[#allocation10 + $0x304] sm:$0xff]
    %v814 = vld [vmem:[#allocation10 + $0x30c] sm:$0xf]
    %v815 = vld [vmem:[#allocation10 + $0x310] sm:$0xff]
    %v816 = vld [vmem:[#allocation10 + $0x318] sm:$0xff]
    %v817 = vld [vmem:[#allocation10 + $0x320] sm:$0xff]
    %v818 = vld [vmem:[#allocation10 + $0x328] sm:$0xf]
    %v819 = vld [vmem:[#allocation10 + $0x32c] sm:$0xff]
    %v820 = vld [vmem:[#allocation10 + $0x334] sm:$0xff]
    %v821 = vld [vmem:[#allocation10 + $0x33c] sm:$0xff]
    %v822 = vld [vmem:[#allocation10 + $0x344] sm:$0xf]
    %v823 = vld [vmem:[#allocation10 + $0x348] sm:$0xff]
    %v824 = vld [vmem:[#allocation10 + $0x350] sm:$0xff]
    %v825 = vld [vmem:[#allocation10 + $0x358] sm:$0xff]
    %v826 = vld [vmem:[#allocation10 + $0x360] sm:$0xf]
    %v827 = vld [vmem:[#allocation10 + $0x364] sm:$0xff]
    %v828 = vld [vmem:[#allocation10 + $0x36c] sm:$0xff]
    %v829 = vld [vmem:[#allocation10 + $0x374] sm:$0xff]
    %v830 = vld [vmem:[#allocation10 + $0x37c] sm:$0xf]
    %v831 = vld [vmem:[#allocation10 + $0x380] sm:$0xff]
    %v832 = vld [vmem:[#allocation10 + $0x388] sm:$0xff]
    %v833 = vld [vmem:[#allocation10 + $0x390] sm:$0xff]
    %v834 = vld [vmem:[#allocation10 + $0x398] sm:$0xf]
    %v835 = vld [vmem:[#allocation10 + $0x39c] sm:$0xff]
    %v836 = vld [vmem:[#allocation10 + $0x3a4] sm:$0xff]
    %v837 = vld [vmem:[#allocation10 + $0x3ac] sm:$0xff]
    %v838 = vld [vmem:[#allocation10 + $0x3b4] sm:$0xf]
    %v839 = vld [vmem:[#allocation10 + $0x3b8] sm:$0xff]
    %v840 = vld [vmem:[#allocation10 + $0x3c0] sm:$0xff]
    %v841 = vld [vmem:[#allocation10 + $0x3c8] sm:$0xff]
    %v842 = vld [vmem:[#allocation10 + $0x3d0] sm:$0xf]
    %v843 = vld [vmem:[#allocation10 + $0x3d4] sm:$0xff]
    %v844 = vld [vmem:[#allocation10 + $0x3dc] sm:$0xff]
    %v845 = vld [vmem:[#allocation10 + $0x3e4] sm:$0xff]
    %v846 = vld [vmem:[#allocation10 + $0x3ec] sm:$0xf]
    %v847 = vld [vmem:[#allocation10 + $0x3f0] sm:$0xff]
    %v848 = vld [vmem:[#allocation10 + $0x3f8] sm:$0xff]
    %v849 = vld [vmem:[#allocation10 + $0x400] sm:$0xff]
    %v850 = vld [vmem:[#allocation10 + $0x408] sm:$0xf]
    %v851 = vld [vmem:[#allocation10 + $0x40c] sm:$0xff]
    %v852 = vld [vmem:[#allocation10 + $0x414] sm:$0xff]
    %v853 = vld [vmem:[#allocation10 + $0x41c] sm:$0xff]
    %v854 = vld [vmem:[#allocation10 + $0x424] sm:$0xf]
    %v855 = vld [vmem:[#allocation10 + $0x428] sm:$0xff]
    %v856 = vld [vmem:[#allocation10 + $0x430] sm:$0xff]
    %v857 = vld [vmem:[#allocation10 + $0x438] sm:$0xff]
    %v858 = vld [vmem:[#allocation10 + $0x440] sm:$0xf]
    %v859 = vld [vmem:[#allocation10 + $0x444] sm:$0xff]
    %v860 = vld [vmem:[#allocation10 + $0x44c] sm:$0xff]
    %v861 = vld [vmem:[#allocation10 + $0x454] sm:$0xff]
    %v862 = vld [vmem:[#allocation10 + $0x45c] sm:$0xf]
    %v863 = vld [vmem:[#allocation10 + $0x460] sm:$0xff]
    %v864 = vld [vmem:[#allocation10 + $0x468] sm:$0xff]
    %v865 = vld [vmem:[#allocation10 + $0x470] sm:$0xff]
    %v866 = vld [vmem:[#allocation10 + $0x478] sm:$0xf]
    %v867 = vld [vmem:[#allocation10 + $0x47c] sm:$0xff]
    %v868 = vld [vmem:[#allocation10 + $0x484] sm:$0xff]
    %v869 = vld [vmem:[#allocation10 + $0x48c] sm:$0xff]
    %v870 = vld [vmem:[#allocation10 + $0x494] sm:$0xf]
    %v871 = vld [vmem:[#allocation10 + $0x498] sm:$0xff]
    %v872 = vld [vmem:[#allocation10 + $0x4a0] sm:$0xff]
    %v873 = vld [vmem:[#allocation10 + $0x4a8] sm:$0xff]
    %v874 = vld [vmem:[#allocation10 + $0x4b0] sm:$0xf]
    %v875 = vld [vmem:[#allocation10 + $0x4b4] sm:$0xff]
    %v876 = vld [vmem:[#allocation10 + $0x4bc] sm:$0xff]
    %v877 = vld [vmem:[#allocation10 + $0x4c4] sm:$0xff]
    %v878 = vld [vmem:[#allocation10 + $0x4cc] sm:$0xf]
    %v879 = vld [vmem:[#allocation10 + $0x4d0] sm:$0xff]
    %v880 = vld [vmem:[#allocation10 + $0x4d8] sm:$0xff]
    %v881 = vld [vmem:[#allocation10 + $0x4e0] sm:$0xff]
    %v882 = vld [vmem:[#allocation10 + $0x4e8] sm:$0xf]
    %v883 = vld [vmem:[#allocation10 + $0x4ec] sm:$0xff]
    %v884 = vld [vmem:[#allocation10 + $0x4f4] sm:$0xff]
    %v885 = vld [vmem:[#allocation10 + $0x4fc] sm:$0xff]
    %v886 = vld [vmem:[#allocation10 + $0x504] sm:$0xf]
    %v887 = vld [vmem:[#allocation10 + $0x508] sm:$0xff]
    %v888 = vld [vmem:[#allocation10 + $0x510] sm:$0xff]
    %v889 = vld [vmem:[#allocation10 + $0x518] sm:$0xff]
    %v890 = vld [vmem:[#allocation10 + $0x520] sm:$0xf]
    %v891 = vld [vmem:[#allocation10 + $0x524] sm:$0xff]
    %v892 = vld [vmem:[#allocation10 + $0x52c] sm:$0xff]
    %v893 = vld [vmem:[#allocation10 + $0x534] sm:$0xff]
    %v894 = vld [vmem:[#allocation10 + $0x53c] sm:$0xf]
    %v895 = vld [vmem:[#allocation10 + $0x540] sm:$0xff]
    %v896 = vld [vmem:[#allocation10 + $0x548] sm:$0xff]
    %v897 = vld [vmem:[#allocation10 + $0x550] sm:$0xff]
    %v898 = vld [vmem:[#allocation10 + $0x558] sm:$0xf]
    %v899 = vld [vmem:[#allocation10 + $0x55c] sm:$0xff]
    %v900 = vld [vmem:[#allocation10 + $0x564] sm:$0xff]
    %v901 = vld [vmem:[#allocation10 + $0x56c] sm:$0xff]
    %v902 = vld [vmem:[#allocation10 + $0x574] sm:$0xf]
    %v903 = vld [vmem:[#allocation10 + $0x578] sm:$0xff]
    %v904 = vld [vmem:[#allocation10 + $0x580] sm:$0xff]
    %v905 = vld [vmem:[#allocation10 + $0x588] sm:$0xff]
    %v906 = vld [vmem:[#allocation10 + $0x590] sm:$0xf]
    %v907 = vld [vmem:[#allocation10 + $0x594] sm:$0xff]
    %v908 = vld [vmem:[#allocation10 + $0x59c] sm:$0xff]
    %v909 = vld [vmem:[#allocation10 + $0x5a4] sm:$0xff]
    %v910 = vld [vmem:[#allocation10 + $0x5ac] sm:$0xf]
    %v911 = vld [vmem:[#allocation10 + $0x5b0] sm:$0xff]
    %v912 = vld [vmem:[#allocation10 + $0x5b8] sm:$0xff]
    %v913 = vld [vmem:[#allocation10 + $0x5c0] sm:$0xff]
    %v914 = vld [vmem:[#allocation10 + $0x5c8] sm:$0xf]
    %v915 = vld [vmem:[#allocation10 + $0x5cc] sm:$0xff]
    %v916 = vld [vmem:[#allocation10 + $0x5d4] sm:$0xff]
    %v917 = vld [vmem:[#allocation10 + $0x5dc] sm:$0xff]
    %v918 = vld [vmem:[#allocation10 + $0x5e4] sm:$0xf]
    %v919 = vld [vmem:[#allocation10 + $0x5e8] sm:$0xff]
    %v920 = vld [vmem:[#allocation10 + $0x5f0] sm:$0xff]
    %v921 = vld [vmem:[#allocation10 + $0x5f8] sm:$0xff]
    %v922 = vld [vmem:[#allocation10 + $0x600] sm:$0xf]
    %v923 = vld [vmem:[#allocation10 + $0x604] sm:$0xff]
    %v924 = vld [vmem:[#allocation10 + $0x60c] sm:$0xff]
    %v925 = vld [vmem:[#allocation10 + $0x614] sm:$0xff]
    %v926 = vld [vmem:[#allocation10 + $0x61c] sm:$0xf]
    %v927 = vld [vmem:[#allocation10 + $0x620] sm:$0xff]
    %v928 = vld [vmem:[#allocation10 + $0x628] sm:$0xff]
    %v929 = vld [vmem:[#allocation10 + $0x630] sm:$0xff]
    %v930 = vld [vmem:[#allocation10 + $0x638] sm:$0xf]
    %v931 = vld [vmem:[#allocation10 + $0x63c] sm:$0xff]
    %v932 = vld [vmem:[#allocation10 + $0x644] sm:$0xff]
    %v933 = vld [vmem:[#allocation10 + $0x64c] sm:$0xff]
    %v934 = vld [vmem:[#allocation10 + $0x654] sm:$0xf]
    %v935 = vld [vmem:[#allocation10 + $0x658] sm:$0xff]
    %v936 = vld [vmem:[#allocation10 + $0x660] sm:$0xff]
    %v937 = vld [vmem:[#allocation10 + $0x668] sm:$0xff]
    %v938 = vld [vmem:[#allocation10 + $0x670] sm:$0xf]
    %v939 = vld [vmem:[#allocation10 + $0x674] sm:$0xff]
    %v940 = vld [vmem:[#allocation10 + $0x67c] sm:$0xff]
    %v941 = vld [vmem:[#allocation10 + $0x684] sm:$0xff]
    %v942 = vld [vmem:[#allocation10 + $0x68c] sm:$0xf]
    %v943 = vld [vmem:[#allocation10 + $0x690] sm:$0xff]
    %v944 = vld [vmem:[#allocation10 + $0x698] sm:$0xff]
    %v945 = vld [vmem:[#allocation10 + $0x6a0] sm:$0xff]
    %v946 = vld [vmem:[#allocation10 + $0x6a8] sm:$0xf]
    %v947 = vld [vmem:[#allocation10 + $0x6ac] sm:$0xff]
    %v948 = vld [vmem:[#allocation10 + $0x6b4] sm:$0xff]
    %v949 = vld [vmem:[#allocation10 + $0x6bc] sm:$0xff]
    %v950 = vld [vmem:[#allocation10 + $0x6c4] sm:$0xf]
    %v951 = vld [vmem:[#allocation10 + $0x6c8] sm:$0xff]
    %v952 = vld [vmem:[#allocation10 + $0x6d0] sm:$0xff]
    %v953 = vld [vmem:[#allocation10 + $0x6d8] sm:$0xff]
    %v954 = vld [vmem:[#allocation10 + $0x6e0] sm:$0xf]
    %v955 = vld [vmem:[#allocation10 + $0x6e4] sm:$0xff]
    %v956 = vld [vmem:[#allocation10 + $0x6ec] sm:$0xff]
    %v957 = vld [vmem:[#allocation10 + $0x6f4] sm:$0xff]
    %v958 = vld [vmem:[#allocation10 + $0x6fc] sm:$0xf]
    %v963 = vunpack.c.l.b16 %v251
    %v964 = vunpack.c.h.b16 %v251
    %v965 = vunpack.c.l.b16 %v252
    %v966 = vunpack.c.h.b16 %v252
    %v967 = vunpack.c.l.b16 %v253
    %v968 = vunpack.c.h.b16 %v253
    %v969 = vunpack.c.l.b16 %v254
    %v970 = vunpack.c.h.b16 %v254
    %v971 = vpack.c.b16 %v967, %v963
    %v972 = vpack.c.b16 %v968, %v964
    %v973 = vpack.c.b16 %v969, %v965
    %v974 = vpack.c.b16 %v970, %v966
    %v1235 = vunpack.c.l.b16 %v703
    %v1236 = vunpack.c.h.b16 %v703
    %v1237 = vunpack.c.l.b16 %v704
    %v1238 = vunpack.c.h.b16 %v704
    %v1239 = vunpack.c.l.b16 %v705
    %v1240 = vunpack.c.h.b16 %v705
    %v1241 = vunpack.c.l.b16 %v706
    %v1242 = vunpack.c.l.b16 %v707
    %v1243 = vunpack.c.h.b16 %v707
    %v1244 = vunpack.c.l.b16 %v708
    %v1245 = vunpack.c.h.b16 %v708
    %v1246 = vunpack.c.l.b16 %v709
    %v1247 = vunpack.c.h.b16 %v709
    %v1248 = vunpack.c.l.b16 %v710
    %v1249 = vunpack.c.l.b16 %v711
    %v1250 = vunpack.c.h.b16 %v711
    %v1251 = vunpack.c.l.b16 %v712
    %v1252 = vunpack.c.h.b16 %v712
    %v1253 = vunpack.c.l.b16 %v713
    %v1254 = vunpack.c.h.b16 %v713
    %v1255 = vunpack.c.l.b16 %v714
    %v1256 = vunpack.c.l.b16 %v715
    %v1257 = vunpack.c.h.b16 %v715
    %v1258 = vunpack.c.l.b16 %v716
    %v1259 = vunpack.c.h.b16 %v716
    %v1260 = vunpack.c.l.b16 %v717
    %v1261 = vunpack.c.h.b16 %v717
    %v1262 = vunpack.c.l.b16 %v718
    %v1263 = vunpack.c.l.b16 %v719
    %v1264 = vunpack.c.h.b16 %v719
    %v1265 = vunpack.c.l.b16 %v720
    %v1266 = vunpack.c.h.b16 %v720
    %v1267 = vunpack.c.l.b16 %v721
    %v1268 = vunpack.c.h.b16 %v721
    %v1269 = vunpack.c.l.b16 %v722
    %v1270 = vunpack.c.l.b16 %v723
    %v1271 = vunpack.c.h.b16 %v723
    %v1272 = vunpack.c.l.b16 %v724
    %v1273 = vunpack.c.h.b16 %v724
    %v1274 = vunpack.c.l.b16 %v725
    %v1275 = vunpack.c.h.b16 %v725
    %v1276 = vunpack.c.l.b16 %v726
    %v1277 = vunpack.c.l.b16 %v727
    %v1278 = vunpack.c.h.b16 %v727
    %v1279 = vunpack.c.l.b16 %v728
    %v1280 = vunpack.c.h.b16 %v728
    %v1281 = vunpack.c.l.b16 %v729
    %v1282 = vunpack.c.h.b16 %v729
    %v1283 = vunpack.c.l.b16 %v730
    %v1284 = vunpack.c.l.b16 %v731
    %v1285 = vunpack.c.h.b16 %v731
    %v1286 = vunpack.c.l.b16 %v732
    %v1287 = vunpack.c.h.b16 %v732
    %v1288 = vunpack.c.l.b16 %v733
    %v1289 = vunpack.c.h.b16 %v733
    %v1290 = vunpack.c.l.b16 %v734
    %v1291 = vunpack.c.l.b16 %v735
    %v1292 = vunpack.c.h.b16 %v735
    %v1293 = vunpack.c.l.b16 %v736
    %v1294 = vunpack.c.h.b16 %v736
    %v1295 = vunpack.c.l.b16 %v737
    %v1296 = vunpack.c.h.b16 %v737
    %v1297 = vunpack.c.l.b16 %v738
    %v1298 = vunpack.c.l.b16 %v739
    %v1299 = vunpack.c.h.b16 %v739
    %v1300 = vunpack.c.l.b16 %v740
    %v1301 = vunpack.c.h.b16 %v740
    %v1302 = vunpack.c.l.b16 %v741
    %v1303 = vunpack.c.h.b16 %v741
    %v1304 = vunpack.c.l.b16 %v742
    %v1305 = vunpack.c.l.b16 %v743
    %v1306 = vunpack.c.h.b16 %v743
    %v1307 = vunpack.c.l.b16 %v744
    %v1308 = vunpack.c.h.b16 %v744
    %v1309 = vunpack.c.l.b16 %v745
    %v1310 = vunpack.c.h.b16 %v745
    %v1311 = vunpack.c.l.b16 %v746
    %v1312 = vunpack.c.l.b16 %v747
    %v1313 = vunpack.c.h.b16 %v747
    %v1314 = vunpack.c.l.b16 %v748
    %v1315 = vunpack.c.h.b16 %v748
    %v1316 = vunpack.c.l.b16 %v749
    %v1317 = vunpack.c.h.b16 %v749
    %v1318 = vunpack.c.l.b16 %v750
    %v1319 = vunpack.c.l.b16 %v751
    %v1320 = vunpack.c.h.b16 %v751
    %v1321 = vunpack.c.l.b16 %v752
    %v1322 = vunpack.c.h.b16 %v752
    %v1323 = vunpack.c.l.b16 %v753
    %v1324 = vunpack.c.h.b16 %v753
    %v1325 = vunpack.c.l.b16 %v754
    %v1326 = vunpack.c.l.b16 %v755
    %v1327 = vunpack.c.h.b16 %v755
    %v1328 = vunpack.c.l.b16 %v756
    %v1329 = vunpack.c.h.b16 %v756
    %v1330 = vunpack.c.l.b16 %v757
    %v1331 = vunpack.c.h.b16 %v757
    %v1332 = vunpack.c.l.b16 %v758
    %v1333 = vunpack.c.l.b16 %v759
    %v1334 = vunpack.c.h.b16 %v759
    %v1335 = vunpack.c.l.b16 %v760
    %v1336 = vunpack.c.h.b16 %v760
    %v1337 = vunpack.c.l.b16 %v761
    %v1338 = vunpack.c.h.b16 %v761
    %v1339 = vunpack.c.l.b16 %v762
    %v1340 = vunpack.c.l.b16 %v763
    %v1341 = vunpack.c.h.b16 %v763
    %v1342 = vunpack.c.l.b16 %v764
    %v1343 = vunpack.c.h.b16 %v764
    %v1344 = vunpack.c.l.b16 %v765
    %v1345 = vunpack.c.h.b16 %v765
    %v1346 = vunpack.c.l.b16 %v766
    %v1347 = vunpack.c.l.b16 %v767
    %v1348 = vunpack.c.h.b16 %v767
    %v1349 = vunpack.c.l.b16 %v768
    %v1350 = vunpack.c.h.b16 %v768
    %v1351 = vunpack.c.l.b16 %v769
    %v1352 = vunpack.c.h.b16 %v769
    %v1353 = vunpack.c.l.b16 %v770
    %v1354 = vunpack.c.l.b16 %v771
    %v1355 = vunpack.c.h.b16 %v771
    %v1356 = vunpack.c.l.b16 %v772
    %v1357 = vunpack.c.h.b16 %v772
    %v1358 = vunpack.c.l.b16 %v773
    %v1359 = vunpack.c.h.b16 %v773
    %v1360 = vunpack.c.l.b16 %v774
    %v1361 = vunpack.c.l.b16 %v775
    %v1362 = vunpack.c.h.b16 %v775
    %v1363 = vunpack.c.l.b16 %v776
    %v1364 = vunpack.c.h.b16 %v776
    %v1365 = vunpack.c.l.b16 %v777
    %v1366 = vunpack.c.h.b16 %v777
    %v1367 = vunpack.c.l.b16 %v778
    %v1368 = vunpack.c.l.b16 %v779
    %v1369 = vunpack.c.h.b16 %v779
    %v1370 = vunpack.c.l.b16 %v780
    %v1371 = vunpack.c.h.b16 %v780
    %v1372 = vunpack.c.l.b16 %v781
    %v1373 = vunpack.c.h.b16 %v781
    %v1374 = vunpack.c.l.b16 %v782
    %v1375 = vunpack.c.l.b16 %v783
    %v1376 = vunpack.c.h.b16 %v783
    %v1377 = vunpack.c.l.b16 %v784
    %v1378 = vunpack.c.h.b16 %v784
    %v1379 = vunpack.c.l.b16 %v785
    %v1380 = vunpack.c.h.b16 %v785
    %v1381 = vunpack.c.l.b16 %v786
    %v1382 = vunpack.c.l.b16 %v787
    %v1383 = vunpack.c.h.b16 %v787
    %v1384 = vunpack.c.l.b16 %v788
    %v1385 = vunpack.c.h.b16 %v788
    %v1386 = vunpack.c.l.b16 %v789
    %v1387 = vunpack.c.h.b16 %v789
    %v1388 = vunpack.c.l.b16 %v790
    %v1389 = vunpack.c.l.b16 %v791
    %v1390 = vunpack.c.h.b16 %v791
    %v1391 = vunpack.c.l.b16 %v792
    %v1392 = vunpack.c.h.b16 %v792
    %v1393 = vunpack.c.l.b16 %v793
    %v1394 = vunpack.c.h.b16 %v793
    %v1395 = vunpack.c.l.b16 %v794
    %v1396 = vunpack.c.l.b16 %v795
    %v1397 = vunpack.c.h.b16 %v795
    %v1398 = vunpack.c.l.b16 %v796
    %v1399 = vunpack.c.h.b16 %v796
    %v1400 = vunpack.c.l.b16 %v797
    %v1401 = vunpack.c.h.b16 %v797
    %v1402 = vunpack.c.l.b16 %v798
    %v1403 = vunpack.c.l.b16 %v799
    %v1404 = vunpack.c.h.b16 %v799
    %v1405 = vunpack.c.l.b16 %v800
    %v1406 = vunpack.c.h.b16 %v800
    %v1407 = vunpack.c.l.b16 %v801
    %v1408 = vunpack.c.h.b16 %v801
    %v1409 = vunpack.c.l.b16 %v802
    %v1410 = vunpack.c.l.b16 %v803
    %v1411 = vunpack.c.h.b16 %v803
    %v1412 = vunpack.c.l.b16 %v804
    %v1413 = vunpack.c.h.b16 %v804
    %v1414 = vunpack.c.l.b16 %v805
    %v1415 = vunpack.c.h.b16 %v805
    %v1416 = vunpack.c.l.b16 %v806
    %v1417 = vunpack.c.l.b16 %v807
    %v1418 = vunpack.c.h.b16 %v807
    %v1419 = vunpack.c.l.b16 %v808
    %v1420 = vunpack.c.h.b16 %v808
    %v1421 = vunpack.c.l.b16 %v809
    %v1422 = vunpack.c.h.b16 %v809
    %v1423 = vunpack.c.l.b16 %v810
    %v1424 = vunpack.c.l.b16 %v811
    %v1425 = vunpack.c.h.b16 %v811
    %v1426 = vunpack.c.l.b16 %v812
    %v1427 = vunpack.c.h.b16 %v812
    %v1428 = vunpack.c.l.b16 %v813
    %v1429 = vunpack.c.h.b16 %v813
    %v1430 = vunpack.c.l.b16 %v814
    %v1431 = vunpack.c.l.b16 %v815
    %v1432 = vunpack.c.h.b16 %v815
    %v1433 = vunpack.c.l.b16 %v816
    %v1434 = vunpack.c.h.b16 %v816
    %v1435 = vunpack.c.l.b16 %v817
    %v1436 = vunpack.c.h.b16 %v817
    %v1437 = vunpack.c.l.b16 %v818
    %v1438 = vunpack.c.l.b16 %v819
    %v1439 = vunpack.c.h.b16 %v819
    %v1440 = vunpack.c.l.b16 %v820
    %v1441 = vunpack.c.h.b16 %v820
    %v1442 = vunpack.c.l.b16 %v821
    %v1443 = vunpack.c.h.b16 %v821
    %v1444 = vunpack.c.l.b16 %v822
    %v1445 = vunpack.c.l.b16 %v823
    %v1446 = vunpack.c.h.b16 %v823
    %v1447 = vunpack.c.l.b16 %v824
    %v1448 = vunpack.c.h.b16 %v824
    %v1449 = vunpack.c.l.b16 %v825
    %v1450 = vunpack.c.h.b16 %v825
    %v1451 = vunpack.c.l.b16 %v826
    %v1452 = vunpack.c.l.b16 %v827
    %v1453 = vunpack.c.h.b16 %v827
    %v1454 = vunpack.c.l.b16 %v828
    %v1455 = vunpack.c.h.b16 %v828
    %v1456 = vunpack.c.l.b16 %v829
    %v1457 = vunpack.c.h.b16 %v829
    %v1458 = vunpack.c.l.b16 %v830
    %v1459 = vunpack.c.l.b16 %v831
    %v1460 = vunpack.c.h.b16 %v831
    %v1461 = vunpack.c.l.b16 %v832
    %v1462 = vunpack.c.h.b16 %v832
    %v1463 = vunpack.c.l.b16 %v833
    %v1464 = vunpack.c.h.b16 %v833
    %v1465 = vunpack.c.l.b16 %v834
    %v1466 = vunpack.c.l.b16 %v835
    %v1467 = vunpack.c.h.b16 %v835
    %v1468 = vunpack.c.l.b16 %v836
    %v1469 = vunpack.c.h.b16 %v836
    %v1470 = vunpack.c.l.b16 %v837
    %v1471 = vunpack.c.h.b16 %v837
    %v1472 = vunpack.c.l.b16 %v838
    %v1473 = vunpack.c.l.b16 %v839
    %v1474 = vunpack.c.h.b16 %v839
    %v1475 = vunpack.c.l.b16 %v840
    %v1476 = vunpack.c.h.b16 %v840
    %v1477 = vunpack.c.l.b16 %v841
    %v1478 = vunpack.c.h.b16 %v841
    %v1479 = vunpack.c.l.b16 %v842
    %v1480 = vunpack.c.l.b16 %v843
    %v1481 = vunpack.c.h.b16 %v843
    %v1482 = vunpack.c.l.b16 %v844
    %v1483 = vunpack.c.h.b16 %v844
    %v1484 = vunpack.c.l.b16 %v845
    %v1485 = vunpack.c.h.b16 %v845
    %v1486 = vunpack.c.l.b16 %v846
    %v1487 = vunpack.c.l.b16 %v847
    %v1488 = vunpack.c.h.b16 %v847
    %v1489 = vunpack.c.l.b16 %v848
    %v1490 = vunpack.c.h.b16 %v848
    %v1491 = vunpack.c.l.b16 %v849
    %v1492 = vunpack.c.h.b16 %v849
    %v1493 = vunpack.c.l.b16 %v850
    %v1494 = vunpack.c.l.b16 %v851
    %v1495 = vunpack.c.h.b16 %v851
    %v1496 = vunpack.c.l.b16 %v852
    %v1497 = vunpack.c.h.b16 %v852
    %v1498 = vunpack.c.l.b16 %v853
    %v1499 = vunpack.c.h.b16 %v853
    %v1500 = vunpack.c.l.b16 %v854
    %v1501 = vunpack.c.l.b16 %v855
    %v1502 = vunpack.c.h.b16 %v855
    %v1503 = vunpack.c.l.b16 %v856
    %v1504 = vunpack.c.h.b16 %v856
    %v1505 = vunpack.c.l.b16 %v857
    %v1506 = vunpack.c.h.b16 %v857
    %v1507 = vunpack.c.l.b16 %v858
    %v1508 = vunpack.c.l.b16 %v859
    %v1509 = vunpack.c.h.b16 %v859
    %v1510 = vunpack.c.l.b16 %v860
    %v1511 = vunpack.c.h.b16 %v860
    %v1512 = vunpack.c.l.b16 %v861
    %v1513 = vunpack.c.h.b16 %v861
    %v1514 = vunpack.c.l.b16 %v862
    %v1515 = vunpack.c.l.b16 %v863
    %v1516 = vunpack.c.h.b16 %v863
    %v1517 = vunpack.c.l.b16 %v864
    %v1518 = vunpack.c.h.b16 %v864
    %v1519 = vunpack.c.l.b16 %v865
    %v1520 = vunpack.c.h.b16 %v865
    %v1521 = vunpack.c.l.b16 %v866
    %v1522 = vunpack.c.l.b16 %v867
    %v1523 = vunpack.c.h.b16 %v867
    %v1524 = vunpack.c.l.b16 %v868
    %v1525 = vunpack.c.h.b16 %v868
    %v1526 = vunpack.c.l.b16 %v869
    %v1527 = vunpack.c.h.b16 %v869
    %v1528 = vunpack.c.l.b16 %v870
    %v1529 = vunpack.c.l.b16 %v871
    %v1530 = vunpack.c.h.b16 %v871
    %v1531 = vunpack.c.l.b16 %v872
    %v1532 = vunpack.c.h.b16 %v872
    %v1533 = vunpack.c.l.b16 %v873
    %v1534 = vunpack.c.h.b16 %v873
    %v1535 = vunpack.c.l.b16 %v874
    %v1536 = vunpack.c.l.b16 %v875
    %v1537 = vunpack.c.h.b16 %v875
    %v1538 = vunpack.c.l.b16 %v876
    %v1539 = vunpack.c.h.b16 %v876
    %v1540 = vunpack.c.l.b16 %v877
    %v1541 = vunpack.c.h.b16 %v877
    %v1542 = vunpack.c.l.b16 %v878
    %v1543 = vunpack.c.l.b16 %v879
    %v1544 = vunpack.c.h.b16 %v879
    %v1545 = vunpack.c.l.b16 %v880
    %v1546 = vunpack.c.h.b16 %v880
    %v1547 = vunpack.c.l.b16 %v881
    %v1548 = vunpack.c.h.b16 %v881
    %v1549 = vunpack.c.l.b16 %v882
    %v1550 = vunpack.c.l.b16 %v883
    %v1551 = vunpack.c.h.b16 %v883
    %v1552 = vunpack.c.l.b16 %v884
    %v1553 = vunpack.c.h.b16 %v884
    %v1554 = vunpack.c.l.b16 %v885
    %v1555 = vunpack.c.h.b16 %v885
    %v1556 = vunpack.c.l.b16 %v886
    %v1557 = vunpack.c.l.b16 %v887
    %v1558 = vunpack.c.h.b16 %v887
    %v1559 = vunpack.c.l.b16 %v888
    %v1560 = vunpack.c.h.b16 %v888
    %v1561 = vunpack.c.l.b16 %v889
    %v1562 = vunpack.c.h.b16 %v889
    %v1563 = vunpack.c.l.b16 %v890
    %v1564 = vunpack.c.l.b16 %v891
    %v1565 = vunpack.c.h.b16 %v891
    %v1566 = vunpack.c.l.b16 %v892
    %v1567 = vunpack.c.h.b16 %v892
    %v1568 = vunpack.c.l.b16 %v893
    %v1569 = vunpack.c.h.b16 %v893
    %v1570 = vunpack.c.l.b16 %v894
    %v1571 = vunpack.c.l.b16 %v895
    %v1572 = vunpack.c.h.b16 %v895
    %v1573 = vunpack.c.l.b16 %v896
    %v1574 = vunpack.c.h.b16 %v896
    %v1575 = vunpack.c.l.b16 %v897
    %v1576 = vunpack.c.h.b16 %v897
    %v1577 = vunpack.c.l.b16 %v898
    %v1578 = vunpack.c.l.b16 %v899
    %v1579 = vunpack.c.h.b16 %v899
    %v1580 = vunpack.c.l.b16 %v900
    %v1581 = vunpack.c.h.b16 %v900
    %v1582 = vunpack.c.l.b16 %v901
    %v1583 = vunpack.c.h.b16 %v901
    %v1584 = vunpack.c.l.b16 %v902
    %v1585 = vunpack.c.l.b16 %v903
    %v1586 = vunpack.c.h.b16 %v903
    %v1587 = vunpack.c.l.b16 %v904
    %v1588 = vunpack.c.h.b16 %v904
    %v1589 = vunpack.c.l.b16 %v905
    %v1590 = vunpack.c.h.b16 %v905
    %v1591 = vunpack.c.l.b16 %v906
    %v1592 = vunpack.c.l.b16 %v907
    %v1593 = vunpack.c.h.b16 %v907
    %v1594 = vunpack.c.l.b16 %v908
    %v1595 = vunpack.c.h.b16 %v908
    %v1596 = vunpack.c.l.b16 %v909
    %v1597 = vunpack.c.h.b16 %v909
    %v1598 = vunpack.c.l.b16 %v910
    %v1599 = vunpack.c.l.b16 %v911
    %v1600 = vunpack.c.h.b16 %v911
    %v1601 = vunpack.c.l.b16 %v912
    %v1602 = vunpack.c.h.b16 %v912
    %v1603 = vunpack.c.l.b16 %v913
    %v1604 = vunpack.c.h.b16 %v913
    %v1605 = vunpack.c.l.b16 %v914
    %v1606 = vunpack.c.l.b16 %v915
    %v1607 = vunpack.c.h.b16 %v915
    %v1608 = vunpack.c.l.b16 %v916
    %v1609 = vunpack.c.h.b16 %v916
    %v1610 = vunpack.c.l.b16 %v917
    %v1611 = vunpack.c.h.b16 %v917
    %v1612 = vunpack.c.l.b16 %v918
    %v1613 = vunpack.c.l.b16 %v919
    %v1614 = vunpack.c.h.b16 %v919
    %v1615 = vunpack.c.l.b16 %v920
    %v1616 = vunpack.c.h.b16 %v920
    %v1617 = vunpack.c.l.b16 %v921
    %v1618 = vunpack.c.h.b16 %v921
    %v1619 = vunpack.c.l.b16 %v922
    %v1620 = vunpack.c.l.b16 %v923
    %v1621 = vunpack.c.h.b16 %v923
    %v1622 = vunpack.c.l.b16 %v924
    %v1623 = vunpack.c.h.b16 %v924
    %v1624 = vunpack.c.l.b16 %v925
    %v1625 = vunpack.c.h.b16 %v925
    %v1626 = vunpack.c.l.b16 %v926
    %v1627 = vunpack.c.l.b16 %v927
    %v1628 = vunpack.c.h.b16 %v927
    %v1629 = vunpack.c.l.b16 %v928
    %v1630 = vunpack.c.h.b16 %v928
    %v1631 = vunpack.c.l.b16 %v929
    %v1632 = vunpack.c.h.b16 %v929
    %v1633 = vunpack.c.l.b16 %v930
    %v1634 = vunpack.c.l.b16 %v931
    %v1635 = vunpack.c.h.b16 %v931
    %v1636 = vunpack.c.l.b16 %v932
    %v1637 = vunpack.c.h.b16 %v932
    %v1638 = vunpack.c.l.b16 %v933
    %v1639 = vunpack.c.h.b16 %v933
    %v1640 = vunpack.c.l.b16 %v934
    %v1641 = vunpack.c.l.b16 %v935
    %v1642 = vunpack.c.h.b16 %v935
    %v1643 = vunpack.c.l.b16 %v936
    %v1644 = vunpack.c.h.b16 %v936
    %v1645 = vunpack.c.l.b16 %v937
    %v1646 = vunpack.c.h.b16 %v937
    %v1647 = vunpack.c.l.b16 %v938
    %v1648 = vunpack.c.l.b16 %v939
    %v1649 = vunpack.c.h.b16 %v939
    %v1650 = vunpack.c.l.b16 %v940
    %v1651 = vunpack.c.h.b16 %v940
    %v1652 = vunpack.c.l.b16 %v941
    %v1653 = vunpack.c.h.b16 %v941
    %v1654 = vunpack.c.l.b16 %v942
    %v1655 = vunpack.c.l.b16 %v943
    %v1656 = vunpack.c.h.b16 %v943
    %v1657 = vunpack.c.l.b16 %v944
    %v1658 = vunpack.c.h.b16 %v944
    %v1659 = vunpack.c.l.b16 %v945
    %v1660 = vunpack.c.h.b16 %v945
    %v1661 = vunpack.c.l.b16 %v946
    %v1662 = vunpack.c.l.b16 %v947
    %v1663 = vunpack.c.h.b16 %v947
    %v1664 = vunpack.c.l.b16 %v948
    %v1665 = vunpack.c.h.b16 %v948
    %v1666 = vunpack.c.l.b16 %v949
    %v1667 = vunpack.c.h.b16 %v949
    %v1668 = vunpack.c.l.b16 %v950
    %v1669 = vunpack.c.l.b16 %v951
    %v1670 = vunpack.c.h.b16 %v951
    %v1671 = vunpack.c.l.b16 %v952
    %v1672 = vunpack.c.h.b16 %v952
    %v1673 = vunpack.c.l.b16 %v953
    %v1674 = vunpack.c.h.b16 %v953
    %v1675 = vunpack.c.l.b16 %v954
    %v1676 = vunpack.c.l.b16 %v955
    %v1677 = vunpack.c.h.b16 %v955
    %v1678 = vunpack.c.l.b16 %v956
    %v1679 = vunpack.c.h.b16 %v956
    %v1680 = vunpack.c.l.b16 %v957
    %v1681 = vunpack.c.h.b16 %v957
    %v1682 = vunpack.c.l.b16 %v958
    %v1683 = vpack.c.b16 %v1242, %v1235
    %v1684 = vpack.c.b16 %v1243, %v1236
    %v1685 = vpack.c.b16 %v1244, %v1237
    %v1686 = vpack.c.b16 %v1245, %v1238
    %v1687 = vpack.c.b16 %v1246, %v1239
    %v1688 = vpack.c.b16 %v1247, %v1240
    %v1689 = vpack.c.b16 %v1248, %v1241
    %v1690 = vpack.c.b16 %v1256, %v1249
    %v1691 = vpack.c.b16 %v1257, %v1250
    %v1692 = vpack.c.b16 %v1258, %v1251
    %v1693 = vpack.c.b16 %v1259, %v1252
    %v1694 = vpack.c.b16 %v1260, %v1253
    %v1695 = vpack.c.b16 %v1261, %v1254
    %v1696 = vpack.c.b16 %v1262, %v1255
    %v1697 = vpack.c.b16 %v1270, %v1263
    %v1698 = vpack.c.b16 %v1271, %v1264
    %v1699 = vpack.c.b16 %v1272, %v1265
    %v1700 = vpack.c.b16 %v1273, %v1266
    %v1701 = vpack.c.b16 %v1274, %v1267
    %v1702 = vpack.c.b16 %v1275, %v1268
    %v1703 = vpack.c.b16 %v1276, %v1269
    %v1704 = vpack.c.b16 %v1284, %v1277
    %v1705 = vpack.c.b16 %v1285, %v1278
    %v1706 = vpack.c.b16 %v1286, %v1279
    %v1707 = vpack.c.b16 %v1287, %v1280
    %v1708 = vpack.c.b16 %v1288, %v1281
    %v1709 = vpack.c.b16 %v1289, %v1282
    %v1710 = vpack.c.b16 %v1290, %v1283
    %v1711 = vpack.c.b16 %v1298, %v1291
    %v1712 = vpack.c.b16 %v1299, %v1292
    %v1713 = vpack.c.b16 %v1300, %v1293
    %v1714 = vpack.c.b16 %v1301, %v1294
    %v1715 = vpack.c.b16 %v1302, %v1295
    %v1716 = vpack.c.b16 %v1303, %v1296
    %v1717 = vpack.c.b16 %v1304, %v1297
    %v1718 = vpack.c.b16 %v1312, %v1305
    %v1719 = vpack.c.b16 %v1313, %v1306
    %v1720 = vpack.c.b16 %v1314, %v1307
    %v1721 = vpack.c.b16 %v1315, %v1308
    %v1722 = vpack.c.b16 %v1316, %v1309
    %v1723 = vpack.c.b16 %v1317, %v1310
    %v1724 = vpack.c.b16 %v1318, %v1311
    %v1725 = vpack.c.b16 %v1326, %v1319
    %v1726 = vpack.c.b16 %v1327, %v1320
    %v1727 = vpack.c.b16 %v1328, %v1321
    %v1728 = vpack.c.b16 %v1329, %v1322
    %v1729 = vpack.c.b16 %v1330, %v1323
    %v1730 = vpack.c.b16 %v1331, %v1324
    %v1731 = vpack.c.b16 %v1332, %v1325
    %v1732 = vpack.c.b16 %v1340, %v1333
    %v1733 = vpack.c.b16 %v1341, %v1334
    %v1734 = vpack.c.b16 %v1342, %v1335
    %v1735 = vpack.c.b16 %v1343, %v1336
    %v1736 = vpack.c.b16 %v1344, %v1337
    %v1737 = vpack.c.b16 %v1345, %v1338
    %v1738 = vpack.c.b16 %v1346, %v1339
    %v1739 = vpack.c.b16 %v1354, %v1347
    %v1740 = vpack.c.b16 %v1355, %v1348
    %v1741 = vpack.c.b16 %v1356, %v1349
    %v1742 = vpack.c.b16 %v1357, %v1350
    %v1743 = vpack.c.b16 %v1358, %v1351
    %v1744 = vpack.c.b16 %v1359, %v1352
    %v1745 = vpack.c.b16 %v1360, %v1353
    %v1746 = vpack.c.b16 %v1368, %v1361
    %v1747 = vpack.c.b16 %v1369, %v1362
    %v1748 = vpack.c.b16 %v1370, %v1363
    %v1749 = vpack.c.b16 %v1371, %v1364
    %v1750 = vpack.c.b16 %v1372, %v1365
    %v1751 = vpack.c.b16 %v1373, %v1366
    %v1752 = vpack.c.b16 %v1374, %v1367
    %v1753 = vpack.c.b16 %v1382, %v1375
    %v1754 = vpack.c.b16 %v1383, %v1376
    %v1755 = vpack.c.b16 %v1384, %v1377
    %v1756 = vpack.c.b16 %v1385, %v1378
    %v1757 = vpack.c.b16 %v1386, %v1379
    %v1758 = vpack.c.b16 %v1387, %v1380
    %v1759 = vpack.c.b16 %v1388, %v1381
    %v1760 = vpack.c.b16 %v1396, %v1389
    %v1761 = vpack.c.b16 %v1397, %v1390
    %v1762 = vpack.c.b16 %v1398, %v1391
    %v1763 = vpack.c.b16 %v1399, %v1392
    %v1764 = vpack.c.b16 %v1400, %v1393
    %v1765 = vpack.c.b16 %v1401, %v1394
    %v1766 = vpack.c.b16 %v1402, %v1395
    %v1767 = vpack.c.b16 %v1410, %v1403
    %v1768 = vpack.c.b16 %v1411, %v1404
    %v1769 = vpack.c.b16 %v1412, %v1405
    %v1770 = vpack.c.b16 %v1413, %v1406
    %v1771 = vpack.c.b16 %v1414, %v1407
    %v1772 = vpack.c.b16 %v1415, %v1408
    %v1773 = vpack.c.b16 %v1416, %v1409
    %v1774 = vpack.c.b16 %v1424, %v1417
    %v1775 = vpack.c.b16 %v1425, %v1418
    %v1776 = vpack.c.b16 %v1426, %v1419
    %v1777 = vpack.c.b16 %v1427, %v1420
    %v1778 = vpack.c.b16 %v1428, %v1421
    %v1779 = vpack.c.b16 %v1429, %v1422
    %v1780 = vpack.c.b16 %v1430, %v1423
    %v1781 = vpack.c.b16 %v1438, %v1431
    %v1782 = vpack.c.b16 %v1439, %v1432
    %v1783 = vpack.c.b16 %v1440, %v1433
    %v1784 = vpack.c.b16 %v1441, %v1434
    %v1785 = vpack.c.b16 %v1442, %v1435
    %v1786 = vpack.c.b16 %v1443, %v1436
    %v1787 = vpack.c.b16 %v1444, %v1437
    %v1788 = vpack.c.b16 %v1452, %v1445
    %v1789 = vpack.c.b16 %v1453, %v1446
    %v1790 = vpack.c.b16 %v1454, %v1447
    %v1791 = vpack.c.b16 %v1455, %v1448
    %v1792 = vpack.c.b16 %v1456, %v1449
    %v1793 = vpack.c.b16 %v1457, %v1450
    %v1794 = vpack.c.b16 %v1458, %v1451
    %v1795 = vpack.c.b16 %v1466, %v1459
    %v1796 = vpack.c.b16 %v1467, %v1460
    %v1797 = vpack.c.b16 %v1468, %v1461
    %v1798 = vpack.c.b16 %v1469, %v1462
    %v1799 = vpack.c.b16 %v1470, %v1463
    %v1800 = vpack.c.b16 %v1471, %v1464
    %v1801 = vpack.c.b16 %v1472, %v1465
    %v1802 = vpack.c.b16 %v1480, %v1473
    %v1803 = vpack.c.b16 %v1481, %v1474
    %v1804 = vpack.c.b16 %v1482, %v1475
    %v1805 = vpack.c.b16 %v1483, %v1476
    %v1806 = vpack.c.b16 %v1484, %v1477
    %v1807 = vpack.c.b16 %v1485, %v1478
    %v1808 = vpack.c.b16 %v1486, %v1479
    %v1809 = vpack.c.b16 %v1494, %v1487
    %v1810 = vpack.c.b16 %v1495, %v1488
    %v1811 = vpack.c.b16 %v1496, %v1489
    %v1812 = vpack.c.b16 %v1497, %v1490
    %v1813 = vpack.c.b16 %v1498, %v1491
    %v1814 = vpack.c.b16 %v1499, %v1492
    %v1815 = vpack.c.b16 %v1500, %v1493
    %v1816 = vpack.c.b16 %v1508, %v1501
    %v1817 = vpack.c.b16 %v1509, %v1502
    %v1818 = vpack.c.b16 %v1510, %v1503
    %v1819 = vpack.c.b16 %v1511, %v1504
    %v1820 = vpack.c.b16 %v1512, %v1505
    %v1821 = vpack.c.b16 %v1513, %v1506
    %v1822 = vpack.c.b16 %v1514, %v1507
    %v1823 = vpack.c.b16 %v1522, %v1515
    %v1824 = vpack.c.b16 %v1523, %v1516
    %v1825 = vpack.c.b16 %v1524, %v1517
    %v1826 = vpack.c.b16 %v1525, %v1518
    %v1827 = vpack.c.b16 %v1526, %v1519
    %v1828 = vpack.c.b16 %v1527, %v1520
    %v1829 = vpack.c.b16 %v1528, %v1521
    %v1830 = vpack.c.b16 %v1536, %v1529
    %v1831 = vpack.c.b16 %v1537, %v1530
    %v1832 = vpack.c.b16 %v1538, %v1531
    %v1833 = vpack.c.b16 %v1539, %v1532
    %v1834 = vpack.c.b16 %v1540, %v1533
    %v1835 = vpack.c.b16 %v1541, %v1534
    %v1836 = vpack.c.b16 %v1542, %v1535
    %v1837 = vpack.c.b16 %v1550, %v1543
    %v1838 = vpack.c.b16 %v1551, %v1544
    %v1839 = vpack.c.b16 %v1552, %v1545
    %v1840 = vpack.c.b16 %v1553, %v1546
    %v1841 = vpack.c.b16 %v1554, %v1547
    %v1842 = vpack.c.b16 %v1555, %v1548
    %v1843 = vpack.c.b16 %v1556, %v1549
    %v1844 = vpack.c.b16 %v1564, %v1557
    %v1845 = vpack.c.b16 %v1565, %v1558
    %v1846 = vpack.c.b16 %v1566, %v1559
    %v1847 = vpack.c.b16 %v1567, %v1560
    %v1848 = vpack.c.b16 %v1568, %v1561
    %v1849 = vpack.c.b16 %v1569, %v1562
    %v1850 = vpack.c.b16 %v1570, %v1563
    %v1851 = vpack.c.b16 %v1578, %v1571
    %v1852 = vpack.c.b16 %v1579, %v1572
    %v1853 = vpack.c.b16 %v1580, %v1573
    %v1854 = vpack.c.b16 %v1581, %v1574
    %v1855 = vpack.c.b16 %v1582, %v1575
    %v1856 = vpack.c.b16 %v1583, %v1576
    %v1857 = vpack.c.b16 %v1584, %v1577
    %v1858 = vpack.c.b16 %v1592, %v1585
    %v1859 = vpack.c.b16 %v1593, %v1586
    %v1860 = vpack.c.b16 %v1594, %v1587
    %v1861 = vpack.c.b16 %v1595, %v1588
    %v1862 = vpack.c.b16 %v1596, %v1589
    %v1863 = vpack.c.b16 %v1597, %v1590
    %v1864 = vpack.c.b16 %v1598, %v1591
    %v1865 = vpack.c.b16 %v1606, %v1599
    %v1866 = vpack.c.b16 %v1607, %v1600
    %v1867 = vpack.c.b16 %v1608, %v1601
    %v1868 = vpack.c.b16 %v1609, %v1602
    %v1869 = vpack.c.b16 %v1610, %v1603
    %v1870 = vpack.c.b16 %v1611, %v1604
    %v1871 = vpack.c.b16 %v1612, %v1605
    %v1872 = vpack.c.b16 %v1620, %v1613
    %v1873 = vpack.c.b16 %v1621, %v1614
    %v1874 = vpack.c.b16 %v1622, %v1615
    %v1875 = vpack.c.b16 %v1623, %v1616
    %v1876 = vpack.c.b16 %v1624, %v1617
    %v1877 = vpack.c.b16 %v1625, %v1618
    %v1878 = vpack.c.b16 %v1626, %v1619
    %v1879 = vpack.c.b16 %v1634, %v1627
    %v1880 = vpack.c.b16 %v1635, %v1628
    %v1881 = vpack.c.b16 %v1636, %v1629
    %v1882 = vpack.c.b16 %v1637, %v1630
    %v1883 = vpack.c.b16 %v1638, %v1631
    %v1884 = vpack.c.b16 %v1639, %v1632
    %v1885 = vpack.c.b16 %v1640, %v1633
    %v1886 = vpack.c.b16 %v1648, %v1641
    %v1887 = vpack.c.b16 %v1649, %v1642
    %v1888 = vpack.c.b16 %v1650, %v1643
    %v1889 = vpack.c.b16 %v1651, %v1644
    %v1890 = vpack.c.b16 %v1652, %v1645
    %v1891 = vpack.c.b16 %v1653, %v1646
    %v1892 = vpack.c.b16 %v1654, %v1647
    %v1893 = vpack.c.b16 %v1662, %v1655
    %v1894 = vpack.c.b16 %v1663, %v1656
    %v1895 = vpack.c.b16 %v1664, %v1657
    %v1896 = vpack.c.b16 %v1665, %v1658
    %v1897 = vpack.c.b16 %v1666, %v1659
    %v1898 = vpack.c.b16 %v1667, %v1660
    %v1899 = vpack.c.b16 %v1668, %v1661
    %v1900 = vpack.c.b16 %v1676, %v1669
    %v1901 = vpack.c.b16 %v1677, %v1670
    %v1902 = vpack.c.b16 %v1678, %v1671
    %v1903 = vpack.c.b16 %v1679, %v1672
    %v1904 = vpack.c.b16 %v1680, %v1673
    %v1905 = vpack.c.b16 %v1681, %v1674
    %v1906 = vpack.c.b16 %v1682, %v1675
    %2131 = vmatpush.bf16.msra.mxu0 %v1732
    %2132 = vmatpush.bf16.msra.mxu0 %v1725
    %2133 = vmatpush.bf16.msra.mxu0 %v1718
    %2134 = vmatpush.bf16.msra.mxu0 %v1711
    %2135 = vmatpush.bf16.msra.mxu0 %v1704
    %2136 = vmatpush.bf16.msra.mxu0 %v1697
    %2137 = vmatpush.bf16.msra.mxu0 %v1690
    %2138 = vmatpush.bf16.msra.mxu0 %v1683
    %2139 = vmatmul.bf16.gmra.mxu0 %v971
    %v2140 = vpop.f32.mrf.mxu0
    %v2141 = vadd.f32 0.0, %v2140
    %v2142 = vpop.f32.mrf.mxu0
    %v2143 = vadd.f32 0.0, %v2142
    %2144 = vdwg.mxu0
    %2145 = vmatpush.bf16.msra.mxu0 %v1788
    %2146 = vmatpush.bf16.msra.mxu0 %v1781
    %2147 = vmatpush.bf16.msra.mxu0 %v1774
    %2148 = vmatpush.bf16.msra.mxu0 %v1767
    %2149 = vmatpush.bf16.msra.mxu0 %v1760
    %2150 = vmatpush.bf16.msra.mxu0 %v1753
    %2151 = vmatpush.bf16.msra.mxu0 %v1746
    %2152 = vmatpush.bf16.msra.mxu0 %v1739
    %2153 = vmatmul.bf16.gmra.mxu0 %v972
    %v2154 = vpop.f32.mrf.mxu0
    %v2155 = vadd.f32 %v2141, %v2154
    %v2156 = vpop.f32.mrf.mxu0
    %v2157 = vadd.f32 %v2143, %v2156
    %2158 = vdwg.mxu0
    %2159 = vmatpush.bf16.msra.mxu0 %v1844
    %2160 = vmatpush.bf16.msra.mxu0 %v1837
    %2161 = vmatpush.bf16.msra.mxu0 %v1830
    %2162 = vmatpush.bf16.msra.mxu0 %v1823
    %2163 = vmatpush.bf16.msra.mxu0 %v1816
    %2164 = vmatpush.bf16.msra.mxu0 %v1809
    %2165 = vmatpush.bf16.msra.mxu0 %v1802
    %2166 = vmatpush.bf16.msra.mxu0 %v1795
    %2167 = vmatmul.bf16.gmra.mxu0 %v973
    %v2168 = vpop.f32.mrf.mxu0
    %v2169 = vadd.f32 %v2155, %v2168
    %v2170 = vpop.f32.mrf.mxu0
    %v2171 = vadd.f32 %v2157, %v2170
    %2172 = vdwg.mxu0
    %2173 = vmatpush.bf16.msra.mxu0 %v1900
    %2174 = vmatpush.bf16.msra.mxu0 %v1893
    %2175 = vmatpush.bf16.msra.mxu0 %v1886
    %2176 = vmatpush.bf16.msra.mxu0 %v1879
    %2177 = vmatpush.bf16.msra.mxu0 %v1872
    %2178 = vmatpush.bf16.msra.mxu0 %v1865
    %2179 = vmatpush.bf16.msra.mxu0 %v1858
    %2180 = vmatpush.bf16.msra.mxu0 %v1851
    %2181 = vmatmul.bf16.gmra.mxu0 %v974
    %v2182 = vpop.f32.mrf.mxu0
    %v2183 = vadd.f32 %v2169, %v2182
    %v2184 = vpop.f32.mrf.mxu0
    %v2185 = vadd.f32 %v2171, %v2184
    %2186 = vdwg.mxu0
    %2187 = vmatpush.bf16.msra.mxu0 %v1733
    %2188 = vmatpush.bf16.msra.mxu0 %v1726
    %2189 = vmatpush.bf16.msra.mxu0 %v1719
    %2190 = vmatpush.bf16.msra.mxu0 %v1712
    %2191 = vmatpush.bf16.msra.mxu0 %v1705
    %2192 = vmatpush.bf16.msra.mxu0 %v1698
    %2193 = vmatpush.bf16.msra.mxu0 %v1691
    %2194 = vmatpush.bf16.msra.mxu0 %v1684
    %2195 = vmatmul.bf16.gmra.mxu0 %v971
    %v2196 = vpop.f32.mrf.mxu0
    %v2197 = vadd.f32 0.0, %v2196
    %v2198 = vpop.f32.mrf.mxu0
    %v2199 = vadd.f32 0.0, %v2198
    %2200 = vdwg.mxu0
    %2201 = vmatpush.bf16.msra.mxu0 %v1789
    %2202 = vmatpush.bf16.msra.mxu0 %v1782
    %2203 = vmatpush.bf16.msra.mxu0 %v1775
    %2204 = vmatpush.bf16.msra.mxu0 %v1768
    %2205 = vmatpush.bf16.msra.mxu0 %v1761
    %2206 = vmatpush.bf16.msra.mxu0 %v1754
    %2207 = vmatpush.bf16.msra.mxu0 %v1747
    %2208 = vmatpush.bf16.msra.mxu0 %v1740
    %2209 = vmatmul.bf16.gmra.mxu0 %v972
    %v2210 = vpop.f32.mrf.mxu0
    %v2211 = vadd.f32 %v2197, %v2210
    %v2212 = vpop.f32.mrf.mxu0
    %v2213 = vadd.f32 %v2199, %v2212
    %2214 = vdwg.mxu0
    %2215 = vmatpush.bf16.msra.mxu0 %v1845
    %2216 = vmatpush.bf16.msra.mxu0 %v1838
    %2217 = vmatpush.bf16.msra.mxu0 %v1831
    %2218 = vmatpush.bf16.msra.mxu0 %v1824
    %2219 = vmatpush.bf16.msra.mxu0 %v1817
    %2220 = vmatpush.bf16.msra.mxu0 %v1810
    %2221 = vmatpush.bf16.msra.mxu0 %v1803
    %2222 = vmatpush.bf16.msra.mxu0 %v1796
    %2223 = vmatmul.bf16.gmra.mxu0 %v973
    %v2224 = vpop.f32.mrf.mxu0
    %v2225 = vadd.f32 %v2211, %v2224
    %v2226 = vpop.f32.mrf.mxu0
    %v2227 = vadd.f32 %v2213, %v2226
    %2228 = vdwg.mxu0
    %2229 = vmatpush.bf16.msra.mxu0 %v1901
    %2230 = vmatpush.bf16.msra.mxu0 %v1894
    %2231 = vmatpush.bf16.msra.mxu0 %v1887
    %2232 = vmatpush.bf16.msra.mxu0 %v1880
    %2233 = vmatpush.bf16.msra.mxu0 %v1873
    %2234 = vmatpush.bf16.msra.mxu0 %v1866
    %2235 = vmatpush.bf16.msra.mxu0 %v1859
    %2236 = vmatpush.bf16.msra.mxu0 %v1852
    %2237 = vmatmul.bf16.gmra.mxu0 %v974
    %v2238 = vpop.f32.mrf.mxu0
    %v2239 = vadd.f32 %v2225, %v2238
    %v2240 = vpop.f32.mrf.mxu0
    %v2241 = vadd.f32 %v2227, %v2240
    %2242 = vdwg.mxu0
    %2243 = vmatpush.bf16.msra.mxu0 %v1734
    %2244 = vmatpush.bf16.msra.mxu0 %v1727
    %2245 = vmatpush.bf16.msra.mxu0 %v1720
    %2246 = vmatpush.bf16.msra.mxu0 %v1713
    %2247 = vmatpush.bf16.msra.mxu0 %v1706
    %2248 = vmatpush.bf16.msra.mxu0 %v1699
    %2249 = vmatpush.bf16.msra.mxu0 %v1692
    %2250 = vmatpush.bf16.msra.mxu0 %v1685
    %2251 = vmatmul.bf16.gmra.mxu0 %v971
    %v2252 = vpop.f32.mrf.mxu0
    %v2253 = vadd.f32 0.0, %v2252
    %v2254 = vpop.f32.mrf.mxu0
    %v2255 = vadd.f32 0.0, %v2254
    %2256 = vdwg.mxu0
    %2257 = vmatpush.bf16.msra.mxu0 %v1790
    %2258 = vmatpush.bf16.msra.mxu0 %v1783
    %2259 = vmatpush.bf16.msra.mxu0 %v1776
    %2260 = vmatpush.bf16.msra.mxu0 %v1769
    %2261 = vmatpush.bf16.msra.mxu0 %v1762
    %2262 = vmatpush.bf16.msra.mxu0 %v1755
    %2263 = vmatpush.bf16.msra.mxu0 %v1748
    %2264 = vmatpush.bf16.msra.mxu0 %v1741
    %2265 = vmatmul.bf16.gmra.mxu0 %v972
    %v2266 = vpop.f32.mrf.mxu0
    %v2267 = vadd.f32 %v2253, %v2266
    %v2268 = vpop.f32.mrf.mxu0
    %v2269 = vadd.f32 %v2255, %v2268
    %2270 = vdwg.mxu0
    %2271 = vmatpush.bf16.msra.mxu0 %v1846
    %2272 = vmatpush.bf16.msra.mxu0 %v1839
    %2273 = vmatpush.bf16.msra.mxu0 %v1832
    %2274 = vmatpush.bf16.msra.mxu0 %v1825
    %2275 = vmatpush.bf16.msra.mxu0 %v1818
    %2276 = vmatpush.bf16.msra.mxu0 %v1811
    %2277 = vmatpush.bf16.msra.mxu0 %v1804
    %2278 = vmatpush.bf16.msra.mxu0 %v1797
    %2279 = vmatmul.bf16.gmra.mxu0 %v973
    %v2280 = vpop.f32.mrf.mxu0
    %v2281 = vadd.f32 %v2267, %v2280
    %v2282 = vpop.f32.mrf.mxu0
    %v2283 = vadd.f32 %v2269, %v2282
    %2284 = vdwg.mxu0
    %2285 = vmatpush.bf16.msra.mxu0 %v1902
    %2286 = vmatpush.bf16.msra.mxu0 %v1895
    %2287 = vmatpush.bf16.msra.mxu0 %v1888
    %2288 = vmatpush.bf16.msra.mxu0 %v1881
    %2289 = vmatpush.bf16.msra.mxu0 %v1874
    %2290 = vmatpush.bf16.msra.mxu0 %v1867
    %2291 = vmatpush.bf16.msra.mxu0 %v1860
    %2292 = vmatpush.bf16.msra.mxu0 %v1853
    %2293 = vmatmul.bf16.gmra.mxu0 %v974
    %v2294 = vpop.f32.mrf.mxu0
    %v2295 = vadd.f32 %v2281, %v2294
    %v2296 = vpop.f32.mrf.mxu0
    %v2297 = vadd.f32 %v2283, %v2296
    %2298 = vdwg.mxu0
    %2299 = vmatpush.bf16.msra.mxu0 %v1735
    %2300 = vmatpush.bf16.msra.mxu0 %v1728
    %2301 = vmatpush.bf16.msra.mxu0 %v1721
    %2302 = vmatpush.bf16.msra.mxu0 %v1714
    %2303 = vmatpush.bf16.msra.mxu0 %v1707
    %2304 = vmatpush.bf16.msra.mxu0 %v1700
    %2305 = vmatpush.bf16.msra.mxu0 %v1693
    %2306 = vmatpush.bf16.msra.mxu0 %v1686
    %2307 = vmatmul.bf16.gmra.mxu0 %v971
    %v2308 = vpop.f32.mrf.mxu0
    %v2309 = vadd.f32 0.0, %v2308
    %v2310 = vpop.f32.mrf.mxu0
    %v2311 = vadd.f32 0.0, %v2310
    %2312 = vdwg.mxu0
    %2313 = vmatpush.bf16.msra.mxu0 %v1791
    %2314 = vmatpush.bf16.msra.mxu0 %v1784
    %2315 = vmatpush.bf16.msra.mxu0 %v1777
    %2316 = vmatpush.bf16.msra.mxu0 %v1770
    %2317 = vmatpush.bf16.msra.mxu0 %v1763
    %2318 = vmatpush.bf16.msra.mxu0 %v1756
    %2319 = vmatpush.bf16.msra.mxu0 %v1749
    %2320 = vmatpush.bf16.msra.mxu0 %v1742
    %2321 = vmatmul.bf16.gmra.mxu0 %v972
    %v2322 = vpop.f32.mrf.mxu0
    %v2323 = vadd.f32 %v2309, %v2322
    %v2324 = vpop.f32.mrf.mxu0
    %v2325 = vadd.f32 %v2311, %v2324
    %2326 = vdwg.mxu0
    %2327 = vmatpush.bf16.msra.mxu0 %v1847
    %2328 = vmatpush.bf16.msra.mxu0 %v1840
    %2329 = vmatpush.bf16.msra.mxu0 %v1833
    %2330 = vmatpush.bf16.msra.mxu0 %v1826
    %2331 = vmatpush.bf16.msra.mxu0 %v1819
    %2332 = vmatpush.bf16.msra.mxu0 %v1812
    %2333 = vmatpush.bf16.msra.mxu0 %v1805
    %2334 = vmatpush.bf16.msra.mxu0 %v1798
    %2335 = vmatmul.bf16.gmra.mxu0 %v973
    %v2336 = vpop.f32.mrf.mxu0
    %v2337 = vadd.f32 %v2323, %v2336
    %v2338 = vpop.f32.mrf.mxu0
    %v2339 = vadd.f32 %v2325, %v2338
    %2340 = vdwg.mxu0
    %2341 = vmatpush.bf16.msra.mxu0 %v1903
    %2342 = vmatpush.bf16.msra.mxu0 %v1896
    %2343 = vmatpush.bf16.msra.mxu0 %v1889
    %2344 = vmatpush.bf16.msra.mxu0 %v1882
    %2345 = vmatpush.bf16.msra.mxu0 %v1875
    %2346 = vmatpush.bf16.msra.mxu0 %v1868
    %2347 = vmatpush.bf16.msra.mxu0 %v1861
    %2348 = vmatpush.bf16.msra.mxu0 %v1854
    %2349 = vmatmul.bf16.gmra.mxu0 %v974
    %v2350 = vpop.f32.mrf.mxu0
    %v2351 = vadd.f32 %v2337, %v2350
    %v2352 = vpop.f32.mrf.mxu0
    %v2353 = vadd.f32 %v2339, %v2352
    %2354 = vdwg.mxu0
    %2355 = vmatpush.bf16.msra.mxu0 %v1736
    %2356 = vmatpush.bf16.msra.mxu0 %v1729
    %2357 = vmatpush.bf16.msra.mxu0 %v1722
    %2358 = vmatpush.bf16.msra.mxu0 %v1715
    %2359 = vmatpush.bf16.msra.mxu0 %v1708
    %2360 = vmatpush.bf16.msra.mxu0 %v1701
    %2361 = vmatpush.bf16.msra.mxu0 %v1694
    %2362 = vmatpush.bf16.msra.mxu0 %v1687
    %2363 = vmatmul.bf16.gmra.mxu0 %v971
    %v2364 = vpop.f32.mrf.mxu0
    %v2365 = vadd.f32 0.0, %v2364
    %v2366 = vpop.f32.mrf.mxu0
    %v2367 = vadd.f32 0.0, %v2366
    %2368 = vdwg.mxu0
    %2369 = vmatpush.bf16.msra.mxu0 %v1792
    %2370 = vmatpush.bf16.msra.mxu0 %v1785
    %2371 = vmatpush.bf16.msra.mxu0 %v1778
    %2372 = vmatpush.bf16.msra.mxu0 %v1771
    %2373 = vmatpush.bf16.msra.mxu0 %v1764
    %2374 = vmatpush.bf16.msra.mxu0 %v1757
    %2375 = vmatpush.bf16.msra.mxu0 %v1750
    %2376 = vmatpush.bf16.msra.mxu0 %v1743
    %2377 = vmatmul.bf16.gmra.mxu0 %v972
    %v2378 = vpop.f32.mrf.mxu0
    %v2379 = vadd.f32 %v2365, %v2378
    %v2380 = vpop.f32.mrf.mxu0
    %v2381 = vadd.f32 %v2367, %v2380
    %2382 = vdwg.mxu0
    %2383 = vmatpush.bf16.msra.mxu0 %v1848
    %2384 = vmatpush.bf16.msra.mxu0 %v1841
    %2385 = vmatpush.bf16.msra.mxu0 %v1834
    %2386 = vmatpush.bf16.msra.mxu0 %v1827
    %2387 = vmatpush.bf16.msra.mxu0 %v1820
    %2388 = vmatpush.bf16.msra.mxu0 %v1813
    %2389 = vmatpush.bf16.msra.mxu0 %v1806
    %2390 = vmatpush.bf16.msra.mxu0 %v1799
    %2391 = vmatmul.bf16.gmra.mxu0 %v973
    %v2392 = vpop.f32.mrf.mxu0
    %v2393 = vadd.f32 %v2379, %v2392
    %v2394 = vpop.f32.mrf.mxu0
    %v2395 = vadd.f32 %v2381, %v2394
    %2396 = vdwg.mxu0
    %2397 = vmatpush.bf16.msra.mxu0 %v1904
    %2398 = vmatpush.bf16.msra.mxu0 %v1897
    %2399 = vmatpush.bf16.msra.mxu0 %v1890
    %2400 = vmatpush.bf16.msra.mxu0 %v1883
    %2401 = vmatpush.bf16.msra.mxu0 %v1876
    %2402 = vmatpush.bf16.msra.mxu0 %v1869
    %2403 = vmatpush.bf16.msra.mxu0 %v1862
    %2404 = vmatpush.bf16.msra.mxu0 %v1855
    %2405 = vmatmul.bf16.gmra.mxu0 %v974
    %v2406 = vpop.f32.mrf.mxu0
    %v2407 = vadd.f32 %v2393, %v2406
    %v2408 = vpop.f32.mrf.mxu0
    %v2409 = vadd.f32 %v2395, %v2408
    %2410 = vdwg.mxu0
    %2411 = vmatpush.bf16.msra.mxu0 %v1737
    %2412 = vmatpush.bf16.msra.mxu0 %v1730
    %2413 = vmatpush.bf16.msra.mxu0 %v1723
    %2414 = vmatpush.bf16.msra.mxu0 %v1716
    %2415 = vmatpush.bf16.msra.mxu0 %v1709
    %2416 = vmatpush.bf16.msra.mxu0 %v1702
    %2417 = vmatpush.bf16.msra.mxu0 %v1695
    %2418 = vmatpush.bf16.msra.mxu0 %v1688
    %2419 = vmatmul.bf16.gmra.mxu0 %v971
    %v2420 = vpop.f32.mrf.mxu0
    %v2421 = vadd.f32 0.0, %v2420
    %v2422 = vpop.f32.mrf.mxu0
    %v2423 = vadd.f32 0.0, %v2422
    %2424 = vdwg.mxu0
    %2425 = vmatpush.bf16.msra.mxu0 %v1793
    %2426 = vmatpush.bf16.msra.mxu0 %v1786
    %2427 = vmatpush.bf16.msra.mxu0 %v1779
    %2428 = vmatpush.bf16.msra.mxu0 %v1772
    %2429 = vmatpush.bf16.msra.mxu0 %v1765
    %2430 = vmatpush.bf16.msra.mxu0 %v1758
    %2431 = vmatpush.bf16.msra.mxu0 %v1751
    %2432 = vmatpush.bf16.msra.mxu0 %v1744
    %2433 = vmatmul.bf16.gmra.mxu0 %v972
    %v2434 = vpop.f32.mrf.mxu0
    %v2435 = vadd.f32 %v2421, %v2434
    %v2436 = vpop.f32.mrf.mxu0
    %v2437 = vadd.f32 %v2423, %v2436
    %2438 = vdwg.mxu0
    %2439 = vmatpush.bf16.msra.mxu0 %v1849
    %2440 = vmatpush.bf16.msra.mxu0 %v1842
    %2441 = vmatpush.bf16.msra.mxu0 %v1835
    %2442 = vmatpush.bf16.msra.mxu0 %v1828
    %2443 = vmatpush.bf16.msra.mxu0 %v1821
    %2444 = vmatpush.bf16.msra.mxu0 %v1814
    %2445 = vmatpush.bf16.msra.mxu0 %v1807
    %2446 = vmatpush.bf16.msra.mxu0 %v1800
    %2447 = vmatmul.bf16.gmra.mxu0 %v973
    %v2448 = vpop.f32.mrf.mxu0
    %v2449 = vadd.f32 %v2435, %v2448
    %v2450 = vpop.f32.mrf.mxu0
    %v2451 = vadd.f32 %v2437, %v2450
    %2452 = vdwg.mxu0
    %2453 = vmatpush.bf16.msra.mxu0 %v1905
    %2454 = vmatpush.bf16.msra.mxu0 %v1898
    %2455 = vmatpush.bf16.msra.mxu0 %v1891
    %2456 = vmatpush.bf16.msra.mxu0 %v1884
    %2457 = vmatpush.bf16.msra.mxu0 %v1877
    %2458 = vmatpush.bf16.msra.mxu0 %v1870
    %2459 = vmatpush.bf16.msra.mxu0 %v1863
    %2460 = vmatpush.bf16.msra.mxu0 %v1856
    %2461 = vmatmul.bf16.gmra.mxu0 %v974
    %v2462 = vpop.f32.mrf.mxu0
    %v2463 = vadd.f32 %v2449, %v2462
    %v2464 = vpop.f32.mrf.mxu0
    %v2465 = vadd.f32 %v2451, %v2464
    %2466 = vdwg.mxu0
    %2467 = vmatpush.bf16.msra.mxu0 %v1738
    %2468 = vmatpush.bf16.msra.mxu0 %v1731
    %2469 = vmatpush.bf16.msra.mxu0 %v1724
    %2470 = vmatpush.bf16.msra.mxu0 %v1717
    %2471 = vmatpush.bf16.msra.mxu0 %v1710
    %2472 = vmatpush.bf16.msra.mxu0 %v1703
    %2473 = vmatpush.bf16.msra.mxu0 %v1696
    %2474 = vmatpush.bf16.msra.mxu0 %v1689
    %2475 = vmatmul.bf16.gmra.mxu0 %v971
    %v2476 = vpop.f32.mrf.mxu0
    %v2477 = vadd.f32 0.0, %v2476
    %v2478 = vpop.f32.mrf.mxu0
    %v2479 = vadd.f32 0.0, %v2478
    %2480 = vdwg.mxu0
    %2481 = vmatpush.bf16.msra.mxu0 %v1794
    %2482 = vmatpush.bf16.msra.mxu0 %v1787
    %2483 = vmatpush.bf16.msra.mxu0 %v1780
    %2484 = vmatpush.bf16.msra.mxu0 %v1773
    %2485 = vmatpush.bf16.msra.mxu0 %v1766
    %2486 = vmatpush.bf16.msra.mxu0 %v1759
    %2487 = vmatpush.bf16.msra.mxu0 %v1752
    %2488 = vmatpush.bf16.msra.mxu0 %v1745
    %2489 = vmatmul.bf16.gmra.mxu0 %v972
    %v2490 = vpop.f32.mrf.mxu0
    %v2491 = vadd.f32 %v2477, %v2490
    %v2492 = vpop.f32.mrf.mxu0
    %v2493 = vadd.f32 %v2479, %v2492
    %2494 = vdwg.mxu0
    %2495 = vmatpush.bf16.msra.mxu0 %v1850
    %2496 = vmatpush.bf16.msra.mxu0 %v1843
    %2497 = vmatpush.bf16.msra.mxu0 %v1836
    %2498 = vmatpush.bf16.msra.mxu0 %v1829
    %2499 = vmatpush.bf16.msra.mxu0 %v1822
    %2500 = vmatpush.bf16.msra.mxu0 %v1815
    %2501 = vmatpush.bf16.msra.mxu0 %v1808
    %2502 = vmatpush.bf16.msra.mxu0 %v1801
    %2503 = vmatmul.bf16.gmra.mxu0 %v973
    %v2504 = vpop.f32.mrf.mxu0
    %v2505 = vadd.f32 %v2491, %v2504
    %v2506 = vpop.f32.mrf.mxu0
    %v2507 = vadd.f32 %v2493, %v2506
    %2508 = vdwg.mxu0
    %2509 = vmatpush.bf16.msra.mxu0 %v1906
    %2510 = vmatpush.bf16.msra.mxu0 %v1899
    %2511 = vmatpush.bf16.msra.mxu0 %v1892
    %2512 = vmatpush.bf16.msra.mxu0 %v1885
    %2513 = vmatpush.bf16.msra.mxu0 %v1878
    %2514 = vmatpush.bf16.msra.mxu0 %v1871
    %2515 = vmatpush.bf16.msra.mxu0 %v1864
    %2516 = vmatpush.bf16.msra.mxu0 %v1857
    %2517 = vmatmul.bf16.gmra.mxu0 %v974
    %v2518 = vpop.f32.mrf.mxu0
    %v2519 = vadd.f32 %v2505, %v2518
    %v2520 = vpop.f32.mrf.mxu0
    %v2521 = vadd.f32 %v2507, %v2520
    %2522 = vdwg.mxu0
    %v2531 = vunpack.c.l.b16 %v243
    %v2532 = vunpack.c.h.b16 %v243
    %v2533 = vunpack.c.l.b16 %v244
    %v2534 = vunpack.c.h.b16 %v244
    %v2535 = vunpack.c.l.b16 %v245
    %v2536 = vunpack.c.h.b16 %v245
    %v2537 = vunpack.c.l.b16 %v246
    %v2538 = vunpack.c.l.b16 %v247
    %v2539 = vunpack.c.h.b16 %v247
    %v2540 = vunpack.c.l.b16 %v248
    %v2541 = vunpack.c.h.b16 %v248
    %v2542 = vunpack.c.l.b16 %v249
    %v2543 = vunpack.c.h.b16 %v249
    %v2544 = vunpack.c.l.b16 %v250
    %v2545 = vpack.c.b16 %v2538, %v2531
    %v2546 = vpack.c.b16 %v2539, %v2532
    %v2547 = vpack.c.b16 %v2540, %v2533
    %v2548 = vpack.c.b16 %v2541, %v2534
    %v2549 = vpack.c.b16 %v2542, %v2535
    %v2550 = vpack.c.b16 %v2543, %v2536
    %v2551 = vpack.c.b16 %v2544, %v2537
    %v3007 = vunpack.c.l.b16 %v255
    %v3008 = vunpack.c.h.b16 %v255
    %v3009 = vunpack.c.l.b16 %v256
    %v3010 = vunpack.c.h.b16 %v256
    %v3011 = vunpack.c.l.b16 %v257
    %v3012 = vunpack.c.h.b16 %v257
    %v3013 = vunpack.c.l.b16 %v258
    %v3014 = vunpack.c.l.b16 %v259
    %v3015 = vunpack.c.h.b16 %v259
    %v3016 = vunpack.c.l.b16 %v260
    %v3017 = vunpack.c.h.b16 %v260
    %v3018 = vunpack.c.l.b16 %v261
    %v3019 = vunpack.c.h.b16 %v261
    %v3020 = vunpack.c.l.b16 %v262
    %v3021 = vunpack.c.l.b16 %v263
    %v3022 = vunpack.c.h.b16 %v263
    %v3023 = vunpack.c.l.b16 %v264
    %v3024 = vunpack.c.h.b16 %v264
    %v3025 = vunpack.c.l.b16 %v265
    %v3026 = vunpack.c.h.b16 %v265
    %v3027 = vunpack.c.l.b16 %v266
    %v3028 = vunpack.c.l.b16 %v267
    %v3029 = vunpack.c.h.b16 %v267
    %v3030 = vunpack.c.l.b16 %v268
    %v3031 = vunpack.c.h.b16 %v268
    %v3032 = vunpack.c.l.b16 %v269
    %v3033 = vunpack.c.h.b16 %v269
    %v3034 = vunpack.c.l.b16 %v270
    %v3035 = vunpack.c.l.b16 %v271
    %v3036 = vunpack.c.h.b16 %v271
    %v3037 = vunpack.c.l.b16 %v272
    %v3038 = vunpack.c.h.b16 %v272
    %v3039 = vunpack.c.l.b16 %v273
    %v3040 = vunpack.c.h.b16 %v273
    %v3041 = vunpack.c.l.b16 %v274
    %v3042 = vunpack.c.l.b16 %v275
    %v3043 = vunpack.c.h.b16 %v275
    %v3044 = vunpack.c.l.b16 %v276
    %v3045 = vunpack.c.h.b16 %v276
    %v3046 = vunpack.c.l.b16 %v277
    %v3047 = vunpack.c.h.b16 %v277
    %v3048 = vunpack.c.l.b16 %v278
    %v3049 = vunpack.c.l.b16 %v279
    %v3050 = vunpack.c.h.b16 %v279
    %v3051 = vunpack.c.l.b16 %v280
    %v3052 = vunpack.c.h.b16 %v280
    %v3053 = vunpack.c.l.b16 %v281
    %v3054 = vunpack.c.h.b16 %v281
    %v3055 = vunpack.c.l.b16 %v282
    %v3056 = vunpack.c.l.b16 %v283
    %v3057 = vunpack.c.h.b16 %v283
    %v3058 = vunpack.c.l.b16 %v284
    %v3059 = vunpack.c.h.b16 %v284
    %v3060 = vunpack.c.l.b16 %v285
    %v3061 = vunpack.c.h.b16 %v285
    %v3062 = vunpack.c.l.b16 %v286
    %v3063 = vunpack.c.l.b16 %v287
    %v3064 = vunpack.c.h.b16 %v287
    %v3065 = vunpack.c.l.b16 %v288
    %v3066 = vunpack.c.h.b16 %v288
    %v3067 = vunpack.c.l.b16 %v289
    %v3068 = vunpack.c.h.b16 %v289
    %v3069 = vunpack.c.l.b16 %v290
    %v3070 = vunpack.c.l.b16 %v291
    %v3071 = vunpack.c.h.b16 %v291
    %v3072 = vunpack.c.l.b16 %v292
    %v3073 = vunpack.c.h.b16 %v292
    %v3074 = vunpack.c.l.b16 %v293
    %v3075 = vunpack.c.h.b16 %v293
    %v3076 = vunpack.c.l.b16 %v294
    %v3077 = vunpack.c.l.b16 %v295
    %v3078 = vunpack.c.h.b16 %v295
    %v3079 = vunpack.c.l.b16 %v296
    %v3080 = vunpack.c.h.b16 %v296
    %v3081 = vunpack.c.l.b16 %v297
    %v3082 = vunpack.c.h.b16 %v297
    %v3083 = vunpack.c.l.b16 %v298
    %v3084 = vunpack.c.l.b16 %v299
    %v3085 = vunpack.c.h.b16 %v299
    %v3086 = vunpack.c.l.b16 %v300
    %v3087 = vunpack.c.h.b16 %v300
    %v3088 = vunpack.c.l.b16 %v301
    %v3089 = vunpack.c.h.b16 %v301
    %v3090 = vunpack.c.l.b16 %v302
    %v3091 = vunpack.c.l.b16 %v303
    %v3092 = vunpack.c.h.b16 %v303
    %v3093 = vunpack.c.l.b16 %v304
    %v3094 = vunpack.c.h.b16 %v304
    %v3095 = vunpack.c.l.b16 %v305
    %v3096 = vunpack.c.h.b16 %v305
    %v3097 = vunpack.c.l.b16 %v306
    %v3098 = vunpack.c.l.b16 %v307
    %v3099 = vunpack.c.h.b16 %v307
    %v3100 = vunpack.c.l.b16 %v308
    %v3101 = vunpack.c.h.b16 %v308
    %v3102 = vunpack.c.l.b16 %v309
    %v3103 = vunpack.c.h.b16 %v309
    %v3104 = vunpack.c.l.b16 %v310
    %v3105 = vunpack.c.l.b16 %v311
    %v3106 = vunpack.c.h.b16 %v311
    %v3107 = vunpack.c.l.b16 %v312
    %v3108 = vunpack.c.h.b16 %v312
    %v3109 = vunpack.c.l.b16 %v313
    %v3110 = vunpack.c.h.b16 %v313
    %v3111 = vunpack.c.l.b16 %v314
    %v3112 = vunpack.c.l.b16 %v315
    %v3113 = vunpack.c.h.b16 %v315
    %v3114 = vunpack.c.l.b16 %v316
    %v3115 = vunpack.c.h.b16 %v316
    %v3116 = vunpack.c.l.b16 %v317
    %v3117 = vunpack.c.h.b16 %v317
    %v3118 = vunpack.c.l.b16 %v318
    %v3119 = vunpack.c.l.b16 %v319
    %v3120 = vunpack.c.h.b16 %v319
    %v3121 = vunpack.c.l.b16 %v320
    %v3122 = vunpack.c.h.b16 %v320
    %v3123 = vunpack.c.l.b16 %v321
    %v3124 = vunpack.c.h.b16 %v321
    %v3125 = vunpack.c.l.b16 %v322
    %v3126 = vunpack.c.l.b16 %v323
    %v3127 = vunpack.c.h.b16 %v323
    %v3128 = vunpack.c.l.b16 %v324
    %v3129 = vunpack.c.h.b16 %v324
    %v3130 = vunpack.c.l.b16 %v325
    %v3131 = vunpack.c.h.b16 %v325
    %v3132 = vunpack.c.l.b16 %v326
    %v3133 = vunpack.c.l.b16 %v327
    %v3134 = vunpack.c.h.b16 %v327
    %v3135 = vunpack.c.l.b16 %v328
    %v3136 = vunpack.c.h.b16 %v328
    %v3137 = vunpack.c.l.b16 %v329
    %v3138 = vunpack.c.h.b16 %v329
    %v3139 = vunpack.c.l.b16 %v330
    %v3140 = vunpack.c.l.b16 %v331
    %v3141 = vunpack.c.h.b16 %v331
    %v3142 = vunpack.c.l.b16 %v332
    %v3143 = vunpack.c.h.b16 %v332
    %v3144 = vunpack.c.l.b16 %v333
    %v3145 = vunpack.c.h.b16 %v333
    %v3146 = vunpack.c.l.b16 %v334
    %v3147 = vunpack.c.l.b16 %v335
    %v3148 = vunpack.c.h.b16 %v335
    %v3149 = vunpack.c.l.b16 %v336
    %v3150 = vunpack.c.h.b16 %v336
    %v3151 = vunpack.c.l.b16 %v337
    %v3152 = vunpack.c.h.b16 %v337
    %v3153 = vunpack.c.l.b16 %v338
    %v3154 = vunpack.c.l.b16 %v339
    %v3155 = vunpack.c.h.b16 %v339
    %v3156 = vunpack.c.l.b16 %v340
    %v3157 = vunpack.c.h.b16 %v340
    %v3158 = vunpack.c.l.b16 %v341
    %v3159 = vunpack.c.h.b16 %v341
    %v3160 = vunpack.c.l.b16 %v342
    %v3161 = vunpack.c.l.b16 %v343
    %v3162 = vunpack.c.h.b16 %v343
    %v3163 = vunpack.c.l.b16 %v344
    %v3164 = vunpack.c.h.b16 %v344
    %v3165 = vunpack.c.l.b16 %v345
    %v3166 = vunpack.c.h.b16 %v345
    %v3167 = vunpack.c.l.b16 %v346
    %v3168 = vunpack.c.l.b16 %v347
    %v3169 = vunpack.c.h.b16 %v347
    %v3170 = vunpack.c.l.b16 %v348
    %v3171 = vunpack.c.h.b16 %v348
    %v3172 = vunpack.c.l.b16 %v349
    %v3173 = vunpack.c.h.b16 %v349
    %v3174 = vunpack.c.l.b16 %v350
    %v3175 = vunpack.c.l.b16 %v351
    %v3176 = vunpack.c.h.b16 %v351
    %v3177 = vunpack.c.l.b16 %v352
    %v3178 = vunpack.c.h.b16 %v352
    %v3179 = vunpack.c.l.b16 %v353
    %v3180 = vunpack.c.h.b16 %v353
    %v3181 = vunpack.c.l.b16 %v354
    %v3182 = vunpack.c.l.b16 %v355
    %v3183 = vunpack.c.h.b16 %v355
    %v3184 = vunpack.c.l.b16 %v356
    %v3185 = vunpack.c.h.b16 %v356
    %v3186 = vunpack.c.l.b16 %v357
    %v3187 = vunpack.c.h.b16 %v357
    %v3188 = vunpack.c.l.b16 %v358
    %v3189 = vunpack.c.l.b16 %v359
    %v3190 = vunpack.c.h.b16 %v359
    %v3191 = vunpack.c.l.b16 %v360
    %v3192 = vunpack.c.h.b16 %v360
    %v3193 = vunpack.c.l.b16 %v361
    %v3194 = vunpack.c.h.b16 %v361
    %v3195 = vunpack.c.l.b16 %v362
    %v3196 = vunpack.c.l.b16 %v363
    %v3197 = vunpack.c.h.b16 %v363
    %v3198 = vunpack.c.l.b16 %v364
    %v3199 = vunpack.c.h.b16 %v364
    %v3200 = vunpack.c.l.b16 %v365
    %v3201 = vunpack.c.h.b16 %v365
    %v3202 = vunpack.c.l.b16 %v366
    %v3203 = vunpack.c.l.b16 %v367
    %v3204 = vunpack.c.h.b16 %v367
    %v3205 = vunpack.c.l.b16 %v368
    %v3206 = vunpack.c.h.b16 %v368
    %v3207 = vunpack.c.l.b16 %v369
    %v3208 = vunpack.c.h.b16 %v369
    %v3209 = vunpack.c.l.b16 %v370
    %v3210 = vunpack.c.l.b16 %v371
    %v3211 = vunpack.c.h.b16 %v371
    %v3212 = vunpack.c.l.b16 %v372
    %v3213 = vunpack.c.h.b16 %v372
    %v3214 = vunpack.c.l.b16 %v373
    %v3215 = vunpack.c.h.b16 %v373
    %v3216 = vunpack.c.l.b16 %v374
    %v3217 = vunpack.c.l.b16 %v375
    %v3218 = vunpack.c.h.b16 %v375
    %v3219 = vunpack.c.l.b16 %v376
    %v3220 = vunpack.c.h.b16 %v376
    %v3221 = vunpack.c.l.b16 %v377
    %v3222 = vunpack.c.h.b16 %v377
    %v3223 = vunpack.c.l.b16 %v378
    %v3224 = vunpack.c.l.b16 %v379
    %v3225 = vunpack.c.h.b16 %v379
    %v3226 = vunpack.c.l.b16 %v380
    %v3227 = vunpack.c.h.b16 %v380
    %v3228 = vunpack.c.l.b16 %v381
    %v3229 = vunpack.c.h.b16 %v381
    %v3230 = vunpack.c.l.b16 %v382
    %v3231 = vunpack.c.l.b16 %v383
    %v3232 = vunpack.c.h.b16 %v383
    %v3233 = vunpack.c.l.b16 %v384
    %v3234 = vunpack.c.h.b16 %v384
    %v3235 = vunpack.c.l.b16 %v385
    %v3236 = vunpack.c.h.b16 %v385
    %v3237 = vunpack.c.l.b16 %v386
    %v3238 = vunpack.c.l.b16 %v387
    %v3239 = vunpack.c.h.b16 %v387
    %v3240 = vunpack.c.l.b16 %v388
    %v3241 = vunpack.c.h.b16 %v388
    %v3242 = vunpack.c.l.b16 %v389
    %v3243 = vunpack.c.h.b16 %v389
    %v3244 = vunpack.c.l.b16 %v390
    %v3245 = vunpack.c.l.b16 %v391
    %v3246 = vunpack.c.h.b16 %v391
    %v3247 = vunpack.c.l.b16 %v392
    %v3248 = vunpack.c.h.b16 %v392
    %v3249 = vunpack.c.l.b16 %v393
    %v3250 = vunpack.c.h.b16 %v393
    %v3251 = vunpack.c.l.b16 %v394
    %v3252 = vunpack.c.l.b16 %v395
    %v3253 = vunpack.c.h.b16 %v395
    %v3254 = vunpack.c.l.b16 %v396
    %v3255 = vunpack.c.h.b16 %v396
    %v3256 = vunpack.c.l.b16 %v397
    %v3257 = vunpack.c.h.b16 %v397
    %v3258 = vunpack.c.l.b16 %v398
    %v3259 = vunpack.c.l.b16 %v399
    %v3260 = vunpack.c.h.b16 %v399
    %v3261 = vunpack.c.l.b16 %v400
    %v3262 = vunpack.c.h.b16 %v400
    %v3263 = vunpack.c.l.b16 %v401
    %v3264 = vunpack.c.h.b16 %v401
    %v3265 = vunpack.c.l.b16 %v402
    %v3266 = vunpack.c.l.b16 %v403
    %v3267 = vunpack.c.h.b16 %v403
    %v3268 = vunpack.c.l.b16 %v404
    %v3269 = vunpack.c.h.b16 %v404
    %v3270 = vunpack.c.l.b16 %v405
    %v3271 = vunpack.c.h.b16 %v405
    %v3272 = vunpack.c.l.b16 %v406
    %v3273 = vunpack.c.l.b16 %v407
    %v3274 = vunpack.c.h.b16 %v407
    %v3275 = vunpack.c.l.b16 %v408
    %v3276 = vunpack.c.h.b16 %v408
    %v3277 = vunpack.c.l.b16 %v409
    %v3278 = vunpack.c.h.b16 %v409
    %v3279 = vunpack.c.l.b16 %v410
    %v3280 = vunpack.c.l.b16 %v411
    %v3281 = vunpack.c.h.b16 %v411
    %v3282 = vunpack.c.l.b16 %v412
    %v3283 = vunpack.c.h.b16 %v412
    %v3284 = vunpack.c.l.b16 %v413
    %v3285 = vunpack.c.h.b16 %v413
    %v3286 = vunpack.c.l.b16 %v414
    %v3287 = vunpack.c.l.b16 %v415
    %v3288 = vunpack.c.h.b16 %v415
    %v3289 = vunpack.c.l.b16 %v416
    %v3290 = vunpack.c.h.b16 %v416
    %v3291 = vunpack.c.l.b16 %v417
    %v3292 = vunpack.c.h.b16 %v417
    %v3293 = vunpack.c.l.b16 %v418
    %v3294 = vunpack.c.l.b16 %v419
    %v3295 = vunpack.c.h.b16 %v419
    %v3296 = vunpack.c.l.b16 %v420
    %v3297 = vunpack.c.h.b16 %v420
    %v3298 = vunpack.c.l.b16 %v421
    %v3299 = vunpack.c.h.b16 %v421
    %v3300 = vunpack.c.l.b16 %v422
    %v3301 = vunpack.c.l.b16 %v423
    %v3302 = vunpack.c.h.b16 %v423
    %v3303 = vunpack.c.l.b16 %v424
    %v3304 = vunpack.c.h.b16 %v424
    %v3305 = vunpack.c.l.b16 %v425
    %v3306 = vunpack.c.h.b16 %v425
    %v3307 = vunpack.c.l.b16 %v426
    %v3308 = vunpack.c.l.b16 %v427
    %v3309 = vunpack.c.h.b16 %v427
    %v3310 = vunpack.c.l.b16 %v428
    %v3311 = vunpack.c.h.b16 %v428
    %v3312 = vunpack.c.l.b16 %v429
    %v3313 = vunpack.c.h.b16 %v429
    %v3314 = vunpack.c.l.b16 %v430
    %v3315 = vunpack.c.l.b16 %v431
    %v3316 = vunpack.c.h.b16 %v431
    %v3317 = vunpack.c.l.b16 %v432
    %v3318 = vunpack.c.h.b16 %v432
    %v3319 = vunpack.c.l.b16 %v433
    %v3320 = vunpack.c.h.b16 %v433
    %v3321 = vunpack.c.l.b16 %v434
    %v3322 = vunpack.c.l.b16 %v435
    %v3323 = vunpack.c.h.b16 %v435
    %v3324 = vunpack.c.l.b16 %v436
    %v3325 = vunpack.c.h.b16 %v436
    %v3326 = vunpack.c.l.b16 %v437
    %v3327 = vunpack.c.h.b16 %v437
    %v3328 = vunpack.c.l.b16 %v438
    %v3329 = vunpack.c.l.b16 %v439
    %v3330 = vunpack.c.h.b16 %v439
    %v3331 = vunpack.c.l.b16 %v440
    %v3332 = vunpack.c.h.b16 %v440
    %v3333 = vunpack.c.l.b16 %v441
    %v3334 = vunpack.c.h.b16 %v441
    %v3335 = vunpack.c.l.b16 %v442
    %v3336 = vunpack.c.l.b16 %v443
    %v3337 = vunpack.c.h.b16 %v443
    %v3338 = vunpack.c.l.b16 %v444
    %v3339 = vunpack.c.h.b16 %v444
    %v3340 = vunpack.c.l.b16 %v445
    %v3341 = vunpack.c.h.b16 %v445
    %v3342 = vunpack.c.l.b16 %v446
    %v3343 = vunpack.c.l.b16 %v447
    %v3344 = vunpack.c.h.b16 %v447
    %v3345 = vunpack.c.l.b16 %v448
    %v3346 = vunpack.c.h.b16 %v448
    %v3347 = vunpack.c.l.b16 %v449
    %v3348 = vunpack.c.h.b16 %v449
    %v3349 = vunpack.c.l.b16 %v450
    %v3350 = vunpack.c.l.b16 %v451
    %v3351 = vunpack.c.h.b16 %v451
    %v3352 = vunpack.c.l.b16 %v452
    %v3353 = vunpack.c.h.b16 %v452
    %v3354 = vunpack.c.l.b16 %v453
    %v3355 = vunpack.c.h.b16 %v453
    %v3356 = vunpack.c.l.b16 %v454
    %v3357 = vunpack.c.l.b16 %v455
    %v3358 = vunpack.c.h.b16 %v455
    %v3359 = vunpack.c.l.b16 %v456
    %v3360 = vunpack.c.h.b16 %v456
    %v3361 = vunpack.c.l.b16 %v457
    %v3362 = vunpack.c.h.b16 %v457
    %v3363 = vunpack.c.l.b16 %v458
    %v3364 = vunpack.c.l.b16 %v459
    %v3365 = vunpack.c.h.b16 %v459
    %v3366 = vunpack.c.l.b16 %v460
    %v3367 = vunpack.c.h.b16 %v460
    %v3368 = vunpack.c.l.b16 %v461
    %v3369 = vunpack.c.h.b16 %v461
    %v3370 = vunpack.c.l.b16 %v462
    %v3371 = vunpack.c.l.b16 %v463
    %v3372 = vunpack.c.h.b16 %v463
    %v3373 = vunpack.c.l.b16 %v464
    %v3374 = vunpack.c.h.b16 %v464
    %v3375 = vunpack.c.l.b16 %v465
    %v3376 = vunpack.c.h.b16 %v465
    %v3377 = vunpack.c.l.b16 %v466
    %v3378 = vunpack.c.l.b16 %v467
    %v3379 = vunpack.c.h.b16 %v467
    %v3380 = vunpack.c.l.b16 %v468
    %v3381 = vunpack.c.h.b16 %v468
    %v3382 = vunpack.c.l.b16 %v469
    %v3383 = vunpack.c.h.b16 %v469
    %v3384 = vunpack.c.l.b16 %v470
    %v3385 = vunpack.c.l.b16 %v471
    %v3386 = vunpack.c.h.b16 %v471
    %v3387 = vunpack.c.l.b16 %v472
    %v3388 = vunpack.c.h.b16 %v472
    %v3389 = vunpack.c.l.b16 %v473
    %v3390 = vunpack.c.h.b16 %v473
    %v3391 = vunpack.c.l.b16 %v474
    %v3392 = vunpack.c.l.b16 %v475
    %v3393 = vunpack.c.h.b16 %v475
    %v3394 = vunpack.c.l.b16 %v476
    %v3395 = vunpack.c.h.b16 %v476
    %v3396 = vunpack.c.l.b16 %v477
    %v3397 = vunpack.c.h.b16 %v477
    %v3398 = vunpack.c.l.b16 %v478
    %v3399 = vunpack.c.l.b16 %v479
    %v3400 = vunpack.c.h.b16 %v479
    %v3401 = vunpack.c.l.b16 %v480
    %v3402 = vunpack.c.h.b16 %v480
    %v3403 = vunpack.c.l.b16 %v481
    %v3404 = vunpack.c.h.b16 %v481
    %v3405 = vunpack.c.l.b16 %v482
    %v3406 = vunpack.c.l.b16 %v483
    %v3407 = vunpack.c.h.b16 %v483
    %v3408 = vunpack.c.l.b16 %v484
    %v3409 = vunpack.c.h.b16 %v484
    %v3410 = vunpack.c.l.b16 %v485
    %v3411 = vunpack.c.h.b16 %v485
    %v3412 = vunpack.c.l.b16 %v486
    %v3413 = vunpack.c.l.b16 %v487
    %v3414 = vunpack.c.h.b16 %v487
    %v3415 = vunpack.c.l.b16 %v488
    %v3416 = vunpack.c.h.b16 %v488
    %v3417 = vunpack.c.l.b16 %v489
    %v3418 = vunpack.c.h.b16 %v489
    %v3419 = vunpack.c.l.b16 %v490
    %v3420 = vunpack.c.l.b16 %v491
    %v3421 = vunpack.c.h.b16 %v491
    %v3422 = vunpack.c.l.b16 %v492
    %v3423 = vunpack.c.h.b16 %v492
    %v3424 = vunpack.c.l.b16 %v493
    %v3425 = vunpack.c.h.b16 %v493
    %v3426 = vunpack.c.l.b16 %v494
    %v3427 = vunpack.c.l.b16 %v495
    %v3428 = vunpack.c.h.b16 %v495
    %v3429 = vunpack.c.l.b16 %v496
    %v3430 = vunpack.c.h.b16 %v496
    %v3431 = vunpack.c.l.b16 %v497
    %v3432 = vunpack.c.h.b16 %v497
    %v3433 = vunpack.c.l.b16 %v498
    %v3434 = vunpack.c.l.b16 %v499
    %v3435 = vunpack.c.h.b16 %v499
    %v3436 = vunpack.c.l.b16 %v500
    %v3437 = vunpack.c.h.b16 %v500
    %v3438 = vunpack.c.l.b16 %v501
    %v3439 = vunpack.c.h.b16 %v501
    %v3440 = vunpack.c.l.b16 %v502
    %v3441 = vunpack.c.l.b16 %v503
    %v3442 = vunpack.c.h.b16 %v503
    %v3443 = vunpack.c.l.b16 %v504
    %v3444 = vunpack.c.h.b16 %v504
    %v3445 = vunpack.c.l.b16 %v505
    %v3446 = vunpack.c.h.b16 %v505
    %v3447 = vunpack.c.l.b16 %v506
    %v3448 = vunpack.c.l.b16 %v507
    %v3449 = vunpack.c.h.b16 %v507
    %v3450 = vunpack.c.l.b16 %v508
    %v3451 = vunpack.c.h.b16 %v508
    %v3452 = vunpack.c.l.b16 %v509
    %v3453 = vunpack.c.h.b16 %v509
    %v3454 = vunpack.c.l.b16 %v510
    %v3455 = vunpack.c.l.b16 %v511
    %v3456 = vunpack.c.h.b16 %v511
    %v3457 = vunpack.c.l.b16 %v512
    %v3458 = vunpack.c.h.b16 %v512
    %v3459 = vunpack.c.l.b16 %v513
    %v3460 = vunpack.c.h.b16 %v513
    %v3461 = vunpack.c.l.b16 %v514
    %v3462 = vunpack.c.l.b16 %v515
    %v3463 = vunpack.c.h.b16 %v515
    %v3464 = vunpack.c.l.b16 %v516
    %v3465 = vunpack.c.h.b16 %v516
    %v3466 = vunpack.c.l.b16 %v517
    %v3467 = vunpack.c.h.b16 %v517
    %v3468 = vunpack.c.l.b16 %v518
    %v3469 = vunpack.c.l.b16 %v519
    %v3470 = vunpack.c.h.b16 %v519
    %v3471 = vunpack.c.l.b16 %v520
    %v3472 = vunpack.c.h.b16 %v520
    %v3473 = vunpack.c.l.b16 %v521
    %v3474 = vunpack.c.h.b16 %v521
    %v3475 = vunpack.c.l.b16 %v522
    %v3476 = vunpack.c.l.b16 %v523
    %v3477 = vunpack.c.h.b16 %v523
    %v3478 = vunpack.c.l.b16 %v524
    %v3479 = vunpack.c.h.b16 %v524
    %v3480 = vunpack.c.l.b16 %v525
    %v3481 = vunpack.c.h.b16 %v525
    %v3482 = vunpack.c.l.b16 %v526
    %v3483 = vunpack.c.l.b16 %v527
    %v3484 = vunpack.c.h.b16 %v527
    %v3485 = vunpack.c.l.b16 %v528
    %v3486 = vunpack.c.h.b16 %v528
    %v3487 = vunpack.c.l.b16 %v529
    %v3488 = vunpack.c.h.b16 %v529
    %v3489 = vunpack.c.l.b16 %v530
    %v3490 = vunpack.c.l.b16 %v531
    %v3491 = vunpack.c.h.b16 %v531
    %v3492 = vunpack.c.l.b16 %v532
    %v3493 = vunpack.c.h.b16 %v532
    %v3494 = vunpack.c.l.b16 %v533
    %v3495 = vunpack.c.h.b16 %v533
    %v3496 = vunpack.c.l.b16 %v534
    %v3497 = vunpack.c.l.b16 %v535
    %v3498 = vunpack.c.h.b16 %v535
    %v3499 = vunpack.c.l.b16 %v536
    %v3500 = vunpack.c.h.b16 %v536
    %v3501 = vunpack.c.l.b16 %v537
    %v3502 = vunpack.c.h.b16 %v537
    %v3503 = vunpack.c.l.b16 %v538
    %v3504 = vunpack.c.l.b16 %v539
    %v3505 = vunpack.c.h.b16 %v539
    %v3506 = vunpack.c.l.b16 %v540
    %v3507 = vunpack.c.h.b16 %v540
    %v3508 = vunpack.c.l.b16 %v541
    %v3509 = vunpack.c.h.b16 %v541
    %v3510 = vunpack.c.l.b16 %v542
    %v3511 = vunpack.c.l.b16 %v543
    %v3512 = vunpack.c.h.b16 %v543
    %v3513 = vunpack.c.l.b16 %v544
    %v3514 = vunpack.c.h.b16 %v544
    %v3515 = vunpack.c.l.b16 %v545
    %v3516 = vunpack.c.h.b16 %v545
    %v3517 = vunpack.c.l.b16 %v546
    %v3518 = vunpack.c.l.b16 %v547
    %v3519 = vunpack.c.h.b16 %v547
    %v3520 = vunpack.c.l.b16 %v548
    %v3521 = vunpack.c.h.b16 %v548
    %v3522 = vunpack.c.l.b16 %v549
    %v3523 = vunpack.c.h.b16 %v549
    %v3524 = vunpack.c.l.b16 %v550
    %v3525 = vunpack.c.l.b16 %v551
    %v3526 = vunpack.c.h.b16 %v551
    %v3527 = vunpack.c.l.b16 %v552
    %v3528 = vunpack.c.h.b16 %v552
    %v3529 = vunpack.c.l.b16 %v553
    %v3530 = vunpack.c.h.b16 %v553
    %v3531 = vunpack.c.l.b16 %v554
    %v3532 = vunpack.c.l.b16 %v555
    %v3533 = vunpack.c.h.b16 %v555
    %v3534 = vunpack.c.l.b16 %v556
    %v3535 = vunpack.c.h.b16 %v556
    %v3536 = vunpack.c.l.b16 %v557
    %v3537 = vunpack.c.h.b16 %v557
    %v3538 = vunpack.c.l.b16 %v558
    %v3539 = vunpack.c.l.b16 %v559
    %v3540 = vunpack.c.h.b16 %v559
    %v3541 = vunpack.c.l.b16 %v560
    %v3542 = vunpack.c.h.b16 %v560
    %v3543 = vunpack.c.l.b16 %v561
    %v3544 = vunpack.c.h.b16 %v561
    %v3545 = vunpack.c.l.b16 %v562
    %v3546 = vunpack.c.l.b16 %v563
    %v3547 = vunpack.c.h.b16 %v563
    %v3548 = vunpack.c.l.b16 %v564
    %v3549 = vunpack.c.h.b16 %v564
    %v3550 = vunpack.c.l.b16 %v565
    %v3551 = vunpack.c.h.b16 %v565
    %v3552 = vunpack.c.l.b16 %v566
    %v3553 = vunpack.c.l.b16 %v567
    %v3554 = vunpack.c.h.b16 %v567
    %v3555 = vunpack.c.l.b16 %v568
    %v3556 = vunpack.c.h.b16 %v568
    %v3557 = vunpack.c.l.b16 %v569
    %v3558 = vunpack.c.h.b16 %v569
    %v3559 = vunpack.c.l.b16 %v570
    %v3560 = vunpack.c.l.b16 %v571
    %v3561 = vunpack.c.h.b16 %v571
    %v3562 = vunpack.c.l.b16 %v572
    %v3563 = vunpack.c.h.b16 %v572
    %v3564 = vunpack.c.l.b16 %v573
    %v3565 = vunpack.c.h.b16 %v573
    %v3566 = vunpack.c.l.b16 %v574
    %v3567 = vunpack.c.l.b16 %v575
    %v3568 = vunpack.c.h.b16 %v575
    %v3569 = vunpack.c.l.b16 %v576
    %v3570 = vunpack.c.h.b16 %v576
    %v3571 = vunpack.c.l.b16 %v577
    %v3572 = vunpack.c.h.b16 %v577
    %v3573 = vunpack.c.l.b16 %v578
    %v3574 = vunpack.c.l.b16 %v579
    %v3575 = vunpack.c.h.b16 %v579
    %v3576 = vunpack.c.l.b16 %v580
    %v3577 = vunpack.c.h.b16 %v580
    %v3578 = vunpack.c.l.b16 %v581
    %v3579 = vunpack.c.h.b16 %v581
    %v3580 = vunpack.c.l.b16 %v582
    %v3581 = vunpack.c.l.b16 %v583
    %v3582 = vunpack.c.h.b16 %v583
    %v3583 = vunpack.c.l.b16 %v584
    %v3584 = vunpack.c.h.b16 %v584
    %v3585 = vunpack.c.l.b16 %v585
    %v3586 = vunpack.c.h.b16 %v585
    %v3587 = vunpack.c.l.b16 %v586
    %v3588 = vunpack.c.l.b16 %v587
    %v3589 = vunpack.c.h.b16 %v587
    %v3590 = vunpack.c.l.b16 %v588
    %v3591 = vunpack.c.h.b16 %v588
    %v3592 = vunpack.c.l.b16 %v589
    %v3593 = vunpack.c.h.b16 %v589
    %v3594 = vunpack.c.l.b16 %v590
    %v3595 = vunpack.c.l.b16 %v591
    %v3596 = vunpack.c.h.b16 %v591
    %v3597 = vunpack.c.l.b16 %v592
    %v3598 = vunpack.c.h.b16 %v592
    %v3599 = vunpack.c.l.b16 %v593
    %v3600 = vunpack.c.h.b16 %v593
    %v3601 = vunpack.c.l.b16 %v594
    %v3602 = vunpack.c.l.b16 %v595
    %v3603 = vunpack.c.h.b16 %v595
    %v3604 = vunpack.c.l.b16 %v596
    %v3605 = vunpack.c.h.b16 %v596
    %v3606 = vunpack.c.l.b16 %v597
    %v3607 = vunpack.c.h.b16 %v597
    %v3608 = vunpack.c.l.b16 %v598
    %v3609 = vunpack.c.l.b16 %v599
    %v3610 = vunpack.c.h.b16 %v599
    %v3611 = vunpack.c.l.b16 %v600
    %v3612 = vunpack.c.h.b16 %v600
    %v3613 = vunpack.c.l.b16 %v601
    %v3614 = vunpack.c.h.b16 %v601
    %v3615 = vunpack.c.l.b16 %v602
    %v3616 = vunpack.c.l.b16 %v603
    %v3617 = vunpack.c.h.b16 %v603
    %v3618 = vunpack.c.l.b16 %v604
    %v3619 = vunpack.c.h.b16 %v604
    %v3620 = vunpack.c.l.b16 %v605
    %v3621 = vunpack.c.h.b16 %v605
    %v3622 = vunpack.c.l.b16 %v606
    %v3623 = vunpack.c.l.b16 %v607
    %v3624 = vunpack.c.h.b16 %v607
    %v3625 = vunpack.c.l.b16 %v608
    %v3626 = vunpack.c.h.b16 %v608
    %v3627 = vunpack.c.l.b16 %v609
    %v3628 = vunpack.c.h.b16 %v609
    %v3629 = vunpack.c.l.b16 %v610
    %v3630 = vunpack.c.l.b16 %v611
    %v3631 = vunpack.c.h.b16 %v611
    %v3632 = vunpack.c.l.b16 %v612
    %v3633 = vunpack.c.h.b16 %v612
    %v3634 = vunpack.c.l.b16 %v613
    %v3635 = vunpack.c.h.b16 %v613
    %v3636 = vunpack.c.l.b16 %v614
    %v3637 = vunpack.c.l.b16 %v615
    %v3638 = vunpack.c.h.b16 %v615
    %v3639 = vunpack.c.l.b16 %v616
    %v3640 = vunpack.c.h.b16 %v616
    %v3641 = vunpack.c.l.b16 %v617
    %v3642 = vunpack.c.h.b16 %v617
    %v3643 = vunpack.c.l.b16 %v618
    %v3644 = vunpack.c.l.b16 %v619
    %v3645 = vunpack.c.h.b16 %v619
    %v3646 = vunpack.c.l.b16 %v620
    %v3647 = vunpack.c.h.b16 %v620
    %v3648 = vunpack.c.l.b16 %v621
    %v3649 = vunpack.c.h.b16 %v621
    %v3650 = vunpack.c.l.b16 %v622
    %v3651 = vunpack.c.l.b16 %v623
    %v3652 = vunpack.c.h.b16 %v623
    %v3653 = vunpack.c.l.b16 %v624
    %v3654 = vunpack.c.h.b16 %v624
    %v3655 = vunpack.c.l.b16 %v625
    %v3656 = vunpack.c.h.b16 %v625
    %v3657 = vunpack.c.l.b16 %v626
    %v3658 = vunpack.c.l.b16 %v627
    %v3659 = vunpack.c.h.b16 %v627
    %v3660 = vunpack.c.l.b16 %v628
    %v3661 = vunpack.c.h.b16 %v628
    %v3662 = vunpack.c.l.b16 %v629
    %v3663 = vunpack.c.h.b16 %v629
    %v3664 = vunpack.c.l.b16 %v630
    %v3665 = vunpack.c.l.b16 %v631
    %v3666 = vunpack.c.h.b16 %v631
    %v3667 = vunpack.c.l.b16 %v632
    %v3668 = vunpack.c.h.b16 %v632
    %v3669 = vunpack.c.l.b16 %v633
    %v3670 = vunpack.c.h.b16 %v633
    %v3671 = vunpack.c.l.b16 %v634
    %v3672 = vunpack.c.l.b16 %v635
    %v3673 = vunpack.c.h.b16 %v635
    %v3674 = vunpack.c.l.b16 %v636
    %v3675 = vunpack.c.h.b16 %v636
    %v3676 = vunpack.c.l.b16 %v637
    %v3677 = vunpack.c.h.b16 %v637
    %v3678 = vunpack.c.l.b16 %v638
    %v3679 = vunpack.c.l.b16 %v639
    %v3680 = vunpack.c.h.b16 %v639
    %v3681 = vunpack.c.l.b16 %v640
    %v3682 = vunpack.c.h.b16 %v640
    %v3683 = vunpack.c.l.b16 %v641
    %v3684 = vunpack.c.h.b16 %v641
    %v3685 = vunpack.c.l.b16 %v642
    %v3686 = vunpack.c.l.b16 %v643
    %v3687 = vunpack.c.h.b16 %v643
    %v3688 = vunpack.c.l.b16 %v644
    %v3689 = vunpack.c.h.b16 %v644
    %v3690 = vunpack.c.l.b16 %v645
    %v3691 = vunpack.c.h.b16 %v645
    %v3692 = vunpack.c.l.b16 %v646
    %v3693 = vunpack.c.l.b16 %v647
    %v3694 = vunpack.c.h.b16 %v647
    %v3695 = vunpack.c.l.b16 %v648
    %v3696 = vunpack.c.h.b16 %v648
    %v3697 = vunpack.c.l.b16 %v649
    %v3698 = vunpack.c.h.b16 %v649
    %v3699 = vunpack.c.l.b16 %v650
    %v3700 = vunpack.c.l.b16 %v651
    %v3701 = vunpack.c.h.b16 %v651
    %v3702 = vunpack.c.l.b16 %v652
    %v3703 = vunpack.c.h.b16 %v652
    %v3704 = vunpack.c.l.b16 %v653
    %v3705 = vunpack.c.h.b16 %v653
    %v3706 = vunpack.c.l.b16 %v654
    %v3707 = vunpack.c.l.b16 %v655
    %v3708 = vunpack.c.h.b16 %v655
    %v3709 = vunpack.c.l.b16 %v656
    %v3710 = vunpack.c.h.b16 %v656
    %v3711 = vunpack.c.l.b16 %v657
    %v3712 = vunpack.c.h.b16 %v657
    %v3713 = vunpack.c.l.b16 %v658
    %v3714 = vunpack.c.l.b16 %v659
    %v3715 = vunpack.c.h.b16 %v659
    %v3716 = vunpack.c.l.b16 %v660
    %v3717 = vunpack.c.h.b16 %v660
    %v3718 = vunpack.c.l.b16 %v661
    %v3719 = vunpack.c.h.b16 %v661
    %v3720 = vunpack.c.l.b16 %v662
    %v3721 = vunpack.c.l.b16 %v663
    %v3722 = vunpack.c.h.b16 %v663
    %v3723 = vunpack.c.l.b16 %v664
    %v3724 = vunpack.c.h.b16 %v664
    %v3725 = vunpack.c.l.b16 %v665
    %v3726 = vunpack.c.h.b16 %v665
    %v3727 = vunpack.c.l.b16 %v666
    %v3728 = vunpack.c.l.b16 %v667
    %v3729 = vunpack.c.h.b16 %v667
    %v3730 = vunpack.c.l.b16 %v668
    %v3731 = vunpack.c.h.b16 %v668
    %v3732 = vunpack.c.l.b16 %v669
    %v3733 = vunpack.c.h.b16 %v669
    %v3734 = vunpack.c.l.b16 %v670
    %v3735 = vunpack.c.l.b16 %v671
    %v3736 = vunpack.c.h.b16 %v671
    %v3737 = vunpack.c.l.b16 %v672
    %v3738 = vunpack.c.h.b16 %v672
    %v3739 = vunpack.c.l.b16 %v673
    %v3740 = vunpack.c.h.b16 %v673
    %v3741 = vunpack.c.l.b16 %v674
    %v3742 = vunpack.c.l.b16 %v675
    %v3743 = vunpack.c.h.b16 %v675
    %v3744 = vunpack.c.l.b16 %v676
    %v3745 = vunpack.c.h.b16 %v676
    %v3746 = vunpack.c.l.b16 %v677
    %v3747 = vunpack.c.h.b16 %v677
    %v3748 = vunpack.c.l.b16 %v678
    %v3749 = vunpack.c.l.b16 %v679
    %v3750 = vunpack.c.h.b16 %v679
    %v3751 = vunpack.c.l.b16 %v680
    %v3752 = vunpack.c.h.b16 %v680
    %v3753 = vunpack.c.l.b16 %v681
    %v3754 = vunpack.c.h.b16 %v681
    %v3755 = vunpack.c.l.b16 %v682
    %v3756 = vunpack.c.l.b16 %v683
    %v3757 = vunpack.c.h.b16 %v683
    %v3758 = vunpack.c.l.b16 %v684
    %v3759 = vunpack.c.h.b16 %v684
    %v3760 = vunpack.c.l.b16 %v685
    %v3761 = vunpack.c.h.b16 %v685
    %v3762 = vunpack.c.l.b16 %v686
    %v3763 = vunpack.c.l.b16 %v687
    %v3764 = vunpack.c.h.b16 %v687
    %v3765 = vunpack.c.l.b16 %v688
    %v3766 = vunpack.c.h.b16 %v688
    %v3767 = vunpack.c.l.b16 %v689
    %v3768 = vunpack.c.h.b16 %v689
    %v3769 = vunpack.c.l.b16 %v690
    %v3770 = vunpack.c.l.b16 %v691
    %v3771 = vunpack.c.h.b16 %v691
    %v3772 = vunpack.c.l.b16 %v692
    %v3773 = vunpack.c.h.b16 %v692
    %v3774 = vunpack.c.l.b16 %v693
    %v3775 = vunpack.c.h.b16 %v693
    %v3776 = vunpack.c.l.b16 %v694
    %v3777 = vunpack.c.l.b16 %v695
    %v3778 = vunpack.c.h.b16 %v695
    %v3779 = vunpack.c.l.b16 %v696
    %v3780 = vunpack.c.h.b16 %v696
    %v3781 = vunpack.c.l.b16 %v697
    %v3782 = vunpack.c.h.b16 %v697
    %v3783 = vunpack.c.l.b16 %v698
    %v3784 = vunpack.c.l.b16 %v699
    %v3785 = vunpack.c.h.b16 %v699
    %v3786 = vunpack.c.l.b16 %v700
    %v3787 = vunpack.c.h.b16 %v700
    %v3788 = vunpack.c.l.b16 %v701
    %v3789 = vunpack.c.h.b16 %v701
    %v3790 = vunpack.c.l.b16 %v702
    %v3791 = vpack.c.b16 %v3014, %v3007
    %v3792 = vpack.c.b16 %v3015, %v3008
    %v3793 = vpack.c.b16 %v3016, %v3009
    %v3794 = vpack.c.b16 %v3017, %v3010
    %v3795 = vpack.c.b16 %v3018, %v3011
    %v3796 = vpack.c.b16 %v3019, %v3012
    %v3797 = vpack.c.b16 %v3020, %v3013
    %v3798 = vpack.c.b16 %v3028, %v3021
    %v3799 = vpack.c.b16 %v3029, %v3022
    %v3800 = vpack.c.b16 %v3030, %v3023
    %v3801 = vpack.c.b16 %v3031, %v3024
    %v3802 = vpack.c.b16 %v3032, %v3025
    %v3803 = vpack.c.b16 %v3033, %v3026
    %v3804 = vpack.c.b16 %v3034, %v3027
    %v3805 = vpack.c.b16 %v3042, %v3035
    %v3806 = vpack.c.b16 %v3043, %v3036
    %v3807 = vpack.c.b16 %v3044, %v3037
    %v3808 = vpack.c.b16 %v3045, %v3038
    %v3809 = vpack.c.b16 %v3046, %v3039
    %v3810 = vpack.c.b16 %v3047, %v3040
    %v3811 = vpack.c.b16 %v3048, %v3041
    %v3812 = vpack.c.b16 %v3056, %v3049
    %v3813 = vpack.c.b16 %v3057, %v3050
    %v3814 = vpack.c.b16 %v3058, %v3051
    %v3815 = vpack.c.b16 %v3059, %v3052
    %v3816 = vpack.c.b16 %v3060, %v3053
    %v3817 = vpack.c.b16 %v3061, %v3054
    %v3818 = vpack.c.b16 %v3062, %v3055
    %v3819 = vpack.c.b16 %v3070, %v3063
    %v3820 = vpack.c.b16 %v3071, %v3064
    %v3821 = vpack.c.b16 %v3072, %v3065
    %v3822 = vpack.c.b16 %v3073, %v3066
    %v3823 = vpack.c.b16 %v3074, %v3067
    %v3824 = vpack.c.b16 %v3075, %v3068
    %v3825 = vpack.c.b16 %v3076, %v3069
    %v3826 = vpack.c.b16 %v3084, %v3077
    %v3827 = vpack.c.b16 %v3085, %v3078
    %v3828 = vpack.c.b16 %v3086, %v3079
    %v3829 = vpack.c.b16 %v3087, %v3080
    %v3830 = vpack.c.b16 %v3088, %v3081
    %v3831 = vpack.c.b16 %v3089, %v3082
    %v3832 = vpack.c.b16 %v3090, %v3083
    %v3833 = vpack.c.b16 %v3098, %v3091
    %v3834 = vpack.c.b16 %v3099, %v3092
    %v3835 = vpack.c.b16 %v3100, %v3093
    %v3836 = vpack.c.b16 %v3101, %v3094
    %v3837 = vpack.c.b16 %v3102, %v3095
    %v3838 = vpack.c.b16 %v3103, %v3096
    %v3839 = vpack.c.b16 %v3104, %v3097
    %v3840 = vpack.c.b16 %v3112, %v3105
    %v3841 = vpack.c.b16 %v3113, %v3106
    %v3842 = vpack.c.b16 %v3114, %v3107
    %v3843 = vpack.c.b16 %v3115, %v3108
    %v3844 = vpack.c.b16 %v3116, %v3109
    %v3845 = vpack.c.b16 %v3117, %v3110
    %v3846 = vpack.c.b16 %v3118, %v3111
    %v3847 = vpack.c.b16 %v3126, %v3119
    %v3848 = vpack.c.b16 %v3127, %v3120
    %v3849 = vpack.c.b16 %v3128, %v3121
    %v3850 = vpack.c.b16 %v3129, %v3122
    %v3851 = vpack.c.b16 %v3130, %v3123
    %v3852 = vpack.c.b16 %v3131, %v3124
    %v3853 = vpack.c.b16 %v3132, %v3125
    %v3854 = vpack.c.b16 %v3140, %v3133
    %v3855 = vpack.c.b16 %v3141, %v3134
    %v3856 = vpack.c.b16 %v3142, %v3135
    %v3857 = vpack.c.b16 %v3143, %v3136
    %v3858 = vpack.c.b16 %v3144, %v3137
    %v3859 = vpack.c.b16 %v3145, %v3138
    %v3860 = vpack.c.b16 %v3146, %v3139
    %v3861 = vpack.c.b16 %v3154, %v3147
    %v3862 = vpack.c.b16 %v3155, %v3148
    %v3863 = vpack.c.b16 %v3156, %v3149
    %v3864 = vpack.c.b16 %v3157, %v3150
    %v3865 = vpack.c.b16 %v3158, %v3151
    %v3866 = vpack.c.b16 %v3159, %v3152
    %v3867 = vpack.c.b16 %v3160, %v3153
    %v3868 = vpack.c.b16 %v3168, %v3161
    %v3869 = vpack.c.b16 %v3169, %v3162
    %v3870 = vpack.c.b16 %v3170, %v3163
    %v3871 = vpack.c.b16 %v3171, %v3164
    %v3872 = vpack.c.b16 %v3172, %v3165
    %v3873 = vpack.c.b16 %v3173, %v3166
    %v3874 = vpack.c.b16 %v3174, %v3167
    %v3875 = vpack.c.b16 %v3182, %v3175
    %v3876 = vpack.c.b16 %v3183, %v3176
    %v3877 = vpack.c.b16 %v3184, %v3177
    %v3878 = vpack.c.b16 %v3185, %v3178
    %v3879 = vpack.c.b16 %v3186, %v3179
    %v3880 = vpack.c.b16 %v3187, %v3180
    %v3881 = vpack.c.b16 %v3188, %v3181
    %v3882 = vpack.c.b16 %v3196, %v3189
    %v3883 = vpack.c.b16 %v3197, %v3190
    %v3884 = vpack.c.b16 %v3198, %v3191
    %v3885 = vpack.c.b16 %v3199, %v3192
    %v3886 = vpack.c.b16 %v3200, %v3193
    %v3887 = vpack.c.b16 %v3201, %v3194
    %v3888 = vpack.c.b16 %v3202, %v3195
    %v3889 = vpack.c.b16 %v3210, %v3203
    %v3890 = vpack.c.b16 %v3211, %v3204
    %v3891 = vpack.c.b16 %v3212, %v3205
    %v3892 = vpack.c.b16 %v3213, %v3206
    %v3893 = vpack.c.b16 %v3214, %v3207
    %v3894 = vpack.c.b16 %v3215, %v3208
    %v3895 = vpack.c.b16 %v3216, %v3209
    %v3896 = vpack.c.b16 %v3224, %v3217
    %v3897 = vpack.c.b16 %v3225, %v3218
    %v3898 = vpack.c.b16 %v3226, %v3219
    %v3899 = vpack.c.b16 %v3227, %v3220
    %v3900 = vpack.c.b16 %v3228, %v3221
    %v3901 = vpack.c.b16 %v3229, %v3222
    %v3902 = vpack.c.b16 %v3230, %v3223
    %v3903 = vpack.c.b16 %v3238, %v3231
    %v3904 = vpack.c.b16 %v3239, %v3232
    %v3905 = vpack.c.b16 %v3240, %v3233
    %v3906 = vpack.c.b16 %v3241, %v3234
    %v3907 = vpack.c.b16 %v3242, %v3235
    %v3908 = vpack.c.b16 %v3243, %v3236
    %v3909 = vpack.c.b16 %v3244, %v3237
    %v3910 = vpack.c.b16 %v3252, %v3245
    %v3911 = vpack.c.b16 %v3253, %v3246
    %v3912 = vpack.c.b16 %v3254, %v3247
    %v3913 = vpack.c.b16 %v3255, %v3248
    %v3914 = vpack.c.b16 %v3256, %v3249
    %v3915 = vpack.c.b16 %v3257, %v3250
    %v3916 = vpack.c.b16 %v3258, %v3251
    %v3917 = vpack.c.b16 %v3266, %v3259
    %v3918 = vpack.c.b16 %v3267, %v3260
    %v3919 = vpack.c.b16 %v3268, %v3261
    %v3920 = vpack.c.b16 %v3269, %v3262
    %v3921 = vpack.c.b16 %v3270, %v3263
    %v3922 = vpack.c.b16 %v3271, %v3264
    %v3923 = vpack.c.b16 %v3272, %v3265
    %v3924 = vpack.c.b16 %v3280, %v3273
    %v3925 = vpack.c.b16 %v3281, %v3274
    %v3926 = vpack.c.b16 %v3282, %v3275
    %v3927 = vpack.c.b16 %v3283, %v3276
    %v3928 = vpack.c.b16 %v3284, %v3277
    %v3929 = vpack.c.b16 %v3285, %v3278
    %v3930 = vpack.c.b16 %v3286, %v3279
    %v3931 = vpack.c.b16 %v3294, %v3287
    %v3932 = vpack.c.b16 %v3295, %v3288
    %v3933 = vpack.c.b16 %v3296, %v3289
    %v3934 = vpack.c.b16 %v3297, %v3290
    %v3935 = vpack.c.b16 %v3298, %v3291
    %v3936 = vpack.c.b16 %v3299, %v3292
    %v3937 = vpack.c.b16 %v3300, %v3293
    %v3938 = vpack.c.b16 %v3308, %v3301
    %v3939 = vpack.c.b16 %v3309, %v3302
    %v3940 = vpack.c.b16 %v3310, %v3303
    %v3941 = vpack.c.b16 %v3311, %v3304
    %v3942 = vpack.c.b16 %v3312, %v3305
    %v3943 = vpack.c.b16 %v3313, %v3306
    %v3944 = vpack.c.b16 %v3314, %v3307
    %v3945 = vpack.c.b16 %v3322, %v3315
    %v3946 = vpack.c.b16 %v3323, %v3316
    %v3947 = vpack.c.b16 %v3324, %v3317
    %v3948 = vpack.c.b16 %v3325, %v3318
    %v3949 = vpack.c.b16 %v3326, %v3319
    %v3950 = vpack.c.b16 %v3327, %v3320
    %v3951 = vpack.c.b16 %v3328, %v3321
    %v3952 = vpack.c.b16 %v3336, %v3329
    %v3953 = vpack.c.b16 %v3337, %v3330
    %v3954 = vpack.c.b16 %v3338, %v3331
    %v3955 = vpack.c.b16 %v3339, %v3332
    %v3956 = vpack.c.b16 %v3340, %v3333
    %v3957 = vpack.c.b16 %v3341, %v3334
    %v3958 = vpack.c.b16 %v3342, %v3335
    %v3959 = vpack.c.b16 %v3350, %v3343
    %v3960 = vpack.c.b16 %v3351, %v3344
    %v3961 = vpack.c.b16 %v3352, %v3345
    %v3962 = vpack.c.b16 %v3353, %v3346
    %v3963 = vpack.c.b16 %v3354, %v3347
    %v3964 = vpack.c.b16 %v3355, %v3348
    %v3965 = vpack.c.b16 %v3356, %v3349
    %v3966 = vpack.c.b16 %v3364, %v3357
    %v3967 = vpack.c.b16 %v3365, %v3358
    %v3968 = vpack.c.b16 %v3366, %v3359
    %v3969 = vpack.c.b16 %v3367, %v3360
    %v3970 = vpack.c.b16 %v3368, %v3361
    %v3971 = vpack.c.b16 %v3369, %v3362
    %v3972 = vpack.c.b16 %v3370, %v3363
    %v3973 = vpack.c.b16 %v3378, %v3371
    %v3974 = vpack.c.b16 %v3379, %v3372
    %v3975 = vpack.c.b16 %v3380, %v3373
    %v3976 = vpack.c.b16 %v3381, %v3374
    %v3977 = vpack.c.b16 %v3382, %v3375
    %v3978 = vpack.c.b16 %v3383, %v3376
    %v3979 = vpack.c.b16 %v3384, %v3377
    %v3980 = vpack.c.b16 %v3392, %v3385
    %v3981 = vpack.c.b16 %v3393, %v3386
    %v3982 = vpack.c.b16 %v3394, %v3387
    %v3983 = vpack.c.b16 %v3395, %v3388
    %v3984 = vpack.c.b16 %v3396, %v3389
    %v3985 = vpack.c.b16 %v3397, %v3390
    %v3986 = vpack.c.b16 %v3398, %v3391
    %v3987 = vpack.c.b16 %v3406, %v3399
    %v3988 = vpack.c.b16 %v3407, %v3400
    %v3989 = vpack.c.b16 %v3408, %v3401
    %v3990 = vpack.c.b16 %v3409, %v3402
    %v3991 = vpack.c.b16 %v3410, %v3403
    %v3992 = vpack.c.b16 %v3411, %v3404
    %v3993 = vpack.c.b16 %v3412, %v3405
    %v3994 = vpack.c.b16 %v3420, %v3413
    %v3995 = vpack.c.b16 %v3421, %v3414
    %v3996 = vpack.c.b16 %v3422, %v3415
    %v3997 = vpack.c.b16 %v3423, %v3416
    %v3998 = vpack.c.b16 %v3424, %v3417
    %v3999 = vpack.c.b16 %v3425, %v3418
    %v4000 = vpack.c.b16 %v3426, %v3419
    %v4001 = vpack.c.b16 %v3434, %v3427
    %v4002 = vpack.c.b16 %v3435, %v3428
    %v4003 = vpack.c.b16 %v3436, %v3429
    %v4004 = vpack.c.b16 %v3437, %v3430
    %v4005 = vpack.c.b16 %v3438, %v3431
    %v4006 = vpack.c.b16 %v3439, %v3432
    %v4007 = vpack.c.b16 %v3440, %v3433
    %v4008 = vpack.c.b16 %v3448, %v3441
    %v4009 = vpack.c.b16 %v3449, %v3442
    %v4010 = vpack.c.b16 %v3450, %v3443
    %v4011 = vpack.c.b16 %v3451, %v3444
    %v4012 = vpack.c.b16 %v3452, %v3445
    %v4013 = vpack.c.b16 %v3453, %v3446
    %v4014 = vpack.c.b16 %v3454, %v3447
    %v4015 = vpack.c.b16 %v3462, %v3455
    %v4016 = vpack.c.b16 %v3463, %v3456
    %v4017 = vpack.c.b16 %v3464, %v3457
    %v4018 = vpack.c.b16 %v3465, %v3458
    %v4019 = vpack.c.b16 %v3466, %v3459
    %v4020 = vpack.c.b16 %v3467, %v3460
    %v4021 = vpack.c.b16 %v3468, %v3461
    %v4022 = vpack.c.b16 %v3476, %v3469
    %v4023 = vpack.c.b16 %v3477, %v3470
    %v4024 = vpack.c.b16 %v3478, %v3471
    %v4025 = vpack.c.b16 %v3479, %v3472
    %v4026 = vpack.c.b16 %v3480, %v3473
    %v4027 = vpack.c.b16 %v3481, %v3474
    %v4028 = vpack.c.b16 %v3482, %v3475
    %v4029 = vpack.c.b16 %v3490, %v3483
    %v4030 = vpack.c.b16 %v3491, %v3484
    %v4031 = vpack.c.b16 %v3492, %v3485
    %v4032 = vpack.c.b16 %v3493, %v3486
    %v4033 = vpack.c.b16 %v3494, %v3487
    %v4034 = vpack.c.b16 %v3495, %v3488
    %v4035 = vpack.c.b16 %v3496, %v3489
    %v4036 = vpack.c.b16 %v3504, %v3497
    %v4037 = vpack.c.b16 %v3505, %v3498
    %v4038 = vpack.c.b16 %v3506, %v3499
    %v4039 = vpack.c.b16 %v3507, %v3500
    %v4040 = vpack.c.b16 %v3508, %v3501
    %v4041 = vpack.c.b16 %v3509, %v3502
    %v4042 = vpack.c.b16 %v3510, %v3503
    %v4043 = vpack.c.b16 %v3518, %v3511
    %v4044 = vpack.c.b16 %v3519, %v3512
    %v4045 = vpack.c.b16 %v3520, %v3513
    %v4046 = vpack.c.b16 %v3521, %v3514
    %v4047 = vpack.c.b16 %v3522, %v3515
    %v4048 = vpack.c.b16 %v3523, %v3516
    %v4049 = vpack.c.b16 %v3524, %v3517
    %v4050 = vpack.c.b16 %v3532, %v3525
    %v4051 = vpack.c.b16 %v3533, %v3526
    %v4052 = vpack.c.b16 %v3534, %v3527
    %v4053 = vpack.c.b16 %v3535, %v3528
    %v4054 = vpack.c.b16 %v3536, %v3529
    %v4055 = vpack.c.b16 %v3537, %v3530
    %v4056 = vpack.c.b16 %v3538, %v3531
    %v4057 = vpack.c.b16 %v3546, %v3539
    %v4058 = vpack.c.b16 %v3547, %v3540
    %v4059 = vpack.c.b16 %v3548, %v3541
    %v4060 = vpack.c.b16 %v3549, %v3542
    %v4061 = vpack.c.b16 %v3550, %v3543
    %v4062 = vpack.c.b16 %v3551, %v3544
    %v4063 = vpack.c.b16 %v3552, %v3545
    %v4064 = vpack.c.b16 %v3560, %v3553
    %v4065 = vpack.c.b16 %v3561, %v3554
    %v4066 = vpack.c.b16 %v3562, %v3555
    %v4067 = vpack.c.b16 %v3563, %v3556
    %v4068 = vpack.c.b16 %v3564, %v3557
    %v4069 = vpack.c.b16 %v3565, %v3558
    %v4070 = vpack.c.b16 %v3566, %v3559
    %v4071 = vpack.c.b16 %v3574, %v3567
    %v4072 = vpack.c.b16 %v3575, %v3568
    %v4073 = vpack.c.b16 %v3576, %v3569
    %v4074 = vpack.c.b16 %v3577, %v3570
    %v4075 = vpack.c.b16 %v3578, %v3571
    %v4076 = vpack.c.b16 %v3579, %v3572
    %v4077 = vpack.c.b16 %v3580, %v3573
    %v4078 = vpack.c.b16 %v3588, %v3581
    %v4079 = vpack.c.b16 %v3589, %v3582
    %v4080 = vpack.c.b16 %v3590, %v3583
    %v4081 = vpack.c.b16 %v3591, %v3584
    %v4082 = vpack.c.b16 %v3592, %v3585
    %v4083 = vpack.c.b16 %v3593, %v3586
    %v4084 = vpack.c.b16 %v3594, %v3587
    %v4085 = vpack.c.b16 %v3602, %v3595
    %v4086 = vpack.c.b16 %v3603, %v3596
    %v4087 = vpack.c.b16 %v3604, %v3597
    %v4088 = vpack.c.b16 %v3605, %v3598
    %v4089 = vpack.c.b16 %v3606, %v3599
    %v4090 = vpack.c.b16 %v3607, %v3600
    %v4091 = vpack.c.b16 %v3608, %v3601
    %v4092 = vpack.c.b16 %v3616, %v3609
    %v4093 = vpack.c.b16 %v3617, %v3610
    %v4094 = vpack.c.b16 %v3618, %v3611
    %v4095 = vpack.c.b16 %v3619, %v3612
    %v4096 = vpack.c.b16 %v3620, %v3613
    %v4097 = vpack.c.b16 %v3621, %v3614
    %v4098 = vpack.c.b16 %v3622, %v3615
    %v4099 = vpack.c.b16 %v3630, %v3623
    %v4100 = vpack.c.b16 %v3631, %v3624
    %v4101 = vpack.c.b16 %v3632, %v3625
    %v4102 = vpack.c.b16 %v3633, %v3626
    %v4103 = vpack.c.b16 %v3634, %v3627
    %v4104 = vpack.c.b16 %v3635, %v3628
    %v4105 = vpack.c.b16 %v3636, %v3629
    %v4106 = vpack.c.b16 %v3644, %v3637
    %v4107 = vpack.c.b16 %v3645, %v3638
    %v4108 = vpack.c.b16 %v3646, %v3639
    %v4109 = vpack.c.b16 %v3647, %v3640
    %v4110 = vpack.c.b16 %v3648, %v3641
    %v4111 = vpack.c.b16 %v3649, %v3642
    %v4112 = vpack.c.b16 %v3650, %v3643
    %v4113 = vpack.c.b16 %v3658, %v3651
    %v4114 = vpack.c.b16 %v3659, %v3652
    %v4115 = vpack.c.b16 %v3660, %v3653
    %v4116 = vpack.c.b16 %v3661, %v3654
    %v4117 = vpack.c.b16 %v3662, %v3655
    %v4118 = vpack.c.b16 %v3663, %v3656
    %v4119 = vpack.c.b16 %v3664, %v3657
    %v4120 = vpack.c.b16 %v3672, %v3665
    %v4121 = vpack.c.b16 %v3673, %v3666
    %v4122 = vpack.c.b16 %v3674, %v3667
    %v4123 = vpack.c.b16 %v3675, %v3668
    %v4124 = vpack.c.b16 %v3676, %v3669
    %v4125 = vpack.c.b16 %v3677, %v3670
    %v4126 = vpack.c.b16 %v3678, %v3671
    %v4127 = vpack.c.b16 %v3686, %v3679
    %v4128 = vpack.c.b16 %v3687, %v3680
    %v4129 = vpack.c.b16 %v3688, %v3681
    %v4130 = vpack.c.b16 %v3689, %v3682
    %v4131 = vpack.c.b16 %v3690, %v3683
    %v4132 = vpack.c.b16 %v3691, %v3684
    %v4133 = vpack.c.b16 %v3692, %v3685
    %v4134 = vpack.c.b16 %v3700, %v3693
    %v4135 = vpack.c.b16 %v3701, %v3694
    %v4136 = vpack.c.b16 %v3702, %v3695
    %v4137 = vpack.c.b16 %v3703, %v3696
    %v4138 = vpack.c.b16 %v3704, %v3697
    %v4139 = vpack.c.b16 %v3705, %v3698
    %v4140 = vpack.c.b16 %v3706, %v3699
    %v4141 = vpack.c.b16 %v3714, %v3707
    %v4142 = vpack.c.b16 %v3715, %v3708
    %v4143 = vpack.c.b16 %v3716, %v3709
    %v4144 = vpack.c.b16 %v3717, %v3710
    %v4145 = vpack.c.b16 %v3718, %v3711
    %v4146 = vpack.c.b16 %v3719, %v3712
    %v4147 = vpack.c.b16 %v3720, %v3713
    %v4148 = vpack.c.b16 %v3728, %v3721
    %v4149 = vpack.c.b16 %v3729, %v3722
    %v4150 = vpack.c.b16 %v3730, %v3723
    %v4151 = vpack.c.b16 %v3731, %v3724
    %v4152 = vpack.c.b16 %v3732, %v3725
    %v4153 = vpack.c.b16 %v3733, %v3726
    %v4154 = vpack.c.b16 %v3734, %v3727
    %v4155 = vpack.c.b16 %v3742, %v3735
    %v4156 = vpack.c.b16 %v3743, %v3736
    %v4157 = vpack.c.b16 %v3744, %v3737
    %v4158 = vpack.c.b16 %v3745, %v3738
    %v4159 = vpack.c.b16 %v3746, %v3739
    %v4160 = vpack.c.b16 %v3747, %v3740
    %v4161 = vpack.c.b16 %v3748, %v3741
    %v4162 = vpack.c.b16 %v3756, %v3749
    %v4163 = vpack.c.b16 %v3757, %v3750
    %v4164 = vpack.c.b16 %v3758, %v3751
    %v4165 = vpack.c.b16 %v3759, %v3752
    %v4166 = vpack.c.b16 %v3760, %v3753
    %v4167 = vpack.c.b16 %v3761, %v3754
    %v4168 = vpack.c.b16 %v3762, %v3755
    %v4169 = vpack.c.b16 %v3770, %v3763
    %v4170 = vpack.c.b16 %v3771, %v3764
    %v4171 = vpack.c.b16 %v3772, %v3765
    %v4172 = vpack.c.b16 %v3773, %v3766
    %v4173 = vpack.c.b16 %v3774, %v3767
    %v4174 = vpack.c.b16 %v3775, %v3768
    %v4175 = vpack.c.b16 %v3776, %v3769
    %v4176 = vpack.c.b16 %v3784, %v3777
    %v4177 = vpack.c.b16 %v3785, %v3778
    %v4178 = vpack.c.b16 %v3786, %v3779
    %v4179 = vpack.c.b16 %v3787, %v3780
    %v4180 = vpack.c.b16 %v3788, %v3781
    %v4181 = vpack.c.b16 %v3789, %v3782
    %v4182 = vpack.c.b16 %v3790, %v3783
    %4575 = vmatpush.bf16.msra.mxu0 %v3840
    %4576 = vmatpush.bf16.msra.mxu0 %v3833
    %4577 = vmatpush.bf16.msra.mxu0 %v3826
    %4578 = vmatpush.bf16.msra.mxu0 %v3819
    %4579 = vmatpush.bf16.msra.mxu0 %v3812
    %4580 = vmatpush.bf16.msra.mxu0 %v3805
    %4581 = vmatpush.bf16.msra.mxu0 %v3798
    %4582 = vmatpush.bf16.msra.mxu0 %v3791
    %4583 = vmatmul.bf16.gmra.mxu0 %v2545
    %v4584 = vpop.f32.mrf.mxu0
    %v4585 = vadd.f32 %v2183, %v4584
    %v4586 = vpop.f32.mrf.mxu0
    %v4587 = vadd.f32 %v2185, %v4586
    %4588 = vdwg.mxu0
    %4589 = vmatpush.bf16.msra.mxu0 %v3896
    %4590 = vmatpush.bf16.msra.mxu0 %v3889
    %4591 = vmatpush.bf16.msra.mxu0 %v3882
    %4592 = vmatpush.bf16.msra.mxu0 %v3875
    %4593 = vmatpush.bf16.msra.mxu0 %v3868
    %4594 = vmatpush.bf16.msra.mxu0 %v3861
    %4595 = vmatpush.bf16.msra.mxu0 %v3854
    %4596 = vmatpush.bf16.msra.mxu0 %v3847
    %4597 = vmatmul.bf16.gmra.mxu0 %v2546
    %v4598 = vpop.f32.mrf.mxu0
    %v4599 = vadd.f32 %v4585, %v4598
    %v4600 = vpop.f32.mrf.mxu0
    %v4601 = vadd.f32 %v4587, %v4600
    %4602 = vdwg.mxu0
    %4603 = vmatpush.bf16.msra.mxu0 %v3952
    %4604 = vmatpush.bf16.msra.mxu0 %v3945
    %4605 = vmatpush.bf16.msra.mxu0 %v3938
    %4606 = vmatpush.bf16.msra.mxu0 %v3931
    %4607 = vmatpush.bf16.msra.mxu0 %v3924
    %4608 = vmatpush.bf16.msra.mxu0 %v3917
    %4609 = vmatpush.bf16.msra.mxu0 %v3910
    %4610 = vmatpush.bf16.msra.mxu0 %v3903
    %4611 = vmatmul.bf16.gmra.mxu0 %v2547
    %v4612 = vpop.f32.mrf.mxu0
    %v4613 = vadd.f32 %v4599, %v4612
    %v4614 = vpop.f32.mrf.mxu0
    %v4615 = vadd.f32 %v4601, %v4614
    %4616 = vdwg.mxu0
    %4617 = vmatpush.bf16.msra.mxu0 %v4008
    %4618 = vmatpush.bf16.msra.mxu0 %v4001
    %4619 = vmatpush.bf16.msra.mxu0 %v3994
    %4620 = vmatpush.bf16.msra.mxu0 %v3987
    %4621 = vmatpush.bf16.msra.mxu0 %v3980
    %4622 = vmatpush.bf16.msra.mxu0 %v3973
    %4623 = vmatpush.bf16.msra.mxu0 %v3966
    %4624 = vmatpush.bf16.msra.mxu0 %v3959
    %4625 = vmatmul.bf16.gmra.mxu0 %v2548
    %v4626 = vpop.f32.mrf.mxu0
    %v4627 = vadd.f32 %v4613, %v4626
    %v4628 = vpop.f32.mrf.mxu0
    %v4629 = vadd.f32 %v4615, %v4628
    %4630 = vdwg.mxu0
    %4631 = vmatpush.bf16.msra.mxu0 %v4064
    %4632 = vmatpush.bf16.msra.mxu0 %v4057
    %4633 = vmatpush.bf16.msra.mxu0 %v4050
    %4634 = vmatpush.bf16.msra.mxu0 %v4043
    %4635 = vmatpush.bf16.msra.mxu0 %v4036
    %4636 = vmatpush.bf16.msra.mxu0 %v4029
    %4637 = vmatpush.bf16.msra.mxu0 %v4022
    %4638 = vmatpush.bf16.msra.mxu0 %v4015
    %4639 = vmatmul.bf16.gmra.mxu0 %v2549
    %v4640 = vpop.f32.mrf.mxu0
    %v4641 = vadd.f32 %v4627, %v4640
    %v4642 = vpop.f32.mrf.mxu0
    %v4643 = vadd.f32 %v4629, %v4642
    %4644 = vdwg.mxu0
    %4645 = vmatpush.bf16.msra.mxu0 %v4120
    %4646 = vmatpush.bf16.msra.mxu0 %v4113
    %4647 = vmatpush.bf16.msra.mxu0 %v4106
    %4648 = vmatpush.bf16.msra.mxu0 %v4099
    %4649 = vmatpush.bf16.msra.mxu0 %v4092
    %4650 = vmatpush.bf16.msra.mxu0 %v4085
    %4651 = vmatpush.bf16.msra.mxu0 %v4078
    %4652 = vmatpush.bf16.msra.mxu0 %v4071
    %4653 = vmatmul.bf16.gmra.mxu0 %v2550
    %v4654 = vpop.f32.mrf.mxu0
    %v4655 = vadd.f32 %v4641, %v4654
    %v4656 = vpop.f32.mrf.mxu0
    %v4657 = vadd.f32 %v4643, %v4656
    %4658 = vdwg.mxu0
    %4659 = vmatpush.bf16.msra.mxu0 %v4176
    %4660 = vmatpush.bf16.msra.mxu0 %v4169
    %4661 = vmatpush.bf16.msra.mxu0 %v4162
    %4662 = vmatpush.bf16.msra.mxu0 %v4155
    %4663 = vmatpush.bf16.msra.mxu0 %v4148
    %4664 = vmatpush.bf16.msra.mxu0 %v4141
    %4665 = vmatpush.bf16.msra.mxu0 %v4134
    %4666 = vmatpush.bf16.msra.mxu0 %v4127
    %4667 = vmatmul.bf16.gmra.mxu0 %v2551
    %v4668 = vpop.f32.mrf.mxu0
    %v4669 = vadd.f32 %v4655, %v4668
    %v4670 = vpop.f32.mrf.mxu0
    %v4671 = vadd.f32 %v4657, %v4670
    %4672 = vdwg.mxu0
    %4673 = vmatpush.bf16.msra.mxu0 %v3841
    %4674 = vmatpush.bf16.msra.mxu0 %v3834
    %4675 = vmatpush.bf16.msra.mxu0 %v3827
    %4676 = vmatpush.bf16.msra.mxu0 %v3820
    %4677 = vmatpush.bf16.msra.mxu0 %v3813
    %4678 = vmatpush.bf16.msra.mxu0 %v3806
    %4679 = vmatpush.bf16.msra.mxu0 %v3799
    %4680 = vmatpush.bf16.msra.mxu0 %v3792
    %4681 = vmatmul.bf16.gmra.mxu0 %v2545
    %v4682 = vpop.f32.mrf.mxu0
    %v4683 = vadd.f32 %v2239, %v4682
    %v4684 = vpop.f32.mrf.mxu0
    %v4685 = vadd.f32 %v2241, %v4684
    %4686 = vdwg.mxu0
    %4687 = vmatpush.bf16.msra.mxu0 %v3897
    %4688 = vmatpush.bf16.msra.mxu0 %v3890
    %4689 = vmatpush.bf16.msra.mxu0 %v3883
    %4690 = vmatpush.bf16.msra.mxu0 %v3876
    %4691 = vmatpush.bf16.msra.mxu0 %v3869
    %4692 = vmatpush.bf16.msra.mxu0 %v3862
    %4693 = vmatpush.bf16.msra.mxu0 %v3855
    %4694 = vmatpush.bf16.msra.mxu0 %v3848
    %4695 = vmatmul.bf16.gmra.mxu0 %v2546
    %v4696 = vpop.f32.mrf.mxu0
    %v4697 = vadd.f32 %v4683, %v4696
    %v4698 = vpop.f32.mrf.mxu0
    %v4699 = vadd.f32 %v4685, %v4698
    %4700 = vdwg.mxu0
    %4701 = vmatpush.bf16.msra.mxu0 %v3953
    %4702 = vmatpush.bf16.msra.mxu0 %v3946
    %4703 = vmatpush.bf16.msra.mxu0 %v3939
    %4704 = vmatpush.bf16.msra.mxu0 %v3932
    %4705 = vmatpush.bf16.msra.mxu0 %v3925
    %4706 = vmatpush.bf16.msra.mxu0 %v3918
    %4707 = vmatpush.bf16.msra.mxu0 %v3911
    %4708 = vmatpush.bf16.msra.mxu0 %v3904
    %4709 = vmatmul.bf16.gmra.mxu0 %v2547
    %v4710 = vpop.f32.mrf.mxu0
    %v4711 = vadd.f32 %v4697, %v4710
    %v4712 = vpop.f32.mrf.mxu0
    %v4713 = vadd.f32 %v4699, %v4712
    %4714 = vdwg.mxu0
    %4715 = vmatpush.bf16.msra.mxu0 %v4009
    %4716 = vmatpush.bf16.msra.mxu0 %v4002
    %4717 = vmatpush.bf16.msra.mxu0 %v3995
    %4718 = vmatpush.bf16.msra.mxu0 %v3988
    %4719 = vmatpush.bf16.msra.mxu0 %v3981
    %4720 = vmatpush.bf16.msra.mxu0 %v3974
    %4721 = vmatpush.bf16.msra.mxu0 %v3967
    %4722 = vmatpush.bf16.msra.mxu0 %v3960
    %4723 = vmatmul.bf16.gmra.mxu0 %v2548
    %v4724 = vpop.f32.mrf.mxu0
    %v4725 = vadd.f32 %v4711, %v4724
    %v4726 = vpop.f32.mrf.mxu0
    %v4727 = vadd.f32 %v4713, %v4726
    %4728 = vdwg.mxu0
    %4729 = vmatpush.bf16.msra.mxu0 %v4065
    %4730 = vmatpush.bf16.msra.mxu0 %v4058
    %4731 = vmatpush.bf16.msra.mxu0 %v4051
    %4732 = vmatpush.bf16.msra.mxu0 %v4044
    %4733 = vmatpush.bf16.msra.mxu0 %v4037
    %4734 = vmatpush.bf16.msra.mxu0 %v4030
    %4735 = vmatpush.bf16.msra.mxu0 %v4023
    %4736 = vmatpush.bf16.msra.mxu0 %v4016
    %4737 = vmatmul.bf16.gmra.mxu0 %v2549
    %v4738 = vpop.f32.mrf.mxu0
    %v4739 = vadd.f32 %v4725, %v4738
    %v4740 = vpop.f32.mrf.mxu0
    %v4741 = vadd.f32 %v4727, %v4740
    %4742 = vdwg.mxu0
    %4743 = vmatpush.bf16.msra.mxu0 %v4121
    %4744 = vmatpush.bf16.msra.mxu0 %v4114
    %4745 = vmatpush.bf16.msra.mxu0 %v4107
    %4746 = vmatpush.bf16.msra.mxu0 %v4100
    %4747 = vmatpush.bf16.msra.mxu0 %v4093
    %4748 = vmatpush.bf16.msra.mxu0 %v4086
    %4749 = vmatpush.bf16.msra.mxu0 %v4079
    %4750 = vmatpush.bf16.msra.mxu0 %v4072
    %4751 = vmatmul.bf16.gmra.mxu0 %v2550
    %v4752 = vpop.f32.mrf.mxu0
    %v4753 = vadd.f32 %v4739, %v4752
    %v4754 = vpop.f32.mrf.mxu0
    %v4755 = vadd.f32 %v4741, %v4754
    %4756 = vdwg.mxu0
    %4757 = vmatpush.bf16.msra.mxu0 %v4177
    %4758 = vmatpush.bf16.msra.mxu0 %v4170
    %4759 = vmatpush.bf16.msra.mxu0 %v4163
    %4760 = vmatpush.bf16.msra.mxu0 %v4156
    %4761 = vmatpush.bf16.msra.mxu0 %v4149
    %4762 = vmatpush.bf16.msra.mxu0 %v4142
    %4763 = vmatpush.bf16.msra.mxu0 %v4135
    %4764 = vmatpush.bf16.msra.mxu0 %v4128
    %4765 = vmatmul.bf16.gmra.mxu0 %v2551
    %v4766 = vpop.f32.mrf.mxu0
    %v4767 = vadd.f32 %v4753, %v4766
    %v4768 = vpop.f32.mrf.mxu0
    %v4769 = vadd.f32 %v4755, %v4768
    %4770 = vdwg.mxu0
    %4771 = vmatpush.bf16.msra.mxu0 %v3842
    %4772 = vmatpush.bf16.msra.mxu0 %v3835
    %4773 = vmatpush.bf16.msra.mxu0 %v3828
    %4774 = vmatpush.bf16.msra.mxu0 %v3821
    %4775 = vmatpush.bf16.msra.mxu0 %v3814
    %4776 = vmatpush.bf16.msra.mxu0 %v3807
    %4777 = vmatpush.bf16.msra.mxu0 %v3800
    %4778 = vmatpush.bf16.msra.mxu0 %v3793
    %4779 = vmatmul.bf16.gmra.mxu0 %v2545
    %v4780 = vpop.f32.mrf.mxu0
    %v4781 = vadd.f32 %v2295, %v4780
    %v4782 = vpop.f32.mrf.mxu0
    %v4783 = vadd.f32 %v2297, %v4782
    %4784 = vdwg.mxu0
    %4785 = vmatpush.bf16.msra.mxu0 %v3898
    %4786 = vmatpush.bf16.msra.mxu0 %v3891
    %4787 = vmatpush.bf16.msra.mxu0 %v3884
    %4788 = vmatpush.bf16.msra.mxu0 %v3877
    %4789 = vmatpush.bf16.msra.mxu0 %v3870
    %4790 = vmatpush.bf16.msra.mxu0 %v3863
    %4791 = vmatpush.bf16.msra.mxu0 %v3856
    %4792 = vmatpush.bf16.msra.mxu0 %v3849
    %4793 = vmatmul.bf16.gmra.mxu0 %v2546
    %v4794 = vpop.f32.mrf.mxu0
    %v4795 = vadd.f32 %v4781, %v4794
    %v4796 = vpop.f32.mrf.mxu0
    %v4797 = vadd.f32 %v4783, %v4796
    %4798 = vdwg.mxu0
    %4799 = vmatpush.bf16.msra.mxu0 %v3954
    %4800 = vmatpush.bf16.msra.mxu0 %v3947
    %4801 = vmatpush.bf16.msra.mxu0 %v3940
    %4802 = vmatpush.bf16.msra.mxu0 %v3933
    %4803 = vmatpush.bf16.msra.mxu0 %v3926
    %4804 = vmatpush.bf16.msra.mxu0 %v3919
    %4805 = vmatpush.bf16.msra.mxu0 %v3912
    %4806 = vmatpush.bf16.msra.mxu0 %v3905
    %4807 = vmatmul.bf16.gmra.mxu0 %v2547
    %v4808 = vpop.f32.mrf.mxu0
    %v4809 = vadd.f32 %v4795, %v4808
    %v4810 = vpop.f32.mrf.mxu0
    %v4811 = vadd.f32 %v4797, %v4810
    %4812 = vdwg.mxu0
    %4813 = vmatpush.bf16.msra.mxu0 %v4010
    %4814 = vmatpush.bf16.msra.mxu0 %v4003
    %4815 = vmatpush.bf16.msra.mxu0 %v3996
    %4816 = vmatpush.bf16.msra.mxu0 %v3989
    %4817 = vmatpush.bf16.msra.mxu0 %v3982
    %4818 = vmatpush.bf16.msra.mxu0 %v3975
    %4819 = vmatpush.bf16.msra.mxu0 %v3968
    %4820 = vmatpush.bf16.msra.mxu0 %v3961
    %4821 = vmatmul.bf16.gmra.mxu0 %v2548
    %v4822 = vpop.f32.mrf.mxu0
    %v4823 = vadd.f32 %v4809, %v4822
    %v4824 = vpop.f32.mrf.mxu0
    %v4825 = vadd.f32 %v4811, %v4824
    %4826 = vdwg.mxu0
    %4827 = vmatpush.bf16.msra.mxu0 %v4066
    %4828 = vmatpush.bf16.msra.mxu0 %v4059
    %4829 = vmatpush.bf16.msra.mxu0 %v4052
    %4830 = vmatpush.bf16.msra.mxu0 %v4045
    %4831 = vmatpush.bf16.msra.mxu0 %v4038
    %4832 = vmatpush.bf16.msra.mxu0 %v4031
    %4833 = vmatpush.bf16.msra.mxu0 %v4024
    %4834 = vmatpush.bf16.msra.mxu0 %v4017
    %4835 = vmatmul.bf16.gmra.mxu0 %v2549
    %v4836 = vpop.f32.mrf.mxu0
    %v4837 = vadd.f32 %v4823, %v4836
    %v4838 = vpop.f32.mrf.mxu0
    %v4839 = vadd.f32 %v4825, %v4838
    %4840 = vdwg.mxu0
    %4841 = vmatpush.bf16.msra.mxu0 %v4122
    %4842 = vmatpush.bf16.msra.mxu0 %v4115
    %4843 = vmatpush.bf16.msra.mxu0 %v4108
    %4844 = vmatpush.bf16.msra.mxu0 %v4101
    %4845 = vmatpush.bf16.msra.mxu0 %v4094
    %4846 = vmatpush.bf16.msra.mxu0 %v4087
    %4847 = vmatpush.bf16.msra.mxu0 %v4080
    %4848 = vmatpush.bf16.msra.mxu0 %v4073
    %4849 = vmatmul.bf16.gmra.mxu0 %v2550
    %v4850 = vpop.f32.mrf.mxu0
    %v4851 = vadd.f32 %v4837, %v4850
    %v4852 = vpop.f32.mrf.mxu0
    %v4853 = vadd.f32 %v4839, %v4852
    %4854 = vdwg.mxu0
    %4855 = vmatpush.bf16.msra.mxu0 %v4178
    %4856 = vmatpush.bf16.msra.mxu0 %v4171
    %4857 = vmatpush.bf16.msra.mxu0 %v4164
    %4858 = vmatpush.bf16.msra.mxu0 %v4157
    %4859 = vmatpush.bf16.msra.mxu0 %v4150
    %4860 = vmatpush.bf16.msra.mxu0 %v4143
    %4861 = vmatpush.bf16.msra.mxu0 %v4136
    %4862 = vmatpush.bf16.msra.mxu0 %v4129
    %4863 = vmatmul.bf16.gmra.mxu0 %v2551
    %v4864 = vpop.f32.mrf.mxu0
    %v4865 = vadd.f32 %v4851, %v4864
    %v4866 = vpop.f32.mrf.mxu0
    %v4867 = vadd.f32 %v4853, %v4866
    %4868 = vdwg.mxu0
    %4869 = vmatpush.bf16.msra.mxu0 %v3843
    %4870 = vmatpush.bf16.msra.mxu0 %v3836
    %4871 = vmatpush.bf16.msra.mxu0 %v3829
    %4872 = vmatpush.bf16.msra.mxu0 %v3822
    %4873 = vmatpush.bf16.msra.mxu0 %v3815
    %4874 = vmatpush.bf16.msra.mxu0 %v3808
    %4875 = vmatpush.bf16.msra.mxu0 %v3801
    %4876 = vmatpush.bf16.msra.mxu0 %v3794
    %4877 = vmatmul.bf16.gmra.mxu0 %v2545
    %v4878 = vpop.f32.mrf.mxu0
    %v4879 = vadd.f32 %v2351, %v4878
    %v4880 = vpop.f32.mrf.mxu0
    %v4881 = vadd.f32 %v2353, %v4880
    %4882 = vdwg.mxu0
    %4883 = vmatpush.bf16.msra.mxu0 %v3899
    %4884 = vmatpush.bf16.msra.mxu0 %v3892
    %4885 = vmatpush.bf16.msra.mxu0 %v3885
    %4886 = vmatpush.bf16.msra.mxu0 %v3878
    %4887 = vmatpush.bf16.msra.mxu0 %v3871
    %4888 = vmatpush.bf16.msra.mxu0 %v3864
    %4889 = vmatpush.bf16.msra.mxu0 %v3857
    %4890 = vmatpush.bf16.msra.mxu0 %v3850
    %4891 = vmatmul.bf16.gmra.mxu0 %v2546
    %v4892 = vpop.f32.mrf.mxu0
    %v4893 = vadd.f32 %v4879, %v4892
    %v4894 = vpop.f32.mrf.mxu0
    %v4895 = vadd.f32 %v4881, %v4894
    %4896 = vdwg.mxu0
    %4897 = vmatpush.bf16.msra.mxu0 %v3955
    %4898 = vmatpush.bf16.msra.mxu0 %v3948
    %4899 = vmatpush.bf16.msra.mxu0 %v3941
    %4900 = vmatpush.bf16.msra.mxu0 %v3934
    %4901 = vmatpush.bf16.msra.mxu0 %v3927
    %4902 = vmatpush.bf16.msra.mxu0 %v3920
    %4903 = vmatpush.bf16.msra.mxu0 %v3913
    %4904 = vmatpush.bf16.msra.mxu0 %v3906
    %4905 = vmatmul.bf16.gmra.mxu0 %v2547
    %v4906 = vpop.f32.mrf.mxu0
    %v4907 = vadd.f32 %v4893, %v4906
    %v4908 = vpop.f32.mrf.mxu0
    %v4909 = vadd.f32 %v4895, %v4908
    %4910 = vdwg.mxu0
    %4911 = vmatpush.bf16.msra.mxu0 %v4011
    %4912 = vmatpush.bf16.msra.mxu0 %v4004
    %4913 = vmatpush.bf16.msra.mxu0 %v3997
    %4914 = vmatpush.bf16.msra.mxu0 %v3990
    %4915 = vmatpush.bf16.msra.mxu0 %v3983
    %4916 = vmatpush.bf16.msra.mxu0 %v3976
    %4917 = vmatpush.bf16.msra.mxu0 %v3969
    %4918 = vmatpush.bf16.msra.mxu0 %v3962
    %4919 = vmatmul.bf16.gmra.mxu0 %v2548
    %v4920 = vpop.f32.mrf.mxu0
    %v4921 = vadd.f32 %v4907, %v4920
    %v4922 = vpop.f32.mrf.mxu0
    %v4923 = vadd.f32 %v4909, %v4922
    %4924 = vdwg.mxu0
    %4925 = vmatpush.bf16.msra.mxu0 %v4067
    %4926 = vmatpush.bf16.msra.mxu0 %v4060
    %4927 = vmatpush.bf16.msra.mxu0 %v4053
    %4928 = vmatpush.bf16.msra.mxu0 %v4046
    %4929 = vmatpush.bf16.msra.mxu0 %v4039
    %4930 = vmatpush.bf16.msra.mxu0 %v4032
    %4931 = vmatpush.bf16.msra.mxu0 %v4025
    %4932 = vmatpush.bf16.msra.mxu0 %v4018
    %4933 = vmatmul.bf16.gmra.mxu0 %v2549
    %v4934 = vpop.f32.mrf.mxu0
    %v4935 = vadd.f32 %v4921, %v4934
    %v4936 = vpop.f32.mrf.mxu0
    %v4937 = vadd.f32 %v4923, %v4936
    %4938 = vdwg.mxu0
    %4939 = vmatpush.bf16.msra.mxu0 %v4123
    %4940 = vmatpush.bf16.msra.mxu0 %v4116
    %4941 = vmatpush.bf16.msra.mxu0 %v4109
    %4942 = vmatpush.bf16.msra.mxu0 %v4102
    %4943 = vmatpush.bf16.msra.mxu0 %v4095
    %4944 = vmatpush.bf16.msra.mxu0 %v4088
    %4945 = vmatpush.bf16.msra.mxu0 %v4081
    %4946 = vmatpush.bf16.msra.mxu0 %v4074
    %4947 = vmatmul.bf16.gmra.mxu0 %v2550
    %v4948 = vpop.f32.mrf.mxu0
    %v4949 = vadd.f32 %v4935, %v4948
    %v4950 = vpop.f32.mrf.mxu0
    %v4951 = vadd.f32 %v4937, %v4950
    %4952 = vdwg.mxu0
    %4953 = vmatpush.bf16.msra.mxu0 %v4179
    %4954 = vmatpush.bf16.msra.mxu0 %v4172
    %4955 = vmatpush.bf16.msra.mxu0 %v4165
    %4956 = vmatpush.bf16.msra.mxu0 %v4158
    %4957 = vmatpush.bf16.msra.mxu0 %v4151
    %4958 = vmatpush.bf16.msra.mxu0 %v4144
    %4959 = vmatpush.bf16.msra.mxu0 %v4137
    %4960 = vmatpush.bf16.msra.mxu0 %v4130
    %4961 = vmatmul.bf16.gmra.mxu0 %v2551
    %v4962 = vpop.f32.mrf.mxu0
    %v4963 = vadd.f32 %v4949, %v4962
    %v4964 = vpop.f32.mrf.mxu0
    %v4965 = vadd.f32 %v4951, %v4964
    %4966 = vdwg.mxu0
    %4967 = vmatpush.bf16.msra.mxu0 %v3844
    %4968 = vmatpush.bf16.msra.mxu0 %v3837
    %4969 = vmatpush.bf16.msra.mxu0 %v3830
    %4970 = vmatpush.bf16.msra.mxu0 %v3823
    %4971 = vmatpush.bf16.msra.mxu0 %v3816
    %4972 = vmatpush.bf16.msra.mxu0 %v3809
    %4973 = vmatpush.bf16.msra.mxu0 %v3802
    %4974 = vmatpush.bf16.msra.mxu0 %v3795
    %4975 = vmatmul.bf16.gmra.mxu0 %v2545
    %v4976 = vpop.f32.mrf.mxu0
    %v4977 = vadd.f32 %v2407, %v4976
    %v4978 = vpop.f32.mrf.mxu0
    %v4979 = vadd.f32 %v2409, %v4978
    %4980 = vdwg.mxu0
    %4981 = vmatpush.bf16.msra.mxu0 %v3900
    %4982 = vmatpush.bf16.msra.mxu0 %v3893
    %4983 = vmatpush.bf16.msra.mxu0 %v3886
    %4984 = vmatpush.bf16.msra.mxu0 %v3879
    %4985 = vmatpush.bf16.msra.mxu0 %v3872
    %4986 = vmatpush.bf16.msra.mxu0 %v3865
    %4987 = vmatpush.bf16.msra.mxu0 %v3858
    %4988 = vmatpush.bf16.msra.mxu0 %v3851
    %4989 = vmatmul.bf16.gmra.mxu0 %v2546
    %v4990 = vpop.f32.mrf.mxu0
    %v4991 = vadd.f32 %v4977, %v4990
    %v4992 = vpop.f32.mrf.mxu0
    %v4993 = vadd.f32 %v4979, %v4992
    %4994 = vdwg.mxu0
    %4995 = vmatpush.bf16.msra.mxu0 %v3956
    %4996 = vmatpush.bf16.msra.mxu0 %v3949
    %4997 = vmatpush.bf16.msra.mxu0 %v3942
    %4998 = vmatpush.bf16.msra.mxu0 %v3935
    %4999 = vmatpush.bf16.msra.mxu0 %v3928
    %5000 = vmatpush.bf16.msra.mxu0 %v3921
    %5001 = vmatpush.bf16.msra.mxu0 %v3914
    %5002 = vmatpush.bf16.msra.mxu0 %v3907
    %5003 = vmatmul.bf16.gmra.mxu0 %v2547
    %v5004 = vpop.f32.mrf.mxu0
    %v5005 = vadd.f32 %v4991, %v5004
    %v5006 = vpop.f32.mrf.mxu0
    %v5007 = vadd.f32 %v4993, %v5006
    %5008 = vdwg.mxu0
    %5009 = vmatpush.bf16.msra.mxu0 %v4012
    %5010 = vmatpush.bf16.msra.mxu0 %v4005
    %5011 = vmatpush.bf16.msra.mxu0 %v3998
    %5012 = vmatpush.bf16.msra.mxu0 %v3991
    %5013 = vmatpush.bf16.msra.mxu0 %v3984
    %5014 = vmatpush.bf16.msra.mxu0 %v3977
    %5015 = vmatpush.bf16.msra.mxu0 %v3970
    %5016 = vmatpush.bf16.msra.mxu0 %v3963
    %5017 = vmatmul.bf16.gmra.mxu0 %v2548
    %v5018 = vpop.f32.mrf.mxu0
    %v5019 = vadd.f32 %v5005, %v5018
    %v5020 = vpop.f32.mrf.mxu0
    %v5021 = vadd.f32 %v5007, %v5020
    %5022 = vdwg.mxu0
    %5023 = vmatpush.bf16.msra.mxu0 %v4068
    %5024 = vmatpush.bf16.msra.mxu0 %v4061
    %5025 = vmatpush.bf16.msra.mxu0 %v4054
    %5026 = vmatpush.bf16.msra.mxu0 %v4047
    %5027 = vmatpush.bf16.msra.mxu0 %v4040
    %5028 = vmatpush.bf16.msra.mxu0 %v4033
    %5029 = vmatpush.bf16.msra.mxu0 %v4026
    %5030 = vmatpush.bf16.msra.mxu0 %v4019
    %5031 = vmatmul.bf16.gmra.mxu0 %v2549
    %v5032 = vpop.f32.mrf.mxu0
    %v5033 = vadd.f32 %v5019, %v5032
    %v5034 = vpop.f32.mrf.mxu0
    %v5035 = vadd.f32 %v5021, %v5034
    %5036 = vdwg.mxu0
    %5037 = vmatpush.bf16.msra.mxu0 %v4124
    %5038 = vmatpush.bf16.msra.mxu0 %v4117
    %5039 = vmatpush.bf16.msra.mxu0 %v4110
    %5040 = vmatpush.bf16.msra.mxu0 %v4103
    %5041 = vmatpush.bf16.msra.mxu0 %v4096
    %5042 = vmatpush.bf16.msra.mxu0 %v4089
    %5043 = vmatpush.bf16.msra.mxu0 %v4082
    %5044 = vmatpush.bf16.msra.mxu0 %v4075
    %5045 = vmatmul.bf16.gmra.mxu0 %v2550
    %v5046 = vpop.f32.mrf.mxu0
    %v5047 = vadd.f32 %v5033, %v5046
    %v5048 = vpop.f32.mrf.mxu0
    %v5049 = vadd.f32 %v5035, %v5048
    %5050 = vdwg.mxu0
    %5051 = vmatpush.bf16.msra.mxu0 %v4180
    %5052 = vmatpush.bf16.msra.mxu0 %v4173
    %5053 = vmatpush.bf16.msra.mxu0 %v4166
    %5054 = vmatpush.bf16.msra.mxu0 %v4159
    %5055 = vmatpush.bf16.msra.mxu0 %v4152
    %5056 = vmatpush.bf16.msra.mxu0 %v4145
    %5057 = vmatpush.bf16.msra.mxu0 %v4138
    %5058 = vmatpush.bf16.msra.mxu0 %v4131
    %5059 = vmatmul.bf16.gmra.mxu0 %v2551
    %v5060 = vpop.f32.mrf.mxu0
    %v5061 = vadd.f32 %v5047, %v5060
    %v5062 = vpop.f32.mrf.mxu0
    %v5063 = vadd.f32 %v5049, %v5062
    %5064 = vdwg.mxu0
    %5065 = vmatpush.bf16.msra.mxu0 %v3845
    %5066 = vmatpush.bf16.msra.mxu0 %v3838
    %5067 = vmatpush.bf16.msra.mxu0 %v3831
    %5068 = vmatpush.bf16.msra.mxu0 %v3824
    %5069 = vmatpush.bf16.msra.mxu0 %v3817
    %5070 = vmatpush.bf16.msra.mxu0 %v3810
    %5071 = vmatpush.bf16.msra.mxu0 %v3803
    %5072 = vmatpush.bf16.msra.mxu0 %v3796
    %5073 = vmatmul.bf16.gmra.mxu0 %v2545
    %v5074 = vpop.f32.mrf.mxu0
    %v5075 = vadd.f32 %v2463, %v5074
    %v5076 = vpop.f32.mrf.mxu0
    %v5077 = vadd.f32 %v2465, %v5076
    %5078 = vdwg.mxu0
    %5079 = vmatpush.bf16.msra.mxu0 %v3901
    %5080 = vmatpush.bf16.msra.mxu0 %v3894
    %5081 = vmatpush.bf16.msra.mxu0 %v3887
    %5082 = vmatpush.bf16.msra.mxu0 %v3880
    %5083 = vmatpush.bf16.msra.mxu0 %v3873
    %5084 = vmatpush.bf16.msra.mxu0 %v3866
    %5085 = vmatpush.bf16.msra.mxu0 %v3859
    %5086 = vmatpush.bf16.msra.mxu0 %v3852
    %5087 = vmatmul.bf16.gmra.mxu0 %v2546
    %v5088 = vpop.f32.mrf.mxu0
    %v5089 = vadd.f32 %v5075, %v5088
    %v5090 = vpop.f32.mrf.mxu0
    %v5091 = vadd.f32 %v5077, %v5090
    %5092 = vdwg.mxu0
    %5093 = vmatpush.bf16.msra.mxu0 %v3957
    %5094 = vmatpush.bf16.msra.mxu0 %v3950
    %5095 = vmatpush.bf16.msra.mxu0 %v3943
    %5096 = vmatpush.bf16.msra.mxu0 %v3936
    %5097 = vmatpush.bf16.msra.mxu0 %v3929
    %5098 = vmatpush.bf16.msra.mxu0 %v3922
    %5099 = vmatpush.bf16.msra.mxu0 %v3915
    %5100 = vmatpush.bf16.msra.mxu0 %v3908
    %5101 = vmatmul.bf16.gmra.mxu0 %v2547
    %v5102 = vpop.f32.mrf.mxu0
    %v5103 = vadd.f32 %v5089, %v5102
    %v5104 = vpop.f32.mrf.mxu0
    %v5105 = vadd.f32 %v5091, %v5104
    %5106 = vdwg.mxu0
    %5107 = vmatpush.bf16.msra.mxu0 %v4013
    %5108 = vmatpush.bf16.msra.mxu0 %v4006
    %5109 = vmatpush.bf16.msra.mxu0 %v3999
    %5110 = vmatpush.bf16.msra.mxu0 %v3992
    %5111 = vmatpush.bf16.msra.mxu0 %v3985
    %5112 = vmatpush.bf16.msra.mxu0 %v3978
    %5113 = vmatpush.bf16.msra.mxu0 %v3971
    %5114 = vmatpush.bf16.msra.mxu0 %v3964
    %5115 = vmatmul.bf16.gmra.mxu0 %v2548
    %v5116 = vpop.f32.mrf.mxu0
    %v5117 = vadd.f32 %v5103, %v5116
    %v5118 = vpop.f32.mrf.mxu0
    %v5119 = vadd.f32 %v5105, %v5118
    %5120 = vdwg.mxu0
    %5121 = vmatpush.bf16.msra.mxu0 %v4069
    %5122 = vmatpush.bf16.msra.mxu0 %v4062
    %5123 = vmatpush.bf16.msra.mxu0 %v4055
    %5124 = vmatpush.bf16.msra.mxu0 %v4048
    %5125 = vmatpush.bf16.msra.mxu0 %v4041
    %5126 = vmatpush.bf16.msra.mxu0 %v4034
    %5127 = vmatpush.bf16.msra.mxu0 %v4027
    %5128 = vmatpush.bf16.msra.mxu0 %v4020
    %5129 = vmatmul.bf16.gmra.mxu0 %v2549
    %v5130 = vpop.f32.mrf.mxu0
    %v5131 = vadd.f32 %v5117, %v5130
    %v5132 = vpop.f32.mrf.mxu0
    %v5133 = vadd.f32 %v5119, %v5132
    %5134 = vdwg.mxu0
    %5135 = vmatpush.bf16.msra.mxu0 %v4125
    %5136 = vmatpush.bf16.msra.mxu0 %v4118
    %5137 = vmatpush.bf16.msra.mxu0 %v4111
    %5138 = vmatpush.bf16.msra.mxu0 %v4104
    %5139 = vmatpush.bf16.msra.mxu0 %v4097
    %5140 = vmatpush.bf16.msra.mxu0 %v4090
    %5141 = vmatpush.bf16.msra.mxu0 %v4083
    %5142 = vmatpush.bf16.msra.mxu0 %v4076
    %5143 = vmatmul.bf16.gmra.mxu0 %v2550
    %v5144 = vpop.f32.mrf.mxu0
    %v5145 = vadd.f32 %v5131, %v5144
    %v5146 = vpop.f32.mrf.mxu0
    %v5147 = vadd.f32 %v5133, %v5146
    %5148 = vdwg.mxu0
    %5149 = vmatpush.bf16.msra.mxu0 %v4181
    %5150 = vmatpush.bf16.msra.mxu0 %v4174
    %5151 = vmatpush.bf16.msra.mxu0 %v4167
    %5152 = vmatpush.bf16.msra.mxu0 %v4160
    %5153 = vmatpush.bf16.msra.mxu0 %v4153
    %5154 = vmatpush.bf16.msra.mxu0 %v4146
    %5155 = vmatpush.bf16.msra.mxu0 %v4139
    %5156 = vmatpush.bf16.msra.mxu0 %v4132
    %5157 = vmatmul.bf16.gmra.mxu0 %v2551
    %v5158 = vpop.f32.mrf.mxu0
    %v5159 = vadd.f32 %v5145, %v5158
    %v5160 = vpop.f32.mrf.mxu0
    %v5161 = vadd.f32 %v5147, %v5160
    %5162 = vdwg.mxu0
    %5163 = vmatpush.bf16.msra.mxu0 %v3846
    %5164 = vmatpush.bf16.msra.mxu0 %v3839
    %5165 = vmatpush.bf16.msra.mxu0 %v3832
    %5166 = vmatpush.bf16.msra.mxu0 %v3825
    %5167 = vmatpush.bf16.msra.mxu0 %v3818
    %5168 = vmatpush.bf16.msra.mxu0 %v3811
    %5169 = vmatpush.bf16.msra.mxu0 %v3804
    %5170 = vmatpush.bf16.msra.mxu0 %v3797
    %5171 = vmatmul.bf16.gmra.mxu0 %v2545
    %v5172 = vpop.f32.mrf.mxu0
    %v5173 = vadd.f32 %v2519, %v5172
    %v5174 = vpop.f32.mrf.mxu0
    %v5175 = vadd.f32 %v2521, %v5174
    %5176 = vdwg.mxu0
    %5177 = vmatpush.bf16.msra.mxu0 %v3902
    %5178 = vmatpush.bf16.msra.mxu0 %v3895
    %5179 = vmatpush.bf16.msra.mxu0 %v3888
    %5180 = vmatpush.bf16.msra.mxu0 %v3881
    %5181 = vmatpush.bf16.msra.mxu0 %v3874
    %5182 = vmatpush.bf16.msra.mxu0 %v3867
    %5183 = vmatpush.bf16.msra.mxu0 %v3860
    %5184 = vmatpush.bf16.msra.mxu0 %v3853
    %5185 = vmatmul.bf16.gmra.mxu0 %v2546
    %v5186 = vpop.f32.mrf.mxu0
    %v5187 = vadd.f32 %v5173, %v5186
    %v5188 = vpop.f32.mrf.mxu0
    %v5189 = vadd.f32 %v5175, %v5188
    %5190 = vdwg.mxu0
    %5191 = vmatpush.bf16.msra.mxu0 %v3958
    %5192 = vmatpush.bf16.msra.mxu0 %v3951
    %5193 = vmatpush.bf16.msra.mxu0 %v3944
    %5194 = vmatpush.bf16.msra.mxu0 %v3937
    %5195 = vmatpush.bf16.msra.mxu0 %v3930
    %5196 = vmatpush.bf16.msra.mxu0 %v3923
    %5197 = vmatpush.bf16.msra.mxu0 %v3916
    %5198 = vmatpush.bf16.msra.mxu0 %v3909
    %5199 = vmatmul.bf16.gmra.mxu0 %v2547
    %v5200 = vpop.f32.mrf.mxu0
    %v5201 = vadd.f32 %v5187, %v5200
    %v5202 = vpop.f32.mrf.mxu0
    %v5203 = vadd.f32 %v5189, %v5202
    %5204 = vdwg.mxu0
    %5205 = vmatpush.bf16.msra.mxu0 %v4014
    %5206 = vmatpush.bf16.msra.mxu0 %v4007
    %5207 = vmatpush.bf16.msra.mxu0 %v4000
    %5208 = vmatpush.bf16.msra.mxu0 %v3993
    %5209 = vmatpush.bf16.msra.mxu0 %v3986
    %5210 = vmatpush.bf16.msra.mxu0 %v3979
    %5211 = vmatpush.bf16.msra.mxu0 %v3972
    %5212 = vmatpush.bf16.msra.mxu0 %v3965
    %5213 = vmatmul.bf16.gmra.mxu0 %v2548
    %v5214 = vpop.f32.mrf.mxu0
    %v5215 = vadd.f32 %v5201, %v5214
    %v5216 = vpop.f32.mrf.mxu0
    %v5217 = vadd.f32 %v5203, %v5216
    %5218 = vdwg.mxu0
    %5219 = vmatpush.bf16.msra.mxu0 %v4070
    %5220 = vmatpush.bf16.msra.mxu0 %v4063
    %5221 = vmatpush.bf16.msra.mxu0 %v4056
    %5222 = vmatpush.bf16.msra.mxu0 %v4049
    %5223 = vmatpush.bf16.msra.mxu0 %v4042
    %5224 = vmatpush.bf16.msra.mxu0 %v4035
    %5225 = vmatpush.bf16.msra.mxu0 %v4028
    %5226 = vmatpush.bf16.msra.mxu0 %v4021
    %5227 = vmatmul.bf16.gmra.mxu0 %v2549
    %v5228 = vpop.f32.mrf.mxu0
    %v5229 = vadd.f32 %v5215, %v5228
    %v5230 = vpop.f32.mrf.mxu0
    %v5231 = vadd.f32 %v5217, %v5230
    %5232 = vdwg.mxu0
    %5233 = vmatpush.bf16.msra.mxu0 %v4126
    %5234 = vmatpush.bf16.msra.mxu0 %v4119
    %5235 = vmatpush.bf16.msra.mxu0 %v4112
    %5236 = vmatpush.bf16.msra.mxu0 %v4105
    %5237 = vmatpush.bf16.msra.mxu0 %v4098
    %5238 = vmatpush.bf16.msra.mxu0 %v4091
    %5239 = vmatpush.bf16.msra.mxu0 %v4084
    %5240 = vmatpush.bf16.msra.mxu0 %v4077
    %5241 = vmatmul.bf16.gmra.mxu0 %v2550
    %v5242 = vpop.f32.mrf.mxu0
    %v5243 = vadd.f32 %v5229, %v5242
    %v5244 = vpop.f32.mrf.mxu0
    %v5245 = vadd.f32 %v5231, %v5244
    %5246 = vdwg.mxu0
    %5247 = vmatpush.bf16.msra.mxu0 %v4182
    %5248 = vmatpush.bf16.msra.mxu0 %v4175
    %5249 = vmatpush.bf16.msra.mxu0 %v4168
    %5250 = vmatpush.bf16.msra.mxu0 %v4161
    %5251 = vmatpush.bf16.msra.mxu0 %v4154
    %5252 = vmatpush.bf16.msra.mxu0 %v4147
    %5253 = vmatpush.bf16.msra.mxu0 %v4140
    %5254 = vmatpush.bf16.msra.mxu0 %v4133
    %5255 = vmatmul.bf16.gmra.mxu0 %v2551
    %v5256 = vpop.f32.mrf.mxu0
    %v5257 = vadd.f32 %v5243, %v5256
    %v5258 = vpop.f32.mrf.mxu0
    %v5259 = vadd.f32 %v5245, %v5258
    %5260 = vdwg.mxu0
    %v5261 = vld [vmem:[#allocation11] sm:$0xff]
    %v5263 = vperm.slane %v5261, 0
    %v5264 = vperm.slane %v5261, 1
    %v5265 = vperm.slane %v5261, 2
    %v5266 = vperm.slane %v5261, 3
    %v5267 = vperm.slane %v5261, 4
    %v5268 = vperm.slane %v5261, 5
    %v5269 = vperm.slane %v5261, 6
    %v5277 = vadd.f32 %v4669, %v5263
    %v5278 = vadd.f32 %v4767, %v5264
    %v5279 = vadd.f32 %v4865, %v5265
    %v5280 = vadd.f32 %v4963, %v5266
    %v5281 = vadd.f32 %v5061, %v5267
    %v5282 = vadd.f32 %v5159, %v5268
    %v5283 = vadd.f32 %v5257, %v5269
    %v5284 = vadd.f32 %v4671, %v5263
    %v5285 = vadd.f32 %v4769, %v5264
    %v5286 = vadd.f32 %v4867, %v5265
    %v5287 = vadd.f32 %v4965, %v5266
    %v5288 = vadd.f32 %v5063, %v5267
    %v5289 = vadd.f32 %v5161, %v5268
    %v5290 = vadd.f32 %v5259, %v5269
    %v5291 = vmax.f32 %v5277, 0.0
    %v5292 = vmax.f32 %v5278, 0.0
    %v5293 = vmax.f32 %v5279, 0.0
    %v5294 = vmax.f32 %v5280, 0.0
    %v5295 = vmax.f32 %v5281, 0.0
    %v5296 = vmax.f32 %v5282, 0.0
    %v5297 = vmax.f32 %v5283, 0.0
    %v5298 = vmax.f32 %v5284, 0.0
    %v5299 = vmax.f32 %v5285, 0.0
    %v5300 = vmax.f32 %v5286, 0.0
    %v5301 = vmax.f32 %v5287, 0.0
    %v5302 = vmax.f32 %v5288, 0.0
    %v5303 = vmax.f32 %v5289, 0.0
    %v5304 = vmax.f32 %v5290, 0.0
    %v5305 = vpack.c.bf16 %v5298, %v5291
    %v5306 = vpack.c.bf16 %v5299, %v5292
    %v5307 = vpack.c.bf16 %v5300, %v5293
    %v5308 = vpack.c.bf16 %v5301, %v5294
    %v5309 = vpack.c.bf16 %v5302, %v5295
    %v5310 = vpack.c.bf16 %v5303, %v5296
    %v5311 = vpack.c.bf16 %v5304, %v5297
    %v5312 = vld [vmem:[#allocation13] sm:$0xff]
    %v5313 = vld [vmem:[#allocation13 + $0x8] sm:$0xff]
    %v5314 = vld [vmem:[#allocation13 + $0x10] sm:$0xff]
    %v5315 = vld [vmem:[#allocation13 + $0x18] sm:$0xff]
    %v5316 = vld [vmem:[#allocation13 + $0x20] sm:$0xff]
    %v5317 = vld [vmem:[#allocation13 + $0x28] sm:$0xff]
    %v5318 = vld [vmem:[#allocation13 + $0x30] sm:$0xff]
    %v5319 = vld [vmem:[#allocation13 + $0x38] sm:$0xff]
    %v5320 = vld [vmem:[#allocation13 + $0x40] sm:$0xff]
    %v5321 = vld [vmem:[#allocation13 + $0x48] sm:$0xff]
    %v5322 = vld [vmem:[#allocation13 + $0x50] sm:$0xff]
    %v5323 = vld [vmem:[#allocation13 + $0x58] sm:$0xff]
    %v5324 = vld [vmem:[#allocation13 + $0x60] sm:$0xff]
    %v5325 = vld [vmem:[#allocation13 + $0x68] sm:$0xff]
    %v5326 = vld [vmem:[#allocation13 + $0x70] sm:$0xff]
    %v5327 = vld [vmem:[#allocation13 + $0x78] sm:$0xff]
    %v5328 = vld [vmem:[#allocation13 + $0x80] sm:$0xff]
    %v5329 = vld [vmem:[#allocation13 + $0x88] sm:$0xff]
    %v5330 = vld [vmem:[#allocation13 + $0x90] sm:$0xff]
    %v5331 = vld [vmem:[#allocation13 + $0x98] sm:$0xff]
    %v5332 = vld [vmem:[#allocation13 + $0xa0] sm:$0xff]
    %v5333 = vld [vmem:[#allocation13 + $0xa8] sm:$0xff]
    %v5334 = vld [vmem:[#allocation13 + $0xb0] sm:$0xff]
    %v5335 = vld [vmem:[#allocation13 + $0xb8] sm:$0xff]
    %v5336 = vld [vmem:[#allocation13 + $0xc0] sm:$0xff]
    %v5337 = vld [vmem:[#allocation13 + $0xc8] sm:$0xff]
    %v5338 = vld [vmem:[#allocation13 + $0xd0] sm:$0xff]
    %v5339 = vld [vmem:[#allocation13 + $0xd8] sm:$0xff]
    %v5340 = vld [vmem:[#allocation13 + $0xe0] sm:$0xff]
    %v5341 = vld [vmem:[#allocation13 + $0xe8] sm:$0xff]
    %v5342 = vld [vmem:[#allocation13 + $0xf0] sm:$0xff]
    %v5343 = vld [vmem:[#allocation13 + $0xf8] sm:$0xff]
    %v5344 = vld [vmem:[#allocation13 + $0x100] sm:$0xff]
    %v5345 = vld [vmem:[#allocation13 + $0x108] sm:$0xff]
    %v5346 = vld [vmem:[#allocation13 + $0x110] sm:$0xff]
    %v5347 = vld [vmem:[#allocation13 + $0x118] sm:$0xff]
    %v5348 = vld [vmem:[#allocation13 + $0x120] sm:$0xff]
    %v5349 = vld [vmem:[#allocation13 + $0x128] sm:$0xff]
    %v5350 = vld [vmem:[#allocation13 + $0x130] sm:$0xff]
    %v5351 = vld [vmem:[#allocation13 + $0x138] sm:$0xff]
    %v5352 = vld [vmem:[#allocation13 + $0x140] sm:$0xff]
    %v5353 = vld [vmem:[#allocation13 + $0x148] sm:$0xff]
    %v5354 = vld [vmem:[#allocation13 + $0x150] sm:$0xff]
    %v5355 = vld [vmem:[#allocation13 + $0x158] sm:$0xff]
    %v5356 = vld [vmem:[#allocation13 + $0x160] sm:$0xff]
    %v5357 = vld [vmem:[#allocation13 + $0x168] sm:$0xff]
    %v5358 = vld [vmem:[#allocation13 + $0x170] sm:$0xff]
    %v5359 = vld [vmem:[#allocation13 + $0x178] sm:$0xff]
    %v5360 = vld [vmem:[#allocation13 + $0x180] sm:$0xff]
    %v5361 = vld [vmem:[#allocation13 + $0x188] sm:$0xff]
    %v5362 = vld [vmem:[#allocation13 + $0x190] sm:$0xff]
    %v5363 = vld [vmem:[#allocation13 + $0x198] sm:$0xff]
    %v5364 = vld [vmem:[#allocation13 + $0x1a0] sm:$0xff]
    %v5365 = vld [vmem:[#allocation13 + $0x1a8] sm:$0xff]
    %v5366 = vld [vmem:[#allocation13 + $0x1b0] sm:$0xff]
    %v5367 = vld [vmem:[#allocation13 + $0x1b8] sm:$0xff]
    %v5368 = vld [vmem:[#allocation13 + $0x1c0] sm:$0xff]
    %v5369 = vld [vmem:[#allocation13 + $0x1c8] sm:$0xff]
    %v5370 = vld [vmem:[#allocation13 + $0x1d0] sm:$0xff]
    %v5371 = vld [vmem:[#allocation13 + $0x1d8] sm:$0xff]
    %v5372 = vld [vmem:[#allocation13 + $0x1e0] sm:$0xff]
    %v5373 = vld [vmem:[#allocation13 + $0x1e8] sm:$0xff]
    %v5374 = vld [vmem:[#allocation13 + $0x1f0] sm:$0xff]
    %v5375 = vld [vmem:[#allocation13 + $0x1f8] sm:$0xff]
    %v5376 = vld [vmem:[#allocation13 + $0x200] sm:$0xff]
    %v5377 = vld [vmem:[#allocation13 + $0x208] sm:$0xff]
    %v5378 = vld [vmem:[#allocation13 + $0x210] sm:$0xff]
    %v5379 = vld [vmem:[#allocation13 + $0x218] sm:$0xff]
    %v5380 = vld [vmem:[#allocation13 + $0x220] sm:$0xff]
    %v5381 = vld [vmem:[#allocation13 + $0x228] sm:$0xff]
    %v5382 = vld [vmem:[#allocation13 + $0x230] sm:$0xff]
    %v5383 = vld [vmem:[#allocation13 + $0x238] sm:$0xff]
    %v5384 = vld [vmem:[#allocation13 + $0x240] sm:$0xff]
    %v5385 = vld [vmem:[#allocation13 + $0x248] sm:$0xff]
    %v5386 = vld [vmem:[#allocation13 + $0x250] sm:$0xff]
    %v5387 = vld [vmem:[#allocation13 + $0x258] sm:$0xff]
    %v5388 = vld [vmem:[#allocation13 + $0x260] sm:$0xff]
    %v5389 = vld [vmem:[#allocation13 + $0x268] sm:$0xff]
    %v5390 = vld [vmem:[#allocation13 + $0x270] sm:$0xff]
    %v5391 = vld [vmem:[#allocation13 + $0x278] sm:$0xff]
    %v5392 = vld [vmem:[#allocation13 + $0x280] sm:$0xff]
    %v5393 = vld [vmem:[#allocation13 + $0x288] sm:$0xff]
    %v5394 = vld [vmem:[#allocation13 + $0x290] sm:$0xff]
    %v5395 = vld [vmem:[#allocation13 + $0x298] sm:$0xff]
    %v5396 = vld [vmem:[#allocation13 + $0x2a0] sm:$0xff]
    %v5397 = vld [vmem:[#allocation13 + $0x2a8] sm:$0xff]
    %v5398 = vld [vmem:[#allocation13 + $0x2b0] sm:$0xff]
    %v5399 = vld [vmem:[#allocation13 + $0x2b8] sm:$0xff]
    %v5400 = vld [vmem:[#allocation13 + $0x2c0] sm:$0xff]
    %v5401 = vld [vmem:[#allocation13 + $0x2c8] sm:$0xff]
    %v5402 = vld [vmem:[#allocation13 + $0x2d0] sm:$0xff]
    %v5403 = vld [vmem:[#allocation13 + $0x2d8] sm:$0xff]
    %v5404 = vld [vmem:[#allocation13 + $0x2e0] sm:$0xff]
    %v5405 = vld [vmem:[#allocation13 + $0x2e8] sm:$0xff]
    %v5406 = vld [vmem:[#allocation13 + $0x2f0] sm:$0xff]
    %v5407 = vld [vmem:[#allocation13 + $0x2f8] sm:$0xff]
    %v5408 = vld [vmem:[#allocation13 + $0x300] sm:$0xff]
    %v5409 = vld [vmem:[#allocation13 + $0x308] sm:$0xff]
    %v5410 = vld [vmem:[#allocation13 + $0x310] sm:$0xff]
    %v5411 = vld [vmem:[#allocation13 + $0x318] sm:$0xff]
    %v5412 = vld [vmem:[#allocation13 + $0x320] sm:$0xff]
    %v5413 = vld [vmem:[#allocation13 + $0x328] sm:$0xff]
    %v5414 = vld [vmem:[#allocation13 + $0x330] sm:$0xff]
    %v5415 = vld [vmem:[#allocation13 + $0x338] sm:$0xff]
    %v5416 = vld [vmem:[#allocation13 + $0x340] sm:$0xff]
    %v5417 = vld [vmem:[#allocation13 + $0x348] sm:$0xff]
    %v5418 = vld [vmem:[#allocation13 + $0x350] sm:$0xff]
    %v5419 = vld [vmem:[#allocation13 + $0x358] sm:$0xff]
    %v5420 = vld [vmem:[#allocation13 + $0x360] sm:$0xff]
    %v5421 = vld [vmem:[#allocation13 + $0x368] sm:$0xff]
    %v5422 = vld [vmem:[#allocation13 + $0x370] sm:$0xff]
    %v5423 = vld [vmem:[#allocation13 + $0x378] sm:$0xff]
    %v5424 = vld [vmem:[#allocation14] sm:$0x3]
    %v5426 = vperm.slane %v5424, 0
    %v5427 = vperm.slane %v5424, 1
    %v5542 = vunpack.c.l.b16 %v5312
    %v5543 = vunpack.c.h.b16 %v5312
    %v5544 = vunpack.c.l.b16 %v5313
    %v5545 = vunpack.c.h.b16 %v5313
    %v5546 = vunpack.c.l.b16 %v5314
    %v5547 = vunpack.c.h.b16 %v5314
    %v5548 = vunpack.c.l.b16 %v5315
    %v5549 = vunpack.c.h.b16 %v5315
    %v5550 = vunpack.c.l.b16 %v5316
    %v5551 = vunpack.c.h.b16 %v5316
    %v5552 = vunpack.c.l.b16 %v5317
    %v5553 = vunpack.c.h.b16 %v5317
    %v5554 = vunpack.c.l.b16 %v5318
    %v5555 = vunpack.c.h.b16 %v5318
    %v5556 = vunpack.c.l.b16 %v5319
    %v5557 = vunpack.c.h.b16 %v5319
    %v5558 = vunpack.c.l.b16 %v5320
    %v5559 = vunpack.c.h.b16 %v5320
    %v5560 = vunpack.c.l.b16 %v5321
    %v5561 = vunpack.c.h.b16 %v5321
    %v5562 = vunpack.c.l.b16 %v5322
    %v5563 = vunpack.c.h.b16 %v5322
    %v5564 = vunpack.c.l.b16 %v5323
    %v5565 = vunpack.c.h.b16 %v5323
    %v5566 = vunpack.c.l.b16 %v5324
    %v5567 = vunpack.c.h.b16 %v5324
    %v5568 = vunpack.c.l.b16 %v5325
    %v5569 = vunpack.c.h.b16 %v5325
    %v5570 = vunpack.c.l.b16 %v5326
    %v5571 = vunpack.c.h.b16 %v5326
    %v5572 = vunpack.c.l.b16 %v5327
    %v5573 = vunpack.c.h.b16 %v5327
    %v5574 = vunpack.c.l.b16 %v5328
    %v5575 = vunpack.c.h.b16 %v5328
    %v5576 = vunpack.c.l.b16 %v5329
    %v5577 = vunpack.c.h.b16 %v5329
    %v5578 = vunpack.c.l.b16 %v5330
    %v5579 = vunpack.c.h.b16 %v5330
    %v5580 = vunpack.c.l.b16 %v5331
    %v5581 = vunpack.c.h.b16 %v5331
    %v5582 = vunpack.c.l.b16 %v5332
    %v5583 = vunpack.c.h.b16 %v5332
    %v5584 = vunpack.c.l.b16 %v5333
    %v5585 = vunpack.c.h.b16 %v5333
    %v5586 = vunpack.c.l.b16 %v5334
    %v5587 = vunpack.c.h.b16 %v5334
    %v5588 = vunpack.c.l.b16 %v5335
    %v5589 = vunpack.c.h.b16 %v5335
    %v5590 = vunpack.c.l.b16 %v5336
    %v5591 = vunpack.c.h.b16 %v5336
    %v5592 = vunpack.c.l.b16 %v5337
    %v5593 = vunpack.c.h.b16 %v5337
    %v5594 = vunpack.c.l.b16 %v5338
    %v5595 = vunpack.c.h.b16 %v5338
    %v5596 = vunpack.c.l.b16 %v5339
    %v5597 = vunpack.c.h.b16 %v5339
    %v5598 = vunpack.c.l.b16 %v5340
    %v5599 = vunpack.c.h.b16 %v5340
    %v5600 = vunpack.c.l.b16 %v5341
    %v5601 = vunpack.c.h.b16 %v5341
    %v5602 = vunpack.c.l.b16 %v5342
    %v5603 = vunpack.c.h.b16 %v5342
    %v5604 = vunpack.c.l.b16 %v5343
    %v5605 = vunpack.c.h.b16 %v5343
    %v5606 = vunpack.c.l.b16 %v5344
    %v5607 = vunpack.c.h.b16 %v5344
    %v5608 = vunpack.c.l.b16 %v5345
    %v5609 = vunpack.c.h.b16 %v5345
    %v5610 = vunpack.c.l.b16 %v5346
    %v5611 = vunpack.c.h.b16 %v5346
    %v5612 = vunpack.c.l.b16 %v5347
    %v5613 = vunpack.c.h.b16 %v5347
    %v5614 = vunpack.c.l.b16 %v5348
    %v5615 = vunpack.c.h.b16 %v5348
    %v5616 = vunpack.c.l.b16 %v5349
    %v5617 = vunpack.c.h.b16 %v5349
    %v5618 = vunpack.c.l.b16 %v5350
    %v5619 = vunpack.c.h.b16 %v5350
    %v5620 = vunpack.c.l.b16 %v5351
    %v5621 = vunpack.c.h.b16 %v5351
    %v5622 = vunpack.c.l.b16 %v5352
    %v5623 = vunpack.c.h.b16 %v5352
    %v5624 = vunpack.c.l.b16 %v5353
    %v5625 = vunpack.c.h.b16 %v5353
    %v5626 = vunpack.c.l.b16 %v5354
    %v5627 = vunpack.c.h.b16 %v5354
    %v5628 = vunpack.c.l.b16 %v5355
    %v5629 = vunpack.c.h.b16 %v5355
    %v5630 = vunpack.c.l.b16 %v5356
    %v5631 = vunpack.c.h.b16 %v5356
    %v5632 = vunpack.c.l.b16 %v5357
    %v5633 = vunpack.c.h.b16 %v5357
    %v5634 = vunpack.c.l.b16 %v5358
    %v5635 = vunpack.c.h.b16 %v5358
    %v5636 = vunpack.c.l.b16 %v5359
    %v5637 = vunpack.c.h.b16 %v5359
    %v5638 = vunpack.c.l.b16 %v5360
    %v5639 = vunpack.c.h.b16 %v5360
    %v5640 = vunpack.c.l.b16 %v5361
    %v5641 = vunpack.c.h.b16 %v5361
    %v5642 = vunpack.c.l.b16 %v5362
    %v5643 = vunpack.c.h.b16 %v5362
    %v5644 = vunpack.c.l.b16 %v5363
    %v5645 = vunpack.c.h.b16 %v5363
    %v5646 = vunpack.c.l.b16 %v5364
    %v5647 = vunpack.c.h.b16 %v5364
    %v5648 = vunpack.c.l.b16 %v5365
    %v5649 = vunpack.c.h.b16 %v5365
    %v5650 = vunpack.c.l.b16 %v5366
    %v5651 = vunpack.c.h.b16 %v5366
    %v5652 = vunpack.c.l.b16 %v5367
    %v5653 = vunpack.c.h.b16 %v5367
    %v5654 = vunpack.c.l.b16 %v5368
    %v5655 = vunpack.c.h.b16 %v5368
    %v5656 = vunpack.c.l.b16 %v5369
    %v5657 = vunpack.c.h.b16 %v5369
    %v5658 = vunpack.c.l.b16 %v5370
    %v5659 = vunpack.c.h.b16 %v5370
    %v5660 = vunpack.c.l.b16 %v5371
    %v5661 = vunpack.c.h.b16 %v5371
    %v5662 = vunpack.c.l.b16 %v5372
    %v5663 = vunpack.c.h.b16 %v5372
    %v5664 = vunpack.c.l.b16 %v5373
    %v5665 = vunpack.c.h.b16 %v5373
    %v5666 = vunpack.c.l.b16 %v5374
    %v5667 = vunpack.c.h.b16 %v5374
    %v5668 = vunpack.c.l.b16 %v5375
    %v5669 = vunpack.c.h.b16 %v5375
    %v5670 = vunpack.c.l.b16 %v5376
    %v5671 = vunpack.c.h.b16 %v5376
    %v5672 = vunpack.c.l.b16 %v5377
    %v5673 = vunpack.c.h.b16 %v5377
    %v5674 = vunpack.c.l.b16 %v5378
    %v5675 = vunpack.c.h.b16 %v5378
    %v5676 = vunpack.c.l.b16 %v5379
    %v5677 = vunpack.c.h.b16 %v5379
    %v5678 = vunpack.c.l.b16 %v5380
    %v5679 = vunpack.c.h.b16 %v5380
    %v5680 = vunpack.c.l.b16 %v5381
    %v5681 = vunpack.c.h.b16 %v5381
    %v5682 = vunpack.c.l.b16 %v5382
    %v5683 = vunpack.c.h.b16 %v5382
    %v5684 = vunpack.c.l.b16 %v5383
    %v5685 = vunpack.c.h.b16 %v5383
    %v5686 = vunpack.c.l.b16 %v5384
    %v5687 = vunpack.c.h.b16 %v5384
    %v5688 = vunpack.c.l.b16 %v5385
    %v5689 = vunpack.c.h.b16 %v5385
    %v5690 = vunpack.c.l.b16 %v5386
    %v5691 = vunpack.c.h.b16 %v5386
    %v5692 = vunpack.c.l.b16 %v5387
    %v5693 = vunpack.c.h.b16 %v5387
    %v5694 = vunpack.c.l.b16 %v5388
    %v5695 = vunpack.c.h.b16 %v5388
    %v5696 = vunpack.c.l.b16 %v5389
    %v5697 = vunpack.c.h.b16 %v5389
    %v5698 = vunpack.c.l.b16 %v5390
    %v5699 = vunpack.c.h.b16 %v5390
    %v5700 = vunpack.c.l.b16 %v5391
    %v5701 = vunpack.c.h.b16 %v5391
    %v5702 = vunpack.c.l.b16 %v5392
    %v5703 = vunpack.c.h.b16 %v5392
    %v5704 = vunpack.c.l.b16 %v5393
    %v5705 = vunpack.c.h.b16 %v5393
    %v5706 = vunpack.c.l.b16 %v5394
    %v5707 = vunpack.c.h.b16 %v5394
    %v5708 = vunpack.c.l.b16 %v5395
    %v5709 = vunpack.c.h.b16 %v5395
    %v5710 = vunpack.c.l.b16 %v5396
    %v5711 = vunpack.c.h.b16 %v5396
    %v5712 = vunpack.c.l.b16 %v5397
    %v5713 = vunpack.c.h.b16 %v5397
    %v5714 = vunpack.c.l.b16 %v5398
    %v5715 = vunpack.c.h.b16 %v5398
    %v5716 = vunpack.c.l.b16 %v5399
    %v5717 = vunpack.c.h.b16 %v5399
    %v5718 = vunpack.c.l.b16 %v5400
    %v5719 = vunpack.c.h.b16 %v5400
    %v5720 = vunpack.c.l.b16 %v5401
    %v5721 = vunpack.c.h.b16 %v5401
    %v5722 = vunpack.c.l.b16 %v5402
    %v5723 = vunpack.c.h.b16 %v5402
    %v5724 = vunpack.c.l.b16 %v5403
    %v5725 = vunpack.c.h.b16 %v5403
    %v5726 = vunpack.c.l.b16 %v5404
    %v5727 = vunpack.c.h.b16 %v5404
    %v5728 = vunpack.c.l.b16 %v5405
    %v5729 = vunpack.c.h.b16 %v5405
    %v5730 = vunpack.c.l.b16 %v5406
    %v5731 = vunpack.c.h.b16 %v5406
    %v5732 = vunpack.c.l.b16 %v5407
    %v5733 = vunpack.c.h.b16 %v5407
    %v5734 = vunpack.c.l.b16 %v5408
    %v5735 = vunpack.c.h.b16 %v5408
    %v5736 = vunpack.c.l.b16 %v5409
    %v5737 = vunpack.c.h.b16 %v5409
    %v5738 = vunpack.c.l.b16 %v5410
    %v5739 = vunpack.c.h.b16 %v5410
    %v5740 = vunpack.c.l.b16 %v5411
    %v5741 = vunpack.c.h.b16 %v5411
    %v5742 = vunpack.c.l.b16 %v5412
    %v5743 = vunpack.c.h.b16 %v5412
    %v5744 = vunpack.c.l.b16 %v5413
    %v5745 = vunpack.c.h.b16 %v5413
    %v5746 = vunpack.c.l.b16 %v5414
    %v5747 = vunpack.c.h.b16 %v5414
    %v5748 = vunpack.c.l.b16 %v5415
    %v5749 = vunpack.c.h.b16 %v5415
    %v5750 = vunpack.c.l.b16 %v5416
    %v5751 = vunpack.c.h.b16 %v5416
    %v5752 = vunpack.c.l.b16 %v5417
    %v5753 = vunpack.c.h.b16 %v5417
    %v5754 = vunpack.c.l.b16 %v5418
    %v5755 = vunpack.c.h.b16 %v5418
    %v5756 = vunpack.c.l.b16 %v5419
    %v5757 = vunpack.c.h.b16 %v5419
    %v5758 = vunpack.c.l.b16 %v5420
    %v5759 = vunpack.c.h.b16 %v5420
    %v5760 = vunpack.c.l.b16 %v5421
    %v5761 = vunpack.c.h.b16 %v5421
    %v5762 = vunpack.c.l.b16 %v5422
    %v5763 = vunpack.c.h.b16 %v5422
    %v5764 = vunpack.c.l.b16 %v5423
    %v5765 = vunpack.c.h.b16 %v5423
    %v5766 = vpack.c.b16 %v5544, %v5542
    %v5767 = vpack.c.b16 %v5545, %v5543
    %v5768 = vpack.c.b16 %v5548, %v5546
    %v5769 = vpack.c.b16 %v5549, %v5547
    %v5770 = vpack.c.b16 %v5552, %v5550
    %v5771 = vpack.c.b16 %v5553, %v5551
    %v5772 = vpack.c.b16 %v5556, %v5554
    %v5773 = vpack.c.b16 %v5557, %v5555
    %v5774 = vpack.c.b16 %v5560, %v5558
    %v5775 = vpack.c.b16 %v5561, %v5559
    %v5776 = vpack.c.b16 %v5564, %v5562
    %v5777 = vpack.c.b16 %v5565, %v5563
    %v5778 = vpack.c.b16 %v5568, %v5566
    %v5779 = vpack.c.b16 %v5569, %v5567
    %v5780 = vpack.c.b16 %v5572, %v5570
    %v5781 = vpack.c.b16 %v5573, %v5571
    %v5782 = vpack.c.b16 %v5576, %v5574
    %v5783 = vpack.c.b16 %v5577, %v5575
    %v5784 = vpack.c.b16 %v5580, %v5578
    %v5785 = vpack.c.b16 %v5581, %v5579
    %v5786 = vpack.c.b16 %v5584, %v5582
    %v5787 = vpack.c.b16 %v5585, %v5583
    %v5788 = vpack.c.b16 %v5588, %v5586
    %v5789 = vpack.c.b16 %v5589, %v5587
    %v5790 = vpack.c.b16 %v5592, %v5590
    %v5791 = vpack.c.b16 %v5593, %v5591
    %v5792 = vpack.c.b16 %v5596, %v5594
    %v5793 = vpack.c.b16 %v5597, %v5595
    %v5794 = vpack.c.b16 %v5600, %v5598
    %v5795 = vpack.c.b16 %v5601, %v5599
    %v5796 = vpack.c.b16 %v5604, %v5602
    %v5797 = vpack.c.b16 %v5605, %v5603
    %v5798 = vpack.c.b16 %v5608, %v5606
    %v5799 = vpack.c.b16 %v5609, %v5607
    %v5800 = vpack.c.b16 %v5612, %v5610
    %v5801 = vpack.c.b16 %v5613, %v5611
    %v5802 = vpack.c.b16 %v5616, %v5614
    %v5803 = vpack.c.b16 %v5617, %v5615
    %v5804 = vpack.c.b16 %v5620, %v5618
    %v5805 = vpack.c.b16 %v5621, %v5619
    %v5806 = vpack.c.b16 %v5624, %v5622
    %v5807 = vpack.c.b16 %v5625, %v5623
    %v5808 = vpack.c.b16 %v5628, %v5626
    %v5809 = vpack.c.b16 %v5629, %v5627
    %v5810 = vpack.c.b16 %v5632, %v5630
    %v5811 = vpack.c.b16 %v5633, %v5631
    %v5812 = vpack.c.b16 %v5636, %v5634
    %v5813 = vpack.c.b16 %v5637, %v5635
    %v5814 = vpack.c.b16 %v5640, %v5638
    %v5815 = vpack.c.b16 %v5641, %v5639
    %v5816 = vpack.c.b16 %v5644, %v5642
    %v5817 = vpack.c.b16 %v5645, %v5643
    %v5818 = vpack.c.b16 %v5648, %v5646
    %v5819 = vpack.c.b16 %v5649, %v5647
    %v5820 = vpack.c.b16 %v5652, %v5650
    %v5821 = vpack.c.b16 %v5653, %v5651
    %v5822 = vpack.c.b16 %v5656, %v5654
    %v5823 = vpack.c.b16 %v5657, %v5655
    %v5824 = vpack.c.b16 %v5660, %v5658
    %v5825 = vpack.c.b16 %v5661, %v5659
    %v5826 = vpack.c.b16 %v5664, %v5662
    %v5827 = vpack.c.b16 %v5665, %v5663
    %v5828 = vpack.c.b16 %v5668, %v5666
    %v5829 = vpack.c.b16 %v5669, %v5667
    %v5830 = vpack.c.b16 %v5672, %v5670
    %v5831 = vpack.c.b16 %v5673, %v5671
    %v5832 = vpack.c.b16 %v5676, %v5674
    %v5833 = vpack.c.b16 %v5677, %v5675
    %v5834 = vpack.c.b16 %v5680, %v5678
    %v5835 = vpack.c.b16 %v5681, %v5679
    %v5836 = vpack.c.b16 %v5684, %v5682
    %v5837 = vpack.c.b16 %v5685, %v5683
    %v5838 = vpack.c.b16 %v5688, %v5686
    %v5839 = vpack.c.b16 %v5689, %v5687
    %v5840 = vpack.c.b16 %v5692, %v5690
    %v5841 = vpack.c.b16 %v5693, %v5691
    %v5842 = vpack.c.b16 %v5696, %v5694
    %v5843 = vpack.c.b16 %v5697, %v5695
    %v5844 = vpack.c.b16 %v5700, %v5698
    %v5845 = vpack.c.b16 %v5701, %v5699
    %v5846 = vpack.c.b16 %v5704, %v5702
    %v5847 = vpack.c.b16 %v5705, %v5703
    %v5848 = vpack.c.b16 %v5708, %v5706
    %v5849 = vpack.c.b16 %v5709, %v5707
    %v5850 = vpack.c.b16 %v5712, %v5710
    %v5851 = vpack.c.b16 %v5713, %v5711
    %v5852 = vpack.c.b16 %v5716, %v5714
    %v5853 = vpack.c.b16 %v5717, %v5715
    %v5854 = vpack.c.b16 %v5720, %v5718
    %v5855 = vpack.c.b16 %v5721, %v5719
    %v5856 = vpack.c.b16 %v5724, %v5722
    %v5857 = vpack.c.b16 %v5725, %v5723
    %v5858 = vpack.c.b16 %v5728, %v5726
    %v5859 = vpack.c.b16 %v5729, %v5727
    %v5860 = vpack.c.b16 %v5732, %v5730
    %v5861 = vpack.c.b16 %v5733, %v5731
    %v5862 = vpack.c.b16 %v5736, %v5734
    %v5863 = vpack.c.b16 %v5737, %v5735
    %v5864 = vpack.c.b16 %v5740, %v5738
    %v5865 = vpack.c.b16 %v5741, %v5739
    %v5866 = vpack.c.b16 %v5744, %v5742
    %v5867 = vpack.c.b16 %v5745, %v5743
    %v5868 = vpack.c.b16 %v5748, %v5746
    %v5869 = vpack.c.b16 %v5749, %v5747
    %v5870 = vpack.c.b16 %v5752, %v5750
    %v5871 = vpack.c.b16 %v5753, %v5751
    %v5872 = vpack.c.b16 %v5756, %v5754
    %v5873 = vpack.c.b16 %v5757, %v5755
    %v5874 = vpack.c.b16 %v5760, %v5758
    %v5875 = vpack.c.b16 %v5761, %v5759
    %v5876 = vpack.c.b16 %v5764, %v5762
    %v5877 = vpack.c.b16 %v5765, %v5763
    %5990 = vmatpush.bf16.msra.mxu0 %v5780
    %5991 = vmatpush.bf16.msra.mxu0 %v5778
    %5992 = vmatpush.bf16.msra.mxu0 %v5776
    %5993 = vmatpush.bf16.msra.mxu0 %v5774
    %5994 = vmatpush.bf16.msra.mxu0 %v5772
    %5995 = vmatpush.bf16.msra.mxu0 %v5770
    %5996 = vmatpush.bf16.msra.mxu0 %v5768
    %5997 = vmatpush.bf16.msra.mxu0 %v5766
    %5998 = vmatmul.bf16.gmra.mxu0 %v5305
    %v5999 = vpop.f32.mrf.mxu0
    %v6000 = vadd.f32 %v5426, %v5999
    %v6001 = vpop.f32.mrf.mxu0
    %v6002 = vadd.f32 %v5426, %v6001
    %6003 = vdwg.mxu0
    %6004 = vmatpush.bf16.msra.mxu0 %v5796
    %6005 = vmatpush.bf16.msra.mxu0 %v5794
    %6006 = vmatpush.bf16.msra.mxu0 %v5792
    %6007 = vmatpush.bf16.msra.mxu0 %v5790
    %6008 = vmatpush.bf16.msra.mxu0 %v5788
    %6009 = vmatpush.bf16.msra.mxu0 %v5786
    %6010 = vmatpush.bf16.msra.mxu0 %v5784
    %6011 = vmatpush.bf16.msra.mxu0 %v5782
    %6012 = vmatmul.bf16.gmra.mxu0 %v5306
    %v6013 = vpop.f32.mrf.mxu0
    %v6014 = vadd.f32 %v6000, %v6013
    %v6015 = vpop.f32.mrf.mxu0
    %v6016 = vadd.f32 %v6002, %v6015
    %6017 = vdwg.mxu0
    %6018 = vmatpush.bf16.msra.mxu0 %v5812
    %6019 = vmatpush.bf16.msra.mxu0 %v5810
    %6020 = vmatpush.bf16.msra.mxu0 %v5808
    %6021 = vmatpush.bf16.msra.mxu0 %v5806
    %6022 = vmatpush.bf16.msra.mxu0 %v5804
    %6023 = vmatpush.bf16.msra.mxu0 %v5802
    %6024 = vmatpush.bf16.msra.mxu0 %v5800
    %6025 = vmatpush.bf16.msra.mxu0 %v5798
    %6026 = vmatmul.bf16.gmra.mxu0 %v5307
    %v6027 = vpop.f32.mrf.mxu0
    %v6028 = vadd.f32 %v6014, %v6027
    %v6029 = vpop.f32.mrf.mxu0
    %v6030 = vadd.f32 %v6016, %v6029
    %6031 = vdwg.mxu0
    %6032 = vmatpush.bf16.msra.mxu0 %v5828
    %6033 = vmatpush.bf16.msra.mxu0 %v5826
    %6034 = vmatpush.bf16.msra.mxu0 %v5824
    %6035 = vmatpush.bf16.msra.mxu0 %v5822
    %6036 = vmatpush.bf16.msra.mxu0 %v5820
    %6037 = vmatpush.bf16.msra.mxu0 %v5818
    %6038 = vmatpush.bf16.msra.mxu0 %v5816
    %6039 = vmatpush.bf16.msra.mxu0 %v5814
    %6040 = vmatmul.bf16.gmra.mxu0 %v5308
    %v6041 = vpop.f32.mrf.mxu0
    %v6042 = vadd.f32 %v6028, %v6041
    %v6043 = vpop.f32.mrf.mxu0
    %v6044 = vadd.f32 %v6030, %v6043
    %6045 = vdwg.mxu0
    %6046 = vmatpush.bf16.msra.mxu0 %v5844
    %6047 = vmatpush.bf16.msra.mxu0 %v5842
    %6048 = vmatpush.bf16.msra.mxu0 %v5840
    %6049 = vmatpush.bf16.msra.mxu0 %v5838
    %6050 = vmatpush.bf16.msra.mxu0 %v5836
    %6051 = vmatpush.bf16.msra.mxu0 %v5834
    %6052 = vmatpush.bf16.msra.mxu0 %v5832
    %6053 = vmatpush.bf16.msra.mxu0 %v5830
    %6054 = vmatmul.bf16.gmra.mxu0 %v5309
    %v6055 = vpop.f32.mrf.mxu0
    %v6056 = vadd.f32 %v6042, %v6055
    %v6057 = vpop.f32.mrf.mxu0
    %v6058 = vadd.f32 %v6044, %v6057
    %6059 = vdwg.mxu0
    %6060 = vmatpush.bf16.msra.mxu0 %v5860
    %6061 = vmatpush.bf16.msra.mxu0 %v5858
    %6062 = vmatpush.bf16.msra.mxu0 %v5856
    %6063 = vmatpush.bf16.msra.mxu0 %v5854
    %6064 = vmatpush.bf16.msra.mxu0 %v5852
    %6065 = vmatpush.bf16.msra.mxu0 %v5850
    %6066 = vmatpush.bf16.msra.mxu0 %v5848
    %6067 = vmatpush.bf16.msra.mxu0 %v5846
    %6068 = vmatmul.bf16.gmra.mxu0 %v5310
    %v6069 = vpop.f32.mrf.mxu0
    %v6070 = vadd.f32 %v6056, %v6069
    %v6071 = vpop.f32.mrf.mxu0
    %v6072 = vadd.f32 %v6058, %v6071
    %6073 = vdwg.mxu0
    %6074 = vmatpush.bf16.msra.mxu0 %v5876
    %6075 = vmatpush.bf16.msra.mxu0 %v5874
    %6076 = vmatpush.bf16.msra.mxu0 %v5872
    %6077 = vmatpush.bf16.msra.mxu0 %v5870
    %6078 = vmatpush.bf16.msra.mxu0 %v5868
    %6079 = vmatpush.bf16.msra.mxu0 %v5866
    %6080 = vmatpush.bf16.msra.mxu0 %v5864
    %6081 = vmatpush.bf16.msra.mxu0 %v5862
    %6082 = vmatmul.bf16.gmra.mxu0 %v5311
    %v6083 = vpop.f32.mrf.mxu0
    %v6084 = vadd.f32 %v6070, %v6083
    %v6085 = vpop.f32.mrf.mxu0
    %v6086 = vadd.f32 %v6072, %v6085
    %6087 = vdwg.mxu0
    %6088 = vmatpush.bf16.msra.mxu0 %v5781
    %6089 = vmatpush.bf16.msra.mxu0 %v5779
    %6090 = vmatpush.bf16.msra.mxu0 %v5777
    %6091 = vmatpush.bf16.msra.mxu0 %v5775
    %6092 = vmatpush.bf16.msra.mxu0 %v5773
    %6093 = vmatpush.bf16.msra.mxu0 %v5771
    %6094 = vmatpush.bf16.msra.mxu0 %v5769
    %6095 = vmatpush.bf16.msra.mxu0 %v5767
    %6096 = vmatmul.bf16.gmra.mxu0 %v5305
    %v6097 = vpop.f32.mrf.mxu0
    %v6098 = vadd.f32 %v5427, %v6097
    %v6099 = vpop.f32.mrf.mxu0
    %v6100 = vadd.f32 %v5427, %v6099
    %6101 = vdwg.mxu0
    %6102 = vmatpush.bf16.msra.mxu0 %v5797
    %6103 = vmatpush.bf16.msra.mxu0 %v5795
    %6104 = vmatpush.bf16.msra.mxu0 %v5793
    %6105 = vmatpush.bf16.msra.mxu0 %v5791
    %6106 = vmatpush.bf16.msra.mxu0 %v5789
    %6107 = vmatpush.bf16.msra.mxu0 %v5787
    %6108 = vmatpush.bf16.msra.mxu0 %v5785
    %6109 = vmatpush.bf16.msra.mxu0 %v5783
    %6110 = vmatmul.bf16.gmra.mxu0 %v5306
    %v6111 = vpop.f32.mrf.mxu0
    %v6112 = vadd.f32 %v6098, %v6111
    %v6113 = vpop.f32.mrf.mxu0
    %v6114 = vadd.f32 %v6100, %v6113
    %6115 = vdwg.mxu0
    %6116 = vmatpush.bf16.msra.mxu0 %v5813
    %6117 = vmatpush.bf16.msra.mxu0 %v5811
    %6118 = vmatpush.bf16.msra.mxu0 %v5809
    %6119 = vmatpush.bf16.msra.mxu0 %v5807
    %6120 = vmatpush.bf16.msra.mxu0 %v5805
    %6121 = vmatpush.bf16.msra.mxu0 %v5803
    %6122 = vmatpush.bf16.msra.mxu0 %v5801
    %6123 = vmatpush.bf16.msra.mxu0 %v5799
    %6124 = vmatmul.bf16.gmra.mxu0 %v5307
    %v6125 = vpop.f32.mrf.mxu0
    %v6126 = vadd.f32 %v6112, %v6125
    %v6127 = vpop.f32.mrf.mxu0
    %v6128 = vadd.f32 %v6114, %v6127
    %6129 = vdwg.mxu0
    %6130 = vmatpush.bf16.msra.mxu0 %v5829
    %6131 = vmatpush.bf16.msra.mxu0 %v5827
    %6132 = vmatpush.bf16.msra.mxu0 %v5825
    %6133 = vmatpush.bf16.msra.mxu0 %v5823
    %6134 = vmatpush.bf16.msra.mxu0 %v5821
    %6135 = vmatpush.bf16.msra.mxu0 %v5819
    %6136 = vmatpush.bf16.msra.mxu0 %v5817
    %6137 = vmatpush.bf16.msra.mxu0 %v5815
    %6138 = vmatmul.bf16.gmra.mxu0 %v5308
    %v6139 = vpop.f32.mrf.mxu0
    %v6140 = vadd.f32 %v6126, %v6139
    %v6141 = vpop.f32.mrf.mxu0
    %v6142 = vadd.f32 %v6128, %v6141
    %6143 = vdwg.mxu0
    %6144 = vmatpush.bf16.msra.mxu0 %v5845
    %6145 = vmatpush.bf16.msra.mxu0 %v5843
    %6146 = vmatpush.bf16.msra.mxu0 %v5841
    %6147 = vmatpush.bf16.msra.mxu0 %v5839
    %6148 = vmatpush.bf16.msra.mxu0 %v5837
    %6149 = vmatpush.bf16.msra.mxu0 %v5835
    %6150 = vmatpush.bf16.msra.mxu0 %v5833
    %6151 = vmatpush.bf16.msra.mxu0 %v5831
    %6152 = vmatmul.bf16.gmra.mxu0 %v5309
    %v6153 = vpop.f32.mrf.mxu0
    %v6154 = vadd.f32 %v6140, %v6153
    %v6155 = vpop.f32.mrf.mxu0
    %v6156 = vadd.f32 %v6142, %v6155
    %6157 = vdwg.mxu0
    %6158 = vmatpush.bf16.msra.mxu0 %v5861
    %6159 = vmatpush.bf16.msra.mxu0 %v5859
    %6160 = vmatpush.bf16.msra.mxu0 %v5857
    %6161 = vmatpush.bf16.msra.mxu0 %v5855
    %6162 = vmatpush.bf16.msra.mxu0 %v5853
    %6163 = vmatpush.bf16.msra.mxu0 %v5851
    %6164 = vmatpush.bf16.msra.mxu0 %v5849
    %6165 = vmatpush.bf16.msra.mxu0 %v5847
    %6166 = vmatmul.bf16.gmra.mxu0 %v5310
    %v6167 = vpop.f32.mrf.mxu0
    %v6168 = vadd.f32 %v6154, %v6167
    %v6169 = vpop.f32.mrf.mxu0
    %v6170 = vadd.f32 %v6156, %v6169
    %6171 = vdwg.mxu0
    %6172 = vmatpush.bf16.msra.mxu0 %v5877
    %6173 = vmatpush.bf16.msra.mxu0 %v5875
    %6174 = vmatpush.bf16.msra.mxu0 %v5873
    %6175 = vmatpush.bf16.msra.mxu0 %v5871
    %6176 = vmatpush.bf16.msra.mxu0 %v5869
    %6177 = vmatpush.bf16.msra.mxu0 %v5867
    %6178 = vmatpush.bf16.msra.mxu0 %v5865
    %6179 = vmatpush.bf16.msra.mxu0 %v5863
    %6180 = vmatmul.bf16.gmra.mxu0 %v5311
    %v6181 = vpop.f32.mrf.mxu0
    %v6182 = vadd.f32 %v6168, %v6181
    %v6183 = vpop.f32.mrf.mxu0
    %v6184 = vadd.f32 %v6170, %v6183
    %6185 = vdwg.mxu0
    %v6186 = vmul.f32 %v6182, 0.5
    %v6187 = vmul.f32 %v6184, 0.5
    %v6188 = vmul.f32 %v6186, 1.442695
    %v6189 = vpow.pop %v6188
    %v6190 = vmul.f32 %v6187, 1.442695
    %v6191 = vpow.pop %v6190
    %v6192 = vld [vmem:[#allocation7] sm:$0xff]
    %v6193 = vld [vmem:[#allocation7 + $0x8] sm:$0xff]
    %v6194 = vmul.f32 %v6192, %v6189
    %v6195 = vmul.f32 %v6193, %v6191
    %v6196 = vadd.f32 %v6084, %v6194
    %v6197 = vadd.f32 %v6086, %v6195
    %v6198 = vpack.c.bf16 %v6197, %v6196
    %v6199 = vld [vmem:[#allocation16] sm:$0xff]
    %v6200 = vld [vmem:[#allocation16 + $0x8] sm:$0xff]
    %v6201 = vld [vmem:[#allocation16 + $0x10] sm:$0xff]
    %v6202 = vld [vmem:[#allocation16 + $0x18] sm:$0xf]
    %v6203 = vld [vmem:[#allocation16 + $0x1c] sm:$0xff]
    %v6204 = vld [vmem:[#allocation16 + $0x24] sm:$0xff]
    %v6205 = vld [vmem:[#allocation16 + $0x2c] sm:$0xff]
    %v6206 = vld [vmem:[#allocation16 + $0x34] sm:$0xf]
    %v6207 = vld [vmem:[#allocation16 + $0x38] sm:$0xff]
    %v6208 = vld [vmem:[#allocation16 + $0x40] sm:$0xff]
    %v6209 = vld [vmem:[#allocation16 + $0x48] sm:$0xff]
    %v6210 = vld [vmem:[#allocation16 + $0x50] sm:$0xf]
    %v6211 = vld [vmem:[#allocation16 + $0x54] sm:$0xff]
    %v6212 = vld [vmem:[#allocation16 + $0x5c] sm:$0xff]
    %v6213 = vld [vmem:[#allocation16 + $0x64] sm:$0xff]
    %v6214 = vld [vmem:[#allocation16 + $0x6c] sm:$0xf]
    %v6215 = vld [vmem:[#allocation16 + $0x70] sm:$0xff]
    %v6216 = vld [vmem:[#allocation16 + $0x78] sm:$0xff]
    %v6217 = vld [vmem:[#allocation16 + $0x80] sm:$0xff]
    %v6218 = vld [vmem:[#allocation16 + $0x88] sm:$0xf]
    %v6219 = vld [vmem:[#allocation16 + $0x8c] sm:$0xff]
    %v6220 = vld [vmem:[#allocation16 + $0x94] sm:$0xff]
    %v6221 = vld [vmem:[#allocation16 + $0x9c] sm:$0xff]
    %v6222 = vld [vmem:[#allocation16 + $0xa4] sm:$0xf]
    %v6223 = vld [vmem:[#allocation16 + $0xa8] sm:$0xff]
    %v6224 = vld [vmem:[#allocation16 + $0xb0] sm:$0xff]
    %v6225 = vld [vmem:[#allocation16 + $0xb8] sm:$0xff]
    %v6226 = vld [vmem:[#allocation16 + $0xc0] sm:$0xf]
    %v6227 = vld [vmem:[#allocation16 + $0xc4] sm:$0xff]
    %v6228 = vld [vmem:[#allocation16 + $0xcc] sm:$0xff]
    %v6229 = vld [vmem:[#allocation16 + $0xd4] sm:$0xff]
    %v6230 = vld [vmem:[#allocation16 + $0xdc] sm:$0xf]
    %v6231 = vld [vmem:[#allocation16 + $0xe0] sm:$0xff]
    %v6232 = vld [vmem:[#allocation16 + $0xe8] sm:$0xff]
    %v6233 = vld [vmem:[#allocation16 + $0xf0] sm:$0xff]
    %v6234 = vld [vmem:[#allocation16 + $0xf8] sm:$0xf]
    %v6235 = vld [vmem:[#allocation16 + $0xfc] sm:$0xff]
    %v6236 = vld [vmem:[#allocation16 + $0x104] sm:$0xff]
    %v6237 = vld [vmem:[#allocation16 + $0x10c] sm:$0xff]
    %v6238 = vld [vmem:[#allocation16 + $0x114] sm:$0xf]
    %v6239 = vld [vmem:[#allocation16 + $0x118] sm:$0xff]
    %v6240 = vld [vmem:[#allocation16 + $0x120] sm:$0xff]
    %v6241 = vld [vmem:[#allocation16 + $0x128] sm:$0xff]
    %v6242 = vld [vmem:[#allocation16 + $0x130] sm:$0xf]
    %v6243 = vld [vmem:[#allocation16 + $0x134] sm:$0xff]
    %v6244 = vld [vmem:[#allocation16 + $0x13c] sm:$0xff]
    %v6245 = vld [vmem:[#allocation16 + $0x144] sm:$0xff]
    %v6246 = vld [vmem:[#allocation16 + $0x14c] sm:$0xf]
    %v6247 = vld [vmem:[#allocation16 + $0x150] sm:$0xff]
    %v6248 = vld [vmem:[#allocation16 + $0x158] sm:$0xff]
    %v6249 = vld [vmem:[#allocation16 + $0x160] sm:$0xff]
    %v6250 = vld [vmem:[#allocation16 + $0x168] sm:$0xf]
    %v6251 = vld [vmem:[#allocation16 + $0x16c] sm:$0xff]
    %v6252 = vld [vmem:[#allocation16 + $0x174] sm:$0xff]
    %v6253 = vld [vmem:[#allocation16 + $0x17c] sm:$0xff]
    %v6254 = vld [vmem:[#allocation16 + $0x184] sm:$0xf]
    %v6255 = vld [vmem:[#allocation16 + $0x188] sm:$0xff]
    %v6256 = vld [vmem:[#allocation16 + $0x190] sm:$0xff]
    %v6257 = vld [vmem:[#allocation16 + $0x198] sm:$0xff]
    %v6258 = vld [vmem:[#allocation16 + $0x1a0] sm:$0xf]
    %v6259 = vld [vmem:[#allocation16 + $0x1a4] sm:$0xff]
    %v6260 = vld [vmem:[#allocation16 + $0x1ac] sm:$0xff]
    %v6261 = vld [vmem:[#allocation16 + $0x1b4] sm:$0xff]
    %v6262 = vld [vmem:[#allocation16 + $0x1bc] sm:$0xf]
    %v6263 = vld [vmem:[#allocation17] sm:$0xff]
    %v6264 = vld [vmem:[#allocation17 + $0x8] sm:$0xff]
    %v6265 = vld [vmem:[#allocation17 + $0x10] sm:$0xff]
    %v6266 = vld [vmem:[#allocation17 + $0x18] sm:$0xf]
    %v6267 = vld [vmem:[#allocation17 + $0x1c] sm:$0xff]
    %v6268 = vld [vmem:[#allocation17 + $0x24] sm:$0xff]
    %v6269 = vld [vmem:[#allocation17 + $0x2c] sm:$0xff]
    %v6270 = vld [vmem:[#allocation17 + $0x34] sm:$0xf]
    %v6271 = vld [vmem:[#allocation17 + $0x38] sm:$0xff]
    %v6272 = vld [vmem:[#allocation17 + $0x40] sm:$0xff]
    %v6273 = vld [vmem:[#allocation17 + $0x48] sm:$0xff]
    %v6274 = vld [vmem:[#allocation17 + $0x50] sm:$0xf]
    %v6275 = vld [vmem:[#allocation17 + $0x54] sm:$0xff]
    %v6276 = vld [vmem:[#allocation17 + $0x5c] sm:$0xff]
    %v6277 = vld [vmem:[#allocation17 + $0x64] sm:$0xff]
    %v6278 = vld [vmem:[#allocation17 + $0x6c] sm:$0xf]
    %v6279 = vld [vmem:[#allocation17 + $0x70] sm:$0xff]
    %v6280 = vld [vmem:[#allocation17 + $0x78] sm:$0xff]
    %v6281 = vld [vmem:[#allocation17 + $0x80] sm:$0xff]
    %v6282 = vld [vmem:[#allocation17 + $0x88] sm:$0xf]
    %v6283 = vld [vmem:[#allocation17 + $0x8c] sm:$0xff]
    %v6284 = vld [vmem:[#allocation17 + $0x94] sm:$0xff]
    %v6285 = vld [vmem:[#allocation17 + $0x9c] sm:$0xff]
    %v6286 = vld [vmem:[#allocation17 + $0xa4] sm:$0xf]
    %v6287 = vld [vmem:[#allocation17 + $0xa8] sm:$0xff]
    %v6288 = vld [vmem:[#allocation17 + $0xb0] sm:$0xff]
    %v6289 = vld [vmem:[#allocation17 + $0xb8] sm:$0xff]
    %v6290 = vld [vmem:[#allocation17 + $0xc0] sm:$0xf]
    %v6291 = vld [vmem:[#allocation17 + $0xc4] sm:$0xff]
    %v6292 = vld [vmem:[#allocation17 + $0xcc] sm:$0xff]
    %v6293 = vld [vmem:[#allocation17 + $0xd4] sm:$0xff]
    %v6294 = vld [vmem:[#allocation17 + $0xdc] sm:$0xf]
    %v6295 = vld [vmem:[#allocation17 + $0xe0] sm:$0xff]
    %v6296 = vld [vmem:[#allocation17 + $0xe8] sm:$0xff]
    %v6297 = vld [vmem:[#allocation17 + $0xf0] sm:$0xff]
    %v6298 = vld [vmem:[#allocation17 + $0xf8] sm:$0xf]
    %v6299 = vld [vmem:[#allocation17 + $0xfc] sm:$0xff]
    %v6300 = vld [vmem:[#allocation17 + $0x104] sm:$0xff]
    %v6301 = vld [vmem:[#allocation17 + $0x10c] sm:$0xff]
    %v6302 = vld [vmem:[#allocation17 + $0x114] sm:$0xf]
    %v6303 = vld [vmem:[#allocation17 + $0x118] sm:$0xff]
    %v6304 = vld [vmem:[#allocation17 + $0x120] sm:$0xff]
    %v6305 = vld [vmem:[#allocation17 + $0x128] sm:$0xff]
    %v6306 = vld [vmem:[#allocation17 + $0x130] sm:$0xf]
    %v6307 = vld [vmem:[#allocation17 + $0x134] sm:$0xff]
    %v6308 = vld [vmem:[#allocation17 + $0x13c] sm:$0xff]
    %v6309 = vld [vmem:[#allocation17 + $0x144] sm:$0xff]
    %v6310 = vld [vmem:[#allocation17 + $0x14c] sm:$0xf]
    %v6311 = vld [vmem:[#allocation17 + $0x150] sm:$0xff]
    %v6312 = vld [vmem:[#allocation17 + $0x158] sm:$0xff]
    %v6313 = vld [vmem:[#allocation17 + $0x160] sm:$0xff]
    %v6314 = vld [vmem:[#allocation17 + $0x168] sm:$0xf]
    %v6315 = vld [vmem:[#allocation17 + $0x16c] sm:$0xff]
    %v6316 = vld [vmem:[#allocation17 + $0x174] sm:$0xff]
    %v6317 = vld [vmem:[#allocation17 + $0x17c] sm:$0xff]
    %v6318 = vld [vmem:[#allocation17 + $0x184] sm:$0xf]
    %v6319 = vld [vmem:[#allocation17 + $0x188] sm:$0xff]
    %v6320 = vld [vmem:[#allocation17 + $0x190] sm:$0xff]
    %v6321 = vld [vmem:[#allocation17 + $0x198] sm:$0xff]
    %v6322 = vld [vmem:[#allocation17 + $0x1a0] sm:$0xf]
    %v6323 = vld [vmem:[#allocation17 + $0x1a4] sm:$0xff]
    %v6324 = vld [vmem:[#allocation17 + $0x1ac] sm:$0xff]
    %v6325 = vld [vmem:[#allocation17 + $0x1b4] sm:$0xff]
    %v6326 = vld [vmem:[#allocation17 + $0x1bc] sm:$0xf]
    %v6327 = vld [vmem:[#allocation17 + $0x1c0] sm:$0xff]
    %v6328 = vld [vmem:[#allocation17 + $0x1c8] sm:$0xff]
    %v6329 = vld [vmem:[#allocation17 + $0x1d0] sm:$0xff]
    %v6330 = vld [vmem:[#allocation17 + $0x1d8] sm:$0xf]
    %v6331 = vld [vmem:[#allocation17 + $0x1dc] sm:$0xff]
    %v6332 = vld [vmem:[#allocation17 + $0x1e4] sm:$0xff]
    %v6333 = vld [vmem:[#allocation17 + $0x1ec] sm:$0xff]
    %v6334 = vld [vmem:[#allocation17 + $0x1f4] sm:$0xf]
    %v6335 = vld [vmem:[#allocation17 + $0x1f8] sm:$0xff]
    %v6336 = vld [vmem:[#allocation17 + $0x200] sm:$0xff]
    %v6337 = vld [vmem:[#allocation17 + $0x208] sm:$0xff]
    %v6338 = vld [vmem:[#allocation17 + $0x210] sm:$0xf]
    %v6339 = vld [vmem:[#allocation17 + $0x214] sm:$0xff]
    %v6340 = vld [vmem:[#allocation17 + $0x21c] sm:$0xff]
    %v6341 = vld [vmem:[#allocation17 + $0x224] sm:$0xff]
    %v6342 = vld [vmem:[#allocation17 + $0x22c] sm:$0xf]
    %v6343 = vld [vmem:[#allocation17 + $0x230] sm:$0xff]
    %v6344 = vld [vmem:[#allocation17 + $0x238] sm:$0xff]
    %v6345 = vld [vmem:[#allocation17 + $0x240] sm:$0xff]
    %v6346 = vld [vmem:[#allocation17 + $0x248] sm:$0xf]
    %v6347 = vld [vmem:[#allocation17 + $0x24c] sm:$0xff]
    %v6348 = vld [vmem:[#allocation17 + $0x254] sm:$0xff]
    %v6349 = vld [vmem:[#allocation17 + $0x25c] sm:$0xff]
    %v6350 = vld [vmem:[#allocation17 + $0x264] sm:$0xf]
    %v6351 = vld [vmem:[#allocation17 + $0x268] sm:$0xff]
    %v6352 = vld [vmem:[#allocation17 + $0x270] sm:$0xff]
    %v6353 = vld [vmem:[#allocation17 + $0x278] sm:$0xff]
    %v6354 = vld [vmem:[#allocation17 + $0x280] sm:$0xf]
    %v6355 = vld [vmem:[#allocation17 + $0x284] sm:$0xff]
    %v6356 = vld [vmem:[#allocation17 + $0x28c] sm:$0xff]
    %v6357 = vld [vmem:[#allocation17 + $0x294] sm:$0xff]
    %v6358 = vld [vmem:[#allocation17 + $0x29c] sm:$0xf]
    %v6359 = vld [vmem:[#allocation17 + $0x2a0] sm:$0xff]
    %v6360 = vld [vmem:[#allocation17 + $0x2a8] sm:$0xff]
    %v6361 = vld [vmem:[#allocation17 + $0x2b0] sm:$0xff]
    %v6362 = vld [vmem:[#allocation17 + $0x2b8] sm:$0xf]
    %v6363 = vld [vmem:[#allocation17 + $0x2bc] sm:$0xff]
    %v6364 = vld [vmem:[#allocation17 + $0x2c4] sm:$0xff]
    %v6365 = vld [vmem:[#allocation17 + $0x2cc] sm:$0xff]
    %v6366 = vld [vmem:[#allocation17 + $0x2d4] sm:$0xf]
    %v6367 = vld [vmem:[#allocation17 + $0x2d8] sm:$0xff]
    %v6368 = vld [vmem:[#allocation17 + $0x2e0] sm:$0xff]
    %v6369 = vld [vmem:[#allocation17 + $0x2e8] sm:$0xff]
    %v6370 = vld [vmem:[#allocation17 + $0x2f0] sm:$0xf]
    %v6371 = vld [vmem:[#allocation17 + $0x2f4] sm:$0xff]
    %v6372 = vld [vmem:[#allocation17 + $0x2fc] sm:$0xff]
    %v6373 = vld [vmem:[#allocation17 + $0x304] sm:$0xff]
    %v6374 = vld [vmem:[#allocation17 + $0x30c] sm:$0xf]
    %v6375 = vld [vmem:[#allocation17 + $0x310] sm:$0xff]
    %v6376 = vld [vmem:[#allocation17 + $0x318] sm:$0xff]
    %v6377 = vld [vmem:[#allocation17 + $0x320] sm:$0xff]
    %v6378 = vld [vmem:[#allocation17 + $0x328] sm:$0xf]
    %v6379 = vld [vmem:[#allocation17 + $0x32c] sm:$0xff]
    %v6380 = vld [vmem:[#allocation17 + $0x334] sm:$0xff]
    %v6381 = vld [vmem:[#allocation17 + $0x33c] sm:$0xff]
    %v6382 = vld [vmem:[#allocation17 + $0x344] sm:$0xf]
    %v6383 = vld [vmem:[#allocation17 + $0x348] sm:$0xff]
    %v6384 = vld [vmem:[#allocation17 + $0x350] sm:$0xff]
    %v6385 = vld [vmem:[#allocation17 + $0x358] sm:$0xff]
    %v6386 = vld [vmem:[#allocation17 + $0x360] sm:$0xf]
    %v6387 = vld [vmem:[#allocation17 + $0x364] sm:$0xff]
    %v6388 = vld [vmem:[#allocation17 + $0x36c] sm:$0xff]
    %v6389 = vld [vmem:[#allocation17 + $0x374] sm:$0xff]
    %v6390 = vld [vmem:[#allocation17 + $0x37c] sm:$0xf]
    %v6391 = vld [vmem:[#allocation17 + $0x380] sm:$0xff]
    %v6392 = vld [vmem:[#allocation17 + $0x388] sm:$0xff]
    %v6393 = vld [vmem:[#allocation17 + $0x390] sm:$0xff]
    %v6394 = vld [vmem:[#allocation17 + $0x398] sm:$0xf]
    %v6395 = vld [vmem:[#allocation17 + $0x39c] sm:$0xff]
    %v6396 = vld [vmem:[#allocation17 + $0x3a4] sm:$0xff]
    %v6397 = vld [vmem:[#allocation17 + $0x3ac] sm:$0xff]
    %v6398 = vld [vmem:[#allocation17 + $0x3b4] sm:$0xf]
    %v6399 = vld [vmem:[#allocation17 + $0x3b8] sm:$0xff]
    %v6400 = vld [vmem:[#allocation17 + $0x3c0] sm:$0xff]
    %v6401 = vld [vmem:[#allocation17 + $0x3c8] sm:$0xff]
    %v6402 = vld [vmem:[#allocation17 + $0x3d0] sm:$0xf]
    %v6403 = vld [vmem:[#allocation17 + $0x3d4] sm:$0xff]
    %v6404 = vld [vmem:[#allocation17 + $0x3dc] sm:$0xff]
    %v6405 = vld [vmem:[#allocation17 + $0x3e4] sm:$0xff]
    %v6406 = vld [vmem:[#allocation17 + $0x3ec] sm:$0xf]
    %v6407 = vld [vmem:[#allocation17 + $0x3f0] sm:$0xff]
    %v6408 = vld [vmem:[#allocation17 + $0x3f8] sm:$0xff]
    %v6409 = vld [vmem:[#allocation17 + $0x400] sm:$0xff]
    %v6410 = vld [vmem:[#allocation17 + $0x408] sm:$0xf]
    %v6411 = vld [vmem:[#allocation17 + $0x40c] sm:$0xff]
    %v6412 = vld [vmem:[#allocation17 + $0x414] sm:$0xff]
    %v6413 = vld [vmem:[#allocation17 + $0x41c] sm:$0xff]
    %v6414 = vld [vmem:[#allocation17 + $0x424] sm:$0xf]
    %v6415 = vld [vmem:[#allocation17 + $0x428] sm:$0xff]
    %v6416 = vld [vmem:[#allocation17 + $0x430] sm:$0xff]
    %v6417 = vld [vmem:[#allocation17 + $0x438] sm:$0xff]
    %v6418 = vld [vmem:[#allocation17 + $0x440] sm:$0xf]
    %v6419 = vld [vmem:[#allocation17 + $0x444] sm:$0xff]
    %v6420 = vld [vmem:[#allocation17 + $0x44c] sm:$0xff]
    %v6421 = vld [vmem:[#allocation17 + $0x454] sm:$0xff]
    %v6422 = vld [vmem:[#allocation17 + $0x45c] sm:$0xf]
    %v6423 = vld [vmem:[#allocation17 + $0x460] sm:$0xff]
    %v6424 = vld [vmem:[#allocation17 + $0x468] sm:$0xff]
    %v6425 = vld [vmem:[#allocation17 + $0x470] sm:$0xff]
    %v6426 = vld [vmem:[#allocation17 + $0x478] sm:$0xf]
    %v6427 = vld [vmem:[#allocation17 + $0x47c] sm:$0xff]
    %v6428 = vld [vmem:[#allocation17 + $0x484] sm:$0xff]
    %v6429 = vld [vmem:[#allocation17 + $0x48c] sm:$0xff]
    %v6430 = vld [vmem:[#allocation17 + $0x494] sm:$0xf]
    %v6431 = vld [vmem:[#allocation17 + $0x498] sm:$0xff]
    %v6432 = vld [vmem:[#allocation17 + $0x4a0] sm:$0xff]
    %v6433 = vld [vmem:[#allocation17 + $0x4a8] sm:$0xff]
    %v6434 = vld [vmem:[#allocation17 + $0x4b0] sm:$0xf]
    %v6435 = vld [vmem:[#allocation17 + $0x4b4] sm:$0xff]
    %v6436 = vld [vmem:[#allocation17 + $0x4bc] sm:$0xff]
    %v6437 = vld [vmem:[#allocation17 + $0x4c4] sm:$0xff]
    %v6438 = vld [vmem:[#allocation17 + $0x4cc] sm:$0xf]
    %v6439 = vld [vmem:[#allocation17 + $0x4d0] sm:$0xff]
    %v6440 = vld [vmem:[#allocation17 + $0x4d8] sm:$0xff]
    %v6441 = vld [vmem:[#allocation17 + $0x4e0] sm:$0xff]
    %v6442 = vld [vmem:[#allocation17 + $0x4e8] sm:$0xf]
    %v6443 = vld [vmem:[#allocation17 + $0x4ec] sm:$0xff]
    %v6444 = vld [vmem:[#allocation17 + $0x4f4] sm:$0xff]
    %v6445 = vld [vmem:[#allocation17 + $0x4fc] sm:$0xff]
    %v6446 = vld [vmem:[#allocation17 + $0x504] sm:$0xf]
    %v6447 = vld [vmem:[#allocation17 + $0x508] sm:$0xff]
    %v6448 = vld [vmem:[#allocation17 + $0x510] sm:$0xff]
    %v6449 = vld [vmem:[#allocation17 + $0x518] sm:$0xff]
    %v6450 = vld [vmem:[#allocation17 + $0x520] sm:$0xf]
    %v6451 = vld [vmem:[#allocation17 + $0x524] sm:$0xff]
    %v6452 = vld [vmem:[#allocation17 + $0x52c] sm:$0xff]
    %v6453 = vld [vmem:[#allocation17 + $0x534] sm:$0xff]
    %v6454 = vld [vmem:[#allocation17 + $0x53c] sm:$0xf]
    %v6455 = vld [vmem:[#allocation17 + $0x540] sm:$0xff]
    %v6456 = vld [vmem:[#allocation17 + $0x548] sm:$0xff]
    %v6457 = vld [vmem:[#allocation17 + $0x550] sm:$0xff]
    %v6458 = vld [vmem:[#allocation17 + $0x558] sm:$0xf]
    %v6459 = vld [vmem:[#allocation17 + $0x55c] sm:$0xff]
    %v6460 = vld [vmem:[#allocation17 + $0x564] sm:$0xff]
    %v6461 = vld [vmem:[#allocation17 + $0x56c] sm:$0xff]
    %v6462 = vld [vmem:[#allocation17 + $0x574] sm:$0xf]
    %v6463 = vld [vmem:[#allocation17 + $0x578] sm:$0xff]
    %v6464 = vld [vmem:[#allocation17 + $0x580] sm:$0xff]
    %v6465 = vld [vmem:[#allocation17 + $0x588] sm:$0xff]
    %v6466 = vld [vmem:[#allocation17 + $0x590] sm:$0xf]
    %v6467 = vld [vmem:[#allocation17 + $0x594] sm:$0xff]
    %v6468 = vld [vmem:[#allocation17 + $0x59c] sm:$0xff]
    %v6469 = vld [vmem:[#allocation17 + $0x5a4] sm:$0xff]
    %v6470 = vld [vmem:[#allocation17 + $0x5ac] sm:$0xf]
    %v6471 = vld [vmem:[#allocation17 + $0x5b0] sm:$0xff]
    %v6472 = vld [vmem:[#allocation17 + $0x5b8] sm:$0xff]
    %v6473 = vld [vmem:[#allocation17 + $0x5c0] sm:$0xff]
    %v6474 = vld [vmem:[#allocation17 + $0x5c8] sm:$0xf]
    %v6475 = vld [vmem:[#allocation17 + $0x5cc] sm:$0xff]
    %v6476 = vld [vmem:[#allocation17 + $0x5d4] sm:$0xff]
    %v6477 = vld [vmem:[#allocation17 + $0x5dc] sm:$0xff]
    %v6478 = vld [vmem:[#allocation17 + $0x5e4] sm:$0xf]
    %v6479 = vld [vmem:[#allocation17 + $0x5e8] sm:$0xff]
    %v6480 = vld [vmem:[#allocation17 + $0x5f0] sm:$0xff]
    %v6481 = vld [vmem:[#allocation17 + $0x5f8] sm:$0xff]
    %v6482 = vld [vmem:[#allocation17 + $0x600] sm:$0xf]
    %v6483 = vld [vmem:[#allocation17 + $0x604] sm:$0xff]
    %v6484 = vld [vmem:[#allocation17 + $0x60c] sm:$0xff]
    %v6485 = vld [vmem:[#allocation17 + $0x614] sm:$0xff]
    %v6486 = vld [vmem:[#allocation17 + $0x61c] sm:$0xf]
    %v6487 = vld [vmem:[#allocation17 + $0x620] sm:$0xff]
    %v6488 = vld [vmem:[#allocation17 + $0x628] sm:$0xff]
    %v6489 = vld [vmem:[#allocation17 + $0x630] sm:$0xff]
    %v6490 = vld [vmem:[#allocation17 + $0x638] sm:$0xf]
    %v6491 = vld [vmem:[#allocation17 + $0x63c] sm:$0xff]
    %v6492 = vld [vmem:[#allocation17 + $0x644] sm:$0xff]
    %v6493 = vld [vmem:[#allocation17 + $0x64c] sm:$0xff]
    %v6494 = vld [vmem:[#allocation17 + $0x654] sm:$0xf]
    %v6495 = vld [vmem:[#allocation17 + $0x658] sm:$0xff]
    %v6496 = vld [vmem:[#allocation17 + $0x660] sm:$0xff]
    %v6497 = vld [vmem:[#allocation17 + $0x668] sm:$0xff]
    %v6498 = vld [vmem:[#allocation17 + $0x670] sm:$0xf]
    %v6499 = vld [vmem:[#allocation17 + $0x674] sm:$0xff]
    %v6500 = vld [vmem:[#allocation17 + $0x67c] sm:$0xff]
    %v6501 = vld [vmem:[#allocation17 + $0x684] sm:$0xff]
    %v6502 = vld [vmem:[#allocation17 + $0x68c] sm:$0xf]
    %v6503 = vld [vmem:[#allocation17 + $0x690] sm:$0xff]
    %v6504 = vld [vmem:[#allocation17 + $0x698] sm:$0xff]
    %v6505 = vld [vmem:[#allocation17 + $0x6a0] sm:$0xff]
    %v6506 = vld [vmem:[#allocation17 + $0x6a8] sm:$0xf]
    %v6507 = vld [vmem:[#allocation17 + $0x6ac] sm:$0xff]
    %v6508 = vld [vmem:[#allocation17 + $0x6b4] sm:$0xff]
    %v6509 = vld [vmem:[#allocation17 + $0x6bc] sm:$0xff]
    %v6510 = vld [vmem:[#allocation17 + $0x6c4] sm:$0xf]
    %v6511 = vld [vmem:[#allocation17 + $0x6c8] sm:$0xff]
    %v6512 = vld [vmem:[#allocation17 + $0x6d0] sm:$0xff]
    %v6513 = vld [vmem:[#allocation17 + $0x6d8] sm:$0xff]
    %v6514 = vld [vmem:[#allocation17 + $0x6e0] sm:$0xf]
    %v6515 = vld [vmem:[#allocation17 + $0x6e4] sm:$0xff]
    %v6516 = vld [vmem:[#allocation17 + $0x6ec] sm:$0xff]
    %v6517 = vld [vmem:[#allocation17 + $0x6f4] sm:$0xff]
    %v6518 = vld [vmem:[#allocation17 + $0x6fc] sm:$0xf]
    %v6775 = vunpack.c.l.b16 %v6263
    %v6776 = vunpack.c.h.b16 %v6263
    %v6777 = vunpack.c.l.b16 %v6264
    %v6778 = vunpack.c.h.b16 %v6264
    %v6779 = vunpack.c.l.b16 %v6265
    %v6780 = vunpack.c.h.b16 %v6265
    %v6781 = vunpack.c.l.b16 %v6266
    %v6782 = vunpack.c.l.b16 %v6267
    %v6783 = vunpack.c.h.b16 %v6267
    %v6784 = vunpack.c.l.b16 %v6268
    %v6785 = vunpack.c.h.b16 %v6268
    %v6786 = vunpack.c.l.b16 %v6269
    %v6787 = vunpack.c.h.b16 %v6269
    %v6788 = vunpack.c.l.b16 %v6270
    %v6789 = vunpack.c.l.b16 %v6271
    %v6790 = vunpack.c.h.b16 %v6271
    %v6791 = vunpack.c.l.b16 %v6272
    %v6792 = vunpack.c.h.b16 %v6272
    %v6793 = vunpack.c.l.b16 %v6273
    %v6794 = vunpack.c.h.b16 %v6273
    %v6795 = vunpack.c.l.b16 %v6274
    %v6796 = vunpack.c.l.b16 %v6275
    %v6797 = vunpack.c.h.b16 %v6275
    %v6798 = vunpack.c.l.b16 %v6276
    %v6799 = vunpack.c.h.b16 %v6276
    %v6800 = vunpack.c.l.b16 %v6277
    %v6801 = vunpack.c.h.b16 %v6277
    %v6802 = vunpack.c.l.b16 %v6278
    %v6803 = vunpack.c.l.b16 %v6279
    %v6804 = vunpack.c.h.b16 %v6279
    %v6805 = vunpack.c.l.b16 %v6280
    %v6806 = vunpack.c.h.b16 %v6280
    %v6807 = vunpack.c.l.b16 %v6281
    %v6808 = vunpack.c.h.b16 %v6281
    %v6809 = vunpack.c.l.b16 %v6282
    %v6810 = vunpack.c.l.b16 %v6283
    %v6811 = vunpack.c.h.b16 %v6283
    %v6812 = vunpack.c.l.b16 %v6284
    %v6813 = vunpack.c.h.b16 %v6284
    %v6814 = vunpack.c.l.b16 %v6285
    %v6815 = vunpack.c.h.b16 %v6285
    %v6816 = vunpack.c.l.b16 %v6286
    %v6817 = vunpack.c.l.b16 %v6287
    %v6818 = vunpack.c.h.b16 %v6287
    %v6819 = vunpack.c.l.b16 %v6288
    %v6820 = vunpack.c.h.b16 %v6288
    %v6821 = vunpack.c.l.b16 %v6289
    %v6822 = vunpack.c.h.b16 %v6289
    %v6823 = vunpack.c.l.b16 %v6290
    %v6824 = vunpack.c.l.b16 %v6291
    %v6825 = vunpack.c.h.b16 %v6291
    %v6826 = vunpack.c.l.b16 %v6292
    %v6827 = vunpack.c.h.b16 %v6292
    %v6828 = vunpack.c.l.b16 %v6293
    %v6829 = vunpack.c.h.b16 %v6293
    %v6830 = vunpack.c.l.b16 %v6294
    %v6831 = vunpack.c.l.b16 %v6295
    %v6832 = vunpack.c.h.b16 %v6295
    %v6833 = vunpack.c.l.b16 %v6296
    %v6834 = vunpack.c.h.b16 %v6296
    %v6835 = vunpack.c.l.b16 %v6297
    %v6836 = vunpack.c.h.b16 %v6297
    %v6837 = vunpack.c.l.b16 %v6298
    %v6838 = vunpack.c.l.b16 %v6299
    %v6839 = vunpack.c.h.b16 %v6299
    %v6840 = vunpack.c.l.b16 %v6300
    %v6841 = vunpack.c.h.b16 %v6300
    %v6842 = vunpack.c.l.b16 %v6301
    %v6843 = vunpack.c.h.b16 %v6301
    %v6844 = vunpack.c.l.b16 %v6302
    %v6845 = vunpack.c.l.b16 %v6303
    %v6846 = vunpack.c.h.b16 %v6303
    %v6847 = vunpack.c.l.b16 %v6304
    %v6848 = vunpack.c.h.b16 %v6304
    %v6849 = vunpack.c.l.b16 %v6305
    %v6850 = vunpack.c.h.b16 %v6305
    %v6851 = vunpack.c.l.b16 %v6306
    %v6852 = vunpack.c.l.b16 %v6307
    %v6853 = vunpack.c.h.b16 %v6307
    %v6854 = vunpack.c.l.b16 %v6308
    %v6855 = vunpack.c.h.b16 %v6308
    %v6856 = vunpack.c.l.b16 %v6309
    %v6857 = vunpack.c.h.b16 %v6309
    %v6858 = vunpack.c.l.b16 %v6310
    %v6859 = vunpack.c.l.b16 %v6311
    %v6860 = vunpack.c.h.b16 %v6311
    %v6861 = vunpack.c.l.b16 %v6312
    %v6862 = vunpack.c.h.b16 %v6312
    %v6863 = vunpack.c.l.b16 %v6313
    %v6864 = vunpack.c.h.b16 %v6313
    %v6865 = vunpack.c.l.b16 %v6314
    %v6866 = vunpack.c.l.b16 %v6315
    %v6867 = vunpack.c.h.b16 %v6315
    %v6868 = vunpack.c.l.b16 %v6316
    %v6869 = vunpack.c.h.b16 %v6316
    %v6870 = vunpack.c.l.b16 %v6317
    %v6871 = vunpack.c.h.b16 %v6317
    %v6872 = vunpack.c.l.b16 %v6318
    %v6873 = vunpack.c.l.b16 %v6319
    %v6874 = vunpack.c.h.b16 %v6319
    %v6875 = vunpack.c.l.b16 %v6320
    %v6876 = vunpack.c.h.b16 %v6320
    %v6877 = vunpack.c.l.b16 %v6321
    %v6878 = vunpack.c.h.b16 %v6321
    %v6879 = vunpack.c.l.b16 %v6322
    %v6880 = vunpack.c.l.b16 %v6323
    %v6881 = vunpack.c.h.b16 %v6323
    %v6882 = vunpack.c.l.b16 %v6324
    %v6883 = vunpack.c.h.b16 %v6324
    %v6884 = vunpack.c.l.b16 %v6325
    %v6885 = vunpack.c.h.b16 %v6325
    %v6886 = vunpack.c.l.b16 %v6326
    %v6887 = vunpack.c.l.b16 %v6327
    %v6888 = vunpack.c.h.b16 %v6327
    %v6889 = vunpack.c.l.b16 %v6328
    %v6890 = vunpack.c.h.b16 %v6328
    %v6891 = vunpack.c.l.b16 %v6329
    %v6892 = vunpack.c.h.b16 %v6329
    %v6893 = vunpack.c.l.b16 %v6330
    %v6894 = vunpack.c.l.b16 %v6331
    %v6895 = vunpack.c.h.b16 %v6331
    %v6896 = vunpack.c.l.b16 %v6332
    %v6897 = vunpack.c.h.b16 %v6332
    %v6898 = vunpack.c.l.b16 %v6333
    %v6899 = vunpack.c.h.b16 %v6333
    %v6900 = vunpack.c.l.b16 %v6334
    %v6901 = vunpack.c.l.b16 %v6335
    %v6902 = vunpack.c.h.b16 %v6335
    %v6903 = vunpack.c.l.b16 %v6336
    %v6904 = vunpack.c.h.b16 %v6336
    %v6905 = vunpack.c.l.b16 %v6337
    %v6906 = vunpack.c.h.b16 %v6337
    %v6907 = vunpack.c.l.b16 %v6338
    %v6908 = vunpack.c.l.b16 %v6339
    %v6909 = vunpack.c.h.b16 %v6339
    %v6910 = vunpack.c.l.b16 %v6340
    %v6911 = vunpack.c.h.b16 %v6340
    %v6912 = vunpack.c.l.b16 %v6341
    %v6913 = vunpack.c.h.b16 %v6341
    %v6914 = vunpack.c.l.b16 %v6342
    %v6915 = vunpack.c.l.b16 %v6343
    %v6916 = vunpack.c.h.b16 %v6343
    %v6917 = vunpack.c.l.b16 %v6344
    %v6918 = vunpack.c.h.b16 %v6344
    %v6919 = vunpack.c.l.b16 %v6345
    %v6920 = vunpack.c.h.b16 %v6345
    %v6921 = vunpack.c.l.b16 %v6346
    %v6922 = vunpack.c.l.b16 %v6347
    %v6923 = vunpack.c.h.b16 %v6347
    %v6924 = vunpack.c.l.b16 %v6348
    %v6925 = vunpack.c.h.b16 %v6348
    %v6926 = vunpack.c.l.b16 %v6349
    %v6927 = vunpack.c.h.b16 %v6349
    %v6928 = vunpack.c.l.b16 %v6350
    %v6929 = vunpack.c.l.b16 %v6351
    %v6930 = vunpack.c.h.b16 %v6351
    %v6931 = vunpack.c.l.b16 %v6352
    %v6932 = vunpack.c.h.b16 %v6352
    %v6933 = vunpack.c.l.b16 %v6353
    %v6934 = vunpack.c.h.b16 %v6353
    %v6935 = vunpack.c.l.b16 %v6354
    %v6936 = vunpack.c.l.b16 %v6355
    %v6937 = vunpack.c.h.b16 %v6355
    %v6938 = vunpack.c.l.b16 %v6356
    %v6939 = vunpack.c.h.b16 %v6356
    %v6940 = vunpack.c.l.b16 %v6357
    %v6941 = vunpack.c.h.b16 %v6357
    %v6942 = vunpack.c.l.b16 %v6358
    %v6943 = vunpack.c.l.b16 %v6359
    %v6944 = vunpack.c.h.b16 %v6359
    %v6945 = vunpack.c.l.b16 %v6360
    %v6946 = vunpack.c.h.b16 %v6360
    %v6947 = vunpack.c.l.b16 %v6361
    %v6948 = vunpack.c.h.b16 %v6361
    %v6949 = vunpack.c.l.b16 %v6362
    %v6950 = vunpack.c.l.b16 %v6363
    %v6951 = vunpack.c.h.b16 %v6363
    %v6952 = vunpack.c.l.b16 %v6364
    %v6953 = vunpack.c.h.b16 %v6364
    %v6954 = vunpack.c.l.b16 %v6365
    %v6955 = vunpack.c.h.b16 %v6365
    %v6956 = vunpack.c.l.b16 %v6366
    %v6957 = vunpack.c.l.b16 %v6367
    %v6958 = vunpack.c.h.b16 %v6367
    %v6959 = vunpack.c.l.b16 %v6368
    %v6960 = vunpack.c.h.b16 %v6368
    %v6961 = vunpack.c.l.b16 %v6369
    %v6962 = vunpack.c.h.b16 %v6369
    %v6963 = vunpack.c.l.b16 %v6370
    %v6964 = vunpack.c.l.b16 %v6371
    %v6965 = vunpack.c.h.b16 %v6371
    %v6966 = vunpack.c.l.b16 %v6372
    %v6967 = vunpack.c.h.b16 %v6372
    %v6968 = vunpack.c.l.b16 %v6373
    %v6969 = vunpack.c.h.b16 %v6373
    %v6970 = vunpack.c.l.b16 %v6374
    %v6971 = vunpack.c.l.b16 %v6375
    %v6972 = vunpack.c.h.b16 %v6375
    %v6973 = vunpack.c.l.b16 %v6376
    %v6974 = vunpack.c.h.b16 %v6376
    %v6975 = vunpack.c.l.b16 %v6377
    %v6976 = vunpack.c.h.b16 %v6377
    %v6977 = vunpack.c.l.b16 %v6378
    %v6978 = vunpack.c.l.b16 %v6379
    %v6979 = vunpack.c.h.b16 %v6379
    %v6980 = vunpack.c.l.b16 %v6380
    %v6981 = vunpack.c.h.b16 %v6380
    %v6982 = vunpack.c.l.b16 %v6381
    %v6983 = vunpack.c.h.b16 %v6381
    %v6984 = vunpack.c.l.b16 %v6382
    %v6985 = vunpack.c.l.b16 %v6383
    %v6986 = vunpack.c.h.b16 %v6383
    %v6987 = vunpack.c.l.b16 %v6384
    %v6988 = vunpack.c.h.b16 %v6384
    %v6989 = vunpack.c.l.b16 %v6385
    %v6990 = vunpack.c.h.b16 %v6385
    %v6991 = vunpack.c.l.b16 %v6386
    %v6992 = vunpack.c.l.b16 %v6387
    %v6993 = vunpack.c.h.b16 %v6387
    %v6994 = vunpack.c.l.b16 %v6388
    %v6995 = vunpack.c.h.b16 %v6388
    %v6996 = vunpack.c.l.b16 %v6389
    %v6997 = vunpack.c.h.b16 %v6389
    %v6998 = vunpack.c.l.b16 %v6390
    %v6999 = vunpack.c.l.b16 %v6391
    %v7000 = vunpack.c.h.b16 %v6391
    %v7001 = vunpack.c.l.b16 %v6392
    %v7002 = vunpack.c.h.b16 %v6392
    %v7003 = vunpack.c.l.b16 %v6393
    %v7004 = vunpack.c.h.b16 %v6393
    %v7005 = vunpack.c.l.b16 %v6394
    %v7006 = vunpack.c.l.b16 %v6395
    %v7007 = vunpack.c.h.b16 %v6395
    %v7008 = vunpack.c.l.b16 %v6396
    %v7009 = vunpack.c.h.b16 %v6396
    %v7010 = vunpack.c.l.b16 %v6397
    %v7011 = vunpack.c.h.b16 %v6397
    %v7012 = vunpack.c.l.b16 %v6398
    %v7013 = vunpack.c.l.b16 %v6399
    %v7014 = vunpack.c.h.b16 %v6399
    %v7015 = vunpack.c.l.b16 %v6400
    %v7016 = vunpack.c.h.b16 %v6400
    %v7017 = vunpack.c.l.b16 %v6401
    %v7018 = vunpack.c.h.b16 %v6401
    %v7019 = vunpack.c.l.b16 %v6402
    %v7020 = vunpack.c.l.b16 %v6403
    %v7021 = vunpack.c.h.b16 %v6403
    %v7022 = vunpack.c.l.b16 %v6404
    %v7023 = vunpack.c.h.b16 %v6404
    %v7024 = vunpack.c.l.b16 %v6405
    %v7025 = vunpack.c.h.b16 %v6405
    %v7026 = vunpack.c.l.b16 %v6406
    %v7027 = vunpack.c.l.b16 %v6407
    %v7028 = vunpack.c.h.b16 %v6407
    %v7029 = vunpack.c.l.b16 %v6408
    %v7030 = vunpack.c.h.b16 %v6408
    %v7031 = vunpack.c.l.b16 %v6409
    %v7032 = vunpack.c.h.b16 %v6409
    %v7033 = vunpack.c.l.b16 %v6410
    %v7034 = vunpack.c.l.b16 %v6411
    %v7035 = vunpack.c.h.b16 %v6411
    %v7036 = vunpack.c.l.b16 %v6412
    %v7037 = vunpack.c.h.b16 %v6412
    %v7038 = vunpack.c.l.b16 %v6413
    %v7039 = vunpack.c.h.b16 %v6413
    %v7040 = vunpack.c.l.b16 %v6414
    %v7041 = vunpack.c.l.b16 %v6415
    %v7042 = vunpack.c.h.b16 %v6415
    %v7043 = vunpack.c.l.b16 %v6416
    %v7044 = vunpack.c.h.b16 %v6416
    %v7045 = vunpack.c.l.b16 %v6417
    %v7046 = vunpack.c.h.b16 %v6417
    %v7047 = vunpack.c.l.b16 %v6418
    %v7048 = vunpack.c.l.b16 %v6419
    %v7049 = vunpack.c.h.b16 %v6419
    %v7050 = vunpack.c.l.b16 %v6420
    %v7051 = vunpack.c.h.b16 %v6420
    %v7052 = vunpack.c.l.b16 %v6421
    %v7053 = vunpack.c.h.b16 %v6421
    %v7054 = vunpack.c.l.b16 %v6422
    %v7055 = vunpack.c.l.b16 %v6423
    %v7056 = vunpack.c.h.b16 %v6423
    %v7057 = vunpack.c.l.b16 %v6424
    %v7058 = vunpack.c.h.b16 %v6424
    %v7059 = vunpack.c.l.b16 %v6425
    %v7060 = vunpack.c.h.b16 %v6425
    %v7061 = vunpack.c.l.b16 %v6426
    %v7062 = vunpack.c.l.b16 %v6427
    %v7063 = vunpack.c.h.b16 %v6427
    %v7064 = vunpack.c.l.b16 %v6428
    %v7065 = vunpack.c.h.b16 %v6428
    %v7066 = vunpack.c.l.b16 %v6429
    %v7067 = vunpack.c.h.b16 %v6429
    %v7068 = vunpack.c.l.b16 %v6430
    %v7069 = vunpack.c.l.b16 %v6431
    %v7070 = vunpack.c.h.b16 %v6431
    %v7071 = vunpack.c.l.b16 %v6432
    %v7072 = vunpack.c.h.b16 %v6432
    %v7073 = vunpack.c.l.b16 %v6433
    %v7074 = vunpack.c.h.b16 %v6433
    %v7075 = vunpack.c.l.b16 %v6434
    %v7076 = vunpack.c.l.b16 %v6435
    %v7077 = vunpack.c.h.b16 %v6435
    %v7078 = vunpack.c.l.b16 %v6436
    %v7079 = vunpack.c.h.b16 %v6436
    %v7080 = vunpack.c.l.b16 %v6437
    %v7081 = vunpack.c.h.b16 %v6437
    %v7082 = vunpack.c.l.b16 %v6438
    %v7083 = vunpack.c.l.b16 %v6439
    %v7084 = vunpack.c.h.b16 %v6439
    %v7085 = vunpack.c.l.b16 %v6440
    %v7086 = vunpack.c.h.b16 %v6440
    %v7087 = vunpack.c.l.b16 %v6441
    %v7088 = vunpack.c.h.b16 %v6441
    %v7089 = vunpack.c.l.b16 %v6442
    %v7090 = vunpack.c.l.b16 %v6443
    %v7091 = vunpack.c.h.b16 %v6443
    %v7092 = vunpack.c.l.b16 %v6444
    %v7093 = vunpack.c.h.b16 %v6444
    %v7094 = vunpack.c.l.b16 %v6445
    %v7095 = vunpack.c.h.b16 %v6445
    %v7096 = vunpack.c.l.b16 %v6446
    %v7097 = vunpack.c.l.b16 %v6447
    %v7098 = vunpack.c.h.b16 %v6447
    %v7099 = vunpack.c.l.b16 %v6448
    %v7100 = vunpack.c.h.b16 %v6448
    %v7101 = vunpack.c.l.b16 %v6449
    %v7102 = vunpack.c.h.b16 %v6449
    %v7103 = vunpack.c.l.b16 %v6450
    %v7104 = vunpack.c.l.b16 %v6451
    %v7105 = vunpack.c.h.b16 %v6451
    %v7106 = vunpack.c.l.b16 %v6452
    %v7107 = vunpack.c.h.b16 %v6452
    %v7108 = vunpack.c.l.b16 %v6453
    %v7109 = vunpack.c.h.b16 %v6453
    %v7110 = vunpack.c.l.b16 %v6454
    %v7111 = vunpack.c.l.b16 %v6455
    %v7112 = vunpack.c.h.b16 %v6455
    %v7113 = vunpack.c.l.b16 %v6456
    %v7114 = vunpack.c.h.b16 %v6456
    %v7115 = vunpack.c.l.b16 %v6457
    %v7116 = vunpack.c.h.b16 %v6457
    %v7117 = vunpack.c.l.b16 %v6458
    %v7118 = vunpack.c.l.b16 %v6459
    %v7119 = vunpack.c.h.b16 %v6459
    %v7120 = vunpack.c.l.b16 %v6460
    %v7121 = vunpack.c.h.b16 %v6460
    %v7122 = vunpack.c.l.b16 %v6461
    %v7123 = vunpack.c.h.b16 %v6461
    %v7124 = vunpack.c.l.b16 %v6462
    %v7125 = vunpack.c.l.b16 %v6463
    %v7126 = vunpack.c.h.b16 %v6463
    %v7127 = vunpack.c.l.b16 %v6464
    %v7128 = vunpack.c.h.b16 %v6464
    %v7129 = vunpack.c.l.b16 %v6465
    %v7130 = vunpack.c.h.b16 %v6465
    %v7131 = vunpack.c.l.b16 %v6466
    %v7132 = vunpack.c.l.b16 %v6467
    %v7133 = vunpack.c.h.b16 %v6467
    %v7134 = vunpack.c.l.b16 %v6468
    %v7135 = vunpack.c.h.b16 %v6468
    %v7136 = vunpack.c.l.b16 %v6469
    %v7137 = vunpack.c.h.b16 %v6469
    %v7138 = vunpack.c.l.b16 %v6470
    %v7139 = vunpack.c.l.b16 %v6471
    %v7140 = vunpack.c.h.b16 %v6471
    %v7141 = vunpack.c.l.b16 %v6472
    %v7142 = vunpack.c.h.b16 %v6472
    %v7143 = vunpack.c.l.b16 %v6473
    %v7144 = vunpack.c.h.b16 %v6473
    %v7145 = vunpack.c.l.b16 %v6474
    %v7146 = vunpack.c.l.b16 %v6475
    %v7147 = vunpack.c.h.b16 %v6475
    %v7148 = vunpack.c.l.b16 %v6476
    %v7149 = vunpack.c.h.b16 %v6476
    %v7150 = vunpack.c.l.b16 %v6477
    %v7151 = vunpack.c.h.b16 %v6477
    %v7152 = vunpack.c.l.b16 %v6478
    %v7153 = vunpack.c.l.b16 %v6479
    %v7154 = vunpack.c.h.b16 %v6479
    %v7155 = vunpack.c.l.b16 %v6480
    %v7156 = vunpack.c.h.b16 %v6480
    %v7157 = vunpack.c.l.b16 %v6481
    %v7158 = vunpack.c.h.b16 %v6481
    %v7159 = vunpack.c.l.b16 %v6482
    %v7160 = vunpack.c.l.b16 %v6483
    %v7161 = vunpack.c.h.b16 %v6483
    %v7162 = vunpack.c.l.b16 %v6484
    %v7163 = vunpack.c.h.b16 %v6484
    %v7164 = vunpack.c.l.b16 %v6485
    %v7165 = vunpack.c.h.b16 %v6485
    %v7166 = vunpack.c.l.b16 %v6486
    %v7167 = vunpack.c.l.b16 %v6487
    %v7168 = vunpack.c.h.b16 %v6487
    %v7169 = vunpack.c.l.b16 %v6488
    %v7170 = vunpack.c.h.b16 %v6488
    %v7171 = vunpack.c.l.b16 %v6489
    %v7172 = vunpack.c.h.b16 %v6489
    %v7173 = vunpack.c.l.b16 %v6490
    %v7174 = vunpack.c.l.b16 %v6491
    %v7175 = vunpack.c.h.b16 %v6491
    %v7176 = vunpack.c.l.b16 %v6492
    %v7177 = vunpack.c.h.b16 %v6492
    %v7178 = vunpack.c.l.b16 %v6493
    %v7179 = vunpack.c.h.b16 %v6493
    %v7180 = vunpack.c.l.b16 %v6494
    %v7181 = vunpack.c.l.b16 %v6495
    %v7182 = vunpack.c.h.b16 %v6495
    %v7183 = vunpack.c.l.b16 %v6496
    %v7184 = vunpack.c.h.b16 %v6496
    %v7185 = vunpack.c.l.b16 %v6497
    %v7186 = vunpack.c.h.b16 %v6497
    %v7187 = vunpack.c.l.b16 %v6498
    %v7188 = vunpack.c.l.b16 %v6499
    %v7189 = vunpack.c.h.b16 %v6499
    %v7190 = vunpack.c.l.b16 %v6500
    %v7191 = vunpack.c.h.b16 %v6500
    %v7192 = vunpack.c.l.b16 %v6501
    %v7193 = vunpack.c.h.b16 %v6501
    %v7194 = vunpack.c.l.b16 %v6502
    %v7195 = vunpack.c.l.b16 %v6503
    %v7196 = vunpack.c.h.b16 %v6503
    %v7197 = vunpack.c.l.b16 %v6504
    %v7198 = vunpack.c.h.b16 %v6504
    %v7199 = vunpack.c.l.b16 %v6505
    %v7200 = vunpack.c.h.b16 %v6505
    %v7201 = vunpack.c.l.b16 %v6506
    %v7202 = vunpack.c.l.b16 %v6507
    %v7203 = vunpack.c.h.b16 %v6507
    %v7204 = vunpack.c.l.b16 %v6508
    %v7205 = vunpack.c.h.b16 %v6508
    %v7206 = vunpack.c.l.b16 %v6509
    %v7207 = vunpack.c.h.b16 %v6509
    %v7208 = vunpack.c.l.b16 %v6510
    %v7209 = vunpack.c.l.b16 %v6511
    %v7210 = vunpack.c.h.b16 %v6511
    %v7211 = vunpack.c.l.b16 %v6512
    %v7212 = vunpack.c.h.b16 %v6512
    %v7213 = vunpack.c.l.b16 %v6513
    %v7214 = vunpack.c.h.b16 %v6513
    %v7215 = vunpack.c.l.b16 %v6514
    %v7216 = vunpack.c.l.b16 %v6515
    %v7217 = vunpack.c.h.b16 %v6515
    %v7218 = vunpack.c.l.b16 %v6516
    %v7219 = vunpack.c.h.b16 %v6516
    %v7220 = vunpack.c.l.b16 %v6517
    %v7221 = vunpack.c.h.b16 %v6517
    %v7222 = vunpack.c.l.b16 %v6518
    %v7223 = vpack.c.b16 %v6782, %v6775
    %v7224 = vpack.c.b16 %v6783, %v6776
    %v7225 = vpack.c.b16 %v6784, %v6777
    %v7226 = vpack.c.b16 %v6785, %v6778
    %v7227 = vpack.c.b16 %v6786, %v6779
    %v7228 = vpack.c.b16 %v6787, %v6780
    %v7229 = vpack.c.b16 %v6788, %v6781
    %v7230 = vpack.c.b16 %v6796, %v6789
    %v7231 = vpack.c.b16 %v6797, %v6790
    %v7232 = vpack.c.b16 %v6798, %v6791
    %v7233 = vpack.c.b16 %v6799, %v6792
    %v7234 = vpack.c.b16 %v6800, %v6793
    %v7235 = vpack.c.b16 %v6801, %v6794
    %v7236 = vpack.c.b16 %v6802, %v6795
    %v7237 = vpack.c.b16 %v6810, %v6803
    %v7238 = vpack.c.b16 %v6811, %v6804
    %v7239 = vpack.c.b16 %v6812, %v6805
    %v7240 = vpack.c.b16 %v6813, %v6806
    %v7241 = vpack.c.b16 %v6814, %v6807
    %v7242 = vpack.c.b16 %v6815, %v6808
    %v7243 = vpack.c.b16 %v6816, %v6809
    %v7244 = vpack.c.b16 %v6824, %v6817
    %v7245 = vpack.c.b16 %v6825, %v6818
    %v7246 = vpack.c.b16 %v6826, %v6819
    %v7247 = vpack.c.b16 %v6827, %v6820
    %v7248 = vpack.c.b16 %v6828, %v6821
    %v7249 = vpack.c.b16 %v6829, %v6822
    %v7250 = vpack.c.b16 %v6830, %v6823
    %v7251 = vpack.c.b16 %v6838, %v6831
    %v7252 = vpack.c.b16 %v6839, %v6832
    %v7253 = vpack.c.b16 %v6840, %v6833
    %v7254 = vpack.c.b16 %v6841, %v6834
    %v7255 = vpack.c.b16 %v6842, %v6835
    %v7256 = vpack.c.b16 %v6843, %v6836
    %v7257 = vpack.c.b16 %v6844, %v6837
    %v7258 = vpack.c.b16 %v6852, %v6845
    %v7259 = vpack.c.b16 %v6853, %v6846
    %v7260 = vpack.c.b16 %v6854, %v6847
    %v7261 = vpack.c.b16 %v6855, %v6848
    %v7262 = vpack.c.b16 %v6856, %v6849
    %v7263 = vpack.c.b16 %v6857, %v6850
    %v7264 = vpack.c.b16 %v6858, %v6851
    %v7265 = vpack.c.b16 %v6866, %v6859
    %v7266 = vpack.c.b16 %v6867, %v6860
    %v7267 = vpack.c.b16 %v6868, %v6861
    %v7268 = vpack.c.b16 %v6869, %v6862
    %v7269 = vpack.c.b16 %v6870, %v6863
    %v7270 = vpack.c.b16 %v6871, %v6864
    %v7271 = vpack.c.b16 %v6872, %v6865
    %v7272 = vpack.c.b16 %v6880, %v6873
    %v7273 = vpack.c.b16 %v6881, %v6874
    %v7274 = vpack.c.b16 %v6882, %v6875
    %v7275 = vpack.c.b16 %v6883, %v6876
    %v7276 = vpack.c.b16 %v6884, %v6877
    %v7277 = vpack.c.b16 %v6885, %v6878
    %v7278 = vpack.c.b16 %v6886, %v6879
    %v7279 = vpack.c.b16 %v6894, %v6887
    %v7280 = vpack.c.b16 %v6895, %v6888
    %v7281 = vpack.c.b16 %v6896, %v6889
    %v7282 = vpack.c.b16 %v6897, %v6890
    %v7283 = vpack.c.b16 %v6898, %v6891
    %v7284 = vpack.c.b16 %v6899, %v6892
    %v7285 = vpack.c.b16 %v6900, %v6893
    %v7286 = vpack.c.b16 %v6908, %v6901
    %v7287 = vpack.c.b16 %v6909, %v6902
    %v7288 = vpack.c.b16 %v6910, %v6903
    %v7289 = vpack.c.b16 %v6911, %v6904
    %v7290 = vpack.c.b16 %v6912, %v6905
    %v7291 = vpack.c.b16 %v6913, %v6906
    %v7292 = vpack.c.b16 %v6914, %v6907
    %v7293 = vpack.c.b16 %v6922, %v6915
    %v7294 = vpack.c.b16 %v6923, %v6916
    %v7295 = vpack.c.b16 %v6924, %v6917
    %v7296 = vpack.c.b16 %v6925, %v6918
    %v7297 = vpack.c.b16 %v6926, %v6919
    %v7298 = vpack.c.b16 %v6927, %v6920
    %v7299 = vpack.c.b16 %v6928, %v6921
    %v7300 = vpack.c.b16 %v6936, %v6929
    %v7301 = vpack.c.b16 %v6937, %v6930
    %v7302 = vpack.c.b16 %v6938, %v6931
    %v7303 = vpack.c.b16 %v6939, %v6932
    %v7304 = vpack.c.b16 %v6940, %v6933
    %v7305 = vpack.c.b16 %v6941, %v6934
    %v7306 = vpack.c.b16 %v6942, %v6935
    %v7307 = vpack.c.b16 %v6950, %v6943
    %v7308 = vpack.c.b16 %v6951, %v6944
    %v7309 = vpack.c.b16 %v6952, %v6945
    %v7310 = vpack.c.b16 %v6953, %v6946
    %v7311 = vpack.c.b16 %v6954, %v6947
    %v7312 = vpack.c.b16 %v6955, %v6948
    %v7313 = vpack.c.b16 %v6956, %v6949
    %v7314 = vpack.c.b16 %v6964, %v6957
    %v7315 = vpack.c.b16 %v6965, %v6958
    %v7316 = vpack.c.b16 %v6966, %v6959
    %v7317 = vpack.c.b16 %v6967, %v6960
    %v7318 = vpack.c.b16 %v6968, %v6961
    %v7319 = vpack.c.b16 %v6969, %v6962
    %v7320 = vpack.c.b16 %v6970, %v6963
    %v7321 = vpack.c.b16 %v6978, %v6971
    %v7322 = vpack.c.b16 %v6979, %v6972
    %v7323 = vpack.c.b16 %v6980, %v6973
    %v7324 = vpack.c.b16 %v6981, %v6974
    %v7325 = vpack.c.b16 %v6982, %v6975
    %v7326 = vpack.c.b16 %v6983, %v6976
    %v7327 = vpack.c.b16 %v6984, %v6977
    %v7328 = vpack.c.b16 %v6992, %v6985
    %v7329 = vpack.c.b16 %v6993, %v6986
    %v7330 = vpack.c.b16 %v6994, %v6987
    %v7331 = vpack.c.b16 %v6995, %v6988
    %v7332 = vpack.c.b16 %v6996, %v6989
    %v7333 = vpack.c.b16 %v6997, %v6990
    %v7334 = vpack.c.b16 %v6998, %v6991
    %v7335 = vpack.c.b16 %v7006, %v6999
    %v7336 = vpack.c.b16 %v7007, %v7000
    %v7337 = vpack.c.b16 %v7008, %v7001
    %v7338 = vpack.c.b16 %v7009, %v7002
    %v7339 = vpack.c.b16 %v7010, %v7003
    %v7340 = vpack.c.b16 %v7011, %v7004
    %v7341 = vpack.c.b16 %v7012, %v7005
    %v7342 = vpack.c.b16 %v7020, %v7013
    %v7343 = vpack.c.b16 %v7021, %v7014
    %v7344 = vpack.c.b16 %v7022, %v7015
    %v7345 = vpack.c.b16 %v7023, %v7016
    %v7346 = vpack.c.b16 %v7024, %v7017
    %v7347 = vpack.c.b16 %v7025, %v7018
    %v7348 = vpack.c.b16 %v7026, %v7019
    %v7349 = vpack.c.b16 %v7034, %v7027
    %v7350 = vpack.c.b16 %v7035, %v7028
    %v7351 = vpack.c.b16 %v7036, %v7029
    %v7352 = vpack.c.b16 %v7037, %v7030
    %v7353 = vpack.c.b16 %v7038, %v7031
    %v7354 = vpack.c.b16 %v7039, %v7032
    %v7355 = vpack.c.b16 %v7040, %v7033
    %v7356 = vpack.c.b16 %v7048, %v7041
    %v7357 = vpack.c.b16 %v7049, %v7042
    %v7358 = vpack.c.b16 %v7050, %v7043
    %v7359 = vpack.c.b16 %v7051, %v7044
    %v7360 = vpack.c.b16 %v7052, %v7045
    %v7361 = vpack.c.b16 %v7053, %v7046
    %v7362 = vpack.c.b16 %v7054, %v7047
    %v7363 = vpack.c.b16 %v7062, %v7055
    %v7364 = vpack.c.b16 %v7063, %v7056
    %v7365 = vpack.c.b16 %v7064, %v7057
    %v7366 = vpack.c.b16 %v7065, %v7058
    %v7367 = vpack.c.b16 %v7066, %v7059
    %v7368 = vpack.c.b16 %v7067, %v7060
    %v7369 = vpack.c.b16 %v7068, %v7061
    %v7370 = vpack.c.b16 %v7076, %v7069
    %v7371 = vpack.c.b16 %v7077, %v7070
    %v7372 = vpack.c.b16 %v7078, %v7071
    %v7373 = vpack.c.b16 %v7079, %v7072
    %v7374 = vpack.c.b16 %v7080, %v7073
    %v7375 = vpack.c.b16 %v7081, %v7074
    %v7376 = vpack.c.b16 %v7082, %v7075
    %v7377 = vpack.c.b16 %v7090, %v7083
    %v7378 = vpack.c.b16 %v7091, %v7084
    %v7379 = vpack.c.b16 %v7092, %v7085
    %v7380 = vpack.c.b16 %v7093, %v7086
    %v7381 = vpack.c.b16 %v7094, %v7087
    %v7382 = vpack.c.b16 %v7095, %v7088
    %v7383 = vpack.c.b16 %v7096, %v7089
    %v7384 = vpack.c.b16 %v7104, %v7097
    %v7385 = vpack.c.b16 %v7105, %v7098
    %v7386 = vpack.c.b16 %v7106, %v7099
    %v7387 = vpack.c.b16 %v7107, %v7100
    %v7388 = vpack.c.b16 %v7108, %v7101
    %v7389 = vpack.c.b16 %v7109, %v7102
    %v7390 = vpack.c.b16 %v7110, %v7103
    %v7391 = vpack.c.b16 %v7118, %v7111
    %v7392 = vpack.c.b16 %v7119, %v7112
    %v7393 = vpack.c.b16 %v7120, %v7113
    %v7394 = vpack.c.b16 %v7121, %v7114
    %v7395 = vpack.c.b16 %v7122, %v7115
    %v7396 = vpack.c.b16 %v7123, %v7116
    %v7397 = vpack.c.b16 %v7124, %v7117
    %v7398 = vpack.c.b16 %v7132, %v7125
    %v7399 = vpack.c.b16 %v7133, %v7126
    %v7400 = vpack.c.b16 %v7134, %v7127
    %v7401 = vpack.c.b16 %v7135, %v7128
    %v7402 = vpack.c.b16 %v7136, %v7129
    %v7403 = vpack.c.b16 %v7137, %v7130
    %v7404 = vpack.c.b16 %v7138, %v7131
    %v7405 = vpack.c.b16 %v7146, %v7139
    %v7406 = vpack.c.b16 %v7147, %v7140
    %v7407 = vpack.c.b16 %v7148, %v7141
    %v7408 = vpack.c.b16 %v7149, %v7142
    %v7409 = vpack.c.b16 %v7150, %v7143
    %v7410 = vpack.c.b16 %v7151, %v7144
    %v7411 = vpack.c.b16 %v7152, %v7145
    %v7412 = vpack.c.b16 %v7160, %v7153
    %v7413 = vpack.c.b16 %v7161, %v7154
    %v7414 = vpack.c.b16 %v7162, %v7155
    %v7415 = vpack.c.b16 %v7163, %v7156
    %v7416 = vpack.c.b16 %v7164, %v7157
    %v7417 = vpack.c.b16 %v7165, %v7158
    %v7418 = vpack.c.b16 %v7166, %v7159
    %v7419 = vpack.c.b16 %v7174, %v7167
    %v7420 = vpack.c.b16 %v7175, %v7168
    %v7421 = vpack.c.b16 %v7176, %v7169
    %v7422 = vpack.c.b16 %v7177, %v7170
    %v7423 = vpack.c.b16 %v7178, %v7171
    %v7424 = vpack.c.b16 %v7179, %v7172
    %v7425 = vpack.c.b16 %v7180, %v7173
    %v7426 = vpack.c.b16 %v7188, %v7181
    %v7427 = vpack.c.b16 %v7189, %v7182
    %v7428 = vpack.c.b16 %v7190, %v7183
    %v7429 = vpack.c.b16 %v7191, %v7184
    %v7430 = vpack.c.b16 %v7192, %v7185
    %v7431 = vpack.c.b16 %v7193, %v7186
    %v7432 = vpack.c.b16 %v7194, %v7187
    %v7433 = vpack.c.b16 %v7202, %v7195
    %v7434 = vpack.c.b16 %v7203, %v7196
    %v7435 = vpack.c.b16 %v7204, %v7197
    %v7436 = vpack.c.b16 %v7205, %v7198
    %v7437 = vpack.c.b16 %v7206, %v7199
    %v7438 = vpack.c.b16 %v7207, %v7200
    %v7439 = vpack.c.b16 %v7208, %v7201
    %v7440 = vpack.c.b16 %v7216, %v7209
    %v7441 = vpack.c.b16 %v7217, %v7210
    %v7442 = vpack.c.b16 %v7218, %v7211
    %v7443 = vpack.c.b16 %v7219, %v7212
    %v7444 = vpack.c.b16 %v7220, %v7213
    %v7445 = vpack.c.b16 %v7221, %v7214
    %v7446 = vpack.c.b16 %v7222, %v7215
    %7671 = vmatpush.bf16.msra.mxu0 %v7272
    %7672 = vmatpush.bf16.msra.mxu0 %v7265
    %7673 = vmatpush.bf16.msra.mxu0 %v7258
    %7674 = vmatpush.bf16.msra.mxu0 %v7251
    %7675 = vmatpush.bf16.msra.mxu0 %v7244
    %7676 = vmatpush.bf16.msra.mxu0 %v7237
    %7677 = vmatpush.bf16.msra.mxu0 %v7230
    %7678 = vmatpush.bf16.msra.mxu0 %v7223
    %7679 = vmatmul.bf16.gmra.mxu0 %v971
    %v7680 = vpop.f32.mrf.mxu0
    %v7681 = vadd.f32 0.0, %v7680
    %v7682 = vpop.f32.mrf.mxu0
    %v7683 = vadd.f32 0.0, %v7682
    %7684 = vdwg.mxu0
    %7685 = vmatpush.bf16.msra.mxu0 %v7328
    %7686 = vmatpush.bf16.msra.mxu0 %v7321
    %7687 = vmatpush.bf16.msra.mxu0 %v7314
    %7688 = vmatpush.bf16.msra.mxu0 %v7307
    %7689 = vmatpush.bf16.msra.mxu0 %v7300
    %7690 = vmatpush.bf16.msra.mxu0 %v7293
    %7691 = vmatpush.bf16.msra.mxu0 %v7286
    %7692 = vmatpush.bf16.msra.mxu0 %v7279
    %7693 = vmatmul.bf16.gmra.mxu0 %v972
    %v7694 = vpop.f32.mrf.mxu0
    %v7695 = vadd.f32 %v7681, %v7694
    %v7696 = vpop.f32.mrf.mxu0
    %v7697 = vadd.f32 %v7683, %v7696
    %7698 = vdwg.mxu0
    %7699 = vmatpush.bf16.msra.mxu0 %v7384
    %7700 = vmatpush.bf16.msra.mxu0 %v7377
    %7701 = vmatpush.bf16.msra.mxu0 %v7370
    %7702 = vmatpush.bf16.msra.mxu0 %v7363
    %7703 = vmatpush.bf16.msra.mxu0 %v7356
    %7704 = vmatpush.bf16.msra.mxu0 %v7349
    %7705 = vmatpush.bf16.msra.mxu0 %v7342
    %7706 = vmatpush.bf16.msra.mxu0 %v7335
    %7707 = vmatmul.bf16.gmra.mxu0 %v973
    %v7708 = vpop.f32.mrf.mxu0
    %v7709 = vadd.f32 %v7695, %v7708
    %v7710 = vpop.f32.mrf.mxu0
    %v7711 = vadd.f32 %v7697, %v7710
    %7712 = vdwg.mxu0
    %7713 = vmatpush.bf16.msra.mxu0 %v7440
    %7714 = vmatpush.bf16.msra.mxu0 %v7433
    %7715 = vmatpush.bf16.msra.mxu0 %v7426
    %7716 = vmatpush.bf16.msra.mxu0 %v7419
    %7717 = vmatpush.bf16.msra.mxu0 %v7412
    %7718 = vmatpush.bf16.msra.mxu0 %v7405
    %7719 = vmatpush.bf16.msra.mxu0 %v7398
    %7720 = vmatpush.bf16.msra.mxu0 %v7391
    %7721 = vmatmul.bf16.gmra.mxu0 %v974
    %v7722 = vpop.f32.mrf.mxu0
    %v7723 = vadd.f32 %v7709, %v7722
    %v7724 = vpop.f32.mrf.mxu0
    %v7725 = vadd.f32 %v7711, %v7724
    %7726 = vdwg.mxu0
    %7727 = vmatpush.bf16.msra.mxu0 %v7273
    %7728 = vmatpush.bf16.msra.mxu0 %v7266
    %7729 = vmatpush.bf16.msra.mxu0 %v7259
    %7730 = vmatpush.bf16.msra.mxu0 %v7252
    %7731 = vmatpush.bf16.msra.mxu0 %v7245
    %7732 = vmatpush.bf16.msra.mxu0 %v7238
    %7733 = vmatpush.bf16.msra.mxu0 %v7231
    %7734 = vmatpush.bf16.msra.mxu0 %v7224
    %7735 = vmatmul.bf16.gmra.mxu0 %v971
    %v7736 = vpop.f32.mrf.mxu0
    %v7737 = vadd.f32 0.0, %v7736
    %v7738 = vpop.f32.mrf.mxu0
    %v7739 = vadd.f32 0.0, %v7738
    %7740 = vdwg.mxu0
    %7741 = vmatpush.bf16.msra.mxu0 %v7329
    %7742 = vmatpush.bf16.msra.mxu0 %v7322
    %7743 = vmatpush.bf16.msra.mxu0 %v7315
    %7744 = vmatpush.bf16.msra.mxu0 %v7308
    %7745 = vmatpush.bf16.msra.mxu0 %v7301
    %7746 = vmatpush.bf16.msra.mxu0 %v7294
    %7747 = vmatpush.bf16.msra.mxu0 %v7287
    %7748 = vmatpush.bf16.msra.mxu0 %v7280
    %7749 = vmatmul.bf16.gmra.mxu0 %v972
    %v7750 = vpop.f32.mrf.mxu0
    %v7751 = vadd.f32 %v7737, %v7750
    %v7752 = vpop.f32.mrf.mxu0
    %v7753 = vadd.f32 %v7739, %v7752
    %7754 = vdwg.mxu0
    %7755 = vmatpush.bf16.msra.mxu0 %v7385
    %7756 = vmatpush.bf16.msra.mxu0 %v7378
    %7757 = vmatpush.bf16.msra.mxu0 %v7371
    %7758 = vmatpush.bf16.msra.mxu0 %v7364
    %7759 = vmatpush.bf16.msra.mxu0 %v7357
    %7760 = vmatpush.bf16.msra.mxu0 %v7350
    %7761 = vmatpush.bf16.msra.mxu0 %v7343
    %7762 = vmatpush.bf16.msra.mxu0 %v7336
    %7763 = vmatmul.bf16.gmra.mxu0 %v973
    %v7764 = vpop.f32.mrf.mxu0
    %v7765 = vadd.f32 %v7751, %v7764
    %v7766 = vpop.f32.mrf.mxu0
    %v7767 = vadd.f32 %v7753, %v7766
    %7768 = vdwg.mxu0
    %7769 = vmatpush.bf16.msra.mxu0 %v7441
    %7770 = vmatpush.bf16.msra.mxu0 %v7434
    %7771 = vmatpush.bf16.msra.mxu0 %v7427
    %7772 = vmatpush.bf16.msra.mxu0 %v7420
    %7773 = vmatpush.bf16.msra.mxu0 %v7413
    %7774 = vmatpush.bf16.msra.mxu0 %v7406
    %7775 = vmatpush.bf16.msra.mxu0 %v7399
    %7776 = vmatpush.bf16.msra.mxu0 %v7392
    %7777 = vmatmul.bf16.gmra.mxu0 %v974
    %v7778 = vpop.f32.mrf.mxu0
    %v7779 = vadd.f32 %v7765, %v7778
    %v7780 = vpop.f32.mrf.mxu0
    %v7781 = vadd.f32 %v7767, %v7780
    %7782 = vdwg.mxu0
    %7783 = vmatpush.bf16.msra.mxu0 %v7274
    %7784 = vmatpush.bf16.msra.mxu0 %v7267
    %7785 = vmatpush.bf16.msra.mxu0 %v7260
    %7786 = vmatpush.bf16.msra.mxu0 %v7253
    %7787 = vmatpush.bf16.msra.mxu0 %v7246
    %7788 = vmatpush.bf16.msra.mxu0 %v7239
    %7789 = vmatpush.bf16.msra.mxu0 %v7232
    %7790 = vmatpush.bf16.msra.mxu0 %v7225
    %7791 = vmatmul.bf16.gmra.mxu0 %v971
    %v7792 = vpop.f32.mrf.mxu0
    %v7793 = vadd.f32 0.0, %v7792
    %v7794 = vpop.f32.mrf.mxu0
    %v7795 = vadd.f32 0.0, %v7794
    %7796 = vdwg.mxu0
    %7797 = vmatpush.bf16.msra.mxu0 %v7330
    %7798 = vmatpush.bf16.msra.mxu0 %v7323
    %7799 = vmatpush.bf16.msra.mxu0 %v7316
    %7800 = vmatpush.bf16.msra.mxu0 %v7309
    %7801 = vmatpush.bf16.msra.mxu0 %v7302
    %7802 = vmatpush.bf16.msra.mxu0 %v7295
    %7803 = vmatpush.bf16.msra.mxu0 %v7288
    %7804 = vmatpush.bf16.msra.mxu0 %v7281
    %7805 = vmatmul.bf16.gmra.mxu0 %v972
    %v7806 = vpop.f32.mrf.mxu0
    %v7807 = vadd.f32 %v7793, %v7806
    %v7808 = vpop.f32.mrf.mxu0
    %v7809 = vadd.f32 %v7795, %v7808
    %7810 = vdwg.mxu0
    %7811 = vmatpush.bf16.msra.mxu0 %v7386
    %7812 = vmatpush.bf16.msra.mxu0 %v7379
    %7813 = vmatpush.bf16.msra.mxu0 %v7372
    %7814 = vmatpush.bf16.msra.mxu0 %v7365
    %7815 = vmatpush.bf16.msra.mxu0 %v7358
    %7816 = vmatpush.bf16.msra.mxu0 %v7351
    %7817 = vmatpush.bf16.msra.mxu0 %v7344
    %7818 = vmatpush.bf16.msra.mxu0 %v7337
    %7819 = vmatmul.bf16.gmra.mxu0 %v973
    %v7820 = vpop.f32.mrf.mxu0
    %v7821 = vadd.f32 %v7807, %v7820
    %v7822 = vpop.f32.mrf.mxu0
    %v7823 = vadd.f32 %v7809, %v7822
    %7824 = vdwg.mxu0
    %7825 = vmatpush.bf16.msra.mxu0 %v7442
    %7826 = vmatpush.bf16.msra.mxu0 %v7435
    %7827 = vmatpush.bf16.msra.mxu0 %v7428
    %7828 = vmatpush.bf16.msra.mxu0 %v7421
    %7829 = vmatpush.bf16.msra.mxu0 %v7414
    %7830 = vmatpush.bf16.msra.mxu0 %v7407
    %7831 = vmatpush.bf16.msra.mxu0 %v7400
    %7832 = vmatpush.bf16.msra.mxu0 %v7393
    %7833 = vmatmul.bf16.gmra.mxu0 %v974
    %v7834 = vpop.f32.mrf.mxu0
    %v7835 = vadd.f32 %v7821, %v7834
    %v7836 = vpop.f32.mrf.mxu0
    %v7837 = vadd.f32 %v7823, %v7836
    %7838 = vdwg.mxu0
    %7839 = vmatpush.bf16.msra.mxu0 %v7275
    %7840 = vmatpush.bf16.msra.mxu0 %v7268
    %7841 = vmatpush.bf16.msra.mxu0 %v7261
    %7842 = vmatpush.bf16.msra.mxu0 %v7254
    %7843 = vmatpush.bf16.msra.mxu0 %v7247
    %7844 = vmatpush.bf16.msra.mxu0 %v7240
    %7845 = vmatpush.bf16.msra.mxu0 %v7233
    %7846 = vmatpush.bf16.msra.mxu0 %v7226
    %7847 = vmatmul.bf16.gmra.mxu0 %v971
    %v7848 = vpop.f32.mrf.mxu0
    %v7849 = vadd.f32 0.0, %v7848
    %v7850 = vpop.f32.mrf.mxu0
    %v7851 = vadd.f32 0.0, %v7850
    %7852 = vdwg.mxu0
    %7853 = vmatpush.bf16.msra.mxu0 %v7331
    %7854 = vmatpush.bf16.msra.mxu0 %v7324
    %7855 = vmatpush.bf16.msra.mxu0 %v7317
    %7856 = vmatpush.bf16.msra.mxu0 %v7310
    %7857 = vmatpush.bf16.msra.mxu0 %v7303
    %7858 = vmatpush.bf16.msra.mxu0 %v7296
    %7859 = vmatpush.bf16.msra.mxu0 %v7289
    %7860 = vmatpush.bf16.msra.mxu0 %v7282
    %7861 = vmatmul.bf16.gmra.mxu0 %v972
    %v7862 = vpop.f32.mrf.mxu0
    %v7863 = vadd.f32 %v7849, %v7862
    %v7864 = vpop.f32.mrf.mxu0
    %v7865 = vadd.f32 %v7851, %v7864
    %7866 = vdwg.mxu0
    %7867 = vmatpush.bf16.msra.mxu0 %v7387
    %7868 = vmatpush.bf16.msra.mxu0 %v7380
    %7869 = vmatpush.bf16.msra.mxu0 %v7373
    %7870 = vmatpush.bf16.msra.mxu0 %v7366
    %7871 = vmatpush.bf16.msra.mxu0 %v7359
    %7872 = vmatpush.bf16.msra.mxu0 %v7352
    %7873 = vmatpush.bf16.msra.mxu0 %v7345
    %7874 = vmatpush.bf16.msra.mxu0 %v7338
    %7875 = vmatmul.bf16.gmra.mxu0 %v973
    %v7876 = vpop.f32.mrf.mxu0
    %v7877 = vadd.f32 %v7863, %v7876
    %v7878 = vpop.f32.mrf.mxu0
    %v7879 = vadd.f32 %v7865, %v7878
    %7880 = vdwg.mxu0
    %7881 = vmatpush.bf16.msra.mxu0 %v7443
    %7882 = vmatpush.bf16.msra.mxu0 %v7436
    %7883 = vmatpush.bf16.msra.mxu0 %v7429
    %7884 = vmatpush.bf16.msra.mxu0 %v7422
    %7885 = vmatpush.bf16.msra.mxu0 %v7415
    %7886 = vmatpush.bf16.msra.mxu0 %v7408
    %7887 = vmatpush.bf16.msra.mxu0 %v7401
    %7888 = vmatpush.bf16.msra.mxu0 %v7394
    %7889 = vmatmul.bf16.gmra.mxu0 %v974
    %v7890 = vpop.f32.mrf.mxu0
    %v7891 = vadd.f32 %v7877, %v7890
    %v7892 = vpop.f32.mrf.mxu0
    %v7893 = vadd.f32 %v7879, %v7892
    %7894 = vdwg.mxu0
    %7895 = vmatpush.bf16.msra.mxu0 %v7276
    %7896 = vmatpush.bf16.msra.mxu0 %v7269
    %7897 = vmatpush.bf16.msra.mxu0 %v7262
    %7898 = vmatpush.bf16.msra.mxu0 %v7255
    %7899 = vmatpush.bf16.msra.mxu0 %v7248
    %7900 = vmatpush.bf16.msra.mxu0 %v7241
    %7901 = vmatpush.bf16.msra.mxu0 %v7234
    %7902 = vmatpush.bf16.msra.mxu0 %v7227
    %7903 = vmatmul.bf16.gmra.mxu0 %v971
    %v7904 = vpop.f32.mrf.mxu0
    %v7905 = vadd.f32 0.0, %v7904
    %v7906 = vpop.f32.mrf.mxu0
    %v7907 = vadd.f32 0.0, %v7906
    %7908 = vdwg.mxu0
    %7909 = vmatpush.bf16.msra.mxu0 %v7332
    %7910 = vmatpush.bf16.msra.mxu0 %v7325
    %7911 = vmatpush.bf16.msra.mxu0 %v7318
    %7912 = vmatpush.bf16.msra.mxu0 %v7311
    %7913 = vmatpush.bf16.msra.mxu0 %v7304
    %7914 = vmatpush.bf16.msra.mxu0 %v7297
    %7915 = vmatpush.bf16.msra.mxu0 %v7290
    %7916 = vmatpush.bf16.msra.mxu0 %v7283
    %7917 = vmatmul.bf16.gmra.mxu0 %v972
    %v7918 = vpop.f32.mrf.mxu0
    %v7919 = vadd.f32 %v7905, %v7918
    %v7920 = vpop.f32.mrf.mxu0
    %v7921 = vadd.f32 %v7907, %v7920
    %7922 = vdwg.mxu0
    %7923 = vmatpush.bf16.msra.mxu0 %v7388
    %7924 = vmatpush.bf16.msra.mxu0 %v7381
    %7925 = vmatpush.bf16.msra.mxu0 %v7374
    %7926 = vmatpush.bf16.msra.mxu0 %v7367
    %7927 = vmatpush.bf16.msra.mxu0 %v7360
    %7928 = vmatpush.bf16.msra.mxu0 %v7353
    %7929 = vmatpush.bf16.msra.mxu0 %v7346
    %7930 = vmatpush.bf16.msra.mxu0 %v7339
    %7931 = vmatmul.bf16.gmra.mxu0 %v973
    %v7932 = vpop.f32.mrf.mxu0
    %v7933 = vadd.f32 %v7919, %v7932
    %v7934 = vpop.f32.mrf.mxu0
    %v7935 = vadd.f32 %v7921, %v7934
    %7936 = vdwg.mxu0
    %7937 = vmatpush.bf16.msra.mxu0 %v7444
    %7938 = vmatpush.bf16.msra.mxu0 %v7437
    %7939 = vmatpush.bf16.msra.mxu0 %v7430
    %7940 = vmatpush.bf16.msra.mxu0 %v7423
    %7941 = vmatpush.bf16.msra.mxu0 %v7416
    %7942 = vmatpush.bf16.msra.mxu0 %v7409
    %7943 = vmatpush.bf16.msra.mxu0 %v7402
    %7944 = vmatpush.bf16.msra.mxu0 %v7395
    %7945 = vmatmul.bf16.gmra.mxu0 %v974
    %v7946 = vpop.f32.mrf.mxu0
    %v7947 = vadd.f32 %v7933, %v7946
    %v7948 = vpop.f32.mrf.mxu0
    %v7949 = vadd.f32 %v7935, %v7948
    %7950 = vdwg.mxu0
    %7951 = vmatpush.bf16.msra.mxu0 %v7277
    %7952 = vmatpush.bf16.msra.mxu0 %v7270
    %7953 = vmatpush.bf16.msra.mxu0 %v7263
    %7954 = vmatpush.bf16.msra.mxu0 %v7256
    %7955 = vmatpush.bf16.msra.mxu0 %v7249
    %7956 = vmatpush.bf16.msra.mxu0 %v7242
    %7957 = vmatpush.bf16.msra.mxu0 %v7235
    %7958 = vmatpush.bf16.msra.mxu0 %v7228
    %7959 = vmatmul.bf16.gmra.mxu0 %v971
    %v7960 = vpop.f32.mrf.mxu0
    %v7961 = vadd.f32 0.0, %v7960
    %v7962 = vpop.f32.mrf.mxu0
    %v7963 = vadd.f32 0.0, %v7962
    %7964 = vdwg.mxu0
    %7965 = vmatpush.bf16.msra.mxu0 %v7333
    %7966 = vmatpush.bf16.msra.mxu0 %v7326
    %7967 = vmatpush.bf16.msra.mxu0 %v7319
    %7968 = vmatpush.bf16.msra.mxu0 %v7312
    %7969 = vmatpush.bf16.msra.mxu0 %v7305
    %7970 = vmatpush.bf16.msra.mxu0 %v7298
    %7971 = vmatpush.bf16.msra.mxu0 %v7291
    %7972 = vmatpush.bf16.msra.mxu0 %v7284
    %7973 = vmatmul.bf16.gmra.mxu0 %v972
    %v7974 = vpop.f32.mrf.mxu0
    %v7975 = vadd.f32 %v7961, %v7974
    %v7976 = vpop.f32.mrf.mxu0
    %v7977 = vadd.f32 %v7963, %v7976
    %7978 = vdwg.mxu0
    %7979 = vmatpush.bf16.msra.mxu0 %v7389
    %7980 = vmatpush.bf16.msra.mxu0 %v7382
    %7981 = vmatpush.bf16.msra.mxu0 %v7375
    %7982 = vmatpush.bf16.msra.mxu0 %v7368
    %7983 = vmatpush.bf16.msra.mxu0 %v7361
    %7984 = vmatpush.bf16.msra.mxu0 %v7354
    %7985 = vmatpush.bf16.msra.mxu0 %v7347
    %7986 = vmatpush.bf16.msra.mxu0 %v7340
    %7987 = vmatmul.bf16.gmra.mxu0 %v973
    %v7988 = vpop.f32.mrf.mxu0
    %v7989 = vadd.f32 %v7975, %v7988
    %v7990 = vpop.f32.mrf.mxu0
    %v7991 = vadd.f32 %v7977, %v7990
    %7992 = vdwg.mxu0
    %7993 = vmatpush.bf16.msra.mxu0 %v7445
    %7994 = vmatpush.bf16.msra.mxu0 %v7438
    %7995 = vmatpush.bf16.msra.mxu0 %v7431
    %7996 = vmatpush.bf16.msra.mxu0 %v7424
    %7997 = vmatpush.bf16.msra.mxu0 %v7417
    %7998 = vmatpush.bf16.msra.mxu0 %v7410
    %7999 = vmatpush.bf16.msra.mxu0 %v7403
    %8000 = vmatpush.bf16.msra.mxu0 %v7396
    %8001 = vmatmul.bf16.gmra.mxu0 %v974
    %v8002 = vpop.f32.mrf.mxu0
    %v8003 = vadd.f32 %v7989, %v8002
    %v8004 = vpop.f32.mrf.mxu0
    %v8005 = vadd.f32 %v7991, %v8004
    %8006 = vdwg.mxu0
    %8007 = vmatpush.bf16.msra.mxu0 %v7278
    %8008 = vmatpush.bf16.msra.mxu0 %v7271
    %8009 = vmatpush.bf16.msra.mxu0 %v7264
    %8010 = vmatpush.bf16.msra.mxu0 %v7257
    %8011 = vmatpush.bf16.msra.mxu0 %v7250
    %8012 = vmatpush.bf16.msra.mxu0 %v7243
    %8013 = vmatpush.bf16.msra.mxu0 %v7236
    %8014 = vmatpush.bf16.msra.mxu0 %v7229
    %8015 = vmatmul.bf16.gmra.mxu0 %v971
    %v8016 = vpop.f32.mrf.mxu0
    %v8017 = vadd.f32 0.0, %v8016
    %v8018 = vpop.f32.mrf.mxu0
    %v8019 = vadd.f32 0.0, %v8018
    %8020 = vdwg.mxu0
    %8021 = vmatpush.bf16.msra.mxu0 %v7334
    %8022 = vmatpush.bf16.msra.mxu0 %v7327
    %8023 = vmatpush.bf16.msra.mxu0 %v7320
    %8024 = vmatpush.bf16.msra.mxu0 %v7313
    %8025 = vmatpush.bf16.msra.mxu0 %v7306
    %8026 = vmatpush.bf16.msra.mxu0 %v7299
    %8027 = vmatpush.bf16.msra.mxu0 %v7292
    %8028 = vmatpush.bf16.msra.mxu0 %v7285
    %8029 = vmatmul.bf16.gmra.mxu0 %v972
    %v8030 = vpop.f32.mrf.mxu0
    %v8031 = vadd.f32 %v8017, %v8030
    %v8032 = vpop.f32.mrf.mxu0
    %v8033 = vadd.f32 %v8019, %v8032
    %8034 = vdwg.mxu0
    %8035 = vmatpush.bf16.msra.mxu0 %v7390
    %8036 = vmatpush.bf16.msra.mxu0 %v7383
    %8037 = vmatpush.bf16.msra.mxu0 %v7376
    %8038 = vmatpush.bf16.msra.mxu0 %v7369
    %8039 = vmatpush.bf16.msra.mxu0 %v7362
    %8040 = vmatpush.bf16.msra.mxu0 %v7355
    %8041 = vmatpush.bf16.msra.mxu0 %v7348
    %8042 = vmatpush.bf16.msra.mxu0 %v7341
    %8043 = vmatmul.bf16.gmra.mxu0 %v973
    %v8044 = vpop.f32.mrf.mxu0
    %v8045 = vadd.f32 %v8031, %v8044
    %v8046 = vpop.f32.mrf.mxu0
    %v8047 = vadd.f32 %v8033, %v8046
    %8048 = vdwg.mxu0
    %8049 = vmatpush.bf16.msra.mxu0 %v7446
    %8050 = vmatpush.bf16.msra.mxu0 %v7439
    %8051 = vmatpush.bf16.msra.mxu0 %v7432
    %8052 = vmatpush.bf16.msra.mxu0 %v7425
    %8053 = vmatpush.bf16.msra.mxu0 %v7418
    %8054 = vmatpush.bf16.msra.mxu0 %v7411
    %8055 = vmatpush.bf16.msra.mxu0 %v7404
    %8056 = vmatpush.bf16.msra.mxu0 %v7397
    %8057 = vmatmul.bf16.gmra.mxu0 %v974
    %v8058 = vpop.f32.mrf.mxu0
    %v8059 = vadd.f32 %v8045, %v8058
    %v8060 = vpop.f32.mrf.mxu0
    %v8061 = vadd.f32 %v8047, %v8060
    %8062 = vdwg.mxu0
    %v8127 = vunpack.c.l.b16 %v6199
    %v8128 = vunpack.c.h.b16 %v6199
    %v8129 = vunpack.c.l.b16 %v6200
    %v8130 = vunpack.c.h.b16 %v6200
    %v8131 = vunpack.c.l.b16 %v6201
    %v8132 = vunpack.c.h.b16 %v6201
    %v8133 = vunpack.c.l.b16 %v6202
    %v8134 = vunpack.c.l.b16 %v6203
    %v8135 = vunpack.c.h.b16 %v6203
    %v8136 = vunpack.c.l.b16 %v6204
    %v8137 = vunpack.c.h.b16 %v6204
    %v8138 = vunpack.c.l.b16 %v6205
    %v8139 = vunpack.c.h.b16 %v6205
    %v8140 = vunpack.c.l.b16 %v6206
    %v8141 = vunpack.c.l.b16 %v6207
    %v8142 = vunpack.c.h.b16 %v6207
    %v8143 = vunpack.c.l.b16 %v6208
    %v8144 = vunpack.c.h.b16 %v6208
    %v8145 = vunpack.c.l.b16 %v6209
    %v8146 = vunpack.c.h.b16 %v6209
    %v8147 = vunpack.c.l.b16 %v6210
    %v8148 = vunpack.c.l.b16 %v6211
    %v8149 = vunpack.c.h.b16 %v6211
    %v8150 = vunpack.c.l.b16 %v6212
    %v8151 = vunpack.c.h.b16 %v6212
    %v8152 = vunpack.c.l.b16 %v6213
    %v8153 = vunpack.c.h.b16 %v6213
    %v8154 = vunpack.c.l.b16 %v6214
    %v8155 = vunpack.c.l.b16 %v6215
    %v8156 = vunpack.c.h.b16 %v6215
    %v8157 = vunpack.c.l.b16 %v6216
    %v8158 = vunpack.c.h.b16 %v6216
    %v8159 = vunpack.c.l.b16 %v6217
    %v8160 = vunpack.c.h.b16 %v6217
    %v8161 = vunpack.c.l.b16 %v6218
    %v8162 = vunpack.c.l.b16 %v6219
    %v8163 = vunpack.c.h.b16 %v6219
    %v8164 = vunpack.c.l.b16 %v6220
    %v8165 = vunpack.c.h.b16 %v6220
    %v8166 = vunpack.c.l.b16 %v6221
    %v8167 = vunpack.c.h.b16 %v6221
    %v8168 = vunpack.c.l.b16 %v6222
    %v8169 = vunpack.c.l.b16 %v6223
    %v8170 = vunpack.c.h.b16 %v6223
    %v8171 = vunpack.c.l.b16 %v6224
    %v8172 = vunpack.c.h.b16 %v6224
    %v8173 = vunpack.c.l.b16 %v6225
    %v8174 = vunpack.c.h.b16 %v6225
    %v8175 = vunpack.c.l.b16 %v6226
    %v8176 = vunpack.c.l.b16 %v6227
    %v8177 = vunpack.c.h.b16 %v6227
    %v8178 = vunpack.c.l.b16 %v6228
    %v8179 = vunpack.c.h.b16 %v6228
    %v8180 = vunpack.c.l.b16 %v6229
    %v8181 = vunpack.c.h.b16 %v6229
    %v8182 = vunpack.c.l.b16 %v6230
    %v8183 = vunpack.c.l.b16 %v6231
    %v8184 = vunpack.c.h.b16 %v6231
    %v8185 = vunpack.c.l.b16 %v6232
    %v8186 = vunpack.c.h.b16 %v6232
    %v8187 = vunpack.c.l.b16 %v6233
    %v8188 = vunpack.c.h.b16 %v6233
    %v8189 = vunpack.c.l.b16 %v6234
    %v8190 = vunpack.c.l.b16 %v6235
    %v8191 = vunpack.c.h.b16 %v6235
    %v8192 = vunpack.c.l.b16 %v6236
    %v8193 = vunpack.c.h.b16 %v6236
    %v8194 = vunpack.c.l.b16 %v6237
    %v8195 = vunpack.c.h.b16 %v6237
    %v8196 = vunpack.c.l.b16 %v6238
    %v8197 = vunpack.c.l.b16 %v6239
    %v8198 = vunpack.c.h.b16 %v6239
    %v8199 = vunpack.c.l.b16 %v6240
    %v8200 = vunpack.c.h.b16 %v6240
    %v8201 = vunpack.c.l.b16 %v6241
    %v8202 = vunpack.c.h.b16 %v6241
    %v8203 = vunpack.c.l.b16 %v6242
    %v8204 = vunpack.c.l.b16 %v6243
    %v8205 = vunpack.c.h.b16 %v6243
    %v8206 = vunpack.c.l.b16 %v6244
    %v8207 = vunpack.c.h.b16 %v6244
    %v8208 = vunpack.c.l.b16 %v6245
    %v8209 = vunpack.c.h.b16 %v6245
    %v8210 = vunpack.c.l.b16 %v6246
    %v8211 = vunpack.c.l.b16 %v6247
    %v8212 = vunpack.c.h.b16 %v6247
    %v8213 = vunpack.c.l.b16 %v6248
    %v8214 = vunpack.c.h.b16 %v6248
    %v8215 = vunpack.c.l.b16 %v6249
    %v8216 = vunpack.c.h.b16 %v6249
    %v8217 = vunpack.c.l.b16 %v6250
    %v8218 = vunpack.c.l.b16 %v6251
    %v8219 = vunpack.c.h.b16 %v6251
    %v8220 = vunpack.c.l.b16 %v6252
    %v8221 = vunpack.c.h.b16 %v6252
    %v8222 = vunpack.c.l.b16 %v6253
    %v8223 = vunpack.c.h.b16 %v6253
    %v8224 = vunpack.c.l.b16 %v6254
    %v8225 = vunpack.c.l.b16 %v6255
    %v8226 = vunpack.c.h.b16 %v6255
    %v8227 = vunpack.c.l.b16 %v6256
    %v8228 = vunpack.c.h.b16 %v6256
    %v8229 = vunpack.c.l.b16 %v6257
    %v8230 = vunpack.c.h.b16 %v6257
    %v8231 = vunpack.c.l.b16 %v6258
    %v8232 = vunpack.c.l.b16 %v6259
    %v8233 = vunpack.c.h.b16 %v6259
    %v8234 = vunpack.c.l.b16 %v6260
    %v8235 = vunpack.c.h.b16 %v6260
    %v8236 = vunpack.c.l.b16 %v6261
    %v8237 = vunpack.c.h.b16 %v6261
    %v8238 = vunpack.c.l.b16 %v6262
    %v8239 = vpack.c.b16 %v8134, %v8127
    %v8240 = vpack.c.b16 %v8135, %v8128
    %v8241 = vpack.c.b16 %v8136, %v8129
    %v8242 = vpack.c.b16 %v8137, %v8130
    %v8243 = vpack.c.b16 %v8138, %v8131
    %v8244 = vpack.c.b16 %v8139, %v8132
    %v8245 = vpack.c.b16 %v8140, %v8133
    %v8246 = vpack.c.b16 %v8148, %v8141
    %v8247 = vpack.c.b16 %v8149, %v8142
    %v8248 = vpack.c.b16 %v8150, %v8143
    %v8249 = vpack.c.b16 %v8151, %v8144
    %v8250 = vpack.c.b16 %v8152, %v8145
    %v8251 = vpack.c.b16 %v8153, %v8146
    %v8252 = vpack.c.b16 %v8154, %v8147
    %v8253 = vpack.c.b16 %v8162, %v8155
    %v8254 = vpack.c.b16 %v8163, %v8156
    %v8255 = vpack.c.b16 %v8164, %v8157
    %v8256 = vpack.c.b16 %v8165, %v8158
    %v8257 = vpack.c.b16 %v8166, %v8159
    %v8258 = vpack.c.b16 %v8167, %v8160
    %v8259 = vpack.c.b16 %v8168, %v8161
    %v8260 = vpack.c.b16 %v8176, %v8169
    %v8261 = vpack.c.b16 %v8177, %v8170
    %v8262 = vpack.c.b16 %v8178, %v8171
    %v8263 = vpack.c.b16 %v8179, %v8172
    %v8264 = vpack.c.b16 %v8180, %v8173
    %v8265 = vpack.c.b16 %v8181, %v8174
    %v8266 = vpack.c.b16 %v8182, %v8175
    %v8267 = vpack.c.b16 %v8190, %v8183
    %v8268 = vpack.c.b16 %v8191, %v8184
    %v8269 = vpack.c.b16 %v8192, %v8185
    %v8270 = vpack.c.b16 %v8193, %v8186
    %v8271 = vpack.c.b16 %v8194, %v8187
    %v8272 = vpack.c.b16 %v8195, %v8188
    %v8273 = vpack.c.b16 %v8196, %v8189
    %v8274 = vpack.c.b16 %v8204, %v8197
    %v8275 = vpack.c.b16 %v8205, %v8198
    %v8276 = vpack.c.b16 %v8206, %v8199
    %v8277 = vpack.c.b16 %v8207, %v8200
    %v8278 = vpack.c.b16 %v8208, %v8201
    %v8279 = vpack.c.b16 %v8209, %v8202
    %v8280 = vpack.c.b16 %v8210, %v8203
    %v8281 = vpack.c.b16 %v8218, %v8211
    %v8282 = vpack.c.b16 %v8219, %v8212
    %v8283 = vpack.c.b16 %v8220, %v8213
    %v8284 = vpack.c.b16 %v8221, %v8214
    %v8285 = vpack.c.b16 %v8222, %v8215
    %v8286 = vpack.c.b16 %v8223, %v8216
    %v8287 = vpack.c.b16 %v8224, %v8217
    %v8288 = vpack.c.b16 %v8232, %v8225
    %v8289 = vpack.c.b16 %v8233, %v8226
    %v8290 = vpack.c.b16 %v8234, %v8227
    %v8291 = vpack.c.b16 %v8235, %v8228
    %v8292 = vpack.c.b16 %v8236, %v8229
    %v8293 = vpack.c.b16 %v8237, %v8230
    %v8294 = vpack.c.b16 %v8238, %v8231
    %8351 = vmatpush.bf16.msra.mxu0 %v8288
    %8352 = vmatpush.bf16.msra.mxu0 %v8281
    %8353 = vmatpush.bf16.msra.mxu0 %v8274
    %8354 = vmatpush.bf16.msra.mxu0 %v8267
    %8355 = vmatpush.bf16.msra.mxu0 %v8260
    %8356 = vmatpush.bf16.msra.mxu0 %v8253
    %8357 = vmatpush.bf16.msra.mxu0 %v8246
    %8358 = vmatpush.bf16.msra.mxu0 %v8239
    %8359 = vmatmul.bf16.gmra.mxu0 %v6198
    %v8360 = vpop.f32.mrf.mxu0
    %v8361 = vadd.f32 %v7723, %v8360
    %v8362 = vpop.f32.mrf.mxu0
    %v8363 = vadd.f32 %v7725, %v8362
    %8364 = vdwg.mxu0
    %8365 = vmatpush.bf16.msra.mxu0 %v8289
    %8366 = vmatpush.bf16.msra.mxu0 %v8282
    %8367 = vmatpush.bf16.msra.mxu0 %v8275
    %8368 = vmatpush.bf16.msra.mxu0 %v8268
    %8369 = vmatpush.bf16.msra.mxu0 %v8261
    %8370 = vmatpush.bf16.msra.mxu0 %v8254
    %8371 = vmatpush.bf16.msra.mxu0 %v8247
    %8372 = vmatpush.bf16.msra.mxu0 %v8240
    %8373 = vmatmul.bf16.gmra.mxu0 %v6198
    %v8374 = vpop.f32.mrf.mxu0
    %v8375 = vadd.f32 %v7779, %v8374
    %v8376 = vpop.f32.mrf.mxu0
    %v8377 = vadd.f32 %v7781, %v8376
    %8378 = vdwg.mxu0
    %8379 = vmatpush.bf16.msra.mxu0 %v8290
    %8380 = vmatpush.bf16.msra.mxu0 %v8283
    %8381 = vmatpush.bf16.msra.mxu0 %v8276
    %8382 = vmatpush.bf16.msra.mxu0 %v8269
    %8383 = vmatpush.bf16.msra.mxu0 %v8262
    %8384 = vmatpush.bf16.msra.mxu0 %v8255
    %8385 = vmatpush.bf16.msra.mxu0 %v8248
    %8386 = vmatpush.bf16.msra.mxu0 %v8241
    %8387 = vmatmul.bf16.gmra.mxu0 %v6198
    %v8388 = vpop.f32.mrf.mxu0
    %v8389 = vadd.f32 %v7835, %v8388
    %v8390 = vpop.f32.mrf.mxu0
    %v8391 = vadd.f32 %v7837, %v8390
    %8392 = vdwg.mxu0
    %8393 = vmatpush.bf16.msra.mxu0 %v8291
    %8394 = vmatpush.bf16.msra.mxu0 %v8284
    %8395 = vmatpush.bf16.msra.mxu0 %v8277
    %8396 = vmatpush.bf16.msra.mxu0 %v8270
    %8397 = vmatpush.bf16.msra.mxu0 %v8263
    %8398 = vmatpush.bf16.msra.mxu0 %v8256
    %8399 = vmatpush.bf16.msra.mxu0 %v8249
    %8400 = vmatpush.bf16.msra.mxu0 %v8242
    %8401 = vmatmul.bf16.gmra.mxu0 %v6198
    %v8402 = vpop.f32.mrf.mxu0
    %v8403 = vadd.f32 %v7891, %v8402
    %v8404 = vpop.f32.mrf.mxu0
    %v8405 = vadd.f32 %v7893, %v8404
    %8406 = vdwg.mxu0
    %8407 = vmatpush.bf16.msra.mxu0 %v8292
    %8408 = vmatpush.bf16.msra.mxu0 %v8285
    %8409 = vmatpush.bf16.msra.mxu0 %v8278
    %8410 = vmatpush.bf16.msra.mxu0 %v8271
    %8411 = vmatpush.bf16.msra.mxu0 %v8264
    %8412 = vmatpush.bf16.msra.mxu0 %v8257
    %8413 = vmatpush.bf16.msra.mxu0 %v8250
    %8414 = vmatpush.bf16.msra.mxu0 %v8243
    %8415 = vmatmul.bf16.gmra.mxu0 %v6198
    %v8416 = vpop.f32.mrf.mxu0
    %v8417 = vadd.f32 %v7947, %v8416
    %v8418 = vpop.f32.mrf.mxu0
    %v8419 = vadd.f32 %v7949, %v8418
    %8420 = vdwg.mxu0
    %8421 = vmatpush.bf16.msra.mxu0 %v8293
    %8422 = vmatpush.bf16.msra.mxu0 %v8286
    %8423 = vmatpush.bf16.msra.mxu0 %v8279
    %8424 = vmatpush.bf16.msra.mxu0 %v8272
    %8425 = vmatpush.bf16.msra.mxu0 %v8265
    %8426 = vmatpush.bf16.msra.mxu0 %v8258
    %8427 = vmatpush.bf16.msra.mxu0 %v8251
    %8428 = vmatpush.bf16.msra.mxu0 %v8244
    %8429 = vmatmul.bf16.gmra.mxu0 %v6198
    %v8430 = vpop.f32.mrf.mxu0
    %v8431 = vadd.f32 %v8003, %v8430
    %v8432 = vpop.f32.mrf.mxu0
    %v8433 = vadd.f32 %v8005, %v8432
    %8434 = vdwg.mxu0
    %8435 = vmatpush.bf16.msra.mxu0 %v8294
    %8436 = vmatpush.bf16.msra.mxu0 %v8287
    %8437 = vmatpush.bf16.msra.mxu0 %v8280
    %8438 = vmatpush.bf16.msra.mxu0 %v8273
    %8439 = vmatpush.bf16.msra.mxu0 %v8266
    %8440 = vmatpush.bf16.msra.mxu0 %v8259
    %8441 = vmatpush.bf16.msra.mxu0 %v8252
    %8442 = vmatpush.bf16.msra.mxu0 %v8245
    %8443 = vmatmul.bf16.gmra.mxu0 %v6198
    %v8444 = vpop.f32.mrf.mxu0
    %v8445 = vadd.f32 %v8059, %v8444
    %v8446 = vpop.f32.mrf.mxu0
    %v8447 = vadd.f32 %v8061, %v8446
    %8448 = vdwg.mxu0
    %v8449 = vld [vmem:[#allocation19] sm:$0xff]
    %v8451 = vperm.slane %v8449, 0
    %v8452 = vperm.slane %v8449, 1
    %v8453 = vperm.slane %v8449, 2
    %v8454 = vperm.slane %v8449, 3
    %v8455 = vperm.slane %v8449, 4
    %v8456 = vperm.slane %v8449, 5
    %v8457 = vperm.slane %v8449, 6
    %v8465 = vadd.f32 %v8361, %v8451
    %v8466 = vadd.f32 %v8375, %v8452
    %v8467 = vadd.f32 %v8389, %v8453
    %v8468 = vadd.f32 %v8403, %v8454
    %v8469 = vadd.f32 %v8417, %v8455
    %v8470 = vadd.f32 %v8431, %v8456
    %v8471 = vadd.f32 %v8445, %v8457
    %v8472 = vadd.f32 %v8363, %v8451
    %v8473 = vadd.f32 %v8377, %v8452
    %v8474 = vadd.f32 %v8391, %v8453
    %v8475 = vadd.f32 %v8405, %v8454
    %v8476 = vadd.f32 %v8419, %v8455
    %v8477 = vadd.f32 %v8433, %v8456
    %v8478 = vadd.f32 %v8447, %v8457
    %v8479 = vmax.f32 %v8465, 0.0
    %v8480 = vmax.f32 %v8466, 0.0
    %v8481 = vmax.f32 %v8467, 0.0
    %v8482 = vmax.f32 %v8468, 0.0
    %v8483 = vmax.f32 %v8469, 0.0
    %v8484 = vmax.f32 %v8470, 0.0
    %v8485 = vmax.f32 %v8471, 0.0
    %v8486 = vmax.f32 %v8472, 0.0
    %v8487 = vmax.f32 %v8473, 0.0
    %v8488 = vmax.f32 %v8474, 0.0
    %v8489 = vmax.f32 %v8475, 0.0
    %v8490 = vmax.f32 %v8476, 0.0
    %v8491 = vmax.f32 %v8477, 0.0
    %v8492 = vmax.f32 %v8478, 0.0
    %v8493 = vpack.c.bf16 %v8486, %v8479
    %v8494 = vpack.c.bf16 %v8487, %v8480
    %v8495 = vpack.c.bf16 %v8488, %v8481
    %v8496 = vpack.c.bf16 %v8489, %v8482
    %v8497 = vpack.c.bf16 %v8490, %v8483
    %v8498 = vpack.c.bf16 %v8491, %v8484
    %v8499 = vpack.c.bf16 %v8492, %v8485
    %v8500 = vld [vmem:[#allocation20] sm:$0xff]
    %v8501 = vld [vmem:[#allocation20 + $0x8] sm:$0xff]
    %v8502 = vld [vmem:[#allocation20 + $0x10] sm:$0xff]
    %v8503 = vld [vmem:[#allocation20 + $0x18] sm:$0xf]
    %v8504 = vld [vmem:[#allocation20 + $0x1c] sm:$0xff]
    %v8505 = vld [vmem:[#allocation20 + $0x24] sm:$0xff]
    %v8506 = vld [vmem:[#allocation20 + $0x2c] sm:$0xff]
    %v8507 = vld [vmem:[#allocation20 + $0x34] sm:$0xf]
    %v8508 = vld [vmem:[#allocation20 + $0x38] sm:$0xff]
    %v8509 = vld [vmem:[#allocation20 + $0x40] sm:$0xff]
    %v8510 = vld [vmem:[#allocation20 + $0x48] sm:$0xff]
    %v8511 = vld [vmem:[#allocation20 + $0x50] sm:$0xf]
    %v8512 = vld [vmem:[#allocation20 + $0x54] sm:$0xff]
    %v8513 = vld [vmem:[#allocation20 + $0x5c] sm:$0xff]
    %v8514 = vld [vmem:[#allocation20 + $0x64] sm:$0xff]
    %v8515 = vld [vmem:[#allocation20 + $0x6c] sm:$0xf]
    %v8516 = vld [vmem:[#allocation20 + $0x70] sm:$0xff]
    %v8517 = vld [vmem:[#allocation20 + $0x78] sm:$0xff]
    %v8518 = vld [vmem:[#allocation20 + $0x80] sm:$0xff]
    %v8519 = vld [vmem:[#allocation20 + $0x88] sm:$0xf]
    %v8520 = vld [vmem:[#allocation20 + $0x8c] sm:$0xff]
    %v8521 = vld [vmem:[#allocation20 + $0x94] sm:$0xff]
    %v8522 = vld [vmem:[#allocation20 + $0x9c] sm:$0xff]
    %v8523 = vld [vmem:[#allocation20 + $0xa4] sm:$0xf]
    %v8524 = vld [vmem:[#allocation20 + $0xa8] sm:$0xff]
    %v8525 = vld [vmem:[#allocation20 + $0xb0] sm:$0xff]
    %v8526 = vld [vmem:[#allocation20 + $0xb8] sm:$0xff]
    %v8527 = vld [vmem:[#allocation20 + $0xc0] sm:$0xf]
    %v8528 = vld [vmem:[#allocation20 + $0xc4] sm:$0xff]
    %v8529 = vld [vmem:[#allocation20 + $0xcc] sm:$0xff]
    %v8530 = vld [vmem:[#allocation20 + $0xd4] sm:$0xff]
    %v8531 = vld [vmem:[#allocation20 + $0xdc] sm:$0xf]
    %v8532 = vld [vmem:[#allocation20 + $0xe0] sm:$0xff]
    %v8533 = vld [vmem:[#allocation20 + $0xe8] sm:$0xff]
    %v8534 = vld [vmem:[#allocation20 + $0xf0] sm:$0xff]
    %v8535 = vld [vmem:[#allocation20 + $0xf8] sm:$0xf]
    %v8536 = vld [vmem:[#allocation20 + $0xfc] sm:$0xff]
    %v8537 = vld [vmem:[#allocation20 + $0x104] sm:$0xff]
    %v8538 = vld [vmem:[#allocation20 + $0x10c] sm:$0xff]
    %v8539 = vld [vmem:[#allocation20 + $0x114] sm:$0xf]
    %v8540 = vld [vmem:[#allocation20 + $0x118] sm:$0xff]
    %v8541 = vld [vmem:[#allocation20 + $0x120] sm:$0xff]
    %v8542 = vld [vmem:[#allocation20 + $0x128] sm:$0xff]
    %v8543 = vld [vmem:[#allocation20 + $0x130] sm:$0xf]
    %v8544 = vld [vmem:[#allocation20 + $0x134] sm:$0xff]
    %v8545 = vld [vmem:[#allocation20 + $0x13c] sm:$0xff]
    %v8546 = vld [vmem:[#allocation20 + $0x144] sm:$0xff]
    %v8547 = vld [vmem:[#allocation20 + $0x14c] sm:$0xf]
    %v8548 = vld [vmem:[#allocation20 + $0x150] sm:$0xff]
    %v8549 = vld [vmem:[#allocation20 + $0x158] sm:$0xff]
    %v8550 = vld [vmem:[#allocation20 + $0x160] sm:$0xff]
    %v8551 = vld [vmem:[#allocation20 + $0x168] sm:$0xf]
    %v8552 = vld [vmem:[#allocation20 + $0x16c] sm:$0xff]
    %v8553 = vld [vmem:[#allocation20 + $0x174] sm:$0xff]
    %v8554 = vld [vmem:[#allocation20 + $0x17c] sm:$0xff]
    %v8555 = vld [vmem:[#allocation20 + $0x184] sm:$0xf]
    %v8556 = vld [vmem:[#allocation20 + $0x188] sm:$0xff]
    %v8557 = vld [vmem:[#allocation20 + $0x190] sm:$0xff]
    %v8558 = vld [vmem:[#allocation20 + $0x198] sm:$0xff]
    %v8559 = vld [vmem:[#allocation20 + $0x1a0] sm:$0xf]
    %v8560 = vld [vmem:[#allocation20 + $0x1a4] sm:$0xff]
    %v8561 = vld [vmem:[#allocation20 + $0x1ac] sm:$0xff]
    %v8562 = vld [vmem:[#allocation20 + $0x1b4] sm:$0xff]
    %v8563 = vld [vmem:[#allocation20 + $0x1bc] sm:$0xf]
    %v8564 = vld [vmem:[#allocation20 + $0x1c0] sm:$0xff]
    %v8565 = vld [vmem:[#allocation20 + $0x1c8] sm:$0xff]
    %v8566 = vld [vmem:[#allocation20 + $0x1d0] sm:$0xff]
    %v8567 = vld [vmem:[#allocation20 + $0x1d8] sm:$0xf]
    %v8568 = vld [vmem:[#allocation20 + $0x1dc] sm:$0xff]
    %v8569 = vld [vmem:[#allocation20 + $0x1e4] sm:$0xff]
    %v8570 = vld [vmem:[#allocation20 + $0x1ec] sm:$0xff]
    %v8571 = vld [vmem:[#allocation20 + $0x1f4] sm:$0xf]
    %v8572 = vld [vmem:[#allocation20 + $0x1f8] sm:$0xff]
    %v8573 = vld [vmem:[#allocation20 + $0x200] sm:$0xff]
    %v8574 = vld [vmem:[#allocation20 + $0x208] sm:$0xff]
    %v8575 = vld [vmem:[#allocation20 + $0x210] sm:$0xf]
    %v8576 = vld [vmem:[#allocation20 + $0x214] sm:$0xff]
    %v8577 = vld [vmem:[#allocation20 + $0x21c] sm:$0xff]
    %v8578 = vld [vmem:[#allocation20 + $0x224] sm:$0xff]
    %v8579 = vld [vmem:[#allocation20 + $0x22c] sm:$0xf]
    %v8580 = vld [vmem:[#allocation20 + $0x230] sm:$0xff]
    %v8581 = vld [vmem:[#allocation20 + $0x238] sm:$0xff]
    %v8582 = vld [vmem:[#allocation20 + $0x240] sm:$0xff]
    %v8583 = vld [vmem:[#allocation20 + $0x248] sm:$0xf]
    %v8584 = vld [vmem:[#allocation20 + $0x24c] sm:$0xff]
    %v8585 = vld [vmem:[#allocation20 + $0x254] sm:$0xff]
    %v8586 = vld [vmem:[#allocation20 + $0x25c] sm:$0xff]
    %v8587 = vld [vmem:[#allocation20 + $0x264] sm:$0xf]
    %v8588 = vld [vmem:[#allocation20 + $0x268] sm:$0xff]
    %v8589 = vld [vmem:[#allocation20 + $0x270] sm:$0xff]
    %v8590 = vld [vmem:[#allocation20 + $0x278] sm:$0xff]
    %v8591 = vld [vmem:[#allocation20 + $0x280] sm:$0xf]
    %v8592 = vld [vmem:[#allocation20 + $0x284] sm:$0xff]
    %v8593 = vld [vmem:[#allocation20 + $0x28c] sm:$0xff]
    %v8594 = vld [vmem:[#allocation20 + $0x294] sm:$0xff]
    %v8595 = vld [vmem:[#allocation20 + $0x29c] sm:$0xf]
    %v8596 = vld [vmem:[#allocation20 + $0x2a0] sm:$0xff]
    %v8597 = vld [vmem:[#allocation20 + $0x2a8] sm:$0xff]
    %v8598 = vld [vmem:[#allocation20 + $0x2b0] sm:$0xff]
    %v8599 = vld [vmem:[#allocation20 + $0x2b8] sm:$0xf]
    %v8600 = vld [vmem:[#allocation20 + $0x2bc] sm:$0xff]
    %v8601 = vld [vmem:[#allocation20 + $0x2c4] sm:$0xff]
    %v8602 = vld [vmem:[#allocation20 + $0x2cc] sm:$0xff]
    %v8603 = vld [vmem:[#allocation20 + $0x2d4] sm:$0xf]
    %v8604 = vld [vmem:[#allocation20 + $0x2d8] sm:$0xff]
    %v8605 = vld [vmem:[#allocation20 + $0x2e0] sm:$0xff]
    %v8606 = vld [vmem:[#allocation20 + $0x2e8] sm:$0xff]
    %v8607 = vld [vmem:[#allocation20 + $0x2f0] sm:$0xf]
    %v8608 = vld [vmem:[#allocation20 + $0x2f4] sm:$0xff]
    %v8609 = vld [vmem:[#allocation20 + $0x2fc] sm:$0xff]
    %v8610 = vld [vmem:[#allocation20 + $0x304] sm:$0xff]
    %v8611 = vld [vmem:[#allocation20 + $0x30c] sm:$0xf]
    %v8612 = vld [vmem:[#allocation20 + $0x310] sm:$0xff]
    %v8613 = vld [vmem:[#allocation20 + $0x318] sm:$0xff]
    %v8614 = vld [vmem:[#allocation20 + $0x320] sm:$0xff]
    %v8615 = vld [vmem:[#allocation20 + $0x328] sm:$0xf]
    %v8616 = vld [vmem:[#allocation20 + $0x32c] sm:$0xff]
    %v8617 = vld [vmem:[#allocation20 + $0x334] sm:$0xff]
    %v8618 = vld [vmem:[#allocation20 + $0x33c] sm:$0xff]
    %v8619 = vld [vmem:[#allocation20 + $0x344] sm:$0xf]
    %v8620 = vld [vmem:[#allocation20 + $0x348] sm:$0xff]
    %v8621 = vld [vmem:[#allocation20 + $0x350] sm:$0xff]
    %v8622 = vld [vmem:[#allocation20 + $0x358] sm:$0xff]
    %v8623 = vld [vmem:[#allocation20 + $0x360] sm:$0xf]
    %v8624 = vld [vmem:[#allocation20 + $0x364] sm:$0xff]
    %v8625 = vld [vmem:[#allocation20 + $0x36c] sm:$0xff]
    %v8626 = vld [vmem:[#allocation20 + $0x374] sm:$0xff]
    %v8627 = vld [vmem:[#allocation20 + $0x37c] sm:$0xf]
    %v8628 = vld [vmem:[#allocation20 + $0x380] sm:$0xff]
    %v8629 = vld [vmem:[#allocation20 + $0x388] sm:$0xff]
    %v8630 = vld [vmem:[#allocation20 + $0x390] sm:$0xff]
    %v8631 = vld [vmem:[#allocation20 + $0x398] sm:$0xf]
    %v8632 = vld [vmem:[#allocation20 + $0x39c] sm:$0xff]
    %v8633 = vld [vmem:[#allocation20 + $0x3a4] sm:$0xff]
    %v8634 = vld [vmem:[#allocation20 + $0x3ac] sm:$0xff]
    %v8635 = vld [vmem:[#allocation20 + $0x3b4] sm:$0xf]
    %v8636 = vld [vmem:[#allocation20 + $0x3b8] sm:$0xff]
    %v8637 = vld [vmem:[#allocation20 + $0x3c0] sm:$0xff]
    %v8638 = vld [vmem:[#allocation20 + $0x3c8] sm:$0xff]
    %v8639 = vld [vmem:[#allocation20 + $0x3d0] sm:$0xf]
    %v8640 = vld [vmem:[#allocation20 + $0x3d4] sm:$0xff]
    %v8641 = vld [vmem:[#allocation20 + $0x3dc] sm:$0xff]
    %v8642 = vld [vmem:[#allocation20 + $0x3e4] sm:$0xff]
    %v8643 = vld [vmem:[#allocation20 + $0x3ec] sm:$0xf]
    %v8644 = vld [vmem:[#allocation20 + $0x3f0] sm:$0xff]
    %v8645 = vld [vmem:[#allocation20 + $0x3f8] sm:$0xff]
    %v8646 = vld [vmem:[#allocation20 + $0x400] sm:$0xff]
    %v8647 = vld [vmem:[#allocation20 + $0x408] sm:$0xf]
    %v8648 = vld [vmem:[#allocation20 + $0x40c] sm:$0xff]
    %v8649 = vld [vmem:[#allocation20 + $0x414] sm:$0xff]
    %v8650 = vld [vmem:[#allocation20 + $0x41c] sm:$0xff]
    %v8651 = vld [vmem:[#allocation20 + $0x424] sm:$0xf]
    %v8652 = vld [vmem:[#allocation20 + $0x428] sm:$0xff]
    %v8653 = vld [vmem:[#allocation20 + $0x430] sm:$0xff]
    %v8654 = vld [vmem:[#allocation20 + $0x438] sm:$0xff]
    %v8655 = vld [vmem:[#allocation20 + $0x440] sm:$0xf]
    %v8656 = vld [vmem:[#allocation20 + $0x444] sm:$0xff]
    %v8657 = vld [vmem:[#allocation20 + $0x44c] sm:$0xff]
    %v8658 = vld [vmem:[#allocation20 + $0x454] sm:$0xff]
    %v8659 = vld [vmem:[#allocation20 + $0x45c] sm:$0xf]
    %v8660 = vld [vmem:[#allocation20 + $0x460] sm:$0xff]
    %v8661 = vld [vmem:[#allocation20 + $0x468] sm:$0xff]
    %v8662 = vld [vmem:[#allocation20 + $0x470] sm:$0xff]
    %v8663 = vld [vmem:[#allocation20 + $0x478] sm:$0xf]
    %v8664 = vld [vmem:[#allocation20 + $0x47c] sm:$0xff]
    %v8665 = vld [vmem:[#allocation20 + $0x484] sm:$0xff]
    %v8666 = vld [vmem:[#allocation20 + $0x48c] sm:$0xff]
    %v8667 = vld [vmem:[#allocation20 + $0x494] sm:$0xf]
    %v8668 = vld [vmem:[#allocation20 + $0x498] sm:$0xff]
    %v8669 = vld [vmem:[#allocation20 + $0x4a0] sm:$0xff]
    %v8670 = vld [vmem:[#allocation20 + $0x4a8] sm:$0xff]
    %v8671 = vld [vmem:[#allocation20 + $0x4b0] sm:$0xf]
    %v8672 = vld [vmem:[#allocation20 + $0x4b4] sm:$0xff]
    %v8673 = vld [vmem:[#allocation20 + $0x4bc] sm:$0xff]
    %v8674 = vld [vmem:[#allocation20 + $0x4c4] sm:$0xff]
    %v8675 = vld [vmem:[#allocation20 + $0x4cc] sm:$0xf]
    %v8676 = vld [vmem:[#allocation20 + $0x4d0] sm:$0xff]
    %v8677 = vld [vmem:[#allocation20 + $0x4d8] sm:$0xff]
    %v8678 = vld [vmem:[#allocation20 + $0x4e0] sm:$0xff]
    %v8679 = vld [vmem:[#allocation20 + $0x4e8] sm:$0xf]
    %v8680 = vld [vmem:[#allocation20 + $0x4ec] sm:$0xff]
    %v8681 = vld [vmem:[#allocation20 + $0x4f4] sm:$0xff]
    %v8682 = vld [vmem:[#allocation20 + $0x4fc] sm:$0xff]
    %v8683 = vld [vmem:[#allocation20 + $0x504] sm:$0xf]
    %v8684 = vld [vmem:[#allocation20 + $0x508] sm:$0xff]
    %v8685 = vld [vmem:[#allocation20 + $0x510] sm:$0xff]
    %v8686 = vld [vmem:[#allocation20 + $0x518] sm:$0xff]
    %v8687 = vld [vmem:[#allocation20 + $0x520] sm:$0xf]
    %v8688 = vld [vmem:[#allocation20 + $0x524] sm:$0xff]
    %v8689 = vld [vmem:[#allocation20 + $0x52c] sm:$0xff]
    %v8690 = vld [vmem:[#allocation20 + $0x534] sm:$0xff]
    %v8691 = vld [vmem:[#allocation20 + $0x53c] sm:$0xf]
    %v8692 = vld [vmem:[#allocation20 + $0x540] sm:$0xff]
    %v8693 = vld [vmem:[#allocation20 + $0x548] sm:$0xff]
    %v8694 = vld [vmem:[#allocation20 + $0x550] sm:$0xff]
    %v8695 = vld [vmem:[#allocation20 + $0x558] sm:$0xf]
    %v8696 = vld [vmem:[#allocation20 + $0x55c] sm:$0xff]
    %v8697 = vld [vmem:[#allocation20 + $0x564] sm:$0xff]
    %v8698 = vld [vmem:[#allocation20 + $0x56c] sm:$0xff]
    %v8699 = vld [vmem:[#allocation20 + $0x574] sm:$0xf]
    %v8700 = vld [vmem:[#allocation20 + $0x578] sm:$0xff]
    %v8701 = vld [vmem:[#allocation20 + $0x580] sm:$0xff]
    %v8702 = vld [vmem:[#allocation20 + $0x588] sm:$0xff]
    %v8703 = vld [vmem:[#allocation20 + $0x590] sm:$0xf]
    %v8704 = vld [vmem:[#allocation20 + $0x594] sm:$0xff]
    %v8705 = vld [vmem:[#allocation20 + $0x59c] sm:$0xff]
    %v8706 = vld [vmem:[#allocation20 + $0x5a4] sm:$0xff]
    %v8707 = vld [vmem:[#allocation20 + $0x5ac] sm:$0xf]
    %v8708 = vld [vmem:[#allocation20 + $0x5b0] sm:$0xff]
    %v8709 = vld [vmem:[#allocation20 + $0x5b8] sm:$0xff]
    %v8710 = vld [vmem:[#allocation20 + $0x5c0] sm:$0xff]
    %v8711 = vld [vmem:[#allocation20 + $0x5c8] sm:$0xf]
    %v8712 = vld [vmem:[#allocation20 + $0x5cc] sm:$0xff]
    %v8713 = vld [vmem:[#allocation20 + $0x5d4] sm:$0xff]
    %v8714 = vld [vmem:[#allocation20 + $0x5dc] sm:$0xff]
    %v8715 = vld [vmem:[#allocation20 + $0x5e4] sm:$0xf]
    %v8716 = vld [vmem:[#allocation20 + $0x5e8] sm:$0xff]
    %v8717 = vld [vmem:[#allocation20 + $0x5f0] sm:$0xff]
    %v8718 = vld [vmem:[#allocation20 + $0x5f8] sm:$0xff]
    %v8719 = vld [vmem:[#allocation20 + $0x600] sm:$0xf]
    %v8720 = vld [vmem:[#allocation20 + $0x604] sm:$0xff]
    %v8721 = vld [vmem:[#allocation20 + $0x60c] sm:$0xff]
    %v8722 = vld [vmem:[#allocation20 + $0x614] sm:$0xff]
    %v8723 = vld [vmem:[#allocation20 + $0x61c] sm:$0xf]
    %v8724 = vld [vmem:[#allocation20 + $0x620] sm:$0xff]
    %v8725 = vld [vmem:[#allocation20 + $0x628] sm:$0xff]
    %v8726 = vld [vmem:[#allocation20 + $0x630] sm:$0xff]
    %v8727 = vld [vmem:[#allocation20 + $0x638] sm:$0xf]
    %v8728 = vld [vmem:[#allocation20 + $0x63c] sm:$0xff]
    %v8729 = vld [vmem:[#allocation20 + $0x644] sm:$0xff]
    %v8730 = vld [vmem:[#allocation20 + $0x64c] sm:$0xff]
    %v8731 = vld [vmem:[#allocation20 + $0x654] sm:$0xf]
    %v8732 = vld [vmem:[#allocation20 + $0x658] sm:$0xff]
    %v8733 = vld [vmem:[#allocation20 + $0x660] sm:$0xff]
    %v8734 = vld [vmem:[#allocation20 + $0x668] sm:$0xff]
    %v8735 = vld [vmem:[#allocation20 + $0x670] sm:$0xf]
    %v8736 = vld [vmem:[#allocation20 + $0x674] sm:$0xff]
    %v8737 = vld [vmem:[#allocation20 + $0x67c] sm:$0xff]
    %v8738 = vld [vmem:[#allocation20 + $0x684] sm:$0xff]
    %v8739 = vld [vmem:[#allocation20 + $0x68c] sm:$0xf]
    %v8740 = vld [vmem:[#allocation20 + $0x690] sm:$0xff]
    %v8741 = vld [vmem:[#allocation20 + $0x698] sm:$0xff]
    %v8742 = vld [vmem:[#allocation20 + $0x6a0] sm:$0xff]
    %v8743 = vld [vmem:[#allocation20 + $0x6a8] sm:$0xf]
    %v8744 = vld [vmem:[#allocation20 + $0x6ac] sm:$0xff]
    %v8745 = vld [vmem:[#allocation20 + $0x6b4] sm:$0xff]
    %v8746 = vld [vmem:[#allocation20 + $0x6bc] sm:$0xff]
    %v8747 = vld [vmem:[#allocation20 + $0x6c4] sm:$0xf]
    %v8748 = vld [vmem:[#allocation20 + $0x6c8] sm:$0xff]
    %v8749 = vld [vmem:[#allocation20 + $0x6d0] sm:$0xff]
    %v8750 = vld [vmem:[#allocation20 + $0x6d8] sm:$0xff]
    %v8751 = vld [vmem:[#allocation20 + $0x6e0] sm:$0xf]
    %v8752 = vld [vmem:[#allocation20 + $0x6e4] sm:$0xff]
    %v8753 = vld [vmem:[#allocation20 + $0x6ec] sm:$0xff]
    %v8754 = vld [vmem:[#allocation20 + $0x6f4] sm:$0xff]
    %v8755 = vld [vmem:[#allocation20 + $0x6fc] sm:$0xf]
    %v8756 = vld [vmem:[#allocation20 + $0x700] sm:$0xff]
    %v8757 = vld [vmem:[#allocation20 + $0x708] sm:$0xff]
    %v8758 = vld [vmem:[#allocation20 + $0x710] sm:$0xff]
    %v8759 = vld [vmem:[#allocation20 + $0x718] sm:$0xf]
    %v8760 = vld [vmem:[#allocation20 + $0x71c] sm:$0xff]
    %v8761 = vld [vmem:[#allocation20 + $0x724] sm:$0xff]
    %v8762 = vld [vmem:[#allocation20 + $0x72c] sm:$0xff]
    %v8763 = vld [vmem:[#allocation20 + $0x734] sm:$0xf]
    %v8764 = vld [vmem:[#allocation20 + $0x738] sm:$0xff]
    %v8765 = vld [vmem:[#allocation20 + $0x740] sm:$0xff]
    %v8766 = vld [vmem:[#allocation20 + $0x748] sm:$0xff]
    %v8767 = vld [vmem:[#allocation20 + $0x750] sm:$0xf]
    %v8768 = vld [vmem:[#allocation20 + $0x754] sm:$0xff]
    %v8769 = vld [vmem:[#allocation20 + $0x75c] sm:$0xff]
    %v8770 = vld [vmem:[#allocation20 + $0x764] sm:$0xff]
    %v8771 = vld [vmem:[#allocation20 + $0x76c] sm:$0xf]
    %v8772 = vld [vmem:[#allocation20 + $0x770] sm:$0xff]
    %v8773 = vld [vmem:[#allocation20 + $0x778] sm:$0xff]
    %v8774 = vld [vmem:[#allocation20 + $0x780] sm:$0xff]
    %v8775 = vld [vmem:[#allocation20 + $0x788] sm:$0xf]
    %v8776 = vld [vmem:[#allocation20 + $0x78c] sm:$0xff]
    %v8777 = vld [vmem:[#allocation20 + $0x794] sm:$0xff]
    %v8778 = vld [vmem:[#allocation20 + $0x79c] sm:$0xff]
    %v8779 = vld [vmem:[#allocation20 + $0x7a4] sm:$0xf]
    %v8780 = vld [vmem:[#allocation20 + $0x7a8] sm:$0xff]
    %v8781 = vld [vmem:[#allocation20 + $0x7b0] sm:$0xff]
    %v8782 = vld [vmem:[#allocation20 + $0x7b8] sm:$0xff]
    %v8783 = vld [vmem:[#allocation20 + $0x7c0] sm:$0xf]
    %v8784 = vld [vmem:[#allocation20 + $0x7c4] sm:$0xff]
    %v8785 = vld [vmem:[#allocation20 + $0x7cc] sm:$0xff]
    %v8786 = vld [vmem:[#allocation20 + $0x7d4] sm:$0xff]
    %v8787 = vld [vmem:[#allocation20 + $0x7dc] sm:$0xf]
    %v8788 = vld [vmem:[#allocation20 + $0x7e0] sm:$0xff]
    %v8789 = vld [vmem:[#allocation20 + $0x7e8] sm:$0xff]
    %v8790 = vld [vmem:[#allocation20 + $0x7f0] sm:$0xff]
    %v8791 = vld [vmem:[#allocation20 + $0x7f8] sm:$0xf]
    %v8792 = vld [vmem:[#allocation20 + $0x7fc] sm:$0xff]
    %v8793 = vld [vmem:[#allocation20 + $0x804] sm:$0xff]
    %v8794 = vld [vmem:[#allocation20 + $0x80c] sm:$0xff]
    %v8795 = vld [vmem:[#allocation20 + $0x814] sm:$0xf]
    %v8796 = vld [vmem:[#allocation20 + $0x818] sm:$0xff]
    %v8797 = vld [vmem:[#allocation20 + $0x820] sm:$0xff]
    %v8798 = vld [vmem:[#allocation20 + $0x828] sm:$0xff]
    %v8799 = vld [vmem:[#allocation20 + $0x830] sm:$0xf]
    %v8800 = vld [vmem:[#allocation20 + $0x834] sm:$0xff]
    %v8801 = vld [vmem:[#allocation20 + $0x83c] sm:$0xff]
    %v8802 = vld [vmem:[#allocation20 + $0x844] sm:$0xff]
    %v8803 = vld [vmem:[#allocation20 + $0x84c] sm:$0xf]
    %v8804 = vld [vmem:[#allocation20 + $0x850] sm:$0xff]
    %v8805 = vld [vmem:[#allocation20 + $0x858] sm:$0xff]
    %v8806 = vld [vmem:[#allocation20 + $0x860] sm:$0xff]
    %v8807 = vld [vmem:[#allocation20 + $0x868] sm:$0xf]
    %v8808 = vld [vmem:[#allocation20 + $0x86c] sm:$0xff]
    %v8809 = vld [vmem:[#allocation20 + $0x874] sm:$0xff]
    %v8810 = vld [vmem:[#allocation20 + $0x87c] sm:$0xff]
    %v8811 = vld [vmem:[#allocation20 + $0x884] sm:$0xf]
    %v8812 = vld [vmem:[#allocation20 + $0x888] sm:$0xff]
    %v8813 = vld [vmem:[#allocation20 + $0x890] sm:$0xff]
    %v8814 = vld [vmem:[#allocation20 + $0x898] sm:$0xff]
    %v8815 = vld [vmem:[#allocation20 + $0x8a0] sm:$0xf]
    %v8816 = vld [vmem:[#allocation20 + $0x8a4] sm:$0xff]
    %v8817 = vld [vmem:[#allocation20 + $0x8ac] sm:$0xff]
    %v8818 = vld [vmem:[#allocation20 + $0x8b4] sm:$0xff]
    %v8819 = vld [vmem:[#allocation20 + $0x8bc] sm:$0xf]
    %v8820 = vld [vmem:[#allocation20 + $0x8c0] sm:$0xff]
    %v8821 = vld [vmem:[#allocation20 + $0x8c8] sm:$0xff]
    %v8822 = vld [vmem:[#allocation20 + $0x8d0] sm:$0xff]
    %v8823 = vld [vmem:[#allocation20 + $0x8d8] sm:$0xf]
    %v8824 = vld [vmem:[#allocation20 + $0x8dc] sm:$0xff]
    %v8825 = vld [vmem:[#allocation20 + $0x8e4] sm:$0xff]
    %v8826 = vld [vmem:[#allocation20 + $0x8ec] sm:$0xff]
    %v8827 = vld [vmem:[#allocation20 + $0x8f4] sm:$0xf]
    %v8828 = vld [vmem:[#allocation20 + $0x8f8] sm:$0xff]
    %v8829 = vld [vmem:[#allocation20 + $0x900] sm:$0xff]
    %v8830 = vld [vmem:[#allocation20 + $0x908] sm:$0xff]
    %v8831 = vld [vmem:[#allocation20 + $0x910] sm:$0xf]
    %v8832 = vld [vmem:[#allocation20 + $0x914] sm:$0xff]
    %v8833 = vld [vmem:[#allocation20 + $0x91c] sm:$0xff]
    %v8834 = vld [vmem:[#allocation20 + $0x924] sm:$0xff]
    %v8835 = vld [vmem:[#allocation20 + $0x92c] sm:$0xf]
    %v8836 = vld [vmem:[#allocation20 + $0x930] sm:$0xff]
    %v8837 = vld [vmem:[#allocation20 + $0x938] sm:$0xff]
    %v8838 = vld [vmem:[#allocation20 + $0x940] sm:$0xff]
    %v8839 = vld [vmem:[#allocation20 + $0x948] sm:$0xf]
    %v8840 = vld [vmem:[#allocation20 + $0x94c] sm:$0xff]
    %v8841 = vld [vmem:[#allocation20 + $0x954] sm:$0xff]
    %v8842 = vld [vmem:[#allocation20 + $0x95c] sm:$0xff]
    %v8843 = vld [vmem:[#allocation20 + $0x964] sm:$0xf]
    %v8844 = vld [vmem:[#allocation20 + $0x968] sm:$0xff]
    %v8845 = vld [vmem:[#allocation20 + $0x970] sm:$0xff]
    %v8846 = vld [vmem:[#allocation20 + $0x978] sm:$0xff]
    %v8847 = vld [vmem:[#allocation20 + $0x980] sm:$0xf]
    %v8848 = vld [vmem:[#allocation20 + $0x984] sm:$0xff]
    %v8849 = vld [vmem:[#allocation20 + $0x98c] sm:$0xff]
    %v8850 = vld [vmem:[#allocation20 + $0x994] sm:$0xff]
    %v8851 = vld [vmem:[#allocation20 + $0x99c] sm:$0xf]
    %v8852 = vld [vmem:[#allocation20 + $0x9a0] sm:$0xff]
    %v8853 = vld [vmem:[#allocation20 + $0x9a8] sm:$0xff]
    %v8854 = vld [vmem:[#allocation20 + $0x9b0] sm:$0xff]
    %v8855 = vld [vmem:[#allocation20 + $0x9b8] sm:$0xf]
    %v8856 = vld [vmem:[#allocation20 + $0x9bc] sm:$0xff]
    %v8857 = vld [vmem:[#allocation20 + $0x9c4] sm:$0xff]
    %v8858 = vld [vmem:[#allocation20 + $0x9cc] sm:$0xff]
    %v8859 = vld [vmem:[#allocation20 + $0x9d4] sm:$0xf]
    %v8860 = vld [vmem:[#allocation20 + $0x9d8] sm:$0xff]
    %v8861 = vld [vmem:[#allocation20 + $0x9e0] sm:$0xff]
    %v8862 = vld [vmem:[#allocation20 + $0x9e8] sm:$0xff]
    %v8863 = vld [vmem:[#allocation20 + $0x9f0] sm:$0xf]
    %v8864 = vld [vmem:[#allocation20 + $0x9f4] sm:$0xff]
    %v8865 = vld [vmem:[#allocation20 + $0x9fc] sm:$0xff]
    %v8866 = vld [vmem:[#allocation20 + $0xa04] sm:$0xff]
    %v8867 = vld [vmem:[#allocation20 + $0xa0c] sm:$0xf]
    %v8868 = vld [vmem:[#allocation20 + $0xa10] sm:$0xff]
    %v8869 = vld [vmem:[#allocation20 + $0xa18] sm:$0xff]
    %v8870 = vld [vmem:[#allocation20 + $0xa20] sm:$0xff]
    %v8871 = vld [vmem:[#allocation20 + $0xa28] sm:$0xf]
    %v8872 = vld [vmem:[#allocation20 + $0xa2c] sm:$0xff]
    %v8873 = vld [vmem:[#allocation20 + $0xa34] sm:$0xff]
    %v8874 = vld [vmem:[#allocation20 + $0xa3c] sm:$0xff]
    %v8875 = vld [vmem:[#allocation20 + $0xa44] sm:$0xf]
    %v8876 = vld [vmem:[#allocation20 + $0xa48] sm:$0xff]
    %v8877 = vld [vmem:[#allocation20 + $0xa50] sm:$0xff]
    %v8878 = vld [vmem:[#allocation20 + $0xa58] sm:$0xff]
    %v8879 = vld [vmem:[#allocation20 + $0xa60] sm:$0xf]
    %v8880 = vld [vmem:[#allocation20 + $0xa64] sm:$0xff]
    %v8881 = vld [vmem:[#allocation20 + $0xa6c] sm:$0xff]
    %v8882 = vld [vmem:[#allocation20 + $0xa74] sm:$0xff]
    %v8883 = vld [vmem:[#allocation20 + $0xa7c] sm:$0xf]
    %v8884 = vld [vmem:[#allocation20 + $0xa80] sm:$0xff]
    %v8885 = vld [vmem:[#allocation20 + $0xa88] sm:$0xff]
    %v8886 = vld [vmem:[#allocation20 + $0xa90] sm:$0xff]
    %v8887 = vld [vmem:[#allocation20 + $0xa98] sm:$0xf]
    %v8888 = vld [vmem:[#allocation20 + $0xa9c] sm:$0xff]
    %v8889 = vld [vmem:[#allocation20 + $0xaa4] sm:$0xff]
    %v8890 = vld [vmem:[#allocation20 + $0xaac] sm:$0xff]
    %v8891 = vld [vmem:[#allocation20 + $0xab4] sm:$0xf]
    %v8892 = vld [vmem:[#allocation20 + $0xab8] sm:$0xff]
    %v8893 = vld [vmem:[#allocation20 + $0xac0] sm:$0xff]
    %v8894 = vld [vmem:[#allocation20 + $0xac8] sm:$0xff]
    %v8895 = vld [vmem:[#allocation20 + $0xad0] sm:$0xf]
    %v8896 = vld [vmem:[#allocation20 + $0xad4] sm:$0xff]
    %v8897 = vld [vmem:[#allocation20 + $0xadc] sm:$0xff]
    %v8898 = vld [vmem:[#allocation20 + $0xae4] sm:$0xff]
    %v8899 = vld [vmem:[#allocation20 + $0xaec] sm:$0xf]
    %v8900 = vld [vmem:[#allocation20 + $0xaf0] sm:$0xff]
    %v8901 = vld [vmem:[#allocation20 + $0xaf8] sm:$0xff]
    %v8902 = vld [vmem:[#allocation20 + $0xb00] sm:$0xff]
    %v8903 = vld [vmem:[#allocation20 + $0xb08] sm:$0xf]
    %v8904 = vld [vmem:[#allocation20 + $0xb0c] sm:$0xff]
    %v8905 = vld [vmem:[#allocation20 + $0xb14] sm:$0xff]
    %v8906 = vld [vmem:[#allocation20 + $0xb1c] sm:$0xff]
    %v8907 = vld [vmem:[#allocation20 + $0xb24] sm:$0xf]
    %v8908 = vld [vmem:[#allocation20 + $0xb28] sm:$0xff]
    %v8909 = vld [vmem:[#allocation20 + $0xb30] sm:$0xff]
    %v8910 = vld [vmem:[#allocation20 + $0xb38] sm:$0xff]
    %v8911 = vld [vmem:[#allocation20 + $0xb40] sm:$0xf]
    %v8912 = vld [vmem:[#allocation20 + $0xb44] sm:$0xff]
    %v8913 = vld [vmem:[#allocation20 + $0xb4c] sm:$0xff]
    %v8914 = vld [vmem:[#allocation20 + $0xb54] sm:$0xff]
    %v8915 = vld [vmem:[#allocation20 + $0xb5c] sm:$0xf]
    %v8916 = vld [vmem:[#allocation20 + $0xb60] sm:$0xff]
    %v8917 = vld [vmem:[#allocation20 + $0xb68] sm:$0xff]
    %v8918 = vld [vmem:[#allocation20 + $0xb70] sm:$0xff]
    %v8919 = vld [vmem:[#allocation20 + $0xb78] sm:$0xf]
    %v8920 = vld [vmem:[#allocation20 + $0xb7c] sm:$0xff]
    %v8921 = vld [vmem:[#allocation20 + $0xb84] sm:$0xff]
    %v8922 = vld [vmem:[#allocation20 + $0xb8c] sm:$0xff]
    %v8923 = vld [vmem:[#allocation20 + $0xb94] sm:$0xf]
    %v8924 = vld [vmem:[#allocation20 + $0xb98] sm:$0xff]
    %v8925 = vld [vmem:[#allocation20 + $0xba0] sm:$0xff]
    %v8926 = vld [vmem:[#allocation20 + $0xba8] sm:$0xff]
    %v8927 = vld [vmem:[#allocation20 + $0xbb0] sm:$0xf]
    %v8928 = vld [vmem:[#allocation20 + $0xbb4] sm:$0xff]
    %v8929 = vld [vmem:[#allocation20 + $0xbbc] sm:$0xff]
    %v8930 = vld [vmem:[#allocation20 + $0xbc4] sm:$0xff]
    %v8931 = vld [vmem:[#allocation20 + $0xbcc] sm:$0xf]
    %v8932 = vld [vmem:[#allocation20 + $0xbd0] sm:$0xff]
    %v8933 = vld [vmem:[#allocation20 + $0xbd8] sm:$0xff]
    %v8934 = vld [vmem:[#allocation20 + $0xbe0] sm:$0xff]
    %v8935 = vld [vmem:[#allocation20 + $0xbe8] sm:$0xf]
    %v8936 = vld [vmem:[#allocation20 + $0xbec] sm:$0xff]
    %v8937 = vld [vmem:[#allocation20 + $0xbf4] sm:$0xff]
    %v8938 = vld [vmem:[#allocation20 + $0xbfc] sm:$0xff]
    %v8939 = vld [vmem:[#allocation20 + $0xc04] sm:$0xf]
    %v8940 = vld [vmem:[#allocation20 + $0xc08] sm:$0xff]
    %v8941 = vld [vmem:[#allocation20 + $0xc10] sm:$0xff]
    %v8942 = vld [vmem:[#allocation20 + $0xc18] sm:$0xff]
    %v8943 = vld [vmem:[#allocation20 + $0xc20] sm:$0xf]
    %v8944 = vld [vmem:[#allocation20 + $0xc24] sm:$0xff]
    %v8945 = vld [vmem:[#allocation20 + $0xc2c] sm:$0xff]
    %v8946 = vld [vmem:[#allocation20 + $0xc34] sm:$0xff]
    %v8947 = vld [vmem:[#allocation20 + $0xc3c] sm:$0xf]
    %v8948 = vld [vmem:[#allocation22] sm:$0xff]
    %v8950 = vperm.slane %v8948, 0
    %v8951 = vperm.slane %v8948, 1
    %v8952 = vperm.slane %v8948, 2
    %v8953 = vperm.slane %v8948, 3
    %v8954 = vperm.slane %v8948, 4
    %v8955 = vperm.slane %v8948, 5
    %v8956 = vperm.slane %v8948, 6
    %v9412 = vunpack.c.l.b16 %v8500
    %v9413 = vunpack.c.h.b16 %v8500
    %v9414 = vunpack.c.l.b16 %v8501
    %v9415 = vunpack.c.h.b16 %v8501
    %v9416 = vunpack.c.l.b16 %v8502
    %v9417 = vunpack.c.h.b16 %v8502
    %v9418 = vunpack.c.l.b16 %v8503
    %v9419 = vunpack.c.l.b16 %v8504
    %v9420 = vunpack.c.h.b16 %v8504
    %v9421 = vunpack.c.l.b16 %v8505
    %v9422 = vunpack.c.h.b16 %v8505
    %v9423 = vunpack.c.l.b16 %v8506
    %v9424 = vunpack.c.h.b16 %v8506
    %v9425 = vunpack.c.l.b16 %v8507
    %v9426 = vunpack.c.l.b16 %v8508
    %v9427 = vunpack.c.h.b16 %v8508
    %v9428 = vunpack.c.l.b16 %v8509
    %v9429 = vunpack.c.h.b16 %v8509
    %v9430 = vunpack.c.l.b16 %v8510
    %v9431 = vunpack.c.h.b16 %v8510
    %v9432 = vunpack.c.l.b16 %v8511
    %v9433 = vunpack.c.l.b16 %v8512
    %v9434 = vunpack.c.h.b16 %v8512
    %v9435 = vunpack.c.l.b16 %v8513
    %v9436 = vunpack.c.h.b16 %v8513
    %v9437 = vunpack.c.l.b16 %v8514
    %v9438 = vunpack.c.h.b16 %v8514
    %v9439 = vunpack.c.l.b16 %v8515
    %v9440 = vunpack.c.l.b16 %v8516
    %v9441 = vunpack.c.h.b16 %v8516
    %v9442 = vunpack.c.l.b16 %v8517
    %v9443 = vunpack.c.h.b16 %v8517
    %v9444 = vunpack.c.l.b16 %v8518
    %v9445 = vunpack.c.h.b16 %v8518
    %v9446 = vunpack.c.l.b16 %v8519
    %v9447 = vunpack.c.l.b16 %v8520
    %v9448 = vunpack.c.h.b16 %v8520
    %v9449 = vunpack.c.l.b16 %v8521
    %v9450 = vunpack.c.h.b16 %v8521
    %v9451 = vunpack.c.l.b16 %v8522
    %v9452 = vunpack.c.h.b16 %v8522
    %v9453 = vunpack.c.l.b16 %v8523
    %v9454 = vunpack.c.l.b16 %v8524
    %v9455 = vunpack.c.h.b16 %v8524
    %v9456 = vunpack.c.l.b16 %v8525
    %v9457 = vunpack.c.h.b16 %v8525
    %v9458 = vunpack.c.l.b16 %v8526
    %v9459 = vunpack.c.h.b16 %v8526
    %v9460 = vunpack.c.l.b16 %v8527
    %v9461 = vunpack.c.l.b16 %v8528
    %v9462 = vunpack.c.h.b16 %v8528
    %v9463 = vunpack.c.l.b16 %v8529
    %v9464 = vunpack.c.h.b16 %v8529
    %v9465 = vunpack.c.l.b16 %v8530
    %v9466 = vunpack.c.h.b16 %v8530
    %v9467 = vunpack.c.l.b16 %v8531
    %v9468 = vunpack.c.l.b16 %v8532
    %v9469 = vunpack.c.h.b16 %v8532
    %v9470 = vunpack.c.l.b16 %v8533
    %v9471 = vunpack.c.h.b16 %v8533
    %v9472 = vunpack.c.l.b16 %v8534
    %v9473 = vunpack.c.h.b16 %v8534
    %v9474 = vunpack.c.l.b16 %v8535
    %v9475 = vunpack.c.l.b16 %v8536
    %v9476 = vunpack.c.h.b16 %v8536
    %v9477 = vunpack.c.l.b16 %v8537
    %v9478 = vunpack.c.h.b16 %v8537
    %v9479 = vunpack.c.l.b16 %v8538
    %v9480 = vunpack.c.h.b16 %v8538
    %v9481 = vunpack.c.l.b16 %v8539
    %v9482 = vunpack.c.l.b16 %v8540
    %v9483 = vunpack.c.h.b16 %v8540
    %v9484 = vunpack.c.l.b16 %v8541
    %v9485 = vunpack.c.h.b16 %v8541
    %v9486 = vunpack.c.l.b16 %v8542
    %v9487 = vunpack.c.h.b16 %v8542
    %v9488 = vunpack.c.l.b16 %v8543
    %v9489 = vunpack.c.l.b16 %v8544
    %v9490 = vunpack.c.h.b16 %v8544
    %v9491 = vunpack.c.l.b16 %v8545
    %v9492 = vunpack.c.h.b16 %v8545
    %v9493 = vunpack.c.l.b16 %v8546
    %v9494 = vunpack.c.h.b16 %v8546
    %v9495 = vunpack.c.l.b16 %v8547
    %v9496 = vunpack.c.l.b16 %v8548
    %v9497 = vunpack.c.h.b16 %v8548
    %v9498 = vunpack.c.l.b16 %v8549
    %v9499 = vunpack.c.h.b16 %v8549
    %v9500 = vunpack.c.l.b16 %v8550
    %v9501 = vunpack.c.h.b16 %v8550
    %v9502 = vunpack.c.l.b16 %v8551
    %v9503 = vunpack.c.l.b16 %v8552
    %v9504 = vunpack.c.h.b16 %v8552
    %v9505 = vunpack.c.l.b16 %v8553
    %v9506 = vunpack.c.h.b16 %v8553
    %v9507 = vunpack.c.l.b16 %v8554
    %v9508 = vunpack.c.h.b16 %v8554
    %v9509 = vunpack.c.l.b16 %v8555
    %v9510 = vunpack.c.l.b16 %v8556
    %v9511 = vunpack.c.h.b16 %v8556
    %v9512 = vunpack.c.l.b16 %v8557
    %v9513 = vunpack.c.h.b16 %v8557
    %v9514 = vunpack.c.l.b16 %v8558
    %v9515 = vunpack.c.h.b16 %v8558
    %v9516 = vunpack.c.l.b16 %v8559
    %v9517 = vunpack.c.l.b16 %v8560
    %v9518 = vunpack.c.h.b16 %v8560
    %v9519 = vunpack.c.l.b16 %v8561
    %v9520 = vunpack.c.h.b16 %v8561
    %v9521 = vunpack.c.l.b16 %v8562
    %v9522 = vunpack.c.h.b16 %v8562
    %v9523 = vunpack.c.l.b16 %v8563
    %v9524 = vunpack.c.l.b16 %v8564
    %v9525 = vunpack.c.h.b16 %v8564
    %v9526 = vunpack.c.l.b16 %v8565
    %v9527 = vunpack.c.h.b16 %v8565
    %v9528 = vunpack.c.l.b16 %v8566
    %v9529 = vunpack.c.h.b16 %v8566
    %v9530 = vunpack.c.l.b16 %v8567
    %v9531 = vunpack.c.l.b16 %v8568
    %v9532 = vunpack.c.h.b16 %v8568
    %v9533 = vunpack.c.l.b16 %v8569
    %v9534 = vunpack.c.h.b16 %v8569
    %v9535 = vunpack.c.l.b16 %v8570
    %v9536 = vunpack.c.h.b16 %v8570
    %v9537 = vunpack.c.l.b16 %v8571
    %v9538 = vunpack.c.l.b16 %v8572
    %v9539 = vunpack.c.h.b16 %v8572
    %v9540 = vunpack.c.l.b16 %v8573
    %v9541 = vunpack.c.h.b16 %v8573
    %v9542 = vunpack.c.l.b16 %v8574
    %v9543 = vunpack.c.h.b16 %v8574
    %v9544 = vunpack.c.l.b16 %v8575
    %v9545 = vunpack.c.l.b16 %v8576
    %v9546 = vunpack.c.h.b16 %v8576
    %v9547 = vunpack.c.l.b16 %v8577
    %v9548 = vunpack.c.h.b16 %v8577
    %v9549 = vunpack.c.l.b16 %v8578
    %v9550 = vunpack.c.h.b16 %v8578
    %v9551 = vunpack.c.l.b16 %v8579
    %v9552 = vunpack.c.l.b16 %v8580
    %v9553 = vunpack.c.h.b16 %v8580
    %v9554 = vunpack.c.l.b16 %v8581
    %v9555 = vunpack.c.h.b16 %v8581
    %v9556 = vunpack.c.l.b16 %v8582
    %v9557 = vunpack.c.h.b16 %v8582
    %v9558 = vunpack.c.l.b16 %v8583
    %v9559 = vunpack.c.l.b16 %v8584
    %v9560 = vunpack.c.h.b16 %v8584
    %v9561 = vunpack.c.l.b16 %v8585
    %v9562 = vunpack.c.h.b16 %v8585
    %v9563 = vunpack.c.l.b16 %v8586
    %v9564 = vunpack.c.h.b16 %v8586
    %v9565 = vunpack.c.l.b16 %v8587
    %v9566 = vunpack.c.l.b16 %v8588
    %v9567 = vunpack.c.h.b16 %v8588
    %v9568 = vunpack.c.l.b16 %v8589
    %v9569 = vunpack.c.h.b16 %v8589
    %v9570 = vunpack.c.l.b16 %v8590
    %v9571 = vunpack.c.h.b16 %v8590
    %v9572 = vunpack.c.l.b16 %v8591
    %v9573 = vunpack.c.l.b16 %v8592
    %v9574 = vunpack.c.h.b16 %v8592
    %v9575 = vunpack.c.l.b16 %v8593
    %v9576 = vunpack.c.h.b16 %v8593
    %v9577 = vunpack.c.l.b16 %v8594
    %v9578 = vunpack.c.h.b16 %v8594
    %v9579 = vunpack.c.l.b16 %v8595
    %v9580 = vunpack.c.l.b16 %v8596
    %v9581 = vunpack.c.h.b16 %v8596
    %v9582 = vunpack.c.l.b16 %v8597
    %v9583 = vunpack.c.h.b16 %v8597
    %v9584 = vunpack.c.l.b16 %v8598
    %v9585 = vunpack.c.h.b16 %v8598
    %v9586 = vunpack.c.l.b16 %v8599
    %v9587 = vunpack.c.l.b16 %v8600
    %v9588 = vunpack.c.h.b16 %v8600
    %v9589 = vunpack.c.l.b16 %v8601
    %v9590 = vunpack.c.h.b16 %v8601
    %v9591 = vunpack.c.l.b16 %v8602
    %v9592 = vunpack.c.h.b16 %v8602
    %v9593 = vunpack.c.l.b16 %v8603
    %v9594 = vunpack.c.l.b16 %v8604
    %v9595 = vunpack.c.h.b16 %v8604
    %v9596 = vunpack.c.l.b16 %v8605
    %v9597 = vunpack.c.h.b16 %v8605
    %v9598 = vunpack.c.l.b16 %v8606
    %v9599 = vunpack.c.h.b16 %v8606
    %v9600 = vunpack.c.l.b16 %v8607
    %v9601 = vunpack.c.l.b16 %v8608
    %v9602 = vunpack.c.h.b16 %v8608
    %v9603 = vunpack.c.l.b16 %v8609
    %v9604 = vunpack.c.h.b16 %v8609
    %v9605 = vunpack.c.l.b16 %v8610
    %v9606 = vunpack.c.h.b16 %v8610
    %v9607 = vunpack.c.l.b16 %v8611
    %v9608 = vunpack.c.l.b16 %v8612
    %v9609 = vunpack.c.h.b16 %v8612
    %v9610 = vunpack.c.l.b16 %v8613
    %v9611 = vunpack.c.h.b16 %v8613
    %v9612 = vunpack.c.l.b16 %v8614
    %v9613 = vunpack.c.h.b16 %v8614
    %v9614 = vunpack.c.l.b16 %v8615
    %v9615 = vunpack.c.l.b16 %v8616
    %v9616 = vunpack.c.h.b16 %v8616
    %v9617 = vunpack.c.l.b16 %v8617
    %v9618 = vunpack.c.h.b16 %v8617
    %v9619 = vunpack.c.l.b16 %v8618
    %v9620 = vunpack.c.h.b16 %v8618
    %v9621 = vunpack.c.l.b16 %v8619
    %v9622 = vunpack.c.l.b16 %v8620
    %v9623 = vunpack.c.h.b16 %v8620
    %v9624 = vunpack.c.l.b16 %v8621
    %v9625 = vunpack.c.h.b16 %v8621
    %v9626 = vunpack.c.l.b16 %v8622
    %v9627 = vunpack.c.h.b16 %v8622
    %v9628 = vunpack.c.l.b16 %v8623
    %v9629 = vunpack.c.l.b16 %v8624
    %v9630 = vunpack.c.h.b16 %v8624
    %v9631 = vunpack.c.l.b16 %v8625
    %v9632 = vunpack.c.h.b16 %v8625
    %v9633 = vunpack.c.l.b16 %v8626
    %v9634 = vunpack.c.h.b16 %v8626
    %v9635 = vunpack.c.l.b16 %v8627
    %v9636 = vunpack.c.l.b16 %v8628
    %v9637 = vunpack.c.h.b16 %v8628
    %v9638 = vunpack.c.l.b16 %v8629
    %v9639 = vunpack.c.h.b16 %v8629
    %v9640 = vunpack.c.l.b16 %v8630
    %v9641 = vunpack.c.h.b16 %v8630
    %v9642 = vunpack.c.l.b16 %v8631
    %v9643 = vunpack.c.l.b16 %v8632
    %v9644 = vunpack.c.h.b16 %v8632
    %v9645 = vunpack.c.l.b16 %v8633
    %v9646 = vunpack.c.h.b16 %v8633
    %v9647 = vunpack.c.l.b16 %v8634
    %v9648 = vunpack.c.h.b16 %v8634
    %v9649 = vunpack.c.l.b16 %v8635
    %v9650 = vunpack.c.l.b16 %v8636
    %v9651 = vunpack.c.h.b16 %v8636
    %v9652 = vunpack.c.l.b16 %v8637
    %v9653 = vunpack.c.h.b16 %v8637
    %v9654 = vunpack.c.l.b16 %v8638
    %v9655 = vunpack.c.h.b16 %v8638
    %v9656 = vunpack.c.l.b16 %v8639
    %v9657 = vunpack.c.l.b16 %v8640
    %v9658 = vunpack.c.h.b16 %v8640
    %v9659 = vunpack.c.l.b16 %v8641
    %v9660 = vunpack.c.h.b16 %v8641
    %v9661 = vunpack.c.l.b16 %v8642
    %v9662 = vunpack.c.h.b16 %v8642
    %v9663 = vunpack.c.l.b16 %v8643
    %v9664 = vunpack.c.l.b16 %v8644
    %v9665 = vunpack.c.h.b16 %v8644
    %v9666 = vunpack.c.l.b16 %v8645
    %v9667 = vunpack.c.h.b16 %v8645
    %v9668 = vunpack.c.l.b16 %v8646
    %v9669 = vunpack.c.h.b16 %v8646
    %v9670 = vunpack.c.l.b16 %v8647
    %v9671 = vunpack.c.l.b16 %v8648
    %v9672 = vunpack.c.h.b16 %v8648
    %v9673 = vunpack.c.l.b16 %v8649
    %v9674 = vunpack.c.h.b16 %v8649
    %v9675 = vunpack.c.l.b16 %v8650
    %v9676 = vunpack.c.h.b16 %v8650
    %v9677 = vunpack.c.l.b16 %v8651
    %v9678 = vunpack.c.l.b16 %v8652
    %v9679 = vunpack.c.h.b16 %v8652
    %v9680 = vunpack.c.l.b16 %v8653
    %v9681 = vunpack.c.h.b16 %v8653
    %v9682 = vunpack.c.l.b16 %v8654
    %v9683 = vunpack.c.h.b16 %v8654
    %v9684 = vunpack.c.l.b16 %v8655
    %v9685 = vunpack.c.l.b16 %v8656
    %v9686 = vunpack.c.h.b16 %v8656
    %v9687 = vunpack.c.l.b16 %v8657
    %v9688 = vunpack.c.h.b16 %v8657
    %v9689 = vunpack.c.l.b16 %v8658
    %v9690 = vunpack.c.h.b16 %v8658
    %v9691 = vunpack.c.l.b16 %v8659
    %v9692 = vunpack.c.l.b16 %v8660
    %v9693 = vunpack.c.h.b16 %v8660
    %v9694 = vunpack.c.l.b16 %v8661
    %v9695 = vunpack.c.h.b16 %v8661
    %v9696 = vunpack.c.l.b16 %v8662
    %v9697 = vunpack.c.h.b16 %v8662
    %v9698 = vunpack.c.l.b16 %v8663
    %v9699 = vunpack.c.l.b16 %v8664
    %v9700 = vunpack.c.h.b16 %v8664
    %v9701 = vunpack.c.l.b16 %v8665
    %v9702 = vunpack.c.h.b16 %v8665
    %v9703 = vunpack.c.l.b16 %v8666
    %v9704 = vunpack.c.h.b16 %v8666
    %v9705 = vunpack.c.l.b16 %v8667
    %v9706 = vunpack.c.l.b16 %v8668
    %v9707 = vunpack.c.h.b16 %v8668
    %v9708 = vunpack.c.l.b16 %v8669
    %v9709 = vunpack.c.h.b16 %v8669
    %v9710 = vunpack.c.l.b16 %v8670
    %v9711 = vunpack.c.h.b16 %v8670
    %v9712 = vunpack.c.l.b16 %v8671
    %v9713 = vunpack.c.l.b16 %v8672
    %v9714 = vunpack.c.h.b16 %v8672
    %v9715 = vunpack.c.l.b16 %v8673
    %v9716 = vunpack.c.h.b16 %v8673
    %v9717 = vunpack.c.l.b16 %v8674
    %v9718 = vunpack.c.h.b16 %v8674
    %v9719 = vunpack.c.l.b16 %v8675
    %v9720 = vunpack.c.l.b16 %v8676
    %v9721 = vunpack.c.h.b16 %v8676
    %v9722 = vunpack.c.l.b16 %v8677
    %v9723 = vunpack.c.h.b16 %v8677
    %v9724 = vunpack.c.l.b16 %v8678
    %v9725 = vunpack.c.h.b16 %v8678
    %v9726 = vunpack.c.l.b16 %v8679
    %v9727 = vunpack.c.l.b16 %v8680
    %v9728 = vunpack.c.h.b16 %v8680
    %v9729 = vunpack.c.l.b16 %v8681
    %v9730 = vunpack.c.h.b16 %v8681
    %v9731 = vunpack.c.l.b16 %v8682
    %v9732 = vunpack.c.h.b16 %v8682
    %v9733 = vunpack.c.l.b16 %v8683
    %v9734 = vunpack.c.l.b16 %v8684
    %v9735 = vunpack.c.h.b16 %v8684
    %v9736 = vunpack.c.l.b16 %v8685
    %v9737 = vunpack.c.h.b16 %v8685
    %v9738 = vunpack.c.l.b16 %v8686
    %v9739 = vunpack.c.h.b16 %v8686
    %v9740 = vunpack.c.l.b16 %v8687
    %v9741 = vunpack.c.l.b16 %v8688
    %v9742 = vunpack.c.h.b16 %v8688
    %v9743 = vunpack.c.l.b16 %v8689
    %v9744 = vunpack.c.h.b16 %v8689
    %v9745 = vunpack.c.l.b16 %v8690
    %v9746 = vunpack.c.h.b16 %v8690
    %v9747 = vunpack.c.l.b16 %v8691
    %v9748 = vunpack.c.l.b16 %v8692
    %v9749 = vunpack.c.h.b16 %v8692
    %v9750 = vunpack.c.l.b16 %v8693
    %v9751 = vunpack.c.h.b16 %v8693
    %v9752 = vunpack.c.l.b16 %v8694
    %v9753 = vunpack.c.h.b16 %v8694
    %v9754 = vunpack.c.l.b16 %v8695
    %v9755 = vunpack.c.l.b16 %v8696
    %v9756 = vunpack.c.h.b16 %v8696
    %v9757 = vunpack.c.l.b16 %v8697
    %v9758 = vunpack.c.h.b16 %v8697
    %v9759 = vunpack.c.l.b16 %v8698
    %v9760 = vunpack.c.h.b16 %v8698
    %v9761 = vunpack.c.l.b16 %v8699
    %v9762 = vunpack.c.l.b16 %v8700
    %v9763 = vunpack.c.h.b16 %v8700
    %v9764 = vunpack.c.l.b16 %v8701
    %v9765 = vunpack.c.h.b16 %v8701
    %v9766 = vunpack.c.l.b16 %v8702
    %v9767 = vunpack.c.h.b16 %v8702
    %v9768 = vunpack.c.l.b16 %v8703
    %v9769 = vunpack.c.l.b16 %v8704
    %v9770 = vunpack.c.h.b16 %v8704
    %v9771 = vunpack.c.l.b16 %v8705
    %v9772 = vunpack.c.h.b16 %v8705
    %v9773 = vunpack.c.l.b16 %v8706
    %v9774 = vunpack.c.h.b16 %v8706
    %v9775 = vunpack.c.l.b16 %v8707
    %v9776 = vunpack.c.l.b16 %v8708
    %v9777 = vunpack.c.h.b16 %v8708
    %v9778 = vunpack.c.l.b16 %v8709
    %v9779 = vunpack.c.h.b16 %v8709
    %v9780 = vunpack.c.l.b16 %v8710
    %v9781 = vunpack.c.h.b16 %v8710
    %v9782 = vunpack.c.l.b16 %v8711
    %v9783 = vunpack.c.l.b16 %v8712
    %v9784 = vunpack.c.h.b16 %v8712
    %v9785 = vunpack.c.l.b16 %v8713
    %v9786 = vunpack.c.h.b16 %v8713
    %v9787 = vunpack.c.l.b16 %v8714
    %v9788 = vunpack.c.h.b16 %v8714
    %v9789 = vunpack.c.l.b16 %v8715
    %v9790 = vunpack.c.l.b16 %v8716
    %v9791 = vunpack.c.h.b16 %v8716
    %v9792 = vunpack.c.l.b16 %v8717
    %v9793 = vunpack.c.h.b16 %v8717
    %v9794 = vunpack.c.l.b16 %v8718
    %v9795 = vunpack.c.h.b16 %v8718
    %v9796 = vunpack.c.l.b16 %v8719
    %v9797 = vunpack.c.l.b16 %v8720
    %v9798 = vunpack.c.h.b16 %v8720
    %v9799 = vunpack.c.l.b16 %v8721
    %v9800 = vunpack.c.h.b16 %v8721
    %v9801 = vunpack.c.l.b16 %v8722
    %v9802 = vunpack.c.h.b16 %v8722
    %v9803 = vunpack.c.l.b16 %v8723
    %v9804 = vunpack.c.l.b16 %v8724
    %v9805 = vunpack.c.h.b16 %v8724
    %v9806 = vunpack.c.l.b16 %v8725
    %v9807 = vunpack.c.h.b16 %v8725
    %v9808 = vunpack.c.l.b16 %v8726
    %v9809 = vunpack.c.h.b16 %v8726
    %v9810 = vunpack.c.l.b16 %v8727
    %v9811 = vunpack.c.l.b16 %v8728
    %v9812 = vunpack.c.h.b16 %v8728
    %v9813 = vunpack.c.l.b16 %v8729
    %v9814 = vunpack.c.h.b16 %v8729
    %v9815 = vunpack.c.l.b16 %v8730
    %v9816 = vunpack.c.h.b16 %v8730
    %v9817 = vunpack.c.l.b16 %v8731
    %v9818 = vunpack.c.l.b16 %v8732
    %v9819 = vunpack.c.h.b16 %v8732
    %v9820 = vunpack.c.l.b16 %v8733
    %v9821 = vunpack.c.h.b16 %v8733
    %v9822 = vunpack.c.l.b16 %v8734
    %v9823 = vunpack.c.h.b16 %v8734
    %v9824 = vunpack.c.l.b16 %v8735
    %v9825 = vunpack.c.l.b16 %v8736
    %v9826 = vunpack.c.h.b16 %v8736
    %v9827 = vunpack.c.l.b16 %v8737
    %v9828 = vunpack.c.h.b16 %v8737
    %v9829 = vunpack.c.l.b16 %v8738
    %v9830 = vunpack.c.h.b16 %v8738
    %v9831 = vunpack.c.l.b16 %v8739
    %v9832 = vunpack.c.l.b16 %v8740
    %v9833 = vunpack.c.h.b16 %v8740
    %v9834 = vunpack.c.l.b16 %v8741
    %v9835 = vunpack.c.h.b16 %v8741
    %v9836 = vunpack.c.l.b16 %v8742
    %v9837 = vunpack.c.h.b16 %v8742
    %v9838 = vunpack.c.l.b16 %v8743
    %v9839 = vunpack.c.l.b16 %v8744
    %v9840 = vunpack.c.h.b16 %v8744
    %v9841 = vunpack.c.l.b16 %v8745
    %v9842 = vunpack.c.h.b16 %v8745
    %v9843 = vunpack.c.l.b16 %v8746
    %v9844 = vunpack.c.h.b16 %v8746
    %v9845 = vunpack.c.l.b16 %v8747
    %v9846 = vunpack.c.l.b16 %v8748
    %v9847 = vunpack.c.h.b16 %v8748
    %v9848 = vunpack.c.l.b16 %v8749
    %v9849 = vunpack.c.h.b16 %v8749
    %v9850 = vunpack.c.l.b16 %v8750
    %v9851 = vunpack.c.h.b16 %v8750
    %v9852 = vunpack.c.l.b16 %v8751
    %v9853 = vunpack.c.l.b16 %v8752
    %v9854 = vunpack.c.h.b16 %v8752
    %v9855 = vunpack.c.l.b16 %v8753
    %v9856 = vunpack.c.h.b16 %v8753
    %v9857 = vunpack.c.l.b16 %v8754
    %v9858 = vunpack.c.h.b16 %v8754
    %v9859 = vunpack.c.l.b16 %v8755
    %v9860 = vunpack.c.l.b16 %v8756
    %v9861 = vunpack.c.h.b16 %v8756
    %v9862 = vunpack.c.l.b16 %v8757
    %v9863 = vunpack.c.h.b16 %v8757
    %v9864 = vunpack.c.l.b16 %v8758
    %v9865 = vunpack.c.h.b16 %v8758
    %v9866 = vunpack.c.l.b16 %v8759
    %v9867 = vunpack.c.l.b16 %v8760
    %v9868 = vunpack.c.h.b16 %v8760
    %v9869 = vunpack.c.l.b16 %v8761
    %v9870 = vunpack.c.h.b16 %v8761
    %v9871 = vunpack.c.l.b16 %v8762
    %v9872 = vunpack.c.h.b16 %v8762
    %v9873 = vunpack.c.l.b16 %v8763
    %v9874 = vunpack.c.l.b16 %v8764
    %v9875 = vunpack.c.h.b16 %v8764
    %v9876 = vunpack.c.l.b16 %v8765
    %v9877 = vunpack.c.h.b16 %v8765
    %v9878 = vunpack.c.l.b16 %v8766
    %v9879 = vunpack.c.h.b16 %v8766
    %v9880 = vunpack.c.l.b16 %v8767
    %v9881 = vunpack.c.l.b16 %v8768
    %v9882 = vunpack.c.h.b16 %v8768
    %v9883 = vunpack.c.l.b16 %v8769
    %v9884 = vunpack.c.h.b16 %v8769
    %v9885 = vunpack.c.l.b16 %v8770
    %v9886 = vunpack.c.h.b16 %v8770
    %v9887 = vunpack.c.l.b16 %v8771
    %v9888 = vunpack.c.l.b16 %v8772
    %v9889 = vunpack.c.h.b16 %v8772
    %v9890 = vunpack.c.l.b16 %v8773
    %v9891 = vunpack.c.h.b16 %v8773
    %v9892 = vunpack.c.l.b16 %v8774
    %v9893 = vunpack.c.h.b16 %v8774
    %v9894 = vunpack.c.l.b16 %v8775
    %v9895 = vunpack.c.l.b16 %v8776
    %v9896 = vunpack.c.h.b16 %v8776
    %v9897 = vunpack.c.l.b16 %v8777
    %v9898 = vunpack.c.h.b16 %v8777
    %v9899 = vunpack.c.l.b16 %v8778
    %v9900 = vunpack.c.h.b16 %v8778
    %v9901 = vunpack.c.l.b16 %v8779
    %v9902 = vunpack.c.l.b16 %v8780
    %v9903 = vunpack.c.h.b16 %v8780
    %v9904 = vunpack.c.l.b16 %v8781
    %v9905 = vunpack.c.h.b16 %v8781
    %v9906 = vunpack.c.l.b16 %v8782
    %v9907 = vunpack.c.h.b16 %v8782
    %v9908 = vunpack.c.l.b16 %v8783
    %v9909 = vunpack.c.l.b16 %v8784
    %v9910 = vunpack.c.h.b16 %v8784
    %v9911 = vunpack.c.l.b16 %v8785
    %v9912 = vunpack.c.h.b16 %v8785
    %v9913 = vunpack.c.l.b16 %v8786
    %v9914 = vunpack.c.h.b16 %v8786
    %v9915 = vunpack.c.l.b16 %v8787
    %v9916 = vunpack.c.l.b16 %v8788
    %v9917 = vunpack.c.h.b16 %v8788
    %v9918 = vunpack.c.l.b16 %v8789
    %v9919 = vunpack.c.h.b16 %v8789
    %v9920 = vunpack.c.l.b16 %v8790
    %v9921 = vunpack.c.h.b16 %v8790
    %v9922 = vunpack.c.l.b16 %v8791
    %v9923 = vunpack.c.l.b16 %v8792
    %v9924 = vunpack.c.h.b16 %v8792
    %v9925 = vunpack.c.l.b16 %v8793
    %v9926 = vunpack.c.h.b16 %v8793
    %v9927 = vunpack.c.l.b16 %v8794
    %v9928 = vunpack.c.h.b16 %v8794
    %v9929 = vunpack.c.l.b16 %v8795
    %v9930 = vunpack.c.l.b16 %v8796
    %v9931 = vunpack.c.h.b16 %v8796
    %v9932 = vunpack.c.l.b16 %v8797
    %v9933 = vunpack.c.h.b16 %v8797
    %v9934 = vunpack.c.l.b16 %v8798
    %v9935 = vunpack.c.h.b16 %v8798
    %v9936 = vunpack.c.l.b16 %v8799
    %v9937 = vunpack.c.l.b16 %v8800
    %v9938 = vunpack.c.h.b16 %v8800
    %v9939 = vunpack.c.l.b16 %v8801
    %v9940 = vunpack.c.h.b16 %v8801
    %v9941 = vunpack.c.l.b16 %v8802
    %v9942 = vunpack.c.h.b16 %v8802
    %v9943 = vunpack.c.l.b16 %v8803
    %v9944 = vunpack.c.l.b16 %v8804
    %v9945 = vunpack.c.h.b16 %v8804
    %v9946 = vunpack.c.l.b16 %v8805
    %v9947 = vunpack.c.h.b16 %v8805
    %v9948 = vunpack.c.l.b16 %v8806
    %v9949 = vunpack.c.h.b16 %v8806
    %v9950 = vunpack.c.l.b16 %v8807
    %v9951 = vunpack.c.l.b16 %v8808
    %v9952 = vunpack.c.h.b16 %v8808
    %v9953 = vunpack.c.l.b16 %v8809
    %v9954 = vunpack.c.h.b16 %v8809
    %v9955 = vunpack.c.l.b16 %v8810
    %v9956 = vunpack.c.h.b16 %v8810
    %v9957 = vunpack.c.l.b16 %v8811
    %v9958 = vunpack.c.l.b16 %v8812
    %v9959 = vunpack.c.h.b16 %v8812
    %v9960 = vunpack.c.l.b16 %v8813
    %v9961 = vunpack.c.h.b16 %v8813
    %v9962 = vunpack.c.l.b16 %v8814
    %v9963 = vunpack.c.h.b16 %v8814
    %v9964 = vunpack.c.l.b16 %v8815
    %v9965 = vunpack.c.l.b16 %v8816
    %v9966 = vunpack.c.h.b16 %v8816
    %v9967 = vunpack.c.l.b16 %v8817
    %v9968 = vunpack.c.h.b16 %v8817
    %v9969 = vunpack.c.l.b16 %v8818
    %v9970 = vunpack.c.h.b16 %v8818
    %v9971 = vunpack.c.l.b16 %v8819
    %v9972 = vunpack.c.l.b16 %v8820
    %v9973 = vunpack.c.h.b16 %v8820
    %v9974 = vunpack.c.l.b16 %v8821
    %v9975 = vunpack.c.h.b16 %v8821
    %v9976 = vunpack.c.l.b16 %v8822
    %v9977 = vunpack.c.h.b16 %v8822
    %v9978 = vunpack.c.l.b16 %v8823
    %v9979 = vunpack.c.l.b16 %v8824
    %v9980 = vunpack.c.h.b16 %v8824
    %v9981 = vunpack.c.l.b16 %v8825
    %v9982 = vunpack.c.h.b16 %v8825
    %v9983 = vunpack.c.l.b16 %v8826
    %v9984 = vunpack.c.h.b16 %v8826
    %v9985 = vunpack.c.l.b16 %v8827
    %v9986 = vunpack.c.l.b16 %v8828
    %v9987 = vunpack.c.h.b16 %v8828
    %v9988 = vunpack.c.l.b16 %v8829
    %v9989 = vunpack.c.h.b16 %v8829
    %v9990 = vunpack.c.l.b16 %v8830
    %v9991 = vunpack.c.h.b16 %v8830
    %v9992 = vunpack.c.l.b16 %v8831
    %v9993 = vunpack.c.l.b16 %v8832
    %v9994 = vunpack.c.h.b16 %v8832
    %v9995 = vunpack.c.l.b16 %v8833
    %v9996 = vunpack.c.h.b16 %v8833
    %v9997 = vunpack.c.l.b16 %v8834
    %v9998 = vunpack.c.h.b16 %v8834
    %v9999 = vunpack.c.l.b16 %v8835
    %v10000 = vunpack.c.l.b16 %v8836
    %v10001 = vunpack.c.h.b16 %v8836
    %v10002 = vunpack.c.l.b16 %v8837
    %v10003 = vunpack.c.h.b16 %v8837
    %v10004 = vunpack.c.l.b16 %v8838
    %v10005 = vunpack.c.h.b16 %v8838
    %v10006 = vunpack.c.l.b16 %v8839
    %v10007 = vunpack.c.l.b16 %v8840
    %v10008 = vunpack.c.h.b16 %v8840
    %v10009 = vunpack.c.l.b16 %v8841
    %v10010 = vunpack.c.h.b16 %v8841
    %v10011 = vunpack.c.l.b16 %v8842
    %v10012 = vunpack.c.h.b16 %v8842
    %v10013 = vunpack.c.l.b16 %v8843
    %v10014 = vunpack.c.l.b16 %v8844
    %v10015 = vunpack.c.h.b16 %v8844
    %v10016 = vunpack.c.l.b16 %v8845
    %v10017 = vunpack.c.h.b16 %v8845
    %v10018 = vunpack.c.l.b16 %v8846
    %v10019 = vunpack.c.h.b16 %v8846
    %v10020 = vunpack.c.l.b16 %v8847
    %v10021 = vunpack.c.l.b16 %v8848
    %v10022 = vunpack.c.h.b16 %v8848
    %v10023 = vunpack.c.l.b16 %v8849
    %v10024 = vunpack.c.h.b16 %v8849
    %v10025 = vunpack.c.l.b16 %v8850
    %v10026 = vunpack.c.h.b16 %v8850
    %v10027 = vunpack.c.l.b16 %v8851
    %v10028 = vunpack.c.l.b16 %v8852
    %v10029 = vunpack.c.h.b16 %v8852
    %v10030 = vunpack.c.l.b16 %v8853
    %v10031 = vunpack.c.h.b16 %v8853
    %v10032 = vunpack.c.l.b16 %v8854
    %v10033 = vunpack.c.h.b16 %v8854
    %v10034 = vunpack.c.l.b16 %v8855
    %v10035 = vunpack.c.l.b16 %v8856
    %v10036 = vunpack.c.h.b16 %v8856
    %v10037 = vunpack.c.l.b16 %v8857
    %v10038 = vunpack.c.h.b16 %v8857
    %v10039 = vunpack.c.l.b16 %v8858
    %v10040 = vunpack.c.h.b16 %v8858
    %v10041 = vunpack.c.l.b16 %v8859
    %v10042 = vunpack.c.l.b16 %v8860
    %v10043 = vunpack.c.h.b16 %v8860
    %v10044 = vunpack.c.l.b16 %v8861
    %v10045 = vunpack.c.h.b16 %v8861
    %v10046 = vunpack.c.l.b16 %v8862
    %v10047 = vunpack.c.h.b16 %v8862
    %v10048 = vunpack.c.l.b16 %v8863
    %v10049 = vunpack.c.l.b16 %v8864
    %v10050 = vunpack.c.h.b16 %v8864
    %v10051 = vunpack.c.l.b16 %v8865
    %v10052 = vunpack.c.h.b16 %v8865
    %v10053 = vunpack.c.l.b16 %v8866
    %v10054 = vunpack.c.h.b16 %v8866
    %v10055 = vunpack.c.l.b16 %v8867
    %v10056 = vunpack.c.l.b16 %v8868
    %v10057 = vunpack.c.h.b16 %v8868
    %v10058 = vunpack.c.l.b16 %v8869
    %v10059 = vunpack.c.h.b16 %v8869
    %v10060 = vunpack.c.l.b16 %v8870
    %v10061 = vunpack.c.h.b16 %v8870
    %v10062 = vunpack.c.l.b16 %v8871
    %v10063 = vunpack.c.l.b16 %v8872
    %v10064 = vunpack.c.h.b16 %v8872
    %v10065 = vunpack.c.l.b16 %v8873
    %v10066 = vunpack.c.h.b16 %v8873
    %v10067 = vunpack.c.l.b16 %v8874
    %v10068 = vunpack.c.h.b16 %v8874
    %v10069 = vunpack.c.l.b16 %v8875
    %v10070 = vunpack.c.l.b16 %v8876
    %v10071 = vunpack.c.h.b16 %v8876
    %v10072 = vunpack.c.l.b16 %v8877
    %v10073 = vunpack.c.h.b16 %v8877
    %v10074 = vunpack.c.l.b16 %v8878
    %v10075 = vunpack.c.h.b16 %v8878
    %v10076 = vunpack.c.l.b16 %v8879
    %v10077 = vunpack.c.l.b16 %v8880
    %v10078 = vunpack.c.h.b16 %v8880
    %v10079 = vunpack.c.l.b16 %v8881
    %v10080 = vunpack.c.h.b16 %v8881
    %v10081 = vunpack.c.l.b16 %v8882
    %v10082 = vunpack.c.h.b16 %v8882
    %v10083 = vunpack.c.l.b16 %v8883
    %v10084 = vunpack.c.l.b16 %v8884
    %v10085 = vunpack.c.h.b16 %v8884
    %v10086 = vunpack.c.l.b16 %v8885
    %v10087 = vunpack.c.h.b16 %v8885
    %v10088 = vunpack.c.l.b16 %v8886
    %v10089 = vunpack.c.h.b16 %v8886
    %v10090 = vunpack.c.l.b16 %v8887
    %v10091 = vunpack.c.l.b16 %v8888
    %v10092 = vunpack.c.h.b16 %v8888
    %v10093 = vunpack.c.l.b16 %v8889
    %v10094 = vunpack.c.h.b16 %v8889
    %v10095 = vunpack.c.l.b16 %v8890
    %v10096 = vunpack.c.h.b16 %v8890
    %v10097 = vunpack.c.l.b16 %v8891
    %v10098 = vunpack.c.l.b16 %v8892
    %v10099 = vunpack.c.h.b16 %v8892
    %v10100 = vunpack.c.l.b16 %v8893
    %v10101 = vunpack.c.h.b16 %v8893
    %v10102 = vunpack.c.l.b16 %v8894
    %v10103 = vunpack.c.h.b16 %v8894
    %v10104 = vunpack.c.l.b16 %v8895
    %v10105 = vunpack.c.l.b16 %v8896
    %v10106 = vunpack.c.h.b16 %v8896
    %v10107 = vunpack.c.l.b16 %v8897
    %v10108 = vunpack.c.h.b16 %v8897
    %v10109 = vunpack.c.l.b16 %v8898
    %v10110 = vunpack.c.h.b16 %v8898
    %v10111 = vunpack.c.l.b16 %v8899
    %v10112 = vunpack.c.l.b16 %v8900
    %v10113 = vunpack.c.h.b16 %v8900
    %v10114 = vunpack.c.l.b16 %v8901
    %v10115 = vunpack.c.h.b16 %v8901
    %v10116 = vunpack.c.l.b16 %v8902
    %v10117 = vunpack.c.h.b16 %v8902
    %v10118 = vunpack.c.l.b16 %v8903
    %v10119 = vunpack.c.l.b16 %v8904
    %v10120 = vunpack.c.h.b16 %v8904
    %v10121 = vunpack.c.l.b16 %v8905
    %v10122 = vunpack.c.h.b16 %v8905
    %v10123 = vunpack.c.l.b16 %v8906
    %v10124 = vunpack.c.h.b16 %v8906
    %v10125 = vunpack.c.l.b16 %v8907
    %v10126 = vunpack.c.l.b16 %v8908
    %v10127 = vunpack.c.h.b16 %v8908
    %v10128 = vunpack.c.l.b16 %v8909
    %v10129 = vunpack.c.h.b16 %v8909
    %v10130 = vunpack.c.l.b16 %v8910
    %v10131 = vunpack.c.h.b16 %v8910
    %v10132 = vunpack.c.l.b16 %v8911
    %v10133 = vunpack.c.l.b16 %v8912
    %v10134 = vunpack.c.h.b16 %v8912
    %v10135 = vunpack.c.l.b16 %v8913
    %v10136 = vunpack.c.h.b16 %v8913
    %v10137 = vunpack.c.l.b16 %v8914
    %v10138 = vunpack.c.h.b16 %v8914
    %v10139 = vunpack.c.l.b16 %v8915
    %v10140 = vunpack.c.l.b16 %v8916
    %v10141 = vunpack.c.h.b16 %v8916
    %v10142 = vunpack.c.l.b16 %v8917
    %v10143 = vunpack.c.h.b16 %v8917
    %v10144 = vunpack.c.l.b16 %v8918
    %v10145 = vunpack.c.h.b16 %v8918
    %v10146 = vunpack.c.l.b16 %v8919
    %v10147 = vunpack.c.l.b16 %v8920
    %v10148 = vunpack.c.h.b16 %v8920
    %v10149 = vunpack.c.l.b16 %v8921
    %v10150 = vunpack.c.h.b16 %v8921
    %v10151 = vunpack.c.l.b16 %v8922
    %v10152 = vunpack.c.h.b16 %v8922
    %v10153 = vunpack.c.l.b16 %v8923
    %v10154 = vunpack.c.l.b16 %v8924
    %v10155 = vunpack.c.h.b16 %v8924
    %v10156 = vunpack.c.l.b16 %v8925
    %v10157 = vunpack.c.h.b16 %v8925
    %v10158 = vunpack.c.l.b16 %v8926
    %v10159 = vunpack.c.h.b16 %v8926
    %v10160 = vunpack.c.l.b16 %v8927
    %v10161 = vunpack.c.l.b16 %v8928
    %v10162 = vunpack.c.h.b16 %v8928
    %v10163 = vunpack.c.l.b16 %v8929
    %v10164 = vunpack.c.h.b16 %v8929
    %v10165 = vunpack.c.l.b16 %v8930
    %v10166 = vunpack.c.h.b16 %v8930
    %v10167 = vunpack.c.l.b16 %v8931
    %v10168 = vunpack.c.l.b16 %v8932
    %v10169 = vunpack.c.h.b16 %v8932
    %v10170 = vunpack.c.l.b16 %v8933
    %v10171 = vunpack.c.h.b16 %v8933
    %v10172 = vunpack.c.l.b16 %v8934
    %v10173 = vunpack.c.h.b16 %v8934
    %v10174 = vunpack.c.l.b16 %v8935
    %v10175 = vunpack.c.l.b16 %v8936
    %v10176 = vunpack.c.h.b16 %v8936
    %v10177 = vunpack.c.l.b16 %v8937
    %v10178 = vunpack.c.h.b16 %v8937
    %v10179 = vunpack.c.l.b16 %v8938
    %v10180 = vunpack.c.h.b16 %v8938
    %v10181 = vunpack.c.l.b16 %v8939
    %v10182 = vunpack.c.l.b16 %v8940
    %v10183 = vunpack.c.h.b16 %v8940
    %v10184 = vunpack.c.l.b16 %v8941
    %v10185 = vunpack.c.h.b16 %v8941
    %v10186 = vunpack.c.l.b16 %v8942
    %v10187 = vunpack.c.h.b16 %v8942
    %v10188 = vunpack.c.l.b16 %v8943
    %v10189 = vunpack.c.l.b16 %v8944
    %v10190 = vunpack.c.h.b16 %v8944
    %v10191 = vunpack.c.l.b16 %v8945
    %v10192 = vunpack.c.h.b16 %v8945
    %v10193 = vunpack.c.l.b16 %v8946
    %v10194 = vunpack.c.h.b16 %v8946
    %v10195 = vunpack.c.l.b16 %v8947
    %v10196 = vpack.c.b16 %v9419, %v9412
    %v10197 = vpack.c.b16 %v9420, %v9413
    %v10198 = vpack.c.b16 %v9421, %v9414
    %v10199 = vpack.c.b16 %v9422, %v9415
    %v10200 = vpack.c.b16 %v9423, %v9416
    %v10201 = vpack.c.b16 %v9424, %v9417
    %v10202 = vpack.c.b16 %v9425, %v9418
    %v10203 = vpack.c.b16 %v9433, %v9426
    %v10204 = vpack.c.b16 %v9434, %v9427
    %v10205 = vpack.c.b16 %v9435, %v9428
    %v10206 = vpack.c.b16 %v9436, %v9429
    %v10207 = vpack.c.b16 %v9437, %v9430
    %v10208 = vpack.c.b16 %v9438, %v9431
    %v10209 = vpack.c.b16 %v9439, %v9432
    %v10210 = vpack.c.b16 %v9447, %v9440
    %v10211 = vpack.c.b16 %v9448, %v9441
    %v10212 = vpack.c.b16 %v9449, %v9442
    %v10213 = vpack.c.b16 %v9450, %v9443
    %v10214 = vpack.c.b16 %v9451, %v9444
    %v10215 = vpack.c.b16 %v9452, %v9445
    %v10216 = vpack.c.b16 %v9453, %v9446
    %v10217 = vpack.c.b16 %v9461, %v9454
    %v10218 = vpack.c.b16 %v9462, %v9455
    %v10219 = vpack.c.b16 %v9463, %v9456
    %v10220 = vpack.c.b16 %v9464, %v9457
    %v10221 = vpack.c.b16 %v9465, %v9458
    %v10222 = vpack.c.b16 %v9466, %v9459
    %v10223 = vpack.c.b16 %v9467, %v9460
    %v10224 = vpack.c.b16 %v9475, %v9468
    %v10225 = vpack.c.b16 %v9476, %v9469
    %v10226 = vpack.c.b16 %v9477, %v9470
    %v10227 = vpack.c.b16 %v9478, %v9471
    %v10228 = vpack.c.b16 %v9479, %v9472
    %v10229 = vpack.c.b16 %v9480, %v9473
    %v10230 = vpack.c.b16 %v9481, %v9474
    %v10231 = vpack.c.b16 %v9489, %v9482
    %v10232 = vpack.c.b16 %v9490, %v9483
    %v10233 = vpack.c.b16 %v9491, %v9484
    %v10234 = vpack.c.b16 %v9492, %v9485
    %v10235 = vpack.c.b16 %v9493, %v9486
    %v10236 = vpack.c.b16 %v9494, %v9487
    %v10237 = vpack.c.b16 %v9495, %v9488
    %v10238 = vpack.c.b16 %v9503, %v9496
    %v10239 = vpack.c.b16 %v9504, %v9497
    %v10240 = vpack.c.b16 %v9505, %v9498
    %v10241 = vpack.c.b16 %v9506, %v9499
    %v10242 = vpack.c.b16 %v9507, %v9500
    %v10243 = vpack.c.b16 %v9508, %v9501
    %v10244 = vpack.c.b16 %v9509, %v9502
    %v10245 = vpack.c.b16 %v9517, %v9510
    %v10246 = vpack.c.b16 %v9518, %v9511
    %v10247 = vpack.c.b16 %v9519, %v9512
    %v10248 = vpack.c.b16 %v9520, %v9513
    %v10249 = vpack.c.b16 %v9521, %v9514
    %v10250 = vpack.c.b16 %v9522, %v9515
    %v10251 = vpack.c.b16 %v9523, %v9516
    %v10252 = vpack.c.b16 %v9531, %v9524
    %v10253 = vpack.c.b16 %v9532, %v9525
    %v10254 = vpack.c.b16 %v9533, %v9526
    %v10255 = vpack.c.b16 %v9534, %v9527
    %v10256 = vpack.c.b16 %v9535, %v9528
    %v10257 = vpack.c.b16 %v9536, %v9529
    %v10258 = vpack.c.b16 %v9537, %v9530
    %v10259 = vpack.c.b16 %v9545, %v9538
    %v10260 = vpack.c.b16 %v9546, %v9539
    %v10261 = vpack.c.b16 %v9547, %v9540
    %v10262 = vpack.c.b16 %v9548, %v9541
    %v10263 = vpack.c.b16 %v9549, %v9542
    %v10264 = vpack.c.b16 %v9550, %v9543
    %v10265 = vpack.c.b16 %v9551, %v9544
    %v10266 = vpack.c.b16 %v9559, %v9552
    %v10267 = vpack.c.b16 %v9560, %v9553
    %v10268 = vpack.c.b16 %v9561, %v9554
    %v10269 = vpack.c.b16 %v9562, %v9555
    %v10270 = vpack.c.b16 %v9563, %v9556
    %v10271 = vpack.c.b16 %v9564, %v9557
    %v10272 = vpack.c.b16 %v9565, %v9558
    %v10273 = vpack.c.b16 %v9573, %v9566
    %v10274 = vpack.c.b16 %v9574, %v9567
    %v10275 = vpack.c.b16 %v9575, %v9568
    %v10276 = vpack.c.b16 %v9576, %v9569
    %v10277 = vpack.c.b16 %v9577, %v9570
    %v10278 = vpack.c.b16 %v9578, %v9571
    %v10279 = vpack.c.b16 %v9579, %v9572
    %v10280 = vpack.c.b16 %v9587, %v9580
    %v10281 = vpack.c.b16 %v9588, %v9581
    %v10282 = vpack.c.b16 %v9589, %v9582
    %v10283 = vpack.c.b16 %v9590, %v9583
    %v10284 = vpack.c.b16 %v9591, %v9584
    %v10285 = vpack.c.b16 %v9592, %v9585
    %v10286 = vpack.c.b16 %v9593, %v9586
    %v10287 = vpack.c.b16 %v9601, %v9594
    %v10288 = vpack.c.b16 %v9602, %v9595
    %v10289 = vpack.c.b16 %v9603, %v9596
    %v10290 = vpack.c.b16 %v9604, %v9597
    %v10291 = vpack.c.b16 %v9605, %v9598
    %v10292 = vpack.c.b16 %v9606, %v9599
    %v10293 = vpack.c.b16 %v9607, %v9600
    %v10294 = vpack.c.b16 %v9615, %v9608
    %v10295 = vpack.c.b16 %v9616, %v9609
    %v10296 = vpack.c.b16 %v9617, %v9610
    %v10297 = vpack.c.b16 %v9618, %v9611
    %v10298 = vpack.c.b16 %v9619, %v9612
    %v10299 = vpack.c.b16 %v9620, %v9613
    %v10300 = vpack.c.b16 %v9621, %v9614
    %v10301 = vpack.c.b16 %v9629, %v9622
    %v10302 = vpack.c.b16 %v9630, %v9623
    %v10303 = vpack.c.b16 %v9631, %v9624
    %v10304 = vpack.c.b16 %v9632, %v9625
    %v10305 = vpack.c.b16 %v9633, %v9626
    %v10306 = vpack.c.b16 %v9634, %v9627
    %v10307 = vpack.c.b16 %v9635, %v9628
    %v10308 = vpack.c.b16 %v9643, %v9636
    %v10309 = vpack.c.b16 %v9644, %v9637
    %v10310 = vpack.c.b16 %v9645, %v9638
    %v10311 = vpack.c.b16 %v9646, %v9639
    %v10312 = vpack.c.b16 %v9647, %v9640
    %v10313 = vpack.c.b16 %v9648, %v9641
    %v10314 = vpack.c.b16 %v9649, %v9642
    %v10315 = vpack.c.b16 %v9657, %v9650
    %v10316 = vpack.c.b16 %v9658, %v9651
    %v10317 = vpack.c.b16 %v9659, %v9652
    %v10318 = vpack.c.b16 %v9660, %v9653
    %v10319 = vpack.c.b16 %v9661, %v9654
    %v10320 = vpack.c.b16 %v9662, %v9655
    %v10321 = vpack.c.b16 %v9663, %v9656
    %v10322 = vpack.c.b16 %v9671, %v9664
    %v10323 = vpack.c.b16 %v9672, %v9665
    %v10324 = vpack.c.b16 %v9673, %v9666
    %v10325 = vpack.c.b16 %v9674, %v9667
    %v10326 = vpack.c.b16 %v9675, %v9668
    %v10327 = vpack.c.b16 %v9676, %v9669
    %v10328 = vpack.c.b16 %v9677, %v9670
    %v10329 = vpack.c.b16 %v9685, %v9678
    %v10330 = vpack.c.b16 %v9686, %v9679
    %v10331 = vpack.c.b16 %v9687, %v9680
    %v10332 = vpack.c.b16 %v9688, %v9681
    %v10333 = vpack.c.b16 %v9689, %v9682
    %v10334 = vpack.c.b16 %v9690, %v9683
    %v10335 = vpack.c.b16 %v9691, %v9684
    %v10336 = vpack.c.b16 %v9699, %v9692
    %v10337 = vpack.c.b16 %v9700, %v9693
    %v10338 = vpack.c.b16 %v9701, %v9694
    %v10339 = vpack.c.b16 %v9702, %v9695
    %v10340 = vpack.c.b16 %v9703, %v9696
    %v10341 = vpack.c.b16 %v9704, %v9697
    %v10342 = vpack.c.b16 %v9705, %v9698
    %v10343 = vpack.c.b16 %v9713, %v9706
    %v10344 = vpack.c.b16 %v9714, %v9707
    %v10345 = vpack.c.b16 %v9715, %v9708
    %v10346 = vpack.c.b16 %v9716, %v9709
    %v10347 = vpack.c.b16 %v9717, %v9710
    %v10348 = vpack.c.b16 %v9718, %v9711
    %v10349 = vpack.c.b16 %v9719, %v9712
    %v10350 = vpack.c.b16 %v9727, %v9720
    %v10351 = vpack.c.b16 %v9728, %v9721
    %v10352 = vpack.c.b16 %v9729, %v9722
    %v10353 = vpack.c.b16 %v9730, %v9723
    %v10354 = vpack.c.b16 %v9731, %v9724
    %v10355 = vpack.c.b16 %v9732, %v9725
    %v10356 = vpack.c.b16 %v9733, %v9726
    %v10357 = vpack.c.b16 %v9741, %v9734
    %v10358 = vpack.c.b16 %v9742, %v9735
    %v10359 = vpack.c.b16 %v9743, %v9736
    %v10360 = vpack.c.b16 %v9744, %v9737
    %v10361 = vpack.c.b16 %v9745, %v9738
    %v10362 = vpack.c.b16 %v9746, %v9739
    %v10363 = vpack.c.b16 %v9747, %v9740
    %v10364 = vpack.c.b16 %v9755, %v9748
    %v10365 = vpack.c.b16 %v9756, %v9749
    %v10366 = vpack.c.b16 %v9757, %v9750
    %v10367 = vpack.c.b16 %v9758, %v9751
    %v10368 = vpack.c.b16 %v9759, %v9752
    %v10369 = vpack.c.b16 %v9760, %v9753
    %v10370 = vpack.c.b16 %v9761, %v9754
    %v10371 = vpack.c.b16 %v9769, %v9762
    %v10372 = vpack.c.b16 %v9770, %v9763
    %v10373 = vpack.c.b16 %v9771, %v9764
    %v10374 = vpack.c.b16 %v9772, %v9765
    %v10375 = vpack.c.b16 %v9773, %v9766
    %v10376 = vpack.c.b16 %v9774, %v9767
    %v10377 = vpack.c.b16 %v9775, %v9768
    %v10378 = vpack.c.b16 %v9783, %v9776
    %v10379 = vpack.c.b16 %v9784, %v9777
    %v10380 = vpack.c.b16 %v9785, %v9778
    %v10381 = vpack.c.b16 %v9786, %v9779
    %v10382 = vpack.c.b16 %v9787, %v9780
    %v10383 = vpack.c.b16 %v9788, %v9781
    %v10384 = vpack.c.b16 %v9789, %v9782
    %v10385 = vpack.c.b16 %v9797, %v9790
    %v10386 = vpack.c.b16 %v9798, %v9791
    %v10387 = vpack.c.b16 %v9799, %v9792
    %v10388 = vpack.c.b16 %v9800, %v9793
    %v10389 = vpack.c.b16 %v9801, %v9794
    %v10390 = vpack.c.b16 %v9802, %v9795
    %v10391 = vpack.c.b16 %v9803, %v9796
    %v10392 = vpack.c.b16 %v9811, %v9804
    %v10393 = vpack.c.b16 %v9812, %v9805
    %v10394 = vpack.c.b16 %v9813, %v9806
    %v10395 = vpack.c.b16 %v9814, %v9807
    %v10396 = vpack.c.b16 %v9815, %v9808
    %v10397 = vpack.c.b16 %v9816, %v9809
    %v10398 = vpack.c.b16 %v9817, %v9810
    %v10399 = vpack.c.b16 %v9825, %v9818
    %v10400 = vpack.c.b16 %v9826, %v9819
    %v10401 = vpack.c.b16 %v9827, %v9820
    %v10402 = vpack.c.b16 %v9828, %v9821
    %v10403 = vpack.c.b16 %v9829, %v9822
    %v10404 = vpack.c.b16 %v9830, %v9823
    %v10405 = vpack.c.b16 %v9831, %v9824
    %v10406 = vpack.c.b16 %v9839, %v9832
    %v10407 = vpack.c.b16 %v9840, %v9833
    %v10408 = vpack.c.b16 %v9841, %v9834
    %v10409 = vpack.c.b16 %v9842, %v9835
    %v10410 = vpack.c.b16 %v9843, %v9836
    %v10411 = vpack.c.b16 %v9844, %v9837
    %v10412 = vpack.c.b16 %v9845, %v9838
    %v10413 = vpack.c.b16 %v9853, %v9846
    %v10414 = vpack.c.b16 %v9854, %v9847
    %v10415 = vpack.c.b16 %v9855, %v9848
    %v10416 = vpack.c.b16 %v9856, %v9849
    %v10417 = vpack.c.b16 %v9857, %v9850
    %v10418 = vpack.c.b16 %v9858, %v9851
    %v10419 = vpack.c.b16 %v9859, %v9852
    %v10420 = vpack.c.b16 %v9867, %v9860
    %v10421 = vpack.c.b16 %v9868, %v9861
    %v10422 = vpack.c.b16 %v9869, %v9862
    %v10423 = vpack.c.b16 %v9870, %v9863
    %v10424 = vpack.c.b16 %v9871, %v9864
    %v10425 = vpack.c.b16 %v9872, %v9865
    %v10426 = vpack.c.b16 %v9873, %v9866
    %v10427 = vpack.c.b16 %v9881, %v9874
    %v10428 = vpack.c.b16 %v9882, %v9875
    %v10429 = vpack.c.b16 %v9883, %v9876
    %v10430 = vpack.c.b16 %v9884, %v9877
    %v10431 = vpack.c.b16 %v9885, %v9878
    %v10432 = vpack.c.b16 %v9886, %v9879
    %v10433 = vpack.c.b16 %v9887, %v9880
    %v10434 = vpack.c.b16 %v9895, %v9888
    %v10435 = vpack.c.b16 %v9896, %v9889
    %v10436 = vpack.c.b16 %v9897, %v9890
    %v10437 = vpack.c.b16 %v9898, %v9891
    %v10438 = vpack.c.b16 %v9899, %v9892
    %v10439 = vpack.c.b16 %v9900, %v9893
    %v10440 = vpack.c.b16 %v9901, %v9894
    %v10441 = vpack.c.b16 %v9909, %v9902
    %v10442 = vpack.c.b16 %v9910, %v9903
    %v10443 = vpack.c.b16 %v9911, %v9904
    %v10444 = vpack.c.b16 %v9912, %v9905
    %v10445 = vpack.c.b16 %v9913, %v9906
    %v10446 = vpack.c.b16 %v9914, %v9907
    %v10447 = vpack.c.b16 %v9915, %v9908
    %v10448 = vpack.c.b16 %v9923, %v9916
    %v10449 = vpack.c.b16 %v9924, %v9917
    %v10450 = vpack.c.b16 %v9925, %v9918
    %v10451 = vpack.c.b16 %v9926, %v9919
    %v10452 = vpack.c.b16 %v9927, %v9920
    %v10453 = vpack.c.b16 %v9928, %v9921
    %v10454 = vpack.c.b16 %v9929, %v9922
    %v10455 = vpack.c.b16 %v9937, %v9930
    %v10456 = vpack.c.b16 %v9938, %v9931
    %v10457 = vpack.c.b16 %v9939, %v9932
    %v10458 = vpack.c.b16 %v9940, %v9933
    %v10459 = vpack.c.b16 %v9941, %v9934
    %v10460 = vpack.c.b16 %v9942, %v9935
    %v10461 = vpack.c.b16 %v9943, %v9936
    %v10462 = vpack.c.b16 %v9951, %v9944
    %v10463 = vpack.c.b16 %v9952, %v9945
    %v10464 = vpack.c.b16 %v9953, %v9946
    %v10465 = vpack.c.b16 %v9954, %v9947
    %v10466 = vpack.c.b16 %v9955, %v9948
    %v10467 = vpack.c.b16 %v9956, %v9949
    %v10468 = vpack.c.b16 %v9957, %v9950
    %v10469 = vpack.c.b16 %v9965, %v9958
    %v10470 = vpack.c.b16 %v9966, %v9959
    %v10471 = vpack.c.b16 %v9967, %v9960
    %v10472 = vpack.c.b16 %v9968, %v9961
    %v10473 = vpack.c.b16 %v9969, %v9962
    %v10474 = vpack.c.b16 %v9970, %v9963
    %v10475 = vpack.c.b16 %v9971, %v9964
    %v10476 = vpack.c.b16 %v9979, %v9972
    %v10477 = vpack.c.b16 %v9980, %v9973
    %v10478 = vpack.c.b16 %v9981, %v9974
    %v10479 = vpack.c.b16 %v9982, %v9975
    %v10480 = vpack.c.b16 %v9983, %v9976
    %v10481 = vpack.c.b16 %v9984, %v9977
    %v10482 = vpack.c.b16 %v9985, %v9978
    %v10483 = vpack.c.b16 %v9993, %v9986
    %v10484 = vpack.c.b16 %v9994, %v9987
    %v10485 = vpack.c.b16 %v9995, %v9988
    %v10486 = vpack.c.b16 %v9996, %v9989
    %v10487 = vpack.c.b16 %v9997, %v9990
    %v10488 = vpack.c.b16 %v9998, %v9991
    %v10489 = vpack.c.b16 %v9999, %v9992
    %v10490 = vpack.c.b16 %v10007, %v10000
    %v10491 = vpack.c.b16 %v10008, %v10001
    %v10492 = vpack.c.b16 %v10009, %v10002
    %v10493 = vpack.c.b16 %v10010, %v10003
    %v10494 = vpack.c.b16 %v10011, %v10004
    %v10495 = vpack.c.b16 %v10012, %v10005
    %v10496 = vpack.c.b16 %v10013, %v10006
    %v10497 = vpack.c.b16 %v10021, %v10014
    %v10498 = vpack.c.b16 %v10022, %v10015
    %v10499 = vpack.c.b16 %v10023, %v10016
    %v10500 = vpack.c.b16 %v10024, %v10017
    %v10501 = vpack.c.b16 %v10025, %v10018
    %v10502 = vpack.c.b16 %v10026, %v10019
    %v10503 = vpack.c.b16 %v10027, %v10020
    %v10504 = vpack.c.b16 %v10035, %v10028
    %v10505 = vpack.c.b16 %v10036, %v10029
    %v10506 = vpack.c.b16 %v10037, %v10030
    %v10507 = vpack.c.b16 %v10038, %v10031
    %v10508 = vpack.c.b16 %v10039, %v10032
    %v10509 = vpack.c.b16 %v10040, %v10033
    %v10510 = vpack.c.b16 %v10041, %v10034
    %v10511 = vpack.c.b16 %v10049, %v10042
    %v10512 = vpack.c.b16 %v10050, %v10043
    %v10513 = vpack.c.b16 %v10051, %v10044
    %v10514 = vpack.c.b16 %v10052, %v10045
    %v10515 = vpack.c.b16 %v10053, %v10046
    %v10516 = vpack.c.b16 %v10054, %v10047
    %v10517 = vpack.c.b16 %v10055, %v10048
    %v10518 = vpack.c.b16 %v10063, %v10056
    %v10519 = vpack.c.b16 %v10064, %v10057
    %v10520 = vpack.c.b16 %v10065, %v10058
    %v10521 = vpack.c.b16 %v10066, %v10059
    %v10522 = vpack.c.b16 %v10067, %v10060
    %v10523 = vpack.c.b16 %v10068, %v10061
    %v10524 = vpack.c.b16 %v10069, %v10062
    %v10525 = vpack.c.b16 %v10077, %v10070
    %v10526 = vpack.c.b16 %v10078, %v10071
    %v10527 = vpack.c.b16 %v10079, %v10072
    %v10528 = vpack.c.b16 %v10080, %v10073
    %v10529 = vpack.c.b16 %v10081, %v10074
    %v10530 = vpack.c.b16 %v10082, %v10075
    %v10531 = vpack.c.b16 %v10083, %v10076
    %v10532 = vpack.c.b16 %v10091, %v10084
    %v10533 = vpack.c.b16 %v10092, %v10085
    %v10534 = vpack.c.b16 %v10093, %v10086
    %v10535 = vpack.c.b16 %v10094, %v10087
    %v10536 = vpack.c.b16 %v10095, %v10088
    %v10537 = vpack.c.b16 %v10096, %v10089
    %v10538 = vpack.c.b16 %v10097, %v10090
    %v10539 = vpack.c.b16 %v10105, %v10098
    %v10540 = vpack.c.b16 %v10106, %v10099
    %v10541 = vpack.c.b16 %v10107, %v10100
    %v10542 = vpack.c.b16 %v10108, %v10101
    %v10543 = vpack.c.b16 %v10109, %v10102
    %v10544 = vpack.c.b16 %v10110, %v10103
    %v10545 = vpack.c.b16 %v10111, %v10104
    %v10546 = vpack.c.b16 %v10119, %v10112
    %v10547 = vpack.c.b16 %v10120, %v10113
    %v10548 = vpack.c.b16 %v10121, %v10114
    %v10549 = vpack.c.b16 %v10122, %v10115
    %v10550 = vpack.c.b16 %v10123, %v10116
    %v10551 = vpack.c.b16 %v10124, %v10117
    %v10552 = vpack.c.b16 %v10125, %v10118
    %v10553 = vpack.c.b16 %v10133, %v10126
    %v10554 = vpack.c.b16 %v10134, %v10127
    %v10555 = vpack.c.b16 %v10135, %v10128
    %v10556 = vpack.c.b16 %v10136, %v10129
    %v10557 = vpack.c.b16 %v10137, %v10130
    %v10558 = vpack.c.b16 %v10138, %v10131
    %v10559 = vpack.c.b16 %v10139, %v10132
    %v10560 = vpack.c.b16 %v10147, %v10140
    %v10561 = vpack.c.b16 %v10148, %v10141
    %v10562 = vpack.c.b16 %v10149, %v10142
    %v10563 = vpack.c.b16 %v10150, %v10143
    %v10564 = vpack.c.b16 %v10151, %v10144
    %v10565 = vpack.c.b16 %v10152, %v10145
    %v10566 = vpack.c.b16 %v10153, %v10146
    %v10567 = vpack.c.b16 %v10161, %v10154
    %v10568 = vpack.c.b16 %v10162, %v10155
    %v10569 = vpack.c.b16 %v10163, %v10156
    %v10570 = vpack.c.b16 %v10164, %v10157
    %v10571 = vpack.c.b16 %v10165, %v10158
    %v10572 = vpack.c.b16 %v10166, %v10159
    %v10573 = vpack.c.b16 %v10167, %v10160
    %v10574 = vpack.c.b16 %v10175, %v10168
    %v10575 = vpack.c.b16 %v10176, %v10169
    %v10576 = vpack.c.b16 %v10177, %v10170
    %v10577 = vpack.c.b16 %v10178, %v10171
    %v10578 = vpack.c.b16 %v10179, %v10172
    %v10579 = vpack.c.b16 %v10180, %v10173
    %v10580 = vpack.c.b16 %v10181, %v10174
    %v10581 = vpack.c.b16 %v10189, %v10182
    %v10582 = vpack.c.b16 %v10190, %v10183
    %v10583 = vpack.c.b16 %v10191, %v10184
    %v10584 = vpack.c.b16 %v10192, %v10185
    %v10585 = vpack.c.b16 %v10193, %v10186
    %v10586 = vpack.c.b16 %v10194, %v10187
    %v10587 = vpack.c.b16 %v10195, %v10188
    %10980 = vmatpush.bf16.msra.mxu0 %v10245
    %10981 = vmatpush.bf16.msra.mxu0 %v10238
    %10982 = vmatpush.bf16.msra.mxu0 %v10231
    %10983 = vmatpush.bf16.msra.mxu0 %v10224
    %10984 = vmatpush.bf16.msra.mxu0 %v10217
    %10985 = vmatpush.bf16.msra.mxu0 %v10210
    %10986 = vmatpush.bf16.msra.mxu0 %v10203
    %10987 = vmatpush.bf16.msra.mxu0 %v10196
    %10988 = vmatmul.bf16.gmra.mxu0 %v8493
    %v10989 = vpop.f32.mrf.mxu0
    %v10990 = vadd.f32 %v8950, %v10989
    %v10991 = vpop.f32.mrf.mxu0
    %v10992 = vadd.f32 %v8950, %v10991
    %10993 = vdwg.mxu0
    %10994 = vmatpush.bf16.msra.mxu0 %v10301
    %10995 = vmatpush.bf16.msra.mxu0 %v10294
    %10996 = vmatpush.bf16.msra.mxu0 %v10287
    %10997 = vmatpush.bf16.msra.mxu0 %v10280
    %10998 = vmatpush.bf16.msra.mxu0 %v10273
    %10999 = vmatpush.bf16.msra.mxu0 %v10266
    %11000 = vmatpush.bf16.msra.mxu0 %v10259
    %11001 = vmatpush.bf16.msra.mxu0 %v10252
    %11002 = vmatmul.bf16.gmra.mxu0 %v8494
    %v11003 = vpop.f32.mrf.mxu0
    %v11004 = vadd.f32 %v10990, %v11003
    %v11005 = vpop.f32.mrf.mxu0
    %v11006 = vadd.f32 %v10992, %v11005
    %11007 = vdwg.mxu0
    %11008 = vmatpush.bf16.msra.mxu0 %v10357
    %11009 = vmatpush.bf16.msra.mxu0 %v10350
    %11010 = vmatpush.bf16.msra.mxu0 %v10343
    %11011 = vmatpush.bf16.msra.mxu0 %v10336
    %11012 = vmatpush.bf16.msra.mxu0 %v10329
    %11013 = vmatpush.bf16.msra.mxu0 %v10322
    %11014 = vmatpush.bf16.msra.mxu0 %v10315
    %11015 = vmatpush.bf16.msra.mxu0 %v10308
    %11016 = vmatmul.bf16.gmra.mxu0 %v8495
    %v11017 = vpop.f32.mrf.mxu0
    %v11018 = vadd.f32 %v11004, %v11017
    %v11019 = vpop.f32.mrf.mxu0
    %v11020 = vadd.f32 %v11006, %v11019
    %11021 = vdwg.mxu0
    %11022 = vmatpush.bf16.msra.mxu0 %v10413
    %11023 = vmatpush.bf16.msra.mxu0 %v10406
    %11024 = vmatpush.bf16.msra.mxu0 %v10399
    %11025 = vmatpush.bf16.msra.mxu0 %v10392
    %11026 = vmatpush.bf16.msra.mxu0 %v10385
    %11027 = vmatpush.bf16.msra.mxu0 %v10378
    %11028 = vmatpush.bf16.msra.mxu0 %v10371
    %11029 = vmatpush.bf16.msra.mxu0 %v10364
    %11030 = vmatmul.bf16.gmra.mxu0 %v8496
    %v11031 = vpop.f32.mrf.mxu0
    %v11032 = vadd.f32 %v11018, %v11031
    %v11033 = vpop.f32.mrf.mxu0
    %v11034 = vadd.f32 %v11020, %v11033
    %11035 = vdwg.mxu0
    %11036 = vmatpush.bf16.msra.mxu0 %v10469
    %11037 = vmatpush.bf16.msra.mxu0 %v10462
    %11038 = vmatpush.bf16.msra.mxu0 %v10455
    %11039 = vmatpush.bf16.msra.mxu0 %v10448
    %11040 = vmatpush.bf16.msra.mxu0 %v10441
    %11041 = vmatpush.bf16.msra.mxu0 %v10434
    %11042 = vmatpush.bf16.msra.mxu0 %v10427
    %11043 = vmatpush.bf16.msra.mxu0 %v10420
    %11044 = vmatmul.bf16.gmra.mxu0 %v8497
    %v11045 = vpop.f32.mrf.mxu0
    %v11046 = vadd.f32 %v11032, %v11045
    %v11047 = vpop.f32.mrf.mxu0
    %v11048 = vadd.f32 %v11034, %v11047
    %11049 = vdwg.mxu0
    %11050 = vmatpush.bf16.msra.mxu0 %v10525
    %11051 = vmatpush.bf16.msra.mxu0 %v10518
    %11052 = vmatpush.bf16.msra.mxu0 %v10511
    %11053 = vmatpush.bf16.msra.mxu0 %v10504
    %11054 = vmatpush.bf16.msra.mxu0 %v10497
    %11055 = vmatpush.bf16.msra.mxu0 %v10490
    %11056 = vmatpush.bf16.msra.mxu0 %v10483
    %11057 = vmatpush.bf16.msra.mxu0 %v10476
    %11058 = vmatmul.bf16.gmra.mxu0 %v8498
    %v11059 = vpop.f32.mrf.mxu0
    %v11060 = vadd.f32 %v11046, %v11059
    %v11061 = vpop.f32.mrf.mxu0
    %v11062 = vadd.f32 %v11048, %v11061
    %11063 = vdwg.mxu0
    %11064 = vmatpush.bf16.msra.mxu0 %v10581
    %11065 = vmatpush.bf16.msra.mxu0 %v10574
    %11066 = vmatpush.bf16.msra.mxu0 %v10567
    %11067 = vmatpush.bf16.msra.mxu0 %v10560
    %11068 = vmatpush.bf16.msra.mxu0 %v10553
    %11069 = vmatpush.bf16.msra.mxu0 %v10546
    %11070 = vmatpush.bf16.msra.mxu0 %v10539
    %11071 = vmatpush.bf16.msra.mxu0 %v10532
    %11072 = vmatmul.bf16.gmra.mxu0 %v8499
    %v11073 = vpop.f32.mrf.mxu0
    %v11074 = vadd.f32 %v11060, %v11073
    %v11075 = vpop.f32.mrf.mxu0
    %v11076 = vadd.f32 %v11062, %v11075
    %11077 = vdwg.mxu0
    %11078 = vmatpush.bf16.msra.mxu0 %v10246
    %11079 = vmatpush.bf16.msra.mxu0 %v10239
    %11080 = vmatpush.bf16.msra.mxu0 %v10232
    %11081 = vmatpush.bf16.msra.mxu0 %v10225
    %11082 = vmatpush.bf16.msra.mxu0 %v10218
    %11083 = vmatpush.bf16.msra.mxu0 %v10211
    %11084 = vmatpush.bf16.msra.mxu0 %v10204
    %11085 = vmatpush.bf16.msra.mxu0 %v10197
    %11086 = vmatmul.bf16.gmra.mxu0 %v8493
    %v11087 = vpop.f32.mrf.mxu0
    %v11088 = vadd.f32 %v8951, %v11087
    %v11089 = vpop.f32.mrf.mxu0
    %v11090 = vadd.f32 %v8951, %v11089
    %11091 = vdwg.mxu0
    %11092 = vmatpush.bf16.msra.mxu0 %v10302
    %11093 = vmatpush.bf16.msra.mxu0 %v10295
    %11094 = vmatpush.bf16.msra.mxu0 %v10288
    %11095 = vmatpush.bf16.msra.mxu0 %v10281
    %11096 = vmatpush.bf16.msra.mxu0 %v10274
    %11097 = vmatpush.bf16.msra.mxu0 %v10267
    %11098 = vmatpush.bf16.msra.mxu0 %v10260
    %11099 = vmatpush.bf16.msra.mxu0 %v10253
    %11100 = vmatmul.bf16.gmra.mxu0 %v8494
    %v11101 = vpop.f32.mrf.mxu0
    %v11102 = vadd.f32 %v11088, %v11101
    %v11103 = vpop.f32.mrf.mxu0
    %v11104 = vadd.f32 %v11090, %v11103
    %11105 = vdwg.mxu0
    %11106 = vmatpush.bf16.msra.mxu0 %v10358
    %11107 = vmatpush.bf16.msra.mxu0 %v10351
    %11108 = vmatpush.bf16.msra.mxu0 %v10344
    %11109 = vmatpush.bf16.msra.mxu0 %v10337
    %11110 = vmatpush.bf16.msra.mxu0 %v10330
    %11111 = vmatpush.bf16.msra.mxu0 %v10323
    %11112 = vmatpush.bf16.msra.mxu0 %v10316
    %11113 = vmatpush.bf16.msra.mxu0 %v10309
    %11114 = vmatmul.bf16.gmra.mxu0 %v8495
    %v11115 = vpop.f32.mrf.mxu0
    %v11116 = vadd.f32 %v11102, %v11115
    %v11117 = vpop.f32.mrf.mxu0
    %v11118 = vadd.f32 %v11104, %v11117
    %11119 = vdwg.mxu0
    %11120 = vmatpush.bf16.msra.mxu0 %v10414
    %11121 = vmatpush.bf16.msra.mxu0 %v10407
    %11122 = vmatpush.bf16.msra.mxu0 %v10400
    %11123 = vmatpush.bf16.msra.mxu0 %v10393
    %11124 = vmatpush.bf16.msra.mxu0 %v10386
    %11125 = vmatpush.bf16.msra.mxu0 %v10379
    %11126 = vmatpush.bf16.msra.mxu0 %v10372
    %11127 = vmatpush.bf16.msra.mxu0 %v10365
    %11128 = vmatmul.bf16.gmra.mxu0 %v8496
    %v11129 = vpop.f32.mrf.mxu0
    %v11130 = vadd.f32 %v11116, %v11129
    %v11131 = vpop.f32.mrf.mxu0
    %v11132 = vadd.f32 %v11118, %v11131
    %11133 = vdwg.mxu0
    %11134 = vmatpush.bf16.msra.mxu0 %v10470
    %11135 = vmatpush.bf16.msra.mxu0 %v10463
    %11136 = vmatpush.bf16.msra.mxu0 %v10456
    %11137 = vmatpush.bf16.msra.mxu0 %v10449
    %11138 = vmatpush.bf16.msra.mxu0 %v10442
    %11139 = vmatpush.bf16.msra.mxu0 %v10435
    %11140 = vmatpush.bf16.msra.mxu0 %v10428
    %11141 = vmatpush.bf16.msra.mxu0 %v10421
    %11142 = vmatmul.bf16.gmra.mxu0 %v8497
    %v11143 = vpop.f32.mrf.mxu0
    %v11144 = vadd.f32 %v11130, %v11143
    %v11145 = vpop.f32.mrf.mxu0
    %v11146 = vadd.f32 %v11132, %v11145
    %11147 = vdwg.mxu0
    %11148 = vmatpush.bf16.msra.mxu0 %v10526
    %11149 = vmatpush.bf16.msra.mxu0 %v10519
    %11150 = vmatpush.bf16.msra.mxu0 %v10512
    %11151 = vmatpush.bf16.msra.mxu0 %v10505
    %11152 = vmatpush.bf16.msra.mxu0 %v10498
    %11153 = vmatpush.bf16.msra.mxu0 %v10491
    %11154 = vmatpush.bf16.msra.mxu0 %v10484
    %11155 = vmatpush.bf16.msra.mxu0 %v10477
    %11156 = vmatmul.bf16.gmra.mxu0 %v8498
    %v11157 = vpop.f32.mrf.mxu0
    %v11158 = vadd.f32 %v11144, %v11157
    %v11159 = vpop.f32.mrf.mxu0
    %v11160 = vadd.f32 %v11146, %v11159
    %11161 = vdwg.mxu0
    %11162 = vmatpush.bf16.msra.mxu0 %v10582
    %11163 = vmatpush.bf16.msra.mxu0 %v10575
    %11164 = vmatpush.bf16.msra.mxu0 %v10568
    %11165 = vmatpush.bf16.msra.mxu0 %v10561
    %11166 = vmatpush.bf16.msra.mxu0 %v10554
    %11167 = vmatpush.bf16.msra.mxu0 %v10547
    %11168 = vmatpush.bf16.msra.mxu0 %v10540
    %11169 = vmatpush.bf16.msra.mxu0 %v10533
    %11170 = vmatmul.bf16.gmra.mxu0 %v8499
    %v11171 = vpop.f32.mrf.mxu0
    %v11172 = vadd.f32 %v11158, %v11171
    %v11173 = vpop.f32.mrf.mxu0
    %v11174 = vadd.f32 %v11160, %v11173
    %11175 = vdwg.mxu0
    %11176 = vmatpush.bf16.msra.mxu0 %v10247
    %11177 = vmatpush.bf16.msra.mxu0 %v10240
    %11178 = vmatpush.bf16.msra.mxu0 %v10233
    %11179 = vmatpush.bf16.msra.mxu0 %v10226
    %11180 = vmatpush.bf16.msra.mxu0 %v10219
    %11181 = vmatpush.bf16.msra.mxu0 %v10212
    %11182 = vmatpush.bf16.msra.mxu0 %v10205
    %11183 = vmatpush.bf16.msra.mxu0 %v10198
    %11184 = vmatmul.bf16.gmra.mxu0 %v8493
    %v11185 = vpop.f32.mrf.mxu0
    %v11186 = vadd.f32 %v8952, %v11185
    %v11187 = vpop.f32.mrf.mxu0
    %v11188 = vadd.f32 %v8952, %v11187
    %11189 = vdwg.mxu0
    %11190 = vmatpush.bf16.msra.mxu0 %v10303
    %11191 = vmatpush.bf16.msra.mxu0 %v10296
    %11192 = vmatpush.bf16.msra.mxu0 %v10289
    %11193 = vmatpush.bf16.msra.mxu0 %v10282
    %11194 = vmatpush.bf16.msra.mxu0 %v10275
    %11195 = vmatpush.bf16.msra.mxu0 %v10268
    %11196 = vmatpush.bf16.msra.mxu0 %v10261
    %11197 = vmatpush.bf16.msra.mxu0 %v10254
    %11198 = vmatmul.bf16.gmra.mxu0 %v8494
    %v11199 = vpop.f32.mrf.mxu0
    %v11200 = vadd.f32 %v11186, %v11199
    %v11201 = vpop.f32.mrf.mxu0
    %v11202 = vadd.f32 %v11188, %v11201
    %11203 = vdwg.mxu0
    %11204 = vmatpush.bf16.msra.mxu0 %v10359
    %11205 = vmatpush.bf16.msra.mxu0 %v10352
    %11206 = vmatpush.bf16.msra.mxu0 %v10345
    %11207 = vmatpush.bf16.msra.mxu0 %v10338
    %11208 = vmatpush.bf16.msra.mxu0 %v10331
    %11209 = vmatpush.bf16.msra.mxu0 %v10324
    %11210 = vmatpush.bf16.msra.mxu0 %v10317
    %11211 = vmatpush.bf16.msra.mxu0 %v10310
    %11212 = vmatmul.bf16.gmra.mxu0 %v8495
    %v11213 = vpop.f32.mrf.mxu0
    %v11214 = vadd.f32 %v11200, %v11213
    %v11215 = vpop.f32.mrf.mxu0
    %v11216 = vadd.f32 %v11202, %v11215
    %11217 = vdwg.mxu0
    %11218 = vmatpush.bf16.msra.mxu0 %v10415
    %11219 = vmatpush.bf16.msra.mxu0 %v10408
    %11220 = vmatpush.bf16.msra.mxu0 %v10401
    %11221 = vmatpush.bf16.msra.mxu0 %v10394
    %11222 = vmatpush.bf16.msra.mxu0 %v10387
    %11223 = vmatpush.bf16.msra.mxu0 %v10380
    %11224 = vmatpush.bf16.msra.mxu0 %v10373
    %11225 = vmatpush.bf16.msra.mxu0 %v10366
    %11226 = vmatmul.bf16.gmra.mxu0 %v8496
    %v11227 = vpop.f32.mrf.mxu0
    %v11228 = vadd.f32 %v11214, %v11227
    %v11229 = vpop.f32.mrf.mxu0
    %v11230 = vadd.f32 %v11216, %v11229
    %11231 = vdwg.mxu0
    %11232 = vmatpush.bf16.msra.mxu0 %v10471
    %11233 = vmatpush.bf16.msra.mxu0 %v10464
    %11234 = vmatpush.bf16.msra.mxu0 %v10457
    %11235 = vmatpush.bf16.msra.mxu0 %v10450
    %11236 = vmatpush.bf16.msra.mxu0 %v10443
    %11237 = vmatpush.bf16.msra.mxu0 %v10436
    %11238 = vmatpush.bf16.msra.mxu0 %v10429
    %11239 = vmatpush.bf16.msra.mxu0 %v10422
    %11240 = vmatmul.bf16.gmra.mxu0 %v8497
    %v11241 = vpop.f32.mrf.mxu0
    %v11242 = vadd.f32 %v11228, %v11241
    %v11243 = vpop.f32.mrf.mxu0
    %v11244 = vadd.f32 %v11230, %v11243
    %11245 = vdwg.mxu0
    %11246 = vmatpush.bf16.msra.mxu0 %v10527
    %11247 = vmatpush.bf16.msra.mxu0 %v10520
    %11248 = vmatpush.bf16.msra.mxu0 %v10513
    %11249 = vmatpush.bf16.msra.mxu0 %v10506
    %11250 = vmatpush.bf16.msra.mxu0 %v10499
    %11251 = vmatpush.bf16.msra.mxu0 %v10492
    %11252 = vmatpush.bf16.msra.mxu0 %v10485
    %11253 = vmatpush.bf16.msra.mxu0 %v10478
    %11254 = vmatmul.bf16.gmra.mxu0 %v8498
    %v11255 = vpop.f32.mrf.mxu0
    %v11256 = vadd.f32 %v11242, %v11255
    %v11257 = vpop.f32.mrf.mxu0
    %v11258 = vadd.f32 %v11244, %v11257
    %11259 = vdwg.mxu0
    %11260 = vmatpush.bf16.msra.mxu0 %v10583
    %11261 = vmatpush.bf16.msra.mxu0 %v10576
    %11262 = vmatpush.bf16.msra.mxu0 %v10569
    %11263 = vmatpush.bf16.msra.mxu0 %v10562
    %11264 = vmatpush.bf16.msra.mxu0 %v10555
    %11265 = vmatpush.bf16.msra.mxu0 %v10548
    %11266 = vmatpush.bf16.msra.mxu0 %v10541
    %11267 = vmatpush.bf16.msra.mxu0 %v10534
    %11268 = vmatmul.bf16.gmra.mxu0 %v8499
    %v11269 = vpop.f32.mrf.mxu0
    %v11270 = vadd.f32 %v11256, %v11269
    %v11271 = vpop.f32.mrf.mxu0
    %v11272 = vadd.f32 %v11258, %v11271
    %11273 = vdwg.mxu0
    %11274 = vmatpush.bf16.msra.mxu0 %v10248
    %11275 = vmatpush.bf16.msra.mxu0 %v10241
    %11276 = vmatpush.bf16.msra.mxu0 %v10234
    %11277 = vmatpush.bf16.msra.mxu0 %v10227
    %11278 = vmatpush.bf16.msra.mxu0 %v10220
    %11279 = vmatpush.bf16.msra.mxu0 %v10213
    %11280 = vmatpush.bf16.msra.mxu0 %v10206
    %11281 = vmatpush.bf16.msra.mxu0 %v10199
    %11282 = vmatmul.bf16.gmra.mxu0 %v8493
    %v11283 = vpop.f32.mrf.mxu0
    %v11284 = vadd.f32 %v8953, %v11283
    %v11285 = vpop.f32.mrf.mxu0
    %v11286 = vadd.f32 %v8953, %v11285
    %11287 = vdwg.mxu0
    %11288 = vmatpush.bf16.msra.mxu0 %v10304
    %11289 = vmatpush.bf16.msra.mxu0 %v10297
    %11290 = vmatpush.bf16.msra.mxu0 %v10290
    %11291 = vmatpush.bf16.msra.mxu0 %v10283
    %11292 = vmatpush.bf16.msra.mxu0 %v10276
    %11293 = vmatpush.bf16.msra.mxu0 %v10269
    %11294 = vmatpush.bf16.msra.mxu0 %v10262
    %11295 = vmatpush.bf16.msra.mxu0 %v10255
    %11296 = vmatmul.bf16.gmra.mxu0 %v8494
    %v11297 = vpop.f32.mrf.mxu0
    %v11298 = vadd.f32 %v11284, %v11297
    %v11299 = vpop.f32.mrf.mxu0
    %v11300 = vadd.f32 %v11286, %v11299
    %11301 = vdwg.mxu0
    %11302 = vmatpush.bf16.msra.mxu0 %v10360
    %11303 = vmatpush.bf16.msra.mxu0 %v10353
    %11304 = vmatpush.bf16.msra.mxu0 %v10346
    %11305 = vmatpush.bf16.msra.mxu0 %v10339
    %11306 = vmatpush.bf16.msra.mxu0 %v10332
    %11307 = vmatpush.bf16.msra.mxu0 %v10325
    %11308 = vmatpush.bf16.msra.mxu0 %v10318
    %11309 = vmatpush.bf16.msra.mxu0 %v10311
    %11310 = vmatmul.bf16.gmra.mxu0 %v8495
    %v11311 = vpop.f32.mrf.mxu0
    %v11312 = vadd.f32 %v11298, %v11311
    %v11313 = vpop.f32.mrf.mxu0
    %v11314 = vadd.f32 %v11300, %v11313
    %11315 = vdwg.mxu0
    %11316 = vmatpush.bf16.msra.mxu0 %v10416
    %11317 = vmatpush.bf16.msra.mxu0 %v10409
    %11318 = vmatpush.bf16.msra.mxu0 %v10402
    %11319 = vmatpush.bf16.msra.mxu0 %v10395
    %11320 = vmatpush.bf16.msra.mxu0 %v10388
    %11321 = vmatpush.bf16.msra.mxu0 %v10381
    %11322 = vmatpush.bf16.msra.mxu0 %v10374
    %11323 = vmatpush.bf16.msra.mxu0 %v10367
    %11324 = vmatmul.bf16.gmra.mxu0 %v8496
    %v11325 = vpop.f32.mrf.mxu0
    %v11326 = vadd.f32 %v11312, %v11325
    %v11327 = vpop.f32.mrf.mxu0
    %v11328 = vadd.f32 %v11314, %v11327
    %11329 = vdwg.mxu0
    %11330 = vmatpush.bf16.msra.mxu0 %v10472
    %11331 = vmatpush.bf16.msra.mxu0 %v10465
    %11332 = vmatpush.bf16.msra.mxu0 %v10458
    %11333 = vmatpush.bf16.msra.mxu0 %v10451
    %11334 = vmatpush.bf16.msra.mxu0 %v10444
    %11335 = vmatpush.bf16.msra.mxu0 %v10437
    %11336 = vmatpush.bf16.msra.mxu0 %v10430
    %11337 = vmatpush.bf16.msra.mxu0 %v10423
    %11338 = vmatmul.bf16.gmra.mxu0 %v8497
    %v11339 = vpop.f32.mrf.mxu0
    %v11340 = vadd.f32 %v11326, %v11339
    %v11341 = vpop.f32.mrf.mxu0
    %v11342 = vadd.f32 %v11328, %v11341
    %11343 = vdwg.mxu0
    %11344 = vmatpush.bf16.msra.mxu0 %v10528
    %11345 = vmatpush.bf16.msra.mxu0 %v10521
    %11346 = vmatpush.bf16.msra.mxu0 %v10514
    %11347 = vmatpush.bf16.msra.mxu0 %v10507
    %11348 = vmatpush.bf16.msra.mxu0 %v10500
    %11349 = vmatpush.bf16.msra.mxu0 %v10493
    %11350 = vmatpush.bf16.msra.mxu0 %v10486
    %11351 = vmatpush.bf16.msra.mxu0 %v10479
    %11352 = vmatmul.bf16.gmra.mxu0 %v8498
    %v11353 = vpop.f32.mrf.mxu0
    %v11354 = vadd.f32 %v11340, %v11353
    %v11355 = vpop.f32.mrf.mxu0
    %v11356 = vadd.f32 %v11342, %v11355
    %11357 = vdwg.mxu0
    %11358 = vmatpush.bf16.msra.mxu0 %v10584
    %11359 = vmatpush.bf16.msra.mxu0 %v10577
    %11360 = vmatpush.bf16.msra.mxu0 %v10570
    %11361 = vmatpush.bf16.msra.mxu0 %v10563
    %11362 = vmatpush.bf16.msra.mxu0 %v10556
    %11363 = vmatpush.bf16.msra.mxu0 %v10549
    %11364 = vmatpush.bf16.msra.mxu0 %v10542
    %11365 = vmatpush.bf16.msra.mxu0 %v10535
    %11366 = vmatmul.bf16.gmra.mxu0 %v8499
    %v11367 = vpop.f32.mrf.mxu0
    %v11368 = vadd.f32 %v11354, %v11367
    %v11369 = vpop.f32.mrf.mxu0
    %v11370 = vadd.f32 %v11356, %v11369
    %11371 = vdwg.mxu0
    %11372 = vmatpush.bf16.msra.mxu0 %v10249
    %11373 = vmatpush.bf16.msra.mxu0 %v10242
    %11374 = vmatpush.bf16.msra.mxu0 %v10235
    %11375 = vmatpush.bf16.msra.mxu0 %v10228
    %11376 = vmatpush.bf16.msra.mxu0 %v10221
    %11377 = vmatpush.bf16.msra.mxu0 %v10214
    %11378 = vmatpush.bf16.msra.mxu0 %v10207
    %11379 = vmatpush.bf16.msra.mxu0 %v10200
    %11380 = vmatmul.bf16.gmra.mxu0 %v8493
    %v11381 = vpop.f32.mrf.mxu0
    %v11382 = vadd.f32 %v8954, %v11381
    %v11383 = vpop.f32.mrf.mxu0
    %v11384 = vadd.f32 %v8954, %v11383
    %11385 = vdwg.mxu0
    %11386 = vmatpush.bf16.msra.mxu0 %v10305
    %11387 = vmatpush.bf16.msra.mxu0 %v10298
    %11388 = vmatpush.bf16.msra.mxu0 %v10291
    %11389 = vmatpush.bf16.msra.mxu0 %v10284
    %11390 = vmatpush.bf16.msra.mxu0 %v10277
    %11391 = vmatpush.bf16.msra.mxu0 %v10270
    %11392 = vmatpush.bf16.msra.mxu0 %v10263
    %11393 = vmatpush.bf16.msra.mxu0 %v10256
    %11394 = vmatmul.bf16.gmra.mxu0 %v8494
    %v11395 = vpop.f32.mrf.mxu0
    %v11396 = vadd.f32 %v11382, %v11395
    %v11397 = vpop.f32.mrf.mxu0
    %v11398 = vadd.f32 %v11384, %v11397
    %11399 = vdwg.mxu0
    %11400 = vmatpush.bf16.msra.mxu0 %v10361
    %11401 = vmatpush.bf16.msra.mxu0 %v10354
    %11402 = vmatpush.bf16.msra.mxu0 %v10347
    %11403 = vmatpush.bf16.msra.mxu0 %v10340
    %11404 = vmatpush.bf16.msra.mxu0 %v10333
    %11405 = vmatpush.bf16.msra.mxu0 %v10326
    %11406 = vmatpush.bf16.msra.mxu0 %v10319
    %11407 = vmatpush.bf16.msra.mxu0 %v10312
    %11408 = vmatmul.bf16.gmra.mxu0 %v8495
    %v11409 = vpop.f32.mrf.mxu0
    %v11410 = vadd.f32 %v11396, %v11409
    %v11411 = vpop.f32.mrf.mxu0
    %v11412 = vadd.f32 %v11398, %v11411
    %11413 = vdwg.mxu0
    %11414 = vmatpush.bf16.msra.mxu0 %v10417
    %11415 = vmatpush.bf16.msra.mxu0 %v10410
    %11416 = vmatpush.bf16.msra.mxu0 %v10403
    %11417 = vmatpush.bf16.msra.mxu0 %v10396
    %11418 = vmatpush.bf16.msra.mxu0 %v10389
    %11419 = vmatpush.bf16.msra.mxu0 %v10382
    %11420 = vmatpush.bf16.msra.mxu0 %v10375
    %11421 = vmatpush.bf16.msra.mxu0 %v10368
    %11422 = vmatmul.bf16.gmra.mxu0 %v8496
    %v11423 = vpop.f32.mrf.mxu0
    %v11424 = vadd.f32 %v11410, %v11423
    %v11425 = vpop.f32.mrf.mxu0
    %v11426 = vadd.f32 %v11412, %v11425
    %11427 = vdwg.mxu0
    %11428 = vmatpush.bf16.msra.mxu0 %v10473
    %11429 = vmatpush.bf16.msra.mxu0 %v10466
    %11430 = vmatpush.bf16.msra.mxu0 %v10459
    %11431 = vmatpush.bf16.msra.mxu0 %v10452
    %11432 = vmatpush.bf16.msra.mxu0 %v10445
    %11433 = vmatpush.bf16.msra.mxu0 %v10438
    %11434 = vmatpush.bf16.msra.mxu0 %v10431
    %11435 = vmatpush.bf16.msra.mxu0 %v10424
    %11436 = vmatmul.bf16.gmra.mxu0 %v8497
    %v11437 = vpop.f32.mrf.mxu0
    %v11438 = vadd.f32 %v11424, %v11437
    %v11439 = vpop.f32.mrf.mxu0
    %v11440 = vadd.f32 %v11426, %v11439
    %11441 = vdwg.mxu0
    %11442 = vmatpush.bf16.msra.mxu0 %v10529
    %11443 = vmatpush.bf16.msra.mxu0 %v10522
    %11444 = vmatpush.bf16.msra.mxu0 %v10515
    %11445 = vmatpush.bf16.msra.mxu0 %v10508
    %11446 = vmatpush.bf16.msra.mxu0 %v10501
    %11447 = vmatpush.bf16.msra.mxu0 %v10494
    %11448 = vmatpush.bf16.msra.mxu0 %v10487
    %11449 = vmatpush.bf16.msra.mxu0 %v10480
    %11450 = vmatmul.bf16.gmra.mxu0 %v8498
    %v11451 = vpop.f32.mrf.mxu0
    %v11452 = vadd.f32 %v11438, %v11451
    %v11453 = vpop.f32.mrf.mxu0
    %v11454 = vadd.f32 %v11440, %v11453
    %11455 = vdwg.mxu0
    %11456 = vmatpush.bf16.msra.mxu0 %v10585
    %11457 = vmatpush.bf16.msra.mxu0 %v10578
    %11458 = vmatpush.bf16.msra.mxu0 %v10571
    %11459 = vmatpush.bf16.msra.mxu0 %v10564
    %11460 = vmatpush.bf16.msra.mxu0 %v10557
    %11461 = vmatpush.bf16.msra.mxu0 %v10550
    %11462 = vmatpush.bf16.msra.mxu0 %v10543
    %11463 = vmatpush.bf16.msra.mxu0 %v10536
    %11464 = vmatmul.bf16.gmra.mxu0 %v8499
    %v11465 = vpop.f32.mrf.mxu0
    %v11466 = vadd.f32 %v11452, %v11465
    %v11467 = vpop.f32.mrf.mxu0
    %v11468 = vadd.f32 %v11454, %v11467
    %11469 = vdwg.mxu0
    %11470 = vmatpush.bf16.msra.mxu0 %v10250
    %11471 = vmatpush.bf16.msra.mxu0 %v10243
    %11472 = vmatpush.bf16.msra.mxu0 %v10236
    %11473 = vmatpush.bf16.msra.mxu0 %v10229
    %11474 = vmatpush.bf16.msra.mxu0 %v10222
    %11475 = vmatpush.bf16.msra.mxu0 %v10215
    %11476 = vmatpush.bf16.msra.mxu0 %v10208
    %11477 = vmatpush.bf16.msra.mxu0 %v10201
    %11478 = vmatmul.bf16.gmra.mxu0 %v8493
    %v11479 = vpop.f32.mrf.mxu0
    %v11480 = vadd.f32 %v8955, %v11479
    %v11481 = vpop.f32.mrf.mxu0
    %v11482 = vadd.f32 %v8955, %v11481
    %11483 = vdwg.mxu0
    %11484 = vmatpush.bf16.msra.mxu0 %v10306
    %11485 = vmatpush.bf16.msra.mxu0 %v10299
    %11486 = vmatpush.bf16.msra.mxu0 %v10292
    %11487 = vmatpush.bf16.msra.mxu0 %v10285
    %11488 = vmatpush.bf16.msra.mxu0 %v10278
    %11489 = vmatpush.bf16.msra.mxu0 %v10271
    %11490 = vmatpush.bf16.msra.mxu0 %v10264
    %11491 = vmatpush.bf16.msra.mxu0 %v10257
    %11492 = vmatmul.bf16.gmra.mxu0 %v8494
    %v11493 = vpop.f32.mrf.mxu0
    %v11494 = vadd.f32 %v11480, %v11493
    %v11495 = vpop.f32.mrf.mxu0
    %v11496 = vadd.f32 %v11482, %v11495
    %11497 = vdwg.mxu0
    %11498 = vmatpush.bf16.msra.mxu0 %v10362
    %11499 = vmatpush.bf16.msra.mxu0 %v10355
    %11500 = vmatpush.bf16.msra.mxu0 %v10348
    %11501 = vmatpush.bf16.msra.mxu0 %v10341
    %11502 = vmatpush.bf16.msra.mxu0 %v10334
    %11503 = vmatpush.bf16.msra.mxu0 %v10327
    %11504 = vmatpush.bf16.msra.mxu0 %v10320
    %11505 = vmatpush.bf16.msra.mxu0 %v10313
    %11506 = vmatmul.bf16.gmra.mxu0 %v8495
    %v11507 = vpop.f32.mrf.mxu0
    %v11508 = vadd.f32 %v11494, %v11507
    %v11509 = vpop.f32.mrf.mxu0
    %v11510 = vadd.f32 %v11496, %v11509
    %11511 = vdwg.mxu0
    %11512 = vmatpush.bf16.msra.mxu0 %v10418
    %11513 = vmatpush.bf16.msra.mxu0 %v10411
    %11514 = vmatpush.bf16.msra.mxu0 %v10404
    %11515 = vmatpush.bf16.msra.mxu0 %v10397
    %11516 = vmatpush.bf16.msra.mxu0 %v10390
    %11517 = vmatpush.bf16.msra.mxu0 %v10383
    %11518 = vmatpush.bf16.msra.mxu0 %v10376
    %11519 = vmatpush.bf16.msra.mxu0 %v10369
    %11520 = vmatmul.bf16.gmra.mxu0 %v8496
    %v11521 = vpop.f32.mrf.mxu0
    %v11522 = vadd.f32 %v11508, %v11521
    %v11523 = vpop.f32.mrf.mxu0
    %v11524 = vadd.f32 %v11510, %v11523
    %11525 = vdwg.mxu0
    %11526 = vmatpush.bf16.msra.mxu0 %v10474
    %11527 = vmatpush.bf16.msra.mxu0 %v10467
    %11528 = vmatpush.bf16.msra.mxu0 %v10460
    %11529 = vmatpush.bf16.msra.mxu0 %v10453
    %11530 = vmatpush.bf16.msra.mxu0 %v10446
    %11531 = vmatpush.bf16.msra.mxu0 %v10439
    %11532 = vmatpush.bf16.msra.mxu0 %v10432
    %11533 = vmatpush.bf16.msra.mxu0 %v10425
    %11534 = vmatmul.bf16.gmra.mxu0 %v8497
    %v11535 = vpop.f32.mrf.mxu0
    %v11536 = vadd.f32 %v11522, %v11535
    %v11537 = vpop.f32.mrf.mxu0
    %v11538 = vadd.f32 %v11524, %v11537
    %11539 = vdwg.mxu0
    %11540 = vmatpush.bf16.msra.mxu0 %v10530
    %11541 = vmatpush.bf16.msra.mxu0 %v10523
    %11542 = vmatpush.bf16.msra.mxu0 %v10516
    %11543 = vmatpush.bf16.msra.mxu0 %v10509
    %11544 = vmatpush.bf16.msra.mxu0 %v10502
    %11545 = vmatpush.bf16.msra.mxu0 %v10495
    %11546 = vmatpush.bf16.msra.mxu0 %v10488
    %11547 = vmatpush.bf16.msra.mxu0 %v10481
    %11548 = vmatmul.bf16.gmra.mxu0 %v8498
    %v11549 = vpop.f32.mrf.mxu0
    %v11550 = vadd.f32 %v11536, %v11549
    %v11551 = vpop.f32.mrf.mxu0
    %v11552 = vadd.f32 %v11538, %v11551
    %11553 = vdwg.mxu0
    %11554 = vmatpush.bf16.msra.mxu0 %v10586
    %11555 = vmatpush.bf16.msra.mxu0 %v10579
    %11556 = vmatpush.bf16.msra.mxu0 %v10572
    %11557 = vmatpush.bf16.msra.mxu0 %v10565
    %11558 = vmatpush.bf16.msra.mxu0 %v10558
    %11559 = vmatpush.bf16.msra.mxu0 %v10551
    %11560 = vmatpush.bf16.msra.mxu0 %v10544
    %11561 = vmatpush.bf16.msra.mxu0 %v10537
    %11562 = vmatmul.bf16.gmra.mxu0 %v8499
    %v11563 = vpop.f32.mrf.mxu0
    %v11564 = vadd.f32 %v11550, %v11563
    %v11565 = vpop.f32.mrf.mxu0
    %v11566 = vadd.f32 %v11552, %v11565
    %11567 = vdwg.mxu0
    %11568 = vmatpush.bf16.msra.mxu0 %v10251
    %11569 = vmatpush.bf16.msra.mxu0 %v10244
    %11570 = vmatpush.bf16.msra.mxu0 %v10237
    %11571 = vmatpush.bf16.msra.mxu0 %v10230
    %11572 = vmatpush.bf16.msra.mxu0 %v10223
    %11573 = vmatpush.bf16.msra.mxu0 %v10216
    %11574 = vmatpush.bf16.msra.mxu0 %v10209
    %11575 = vmatpush.bf16.msra.mxu0 %v10202
    %11576 = vmatmul.bf16.gmra.mxu0 %v8493
    %v11577 = vpop.f32.mrf.mxu0
    %v11578 = vadd.f32 %v8956, %v11577
    %v11579 = vpop.f32.mrf.mxu0
    %v11580 = vadd.f32 %v8956, %v11579
    %11581 = vdwg.mxu0
    %11582 = vmatpush.bf16.msra.mxu0 %v10307
    %11583 = vmatpush.bf16.msra.mxu0 %v10300
    %11584 = vmatpush.bf16.msra.mxu0 %v10293
    %11585 = vmatpush.bf16.msra.mxu0 %v10286
    %11586 = vmatpush.bf16.msra.mxu0 %v10279
    %11587 = vmatpush.bf16.msra.mxu0 %v10272
    %11588 = vmatpush.bf16.msra.mxu0 %v10265
    %11589 = vmatpush.bf16.msra.mxu0 %v10258
    %11590 = vmatmul.bf16.gmra.mxu0 %v8494
    %v11591 = vpop.f32.mrf.mxu0
    %v11592 = vadd.f32 %v11578, %v11591
    %v11593 = vpop.f32.mrf.mxu0
    %v11594 = vadd.f32 %v11580, %v11593
    %11595 = vdwg.mxu0
    %11596 = vmatpush.bf16.msra.mxu0 %v10363
    %11597 = vmatpush.bf16.msra.mxu0 %v10356
    %11598 = vmatpush.bf16.msra.mxu0 %v10349
    %11599 = vmatpush.bf16.msra.mxu0 %v10342
    %11600 = vmatpush.bf16.msra.mxu0 %v10335
    %11601 = vmatpush.bf16.msra.mxu0 %v10328
    %11602 = vmatpush.bf16.msra.mxu0 %v10321
    %11603 = vmatpush.bf16.msra.mxu0 %v10314
    %11604 = vmatmul.bf16.gmra.mxu0 %v8495
    %v11605 = vpop.f32.mrf.mxu0
    %v11606 = vadd.f32 %v11592, %v11605
    %v11607 = vpop.f32.mrf.mxu0
    %v11608 = vadd.f32 %v11594, %v11607
    %11609 = vdwg.mxu0
    %11610 = vmatpush.bf16.msra.mxu0 %v10419
    %11611 = vmatpush.bf16.msra.mxu0 %v10412
    %11612 = vmatpush.bf16.msra.mxu0 %v10405
    %11613 = vmatpush.bf16.msra.mxu0 %v10398
    %11614 = vmatpush.bf16.msra.mxu0 %v10391
    %11615 = vmatpush.bf16.msra.mxu0 %v10384
    %11616 = vmatpush.bf16.msra.mxu0 %v10377
    %11617 = vmatpush.bf16.msra.mxu0 %v10370
    %11618 = vmatmul.bf16.gmra.mxu0 %v8496
    %v11619 = vpop.f32.mrf.mxu0
    %v11620 = vadd.f32 %v11606, %v11619
    %v11621 = vpop.f32.mrf.mxu0
    %v11622 = vadd.f32 %v11608, %v11621
    %11623 = vdwg.mxu0
    %11624 = vmatpush.bf16.msra.mxu0 %v10475
    %11625 = vmatpush.bf16.msra.mxu0 %v10468
    %11626 = vmatpush.bf16.msra.mxu0 %v10461
    %11627 = vmatpush.bf16.msra.mxu0 %v10454
    %11628 = vmatpush.bf16.msra.mxu0 %v10447
    %11629 = vmatpush.bf16.msra.mxu0 %v10440
    %11630 = vmatpush.bf16.msra.mxu0 %v10433
    %11631 = vmatpush.bf16.msra.mxu0 %v10426
    %11632 = vmatmul.bf16.gmra.mxu0 %v8497
    %v11633 = vpop.f32.mrf.mxu0
    %v11634 = vadd.f32 %v11620, %v11633
    %v11635 = vpop.f32.mrf.mxu0
    %v11636 = vadd.f32 %v11622, %v11635
    %11637 = vdwg.mxu0
    %11638 = vmatpush.bf16.msra.mxu0 %v10531
    %11639 = vmatpush.bf16.msra.mxu0 %v10524
    %11640 = vmatpush.bf16.msra.mxu0 %v10517
    %11641 = vmatpush.bf16.msra.mxu0 %v10510
    %11642 = vmatpush.bf16.msra.mxu0 %v10503
    %11643 = vmatpush.bf16.msra.mxu0 %v10496
    %11644 = vmatpush.bf16.msra.mxu0 %v10489
    %11645 = vmatpush.bf16.msra.mxu0 %v10482
    %11646 = vmatmul.bf16.gmra.mxu0 %v8498
    %v11647 = vpop.f32.mrf.mxu0
    %v11648 = vadd.f32 %v11634, %v11647
    %v11649 = vpop.f32.mrf.mxu0
    %v11650 = vadd.f32 %v11636, %v11649
    %11651 = vdwg.mxu0
    %11652 = vmatpush.bf16.msra.mxu0 %v10587
    %11653 = vmatpush.bf16.msra.mxu0 %v10580
    %11654 = vmatpush.bf16.msra.mxu0 %v10573
    %11655 = vmatpush.bf16.msra.mxu0 %v10566
    %11656 = vmatpush.bf16.msra.mxu0 %v10559
    %11657 = vmatpush.bf16.msra.mxu0 %v10552
    %11658 = vmatpush.bf16.msra.mxu0 %v10545
    %11659 = vmatpush.bf16.msra.mxu0 %v10538
    %11660 = vmatmul.bf16.gmra.mxu0 %v8499
    %v11661 = vpop.f32.mrf.mxu0
    %v11662 = vadd.f32 %v11648, %v11661
    %v11663 = vpop.f32.mrf.mxu0
    %v11664 = vadd.f32 %v11650, %v11663
    %11665 = vdwg.mxu0
    %v11666 = vxor.u32 %v11074, 2147483648
    %v11667 = vxor.u32 %v11172, 2147483648
    %v11668 = vxor.u32 %v11270, 2147483648
    %v11669 = vxor.u32 %v11368, 2147483648
    %v11670 = vxor.u32 %v11466, 2147483648
    %v11671 = vxor.u32 %v11564, 2147483648
    %v11672 = vxor.u32 %v11662, 2147483648
    %v11673 = vxor.u32 %v11076, 2147483648
    %v11674 = vxor.u32 %v11174, 2147483648
    %v11675 = vxor.u32 %v11272, 2147483648
    %v11676 = vxor.u32 %v11370, 2147483648
    %v11677 = vxor.u32 %v11468, 2147483648
    %v11678 = vxor.u32 %v11566, 2147483648
    %v11679 = vxor.u32 %v11664, 2147483648
    %v11680 = vmul.f32 %v11666, 1.442695
    %v11681 = vpow.pop %v11680
    %v11682 = vmul.f32 %v11667, 1.442695
    %v11683 = vpow.pop %v11682
    %v11684 = vmul.f32 %v11668, 1.442695
    %v11685 = vpow.pop %v11684
    %v11686 = vmul.f32 %v11669, 1.442695
    %v11687 = vpow.pop %v11686
    %v11688 = vmul.f32 %v11670, 1.442695
    %v11689 = vpow.pop %v11688
    %v11690 = vmul.f32 %v11671, 1.442695
    %v11691 = vpow.pop %v11690
    %v11692 = vmul.f32 %v11672, 1.442695
    %v11693 = vpow.pop %v11692
    %v11694 = vmul.f32 %v11673, 1.442695
    %v11695 = vpow.pop %v11694
    %v11696 = vmul.f32 %v11674, 1.442695
    %v11697 = vpow.pop %v11696
    %v11698 = vmul.f32 %v11675, 1.442695
    %v11699 = vpow.pop %v11698
    %v11700 = vmul.f32 %v11676, 1.442695
    %v11701 = vpow.pop %v11700
    %v11702 = vmul.f32 %v11677, 1.442695
    %v11703 = vpow.pop %v11702
    %v11704 = vmul.f32 %v11678, 1.442695
    %v11705 = vpow.pop %v11704
    %v11706 = vmul.f32 %v11679, 1.442695
    %v11707 = vpow.pop %v11706
    %v11708 = vadd.f32 %v11681, 1.0
    %v11709 = vadd.f32 %v11683, 1.0
    %v11710 = vadd.f32 %v11685, 1.0
    %v11711 = vadd.f32 %v11687, 1.0
    %v11712 = vadd.f32 %v11689, 1.0
    %v11713 = vadd.f32 %v11691, 1.0
    %v11714 = vadd.f32 %v11693, 1.0
    %v11715 = vadd.f32 %v11695, 1.0
    %v11716 = vadd.f32 %v11697, 1.0
    %v11717 = vadd.f32 %v11699, 1.0
    %v11718 = vadd.f32 %v11701, 1.0
    %v11719 = vadd.f32 %v11703, 1.0
    %v11720 = vadd.f32 %v11705, 1.0
    %v11721 = vadd.f32 %v11707, 1.0
    %v11722 = vrcp.pop %v11708
    %v11723 = vmul.f32 %v11708, %v11722
    %v11724 = vsub.f32 1.0, %v11723
    %v11725 = vmul.f32 %v11722, %v11724
    %v11726 = vadd.f32 %v11722, %v11725
    %vm11727 = vweird.f32 %v11708
    %vm11728 = vweird.f32 %v11722
    %vm11729 = vmor %vm11727, %vm11728
    %v11730 = vsel %vm11729, %v11722, %v11726
    %v11731 = vand.u32 2147483647, %v11708
    %vm11732 = vcmp.eq.f32.partialorder %v11731, 8.507059e+37
    %v11733 = vand.u32 %v11708, 2147483648
    %v11734 = vor.u32 1.1754944e-38, %v11733
    %v11735 = vsel %vm11732, %v11734, %v11730
    %v11736 = vmul.f32 1.0, %v11735
    %v11737 = vrcp.pop %v11709
    %v11738 = vmul.f32 %v11709, %v11737
    %v11739 = vsub.f32 1.0, %v11738
    %v11740 = vmul.f32 %v11737, %v11739
    %v11741 = vadd.f32 %v11737, %v11740
    %vm11742 = vweird.f32 %v11709
    %vm11743 = vweird.f32 %v11737
    %vm11744 = vmor %vm11742, %vm11743
    %v11745 = vsel %vm11744, %v11737, %v11741
    %v11746 = vand.u32 2147483647, %v11709
    %vm11747 = vcmp.eq.f32.partialorder %v11746, 8.507059e+37
    %v11748 = vand.u32 %v11709, 2147483648
    %v11749 = vor.u32 1.1754944e-38, %v11748
    %v11750 = vsel %vm11747, %v11749, %v11745
    %v11751 = vmul.f32 1.0, %v11750
    %v11752 = vrcp.pop %v11710
    %v11753 = vmul.f32 %v11710, %v11752
    %v11754 = vsub.f32 1.0, %v11753
    %v11755 = vmul.f32 %v11752, %v11754
    %v11756 = vadd.f32 %v11752, %v11755
    %vm11757 = vweird.f32 %v11710
    %vm11758 = vweird.f32 %v11752
    %vm11759 = vmor %vm11757, %vm11758
    %v11760 = vsel %vm11759, %v11752, %v11756
    %v11761 = vand.u32 2147483647, %v11710
    %vm11762 = vcmp.eq.f32.partialorder %v11761, 8.507059e+37
    %v11763 = vand.u32 %v11710, 2147483648
    %v11764 = vor.u32 1.1754944e-38, %v11763
    %v11765 = vsel %vm11762, %v11764, %v11760
    %v11766 = vmul.f32 1.0, %v11765
    %v11767 = vrcp.pop %v11711
    %v11768 = vmul.f32 %v11711, %v11767
    %v11769 = vsub.f32 1.0, %v11768
    %v11770 = vmul.f32 %v11767, %v11769
    %v11771 = vadd.f32 %v11767, %v11770
    %vm11772 = vweird.f32 %v11711
    %vm11773 = vweird.f32 %v11767
    %vm11774 = vmor %vm11772, %vm11773
    %v11775 = vsel %vm11774, %v11767, %v11771
    %v11776 = vand.u32 2147483647, %v11711
    %vm11777 = vcmp.eq.f32.partialorder %v11776, 8.507059e+37
    %v11778 = vand.u32 %v11711, 2147483648
    %v11779 = vor.u32 1.1754944e-38, %v11778
    %v11780 = vsel %vm11777, %v11779, %v11775
    %v11781 = vmul.f32 1.0, %v11780
    %v11782 = vrcp.pop %v11712
    %v11783 = vmul.f32 %v11712, %v11782
    %v11784 = vsub.f32 1.0, %v11783
    %v11785 = vmul.f32 %v11782, %v11784
    %v11786 = vadd.f32 %v11782, %v11785
    %vm11787 = vweird.f32 %v11712
    %vm11788 = vweird.f32 %v11782
    %vm11789 = vmor %vm11787, %vm11788
    %v11790 = vsel %vm11789, %v11782, %v11786
    %v11791 = vand.u32 2147483647, %v11712
    %vm11792 = vcmp.eq.f32.partialorder %v11791, 8.507059e+37
    %v11793 = vand.u32 %v11712, 2147483648
    %v11794 = vor.u32 1.1754944e-38, %v11793
    %v11795 = vsel %vm11792, %v11794, %v11790
    %v11796 = vmul.f32 1.0, %v11795
    %v11797 = vrcp.pop %v11713
    %v11798 = vmul.f32 %v11713, %v11797
    %v11799 = vsub.f32 1.0, %v11798
    %v11800 = vmul.f32 %v11797, %v11799
    %v11801 = vadd.f32 %v11797, %v11800
    %vm11802 = vweird.f32 %v11713
    %vm11803 = vweird.f32 %v11797
    %vm11804 = vmor %vm11802, %vm11803
    %v11805 = vsel %vm11804, %v11797, %v11801
    %v11806 = vand.u32 2147483647, %v11713
    %vm11807 = vcmp.eq.f32.partialorder %v11806, 8.507059e+37
    %v11808 = vand.u32 %v11713, 2147483648
    %v11809 = vor.u32 1.1754944e-38, %v11808
    %v11810 = vsel %vm11807, %v11809, %v11805
    %v11811 = vmul.f32 1.0, %v11810
    %v11812 = vrcp.pop %v11714
    %v11813 = vmul.f32 %v11714, %v11812
    %v11814 = vsub.f32 1.0, %v11813
    %v11815 = vmul.f32 %v11812, %v11814
    %v11816 = vadd.f32 %v11812, %v11815
    %vm11817 = vweird.f32 %v11714
    %vm11818 = vweird.f32 %v11812
    %vm11819 = vmor %vm11817, %vm11818
    %v11820 = vsel %vm11819, %v11812, %v11816
    %v11821 = vand.u32 2147483647, %v11714
    %vm11822 = vcmp.eq.f32.partialorder %v11821, 8.507059e+37
    %v11823 = vand.u32 %v11714, 2147483648
    %v11824 = vor.u32 1.1754944e-38, %v11823
    %v11825 = vsel %vm11822, %v11824, %v11820
    %v11826 = vmul.f32 1.0, %v11825
    %v11827 = vrcp.pop %v11715
    %v11828 = vmul.f32 %v11715, %v11827
    %v11829 = vsub.f32 1.0, %v11828
    %v11830 = vmul.f32 %v11827, %v11829
    %v11831 = vadd.f32 %v11827, %v11830
    %vm11832 = vweird.f32 %v11715
    %vm11833 = vweird.f32 %v11827
    %vm11834 = vmor %vm11832, %vm11833
    %v11835 = vsel %vm11834, %v11827, %v11831
    %v11836 = vand.u32 2147483647, %v11715
    %vm11837 = vcmp.eq.f32.partialorder %v11836, 8.507059e+37
    %v11838 = vand.u32 %v11715, 2147483648
    %v11839 = vor.u32 1.1754944e-38, %v11838
    %v11840 = vsel %vm11837, %v11839, %v11835
    %v11841 = vmul.f32 1.0, %v11840
    %v11842 = vrcp.pop %v11716
    %v11843 = vmul.f32 %v11716, %v11842
    %v11844 = vsub.f32 1.0, %v11843
    %v11845 = vmul.f32 %v11842, %v11844
    %v11846 = vadd.f32 %v11842, %v11845
    %vm11847 = vweird.f32 %v11716
    %vm11848 = vweird.f32 %v11842
    %vm11849 = vmor %vm11847, %vm11848
    %v11850 = vsel %vm11849, %v11842, %v11846
    %v11851 = vand.u32 2147483647, %v11716
    %vm11852 = vcmp.eq.f32.partialorder %v11851, 8.507059e+37
    %v11853 = vand.u32 %v11716, 2147483648
    %v11854 = vor.u32 1.1754944e-38, %v11853
    %v11855 = vsel %vm11852, %v11854, %v11850
    %v11856 = vmul.f32 1.0, %v11855
    %v11857 = vrcp.pop %v11717
    %v11858 = vmul.f32 %v11717, %v11857
    %v11859 = vsub.f32 1.0, %v11858
    %v11860 = vmul.f32 %v11857, %v11859
    %v11861 = vadd.f32 %v11857, %v11860
    %vm11862 = vweird.f32 %v11717
    %vm11863 = vweird.f32 %v11857
    %vm11864 = vmor %vm11862, %vm11863
    %v11865 = vsel %vm11864, %v11857, %v11861
    %v11866 = vand.u32 2147483647, %v11717
    %vm11867 = vcmp.eq.f32.partialorder %v11866, 8.507059e+37
    %v11868 = vand.u32 %v11717, 2147483648
    %v11869 = vor.u32 1.1754944e-38, %v11868
    %v11870 = vsel %vm11867, %v11869, %v11865
    %v11871 = vmul.f32 1.0, %v11870
    %v11872 = vrcp.pop %v11718
    %v11873 = vmul.f32 %v11718, %v11872
    %v11874 = vsub.f32 1.0, %v11873
    %v11875 = vmul.f32 %v11872, %v11874
    %v11876 = vadd.f32 %v11872, %v11875
    %vm11877 = vweird.f32 %v11718
    %vm11878 = vweird.f32 %v11872
    %vm11879 = vmor %vm11877, %vm11878
    %v11880 = vsel %vm11879, %v11872, %v11876
    %v11881 = vand.u32 2147483647, %v11718
    %vm11882 = vcmp.eq.f32.partialorder %v11881, 8.507059e+37
    %v11883 = vand.u32 %v11718, 2147483648
    %v11884 = vor.u32 1.1754944e-38, %v11883
    %v11885 = vsel %vm11882, %v11884, %v11880
    %v11886 = vmul.f32 1.0, %v11885
    %v11887 = vrcp.pop %v11719
    %v11888 = vmul.f32 %v11719, %v11887
    %v11889 = vsub.f32 1.0, %v11888
    %v11890 = vmul.f32 %v11887, %v11889
    %v11891 = vadd.f32 %v11887, %v11890
    %vm11892 = vweird.f32 %v11719
    %vm11893 = vweird.f32 %v11887
    %vm11894 = vmor %vm11892, %vm11893
    %v11895 = vsel %vm11894, %v11887, %v11891
    %v11896 = vand.u32 2147483647, %v11719
    %vm11897 = vcmp.eq.f32.partialorder %v11896, 8.507059e+37
    %v11898 = vand.u32 %v11719, 2147483648
    %v11899 = vor.u32 1.1754944e-38, %v11898
    %v11900 = vsel %vm11897, %v11899, %v11895
    %v11901 = vmul.f32 1.0, %v11900
    %v11902 = vrcp.pop %v11720
    %v11903 = vmul.f32 %v11720, %v11902
    %v11904 = vsub.f32 1.0, %v11903
    %v11905 = vmul.f32 %v11902, %v11904
    %v11906 = vadd.f32 %v11902, %v11905
    %vm11907 = vweird.f32 %v11720
    %vm11908 = vweird.f32 %v11902
    %vm11909 = vmor %vm11907, %vm11908
    %v11910 = vsel %vm11909, %v11902, %v11906
    %v11911 = vand.u32 2147483647, %v11720
    %vm11912 = vcmp.eq.f32.partialorder %v11911, 8.507059e+37
    %v11913 = vand.u32 %v11720, 2147483648
    %v11914 = vor.u32 1.1754944e-38, %v11913
    %v11915 = vsel %vm11912, %v11914, %v11910
    %v11916 = vmul.f32 1.0, %v11915
    %v11917 = vrcp.pop %v11721
    %v11918 = vmul.f32 %v11721, %v11917
    %v11919 = vsub.f32 1.0, %v11918
    %v11920 = vmul.f32 %v11917, %v11919
    %v11921 = vadd.f32 %v11917, %v11920
    %vm11922 = vweird.f32 %v11721
    %vm11923 = vweird.f32 %v11917
    %vm11924 = vmor %vm11922, %vm11923
    %v11925 = vsel %vm11924, %v11917, %v11921
    %v11926 = vand.u32 2147483647, %v11721
    %vm11927 = vcmp.eq.f32.partialorder %v11926, 8.507059e+37
    %v11928 = vand.u32 %v11721, 2147483648
    %v11929 = vor.u32 1.1754944e-38, %v11928
    %v11930 = vsel %vm11927, %v11929, %v11925
    %v11931 = vmul.f32 1.0, %v11930
    %11932 = vst [vmem:[#allocation23] sm:$0xff] %v11736
    %11933 = vst [vmem:[#allocation23 + $0x8] sm:$0xff] %v11751
    %11934 = vst [vmem:[#allocation23 + $0x10] sm:$0xff] %v11766
    %11935 = vst [vmem:[#allocation23 + $0x18] sm:$0xff] %v11781
    %11936 = vst [vmem:[#allocation23 + $0x20] sm:$0xff] %v11796
    %11937 = vst [vmem:[#allocation23 + $0x28] sm:$0xff] %v11811
    %11938 = vst [vmem:[#allocation23 + $0x30] sm:$0xff] %v11826
    %11939 = vst [vmem:[#allocation23 + $0x38] sm:$0xff] %v11841
    %11940 = vst [vmem:[#allocation23 + $0x40] sm:$0xff] %v11856
    %11941 = vst [vmem:[#allocation23 + $0x48] sm:$0xff] %v11871
    %11942 = vst [vmem:[#allocation23 + $0x50] sm:$0xff] %v11886
    %11943 = vst [vmem:[#allocation23 + $0x58] sm:$0xff] %v11901
    %11944 = vst [vmem:[#allocation23 + $0x60] sm:$0xff] %v11916
    %11945 = vst [vmem:[#allocation23 + $0x68] sm:$0xff] %v11931
    %11946 = vst [vmem:[#allocation24] sm:$0xff] %v6084
    %11947 = vst [vmem:[#allocation24 + $0x8] sm:$0xff] %v6086
    %11948 = vst [vmem:[#allocation26] sm:$0xff] %v6182
    %11949 = vst [vmem:[#allocation26 + $0x8] sm:$0xff] %v6184
    // Predicated region
    $region106: #{tpu_custom_call.1} parent=1 // pred_check
      _
    $region107: #{tpu_custom_call.1} parent=1 // pred_check_branch
      %11951 = sbr.rel (0) target = $region109
    $region108: #{tpu_custom_call.1} parent=1 // pred_region
      %11953 = vsyncadd [#allocation4], 0
      %s11954 = sshll.u32 [#allocation23], 4
      %s11955 = int_to_ptr.vmem [resolvable:$true] %s11954
      %s11956 = sshll.u32 %s13, 4
      %s11957 = int_to_ptr.hbm [resolvable:$true] %s11956
      %11962 = dma.vmem_to_hbm [thread:$0]  %s11955, 1792, %s11957, [#allocation4], 896, 896, 56
    $region109: #{tpu_custom_call.1} parent=1 // pred_fallthru
      _
    // Predicated region
    $region110: #{tpu_custom_call.1} parent=1 // pred_check
      _
    $region111: #{tpu_custom_call.1} parent=1 // pred_check_branch
      %11964 = sbr.rel (0) target = $region113
    $region112: #{tpu_custom_call.1} parent=1 // pred_region
      %11966 = vsyncadd [#allocation25], 0
      %s11967 = sshll.u32 [#allocation24], 4
      %s11968 = int_to_ptr.vmem [resolvable:$true] %s11967
      %s11969 = sshll.u32 %s14, 4
      %s11970 = int_to_ptr.hbm [resolvable:$true] %s11969
      %11975 = dma.vmem_to_hbm [thread:$0]  %s11968, 256, %s11970, [#allocation25], 128, 128, 8
    $region113: #{tpu_custom_call.1} parent=1 // pred_fallthru
      _
    // Predicated region
    $region114: #{tpu_custom_call.1} parent=1 // pred_check
      _
    $region115: #{tpu_custom_call.1} parent=1 // pred_check_branch
      %11977 = sbr.rel (0) target = $region117
    $region116: #{tpu_custom_call.1} parent=1 // pred_region
      %11979 = vsyncadd [#allocation25], 0
      %s11980 = sshll.u32 [#allocation26], 4
      %s11981 = int_to_ptr.vmem [resolvable:$true] %s11980
      %s11982 = sshll.u32 %s15, 4
      %s11983 = int_to_ptr.hbm [resolvable:$true] %s11982
      %11988 = dma.vmem_to_hbm [thread:$0]  %s11981, 256, %s11983, [#allocation25], 128, 128, 8
    $region117: #{tpu_custom_call.1} parent=1 // pred_fallthru
      _
    // Predicated region
    $region118: #{tpu_custom_call.1} parent=1 // pred_check
      _
    $region119: #{tpu_custom_call.1} parent=1 // pred_check_branch
      %11990 = sbr.rel (0) target = $region121
    $region120: #{tpu_custom_call.1} parent=1 // pred_region
      %11992 = dma.done [#allocation4], 1792
    $region121: #{tpu_custom_call.1} parent=1 // pred_fallthru
      _
    // Predicated region
    $region122: #{tpu_custom_call.1} parent=1 // pred_check
      _
    $region123: #{tpu_custom_call.1} parent=1 // pred_check_branch
      %11994 = sbr.rel (0) target = $region125
    $region124: #{tpu_custom_call.1} parent=1 // pred_region
      %11996 = dma.done [#allocation25], 256
    $region125: #{tpu_custom_call.1} parent=1 // pred_fallthru
      _
    // Predicated region
    $region126: #{tpu_custom_call.1} parent=1 // pred_check
      _
    $region127: #{tpu_custom_call.1} parent=1 // pred_check_branch
      %11998 = sbr.rel (0) target = $region129
    $region128: #{tpu_custom_call.1} parent=1 // pred_region
      %12000 = dma.done [#allocation25], 256
    $region129: #{tpu_custom_call.1} parent=1 // pred_fallthru
      _
    %12001 = vsyncpa [#allocation3], 1
    %12002 = vsyncpa [#allocation6], 1
    %12003 = vsyncpa [#allocation9], 1
    %12004 = vsyncpa [#allocation12], 1
    %12005 = vsyncpa [#allocation15], 1
    %12006 = vsyncpa [#allocation18], 1
    %12007 = vsyncpa [#allocation21], 1
    %12008 = vsyncpa [#allocation4], 1
    %12009 = vsyncpa [#allocation25], 1

</llo_original>
